<compile_context>
chip_gen: v7x
topology: tpu7x:2x2x1
jax: 0.10.0
libtpu: 0.0.40
codegen_flags: <defaults>
</compile_context>

<pallas_src>
import functools

import jax
import jax.numpy as jnp
from jax import lax
from jax.experimental import pallas as pl
from jax.experimental.pallas import tpu as pltpu


# ----------------------------------------------------------------------------
# Fused kernel
# ----------------------------------------------------------------------------
def _fused_bottleneck_kernel(xpad_ref, w1_ref, b1_ref, w2_ref, b2_ref,
                             w3_ref, b3_ref, o_ref, *,
                             add_residual, mxu_dtype, dw_dtype, lane_dense):
    _, Hp, Wpad, Cin = xpad_ref.shape      # padded input block (full image)
    mid = w1_ref.shape[1]
    Cout = w3_ref.shape[1]
    if lane_dense:
        _, th, WC = o_ref.shape            # lane-dense output tile (th, W*Cout)
        W = WC // Cout
    else:
        _, th, W, _ = o_ref.shape
    H = Hp - 2                             # valid (unpadded) height
    Wd = Wpad - 8                          # aligned working width (mult. of 8, >= W)
    th_in = th + 2                         # input rows incl. 1-row halo

    r0 = pl.multiple_of(pl.program_id(1) * th, th)   # top padded row of this tile

    # ---- (th+2)-row input window (with halo), stays in VMEM --------------------
    xin = xpad_ref[0, pl.ds(r0, th_in), :, :]                 # (th_in, Wpad, Cin)

    # ---- conv1: 1x1 expand on the MXU (BN1 scale pre-folded into w1) + ReLU6 ---
    h1 = jnp.dot(xin.reshape(th_in * Wpad, Cin).astype(mxu_dtype), w1_ref[...],
                 preferred_element_type=jnp.float32)          # (th_in*Wpad, mid)
    h1 = jnp.clip(h1 + b1_ref[...], 0.0, 6.0).reshape(th_in, Wpad, mid)

    # Spatial zero-padding entering the depthwise must be exactly 0 in h1
    # (bias + ReLU6 of a padded zero is clip(b1,0,6), not 0) -> mask the halo.
    row = r0 + lax.broadcasted_iota(jnp.int32, (th_in, Wpad, 1), 0)
    col = lax.broadcasted_iota(jnp.int32, (th_in, Wpad, 1), 1)
    interior = (row >= 1) & (row <= H) & (col >= 1) & (col <= W)
    h1 = jnp.where(interior, h1, 0.0).astype(dw_dtype)        # bf16 on v6e/v7x

    # ---- conv2: 3x3 depthwise on the VPU (BN2 scale folded into w2) + ReLU6 ----
    # The three kw-shifted views are hoisted out of the kh loop: 3 sublane
    # shifts instead of 9; rows are then sliced on the (free) leading dim.
    w2 = w2_ref[...]                                          # (3, 3, mid)
    h1_sh = [h1[:, kw:kw + Wd, :] for kw in range(3)]         # each (th_in, Wd, mid)
    acc = jnp.zeros((th, Wd, mid), jnp.float32)               # f32 accumulation
    for kh in range(3):
        for kw in range(3):
            acc = acc + h1_sh[kw][kh:kh + th] * w2[kh, kw, :]
    h2 = jnp.clip(acc + b2_ref[...], 0.0, 6.0)                # (th, Wd, mid) f32

    # ---- conv3: 1x1 project on the MXU (BN3 scale folded into w3) (+residual) --
    out = jnp.dot(h2.reshape(th * Wd, mid).astype(mxu_dtype), w3_ref[...],
                  preferred_element_type=jnp.float32)         # (th*Wd, Cout)
    out = (out + b3_ref[...]).reshape(th, Wd, Cout)[:, :W, :]
    if add_residual:
        out = out + xin[1:th + 1, 1:W + 1, :].astype(jnp.float32)

    out = out.astype(o_ref.dtype)
    if lane_dense:
        # Lane-dense store: trailing dim W*Cout instead of Cout avoids masked
        # partial stores (largest single measured lever per review).
        o_ref[0] = out.reshape(th, W * Cout)
    else:
        o_ref[0] = out


# ----------------------------------------------------------------------------
# Hardware queries / tiling heuristics
# ----------------------------------------------------------------------------
def _round_up(x, m):
    return ((x + m - 1) // m) * m


@functools.lru_cache(maxsize=None)
def _vmem_capacity_bytes():
    try:
        cap = int(pltpu.get_tpu_info().vmem_capacity_bytes)
        if cap > 0:
            return cap
    except Exception:
        pass
    return 64 * 1024 * 1024          # conservative (v7x-sized) fallback


@functools.lru_cache(maxsize=None)
def _vpu_supports_bf16():
    """v6e (Trillium) and newer have a bf16 VALU; v2-v5 do not."""
    try:
        kind = jax.devices()[0].device_kind.lower()
    except Exception:
        return False
    return not any(v in kind for v in ("v2", "v3", "v4", "v5"))


def _pick_block_rows(N, H, W, Wpad, Cin, mid, Cout, x_bytes, dw_bytes,
                     budget_bytes):
    """Largest legal output-row tile whose VMEM estimate fits the budget.

    A legal tile divides H and (for the lane-dense out_spec) is a multiple of 8
    or equal to H.  The estimate accounts for lane padding (channel dims pad to
    128 lanes) and all resident buffers, not just the expanded h1 tile.
    """
    Wd = Wpad - 8
    lane = lambda c: _round_up(c, 128)
    sub = lambda r: _round_up(max(r, 1), 8)

    def est(th):
        th_in = th + 2
        b = 2 * (H + 2) * Wpad * lane(Cin) * x_bytes            # input block (x2 buf)
        b += 2 * sub(th) * lane(W * Cout) * x_bytes             # output tile (x2 buf)
        b += 2 * (sub(Cin) * lane(mid) + sub(mid) * lane(Cout)) * 2   # w1, w3
        b += 2 * 3 * sub(3) * lane(mid) * dw_bytes              # w2
        b += 2 * 3 * sub(1) * lane(max(mid, Cout)) * 4          # biases
        b += th_in * Wpad * lane(mid) * 4                       # h1 (f32 epilogue)
        b += 3 * th_in * Wd * lane(mid) * dw_bytes              # hoisted kw shifts
        b += th * Wd * lane(mid) * 4                            # depthwise acc / h2
        b += th * Wd * lane(mid) * 2                            # h2 cast for MXU
        b += th * Wd * lane(Cout) * 4                           # conv3 f32 result
        return b

    cands = [t for t in range(1, H + 1)
             if H % t == 0 and (t % 8 == 0 or t == H)]
    if N == 1:
        multi = [t for t in cands if H // t >= 2]   # keep both v7x TCs busy
        cands = multi or cands
    th = min(cands)
    for t in sorted(cands):
        if est(t) <= budget_bytes:
            th = t
    return th


# ----------------------------------------------------------------------------
# Wrappers
# ----------------------------------------------------------------------------
def linear_bottleneck_nhwc(x, params, *, stride=1, mxu_dtype=jnp.bfloat16,
                           dw_dtype=None, block_rows=None):
    """Fused LinearBottleneck forward, NHWC in / NHWC out.

    Output dtype == input dtype, so stacked blocks can keep bf16 channels-last
    activations and only convert at the model edges.
    """
    N, H, W, Cin = x.shape
    mid = params["w1"].shape[1]
    Cout = params["w3"].shape[1]
    add_residual = (stride == 1 and Cin == Cout)

    if dw_dtype is None:
        dw_dtype = (jnp.bfloat16
                    if (mxu_dtype == jnp.bfloat16 and _vpu_supports_bf16())
                    else jnp.float32)

    # Lane/sublane-friendly padded widths (in-kernel matmul reshapes stay trivial).
    Wd = _round_up(W, 8)
    Wpad = Wd + 8
    Hp = H + 2

    vmem_limit = int(_vmem_capacity_bytes() * 3 // 4)     # HW-derived, leaves headroom
    budget = max(2 * 1024 * 1024, (vmem_limit * 3) // 5)
    th = block_rows if block_rows is not None else _pick_block_rows(
        N, H, W, Wpad, Cin, mid, Cout,
        x_bytes=jnp.dtype(x.dtype).itemsize,
        dw_bytes=jnp.dtype(dw_dtype).itemsize,
        budget_bytes=budget)
    assert H % th == 0, "block_rows must divide H"

    # Only the small Cin-channel input gets a 1-px halo (+ alignment) pad; the
    # t*-expanded intermediate never touches HBM and is never padded.
    # TODO(synk): window the input to (th+2) rows (Element-mode row index_map or
    # manual make_async_copy) so resident VMEM is O(th), not O(H), for
    # 112x112-class layers on v7x's 64 MiB VMEM.
    xpad = jnp.pad(x, ((0, 0), (1, 1), (1, Wpad - W - 1), (0, 0)))

    # BN scales folded into the conv weights in f32, THEN cast (avoids
    # compounding bf16 rounding of weight*scale); the kernel only adds biases.
    w1 = (params["w1"] * params["s1"][None, :]).astype(mxu_dtype)       # (Cin, mid)
    w2 = (params["w2"] * params["s2"][None, None, :]).astype(dw_dtype)  # (3, 3, mid)
    w3 = (params["w3"] * params["s3"][None, :]).astype(mxu_dtype)       # (mid, Cout)
    b1 = params["b1"].reshape(1, mid).astype(jnp.float32)
    b2 = params["b2"].reshape(1, mid).astype(jnp.float32)
    b3 = params["b3"].reshape(1, Cout).astype(jnp.float32)

    def run(lane_dense):
        kernel = functools.partial(_fused_bottleneck_kernel,
                                   add_residual=add_residual,
                                   mxu_dtype=mxu_dtype, dw_dtype=dw_dtype,
                                   lane_dense=lane_dense)
        if lane_dense:
            out_shape = jax.ShapeDtypeStruct((N, H, W * Cout), x.dtype)
            out_spec = pl.BlockSpec((1, th, W * Cout), lambda n, r: (n, r, 0))
        else:
            out_shape = jax.ShapeDtypeStruct((N, H, W, Cout), x.dtype)
            out_spec = pl.BlockSpec((1, th, W, Cout), lambda n, r: (n, r, 0, 0))
        # TODO(synk): pipeline_mode=pl.Buffered(1) on the constant-index inputs
        # (image block, weights, biases) would drop their second VMEM buffer on
        # the 64 MiB v7x part.
        out = pl.pallas_call(
            kernel,
            out_shape=out_shape,
            grid_spec=pltpu.PrefetchScalarGridSpec(
                num_scalar_prefetch=0,
                grid=(N, H // th),
                in_specs=[
                    # Full padded image per batch element: block index constant
                    # over the row-tile axis, DMA'd once per n and reused.
                    pl.BlockSpec((1, Hp, Wpad, Cin), lambda n, r: (n, 0, 0, 0)),
                    pl.BlockSpec((Cin, mid), lambda n, r: (0, 0)),
                    pl.BlockSpec((1, mid), lambda n, r: (0, 0)),
                    pl.BlockSpec((3, 3, mid), lambda n, r: (0, 0, 0)),
                    pl.BlockSpec((1, mid), lambda n, r: (0, 0)),
                    pl.BlockSpec((mid, Cout), lambda n, r: (0, 0)),
                    pl.BlockSpec((1, Cout), lambda n, r: (0, 0)),
                ],
                out_specs=out_spec,
            ),
            compiler_params=pltpu.CompilerParams(
                dimension_semantics=("parallel", "parallel"),
                vmem_limit_bytes=vmem_limit,
            ),
        )(xpad, w1, b1, w2, b2, w3, b3)
        return jax.block_until_ready(out).reshape(N, H, W, Cout)

    try:
        out = run(lane_dense=True)       # preferred: lane-dense output store
    except Exception:
        out = run(lane_dense=False)      # fallback if the merge-reshape is rejected

    if stride > 1:
        # Stride-s depthwise (pad=1, k=3) == stride-1 result subsampled by s.
        # TODO(synk): native in-kernel stride-2 (parity-split columns) would cut
        # the ~4x depthwise/conv3 over-compute and full-res output writeback.
        out = out[:, ::stride, ::stride, :]
    return out


def linear_bottleneck(x_nchw, params, *, stride=1, mxu_dtype=jnp.bfloat16,
                      dw_dtype=None):
    """PyTorch-layout (NCHW) convenience wrapper.

    When stacking bottleneck blocks, call linear_bottleneck_nhwc directly and
    keep activations channels-last (bf16); transpose only at the model edges.
    """
    x = jnp.transpose(x_nchw, (0, 2, 3, 1))
    out = linear_bottleneck_nhwc(x, params, stride=stride, mxu_dtype=mxu_dtype,
                                 dw_dtype=dw_dtype)
    return jnp.transpose(out, (0, 3, 1, 2))


# ----------------------------------------------------------------------------
# Parameter construction + plain-JAX (XLA) reference
# ----------------------------------------------------------------------------
def make_torch_params(key, inplanes, outplanes, t):
    mid = inplanes * t
    ks = jax.random.split(key, 15)
    return {
        "w1": 0.1 * jax.random.normal(ks[0], (mid, inplanes, 1, 1), jnp.float32),
        "w2": 0.1 * jax.random.normal(ks[1], (mid, 1, 3, 3), jnp.float32),
        "w3": 0.1 * jax.random.normal(ks[2], (outplanes, mid, 1, 1), jnp.float32),
        "g1": 1.0 + 0.1 * jax.random.normal(ks[3], (mid,), jnp.float32),
        "be1": 0.1 * jax.random.normal(ks[4], (mid,), jnp.float32),
        "m1": 0.1 * jax.random.normal(ks[5], (mid,), jnp.float32),
        "v1": 1.0 + 0.1 * jax.random.uniform(ks[6], (mid,), jnp.float32),
        "g2": 1.0 + 0.1 * jax.random.normal(ks[7], (mid,), jnp.float32),
        "be2": 0.1 * jax.random.normal(ks[8], (mid,), jnp.float32),
        "m2": 0.1 * jax.random.normal(ks[9], (mid,), jnp.float32),
        "v2": 1.0 + 0.1 * jax.random.uniform(ks[10], (mid,), jnp.float32),
        "g3": 1.0 + 0.1 * jax.random.normal(ks[11], (outplanes,), jnp.float32),
        "be3": 0.1 * jax.random.normal(ks[12], (outplanes,), jnp.float32),
        "m3": 0.1 * jax.random.normal(ks[13], (outplanes,), jnp.float32),
        "v3": 1.0 + 0.1 * jax.random.uniform(ks[14], (outplanes,), jnp.float32),
    }


def fold_params(pt, eps=1e-5):
    def fold(g, b, m, v):
        s = g / jnp.sqrt(v + eps)
        return s, b - m * s
    s1, b1 = fold(pt["g1"], pt["be1"], pt["m1"], pt["v1"])
    s2, b2 = fold(pt["g2"], pt["be2"], pt["m2"], pt["v2"])
    s3, b3 = fold(pt["g3"], pt["be3"], pt["m3"], pt["v3"])
    return {
        "w1": jnp.transpose(pt["w1"][:, :, 0, 0], (1, 0)),     # (Cin, mid)
        "w2": jnp.transpose(pt["w2"][:, 0, :, :], (1, 2, 0)),  # (3, 3, mid)
        "w3": jnp.transpose(pt["w3"][:, :, 0, 0], (1, 0)),     # (mid, Cout)
        "s1": s1, "b1": b1, "s2": s2, "b2": b2, "s3": s3, "b3": b3,
    }


def _ref_forward(x, pt, *, stride, inplanes, outplanes, mid, eps=1e-5):
    def bn(y, g, b, m, v):
        g, b, m, v = (a[None, :, None, None] for a in (g, b, m, v))
        return (y - m) / jnp.sqrt(v + eps) * g + b

    dn = ("NCHW", "OIHW", "NCHW")
    out = lax.conv_general_dilated(x, pt["w1"], (1, 1), "VALID", dimension_numbers=dn)
    out = jnp.clip(bn(out, pt["g1"], pt["be1"], pt["m1"], pt["v1"]), 0, 6)
    out = lax.conv_general_dilated(out, pt["w2"], (stride, stride), ((1, 1), (1, 1)),
                                   dimension_numbers=dn, feature_group_count=mid)
    out = jnp.clip(bn(out, pt["g2"], pt["be2"], pt["m2"], pt["v2"]), 0, 6)
    out = lax.conv_general_dilated(out, pt["w3"], (1, 1), "VALID", dimension_numbers=dn)
    out = bn(out, pt["g3"], pt["be3"], pt["m3"], pt["v3"])
    if stride == 1 and inplanes == outplanes:
        out = out + x
    return out


if __name__ == "__main__":
    N, H, W = 2, 16, 16
    key = jax.random.PRNGKey(0)
    k_x, k_p1, k_p2 = jax.random.split(key, 3)

    # ---------------- Case 1: stride=1, inplanes == outplanes (residual) -------
    inplanes, outplanes, t, stride = 4, 4, 6, 1
    mid = inplanes * t
    x = jax.random.normal(k_x, (N, inplanes, H, W), jnp.float32)
    pt = make_torch_params(k_p1, inplanes, outplanes, t)
    params = fold_params(pt)
    ref = _ref_forward(x, pt, stride=stride, inplanes=inplanes,
                       outplanes=outplanes, mid=mid)

    # Exact-semantics check (f32 matmul + f32 depthwise).
    out_f32 = jax.block_until_ready(
        linear_bottleneck(x, params, stride=stride, mxu_dtype=jnp.float32))
    assert out_f32.shape == ref.shape == (N, outplanes, H, W)
    assert jnp.allclose(out_f32, ref, atol=1e-4, rtol=1e-4), \
        float(jnp.max(jnp.abs(out_f32 - ref)))

    # Optimized default: bf16 MXU operands (+ bf16 depthwise on bf16-VPU chips).
    out_bf16 = jax.block_until_ready(linear_bottleneck(x, params, stride=stride))
    assert jnp.allclose(out_bf16, ref, atol=1.5e-1, rtol=1e-1), \
        float(jnp.max(jnp.abs(out_bf16 - ref)))

    # ---------------- Case 2: stride=2, channel-changing projection ------------
    inplanes2, outplanes2, t2, stride2 = 4, 8, 6, 2
    mid2 = inplanes2 * t2
    x2 = jax.random.normal(jax.random.fold_in(k_x, 1), (N, inplanes2, H, W),
                           jnp.float32)
    pt2 = make_torch_params(k_p2, inplanes2, outplanes2, t2)
    params2 = fold_params(pt2)
    ref2 = _ref_forward(x2, pt2, stride=stride2, inplanes=inplanes2,
                        outplanes=outplanes2, mid=mid2)
    out2 = jax.block_until_ready(
        linear_bottleneck(x2, params2, stride=stride2, mxu_dtype=jnp.float32))
    assert out2.shape == ref2.shape == (N, outplanes2, H // 2, W // 2)
    assert jnp.allclose(out2, ref2, atol=1e-4, rtol=1e-4), \
        float(jnp.max(jnp.abs(out2 - ref2)))

    print("KERNEL_OK")
</pallas_src>

<mosaic_0001>
module attributes {stable_mosaic.version = 11 : i64} {
  func.func @_fused_bottleneck_kernel(%arg0: i32, %arg1: i32, %arg2: memref<1x18x24x4xf32, #tpu.memory_space<vmem>>, %arg3: memref<4x24xf32, #tpu.memory_space<vmem>>, %arg4: memref<1x24xf32, #tpu.memory_space<vmem>>, %arg5: memref<3x3x24xf32, #tpu.memory_space<vmem>>, %arg6: memref<1x24xf32, #tpu.memory_space<vmem>>, %arg7: memref<24x4xf32, #tpu.memory_space<vmem>>, %arg8: memref<1x4xf32, #tpu.memory_space<vmem>>, %arg9: memref<1x16x64xf32, #tpu.memory_space<vmem>>) attributes {dimension_semantics = [#tpu.dimension_semantics<parallel>, #tpu.dimension_semantics<parallel>], iteration_bounds = array<i64: 2, 1>, scalar_prefetch = 0 : i64, scratch_operands = 0 : i64, tpu.core_type = #tpu.core_type<tc>, window_params = [{transform_indices = @transform_0, window_bounds = array<i64: 1, 18, 24, 4>}, {pipeline_mode = #tpu.pipeline_mode<synchronous>, transform_indices = @transform_1, window_bounds = array<i64: 4, 24>}, {pipeline_mode = #tpu.pipeline_mode<synchronous>, transform_indices = @transform_2, window_bounds = array<i64: 1, 24>}, {pipeline_mode = #tpu.pipeline_mode<synchronous>, transform_indices = @transform_3, window_bounds = array<i64: 3, 3, 24>}, {pipeline_mode = #tpu.pipeline_mode<synchronous>, transform_indices = @transform_4, window_bounds = array<i64: 1, 24>}, {pipeline_mode = #tpu.pipeline_mode<synchronous>, transform_indices = @transform_5, window_bounds = array<i64: 24, 4>}, {pipeline_mode = #tpu.pipeline_mode<synchronous>, transform_indices = @transform_6, window_bounds = array<i64: 1, 4>}, {transform_indices = @transform_7, window_bounds = array<i64: 1, 16, 64>}]} {
    %c16_i32 = arith.constant 16 : i32
    %0 = arith.muli %arg1, %c16_i32 : i32
    %1 = tpu.assume_multiple %0, 16 : i32
    %c0 = arith.constant 0 : index
    %2 = arith.index_cast %1 : i32 to index
    %c0_0 = arith.constant 0 : index
    %c0_1 = arith.constant 0 : index
    %3 = vector.load %arg2[%c0, %2, %c0_0, %c0_1] : memref<1x18x24x4xf32, #tpu.memory_space<vmem>>, vector<1x18x24x4xf32>
    %4 = vector.shape_cast %3 : vector<1x18x24x4xf32> to vector<18x24x4xf32>
    %5 = vector.shape_cast %4 : vector<18x24x4xf32> to vector<432x4xf32>
    %c0_2 = arith.constant 0 : index
    %c0_3 = arith.constant 0 : index
    %6 = vector.load %arg3[%c0_2, %c0_3] : memref<4x24xf32, #tpu.memory_space<vmem>>, vector<4x24xf32>
    %cst = arith.constant dense<0.000000e+00> : vector<432x24xf32>
    %7 = tpu.matmul %5, %6, %cst {dimension_numbers = #tpu.dot_dimension_numbers<[1], [0], [0], [1], [0, 0, 1, 1], [], []>} : vector<432x4xf32>, vector<4x24xf32>, vector<432x24xf32> -> vector<432x24xf32>
    %c0_4 = arith.constant 0 : index
    %c0_5 = arith.constant 0 : index
    %8 = vector.load %arg4[%c0_4, %c0_5] : memref<1x24xf32, #tpu.memory_space<vmem>>, vector<1x24xf32>
    %9 = vector.broadcast %8 : vector<1x24xf32> to vector<432x24xf32>
    %10 = arith.addf %7, %9 : vector<432x24xf32>
    %cst_6 = arith.constant 0.000000e+00 : f32
    %cst_7 = arith.constant 6.000000e+00 : f32
    %11 = vector.broadcast %cst_6 : f32 to vector<432x24xf32>
    %12 = arith.maximumf %11, %10 : vector<432x24xf32>
    %13 = vector.broadcast %cst_7 : f32 to vector<432x24xf32>
    %14 = arith.minimumf %13, %12 : vector<432x24xf32>
    %15 = vector.shape_cast %14 : vector<432x24xf32> to vector<18x24x24xf32>
    %16 = tpu.iota {dimensions = array<i32: 0>} : vector<18x24x1xi32>
    %17 = vector.broadcast %1 : i32 to vector<18x24x1xi32>
    %18 = arith.addi %17, %16 : vector<18x24x1xi32>
    %19 = tpu.iota {dimensions = array<i32: 1>} : vector<18x24x1xi32>
    %c1_i32 = arith.constant 1 : i32
    %20 = vector.broadcast %c1_i32 : i32 to vector<18x24x1xi32>
    %21 = arith.cmpi sge, %18, %20 : vector<18x24x1xi32>
    %c16_i32_8 = arith.constant 16 : i32
    %22 = vector.broadcast %c16_i32_8 : i32 to vector<18x24x1xi32>
    %23 = arith.cmpi sle, %18, %22 : vector<18x24x1xi32>
    %24 = arith.andi %21, %23 : vector<18x24x1xi1>
    %c1_i32_9 = arith.constant 1 : i32
    %25 = vector.broadcast %c1_i32_9 : i32 to vector<18x24x1xi32>
    %26 = arith.cmpi sge, %19, %25 : vector<18x24x1xi32>
    %27 = arith.andi %24, %26 : vector<18x24x1xi1>
    %c16_i32_10 = arith.constant 16 : i32
    %28 = vector.broadcast %c16_i32_10 : i32 to vector<18x24x1xi32>
    %29 = arith.cmpi sle, %19, %28 : vector<18x24x1xi32>
    %30 = arith.andi %27, %29 : vector<18x24x1xi1>
    %cst_11 = arith.constant 0.000000e+00 : f32
    %31 = vector.shape_cast %30 : vector<18x24x1xi1> to vector<18x24x1xi1>
    %32 = vector.broadcast %31 : vector<18x24x1xi1> to vector<18x24x24xi1>
    %33 = vector.broadcast %cst_11 : f32 to vector<18x24x24xf32>
    %34 = arith.select %32, %15, %33 : vector<18x24x24xi1>, vector<18x24x24xf32>
    %c0_12 = arith.constant 0 : index
    %c0_13 = arith.constant 0 : index
    %c0_14 = arith.constant 0 : index
    %35 = vector.load %arg5[%c0_12, %c0_13, %c0_14] : memref<3x3x24xf32, #tpu.memory_space<vmem>>, vector<3x3x24xf32>
    %36 = vector.extract_strided_slice %34 {offsets = [0, 0, 0], sizes = [18, 16, 24], strides = [1, 1, 1]} : vector<18x24x24xf32> to vector<18x16x24xf32>
    %37 = vector.extract_strided_slice %34 {offsets = [0, 1, 0], sizes = [18, 16, 24], strides = [1, 1, 1]} : vector<18x24x24xf32> to vector<18x16x24xf32>
    %38 = vector.extract_strided_slice %34 {offsets = [0, 2, 0], sizes = [18, 16, 24], strides = [1, 1, 1]} : vector<18x24x24xf32> to vector<18x16x24xf32>
    %cst_15 = arith.constant 0.000000e+00 : f32
    %39 = vector.broadcast %cst_15 : f32 to vector<16x16x24xf32>
    %40 = vector.extract_strided_slice %36 {offsets = [0, 0, 0], sizes = [16, 16, 24], strides = [1, 1, 1]} : vector<18x16x24xf32> to vector<16x16x24xf32>
    %41 = vector.extract_strided_slice %35 {offsets = [0, 0, 0], sizes = [1, 1, 24], strides = [1, 1, 1]} : vector<3x3x24xf32> to vector<1x1x24xf32>
    %42 = vector.shape_cast %41 : vector<1x1x24xf32> to vector<24xf32>
    %43 = vector.shape_cast %42 : vector<24xf32> to vector<1x1x24xf32>
    %44 = vector.broadcast %43 : vector<1x1x24xf32> to vector<16x16x24xf32>
    %45 = arith.mulf %40, %44 : vector<16x16x24xf32>
    %46 = arith.addf %39, %45 : vector<16x16x24xf32>
    %47 = vector.extract_strided_slice %37 {offsets = [0, 0, 0], sizes = [16, 16, 24], strides = [1, 1, 1]} : vector<18x16x24xf32> to vector<16x16x24xf32>
    %48 = vector.extract_strided_slice %35 {offsets = [0, 1, 0], sizes = [1, 1, 24], strides = [1, 1, 1]} : vector<3x3x24xf32> to vector<1x1x24xf32>
    %49 = vector.shape_cast %48 : vector<1x1x24xf32> to vector<24xf32>
    %50 = vector.shape_cast %49 : vector<24xf32> to vector<1x1x24xf32>
    %51 = vector.broadcast %50 : vector<1x1x24xf32> to vector<16x16x24xf32>
    %52 = arith.mulf %47, %51 : vector<16x16x24xf32>
    %53 = arith.addf %46, %52 : vector<16x16x24xf32>
    %54 = vector.extract_strided_slice %38 {offsets = [0, 0, 0], sizes = [16, 16, 24], strides = [1, 1, 1]} : vector<18x16x24xf32> to vector<16x16x24xf32>
    %55 = vector.extract_strided_slice %35 {offsets = [0, 2, 0], sizes = [1, 1, 24], strides = [1, 1, 1]} : vector<3x3x24xf32> to vector<1x1x24xf32>
    %56 = vector.shape_cast %55 : vector<1x1x24xf32> to vector<24xf32>
    %57 = vector.shape_cast %56 : vector<24xf32> to vector<1x1x24xf32>
    %58 = vector.broadcast %57 : vector<1x1x24xf32> to vector<16x16x24xf32>
    %59 = arith.mulf %54, %58 : vector<16x16x24xf32>
    %60 = arith.addf %53, %59 : vector<16x16x24xf32>
    %61 = vector.extract_strided_slice %36 {offsets = [1, 0, 0], sizes = [16, 16, 24], strides = [1, 1, 1]} : vector<18x16x24xf32> to vector<16x16x24xf32>
    %62 = vector.extract_strided_slice %35 {offsets = [1, 0, 0], sizes = [1, 1, 24], strides = [1, 1, 1]} : vector<3x3x24xf32> to vector<1x1x24xf32>
    %63 = vector.shape_cast %62 : vector<1x1x24xf32> to vector<24xf32>
    %64 = vector.shape_cast %63 : vector<24xf32> to vector<1x1x24xf32>
    %65 = vector.broadcast %64 : vector<1x1x24xf32> to vector<16x16x24xf32>
    %66 = arith.mulf %61, %65 : vector<16x16x24xf32>
    %67 = arith.addf %60, %66 : vector<16x16x24xf32>
    %68 = vector.extract_strided_slice %37 {offsets = [1, 0, 0], sizes = [16, 16, 24], strides = [1, 1, 1]} : vector<18x16x24xf32> to vector<16x16x24xf32>
    %69 = vector.extract_strided_slice %35 {offsets = [1, 1, 0], sizes = [1, 1, 24], strides = [1, 1, 1]} : vector<3x3x24xf32> to vector<1x1x24xf32>
    %70 = vector.shape_cast %69 : vector<1x1x24xf32> to vector<24xf32>
    %71 = vector.shape_cast %70 : vector<24xf32> to vector<1x1x24xf32>
    %72 = vector.broadcast %71 : vector<1x1x24xf32> to vector<16x16x24xf32>
    %73 = arith.mulf %68, %72 : vector<16x16x24xf32>
    %74 = arith.addf %67, %73 : vector<16x16x24xf32>
    %75 = vector.extract_strided_slice %38 {offsets = [1, 0, 0], sizes = [16, 16, 24], strides = [1, 1, 1]} : vector<18x16x24xf32> to vector<16x16x24xf32>
    %76 = vector.extract_strided_slice %35 {offsets = [1, 2, 0], sizes = [1, 1, 24], strides = [1, 1, 1]} : vector<3x3x24xf32> to vector<1x1x24xf32>
    %77 = vector.shape_cast %76 : vector<1x1x24xf32> to vector<24xf32>
    %78 = vector.shape_cast %77 : vector<24xf32> to vector<1x1x24xf32>
    %79 = vector.broadcast %78 : vector<1x1x24xf32> to vector<16x16x24xf32>
    %80 = arith.mulf %75, %79 : vector<16x16x24xf32>
    %81 = arith.addf %74, %80 : vector<16x16x24xf32>
    %82 = vector.extract_strided_slice %36 {offsets = [2, 0, 0], sizes = [16, 16, 24], strides = [1, 1, 1]} : vector<18x16x24xf32> to vector<16x16x24xf32>
    %83 = vector.extract_strided_slice %35 {offsets = [2, 0, 0], sizes = [1, 1, 24], strides = [1, 1, 1]} : vector<3x3x24xf32> to vector<1x1x24xf32>
    %84 = vector.shape_cast %83 : vector<1x1x24xf32> to vector<24xf32>
    %85 = vector.shape_cast %84 : vector<24xf32> to vector<1x1x24xf32>
    %86 = vector.broadcast %85 : vector<1x1x24xf32> to vector<16x16x24xf32>
    %87 = arith.mulf %82, %86 : vector<16x16x24xf32>
    %88 = arith.addf %81, %87 : vector<16x16x24xf32>
    %89 = vector.extract_strided_slice %37 {offsets = [2, 0, 0], sizes = [16, 16, 24], strides = [1, 1, 1]} : vector<18x16x24xf32> to vector<16x16x24xf32>
    %90 = vector.extract_strided_slice %35 {offsets = [2, 1, 0], sizes = [1, 1, 24], strides = [1, 1, 1]} : vector<3x3x24xf32> to vector<1x1x24xf32>
    %91 = vector.shape_cast %90 : vector<1x1x24xf32> to vector<24xf32>
    %92 = vector.shape_cast %91 : vector<24xf32> to vector<1x1x24xf32>
    %93 = vector.broadcast %92 : vector<1x1x24xf32> to vector<16x16x24xf32>
    %94 = arith.mulf %89, %93 : vector<16x16x24xf32>
    %95 = arith.addf %88, %94 : vector<16x16x24xf32>
    %96 = vector.extract_strided_slice %38 {offsets = [2, 0, 0], sizes = [16, 16, 24], strides = [1, 1, 1]} : vector<18x16x24xf32> to vector<16x16x24xf32>
    %97 = vector.extract_strided_slice %35 {offsets = [2, 2, 0], sizes = [1, 1, 24], strides = [1, 1, 1]} : vector<3x3x24xf32> to vector<1x1x24xf32>
    %98 = vector.shape_cast %97 : vector<1x1x24xf32> to vector<24xf32>
    %99 = vector.shape_cast %98 : vector<24xf32> to vector<1x1x24xf32>
    %100 = vector.broadcast %99 : vector<1x1x24xf32> to vector<16x16x24xf32>
    %101 = arith.mulf %96, %100 : vector<16x16x24xf32>
    %102 = arith.addf %95, %101 : vector<16x16x24xf32>
    %c0_16 = arith.constant 0 : index
    %c0_17 = arith.constant 0 : index
    %103 = vector.load %arg6[%c0_16, %c0_17] : memref<1x24xf32, #tpu.memory_space<vmem>>, vector<1x24xf32>
    %104 = vector.shape_cast %103 : vector<1x24xf32> to vector<1x1x24xf32>
    %105 = vector.broadcast %104 : vector<1x1x24xf32> to vector<16x16x24xf32>
    %106 = arith.addf %102, %105 : vector<16x16x24xf32>
    %cst_18 = arith.constant 0.000000e+00 : f32
    %cst_19 = arith.constant 6.000000e+00 : f32
    %107 = vector.broadcast %cst_18 : f32 to vector<16x16x24xf32>
    %108 = arith.maximumf %107, %106 : vector<16x16x24xf32>
    %109 = vector.broadcast %cst_19 : f32 to vector<16x16x24xf32>
    %110 = arith.minimumf %109, %108 : vector<16x16x24xf32>
    %111 = vector.shape_cast %110 : vector<16x16x24xf32> to vector<256x24xf32>
    %c0_20 = arith.constant 0 : index
    %c0_21 = arith.constant 0 : index
    %112 = vector.load %arg7[%c0_20, %c0_21] : memref<24x4xf32, #tpu.memory_space<vmem>>, vector<24x4xf32>
    %cst_22 = arith.constant dense<0.000000e+00> : vector<256x4xf32>
    %113 = tpu.matmul %111, %112, %cst_22 {dimension_numbers = #tpu.dot_dimension_numbers<[1], [0], [0], [1], [0, 0, 1, 1], [], []>} : vector<256x24xf32>, vector<24x4xf32>, vector<256x4xf32> -> vector<256x4xf32>
    %c0_23 = arith.constant 0 : index
    %c0_24 = arith.constant 0 : index
    %114 = vector.load %arg8[%c0_23, %c0_24] : memref<1x4xf32, #tpu.memory_space<vmem>>, vector<1x4xf32>
    %115 = vector.broadcast %114 : vector<1x4xf32> to vector<256x4xf32>
    %116 = arith.addf %113, %115 : vector<256x4xf32>
    %117 = vector.shape_cast %116 : vector<256x4xf32> to vector<16x16x4xf32>
    %118 = vector.extract_strided_slice %4 {offsets = [1, 1, 0], sizes = [16, 16, 4], strides = [1, 1, 1]} : vector<18x24x4xf32> to vector<16x16x4xf32>
    %119 = arith.addf %117, %118 : vector<16x16x4xf32>
    %120 = vector.shape_cast %119 : vector<16x16x4xf32> to vector<16x64xf32>
    %c0_25 = arith.constant 0 : index
    %c0_26 = arith.constant 0 : index
    %c0_27 = arith.constant 0 : index
    %121 = vector.load %arg9[%c0_25, %c0_26, %c0_27] : memref<1x16x64xf32, #tpu.memory_space<vmem>>, vector<1x16x64xf32>
    %122 = vector.shape_cast %121 : vector<1x16x64xf32> to vector<16x64xf32>
    %123 = vector.shape_cast %120 : vector<16x64xf32> to vector<1x16x64xf32>
    tpu.vector_store %arg9[%c0_25, %c0_26, %c0_27], %123 {strides = array<i32>} : memref<1x16x64xf32, #tpu.memory_space<vmem>>, vector<1x16x64xf32>,
    return
  }
  func.func @transform_0(%arg0: i32, %arg1: i32) -> (i32, i32, i32, i32) {
    %c0_i32 = arith.constant 0 : i32
    %c0_i32_0 = arith.constant 0 : i32
    %c0_i32_1 = arith.constant 0 : i32
    %c0_i32_2 = arith.constant 0 : i32
    return %arg0, %c0_i32, %c0_i32_0, %c0_i32_1 : i32, i32, i32, i32
  }
  func.func @transform_1(%arg0: i32, %arg1: i32) -> (i32, i32) {
    %c0_i32 = arith.constant 0 : i32
    %c0_i32_0 = arith.constant 0 : i32
    %c0_i32_1 = arith.constant 0 : i32
    return %c0_i32, %c0_i32_0 : i32, i32
  }
  func.func @transform_2(%arg0: i32, %arg1: i32) -> (i32, i32) {
    %c0_i32 = arith.constant 0 : i32
    %c0_i32_0 = arith.constant 0 : i32
    %c0_i32_1 = arith.constant 0 : i32
    return %c0_i32, %c0_i32_0 : i32, i32
  }
  func.func @transform_3(%arg0: i32, %arg1: i32) -> (i32, i32, i32) {
    %c0_i32 = arith.constant 0 : i32
    %c0_i32_0 = arith.constant 0 : i32
    %c0_i32_1 = arith.constant 0 : i32
    %c0_i32_2 = arith.constant 0 : i32
    return %c0_i32, %c0_i32_0, %c0_i32_1 : i32, i32, i32
  }
  func.func @transform_4(%arg0: i32, %arg1: i32) -> (i32, i32) {
    %c0_i32 = arith.constant 0 : i32
    %c0_i32_0 = arith.constant 0 : i32
    %c0_i32_1 = arith.constant 0 : i32
    return %c0_i32, %c0_i32_0 : i32, i32
  }
  func.func @transform_5(%arg0: i32, %arg1: i32) -> (i32, i32) {
    %c0_i32 = arith.constant 0 : i32
    %c0_i32_0 = arith.constant 0 : i32
    %c0_i32_1 = arith.constant 0 : i32
    return %c0_i32, %c0_i32_0 : i32, i32
  }
  func.func @transform_6(%arg0: i32, %arg1: i32) -> (i32, i32) {
    %c0_i32 = arith.constant 0 : i32
    %c0_i32_0 = arith.constant 0 : i32
    %c0_i32_1 = arith.constant 0 : i32
    return %c0_i32, %c0_i32_0 : i32, i32
  }
  func.func @transform_7(%arg0: i32, %arg1: i32) -> (i32, i32, i32) {
    %c0_i32 = arith.constant 0 : i32
    %c0_i32_0 = arith.constant 0 : i32
    return %arg0, %arg1, %c0_i32 : i32, i32, i32
  }
}

module attributes {stable_mosaic.version = 11 : i64} {
  func.func @_fused_bottleneck_kernel(%arg0: i32, %arg1: i32, %arg2: memref<1x18x24x4xf32, #tpu.memory_space<vmem>>, %arg3: memref<4x24xf32, #tpu.memory_space<vmem>>, %arg4: memref<1x24xf32, #tpu.memory_space<vmem>>, %arg5: memref<3x3x24xf32, #tpu.memory_space<vmem>>, %arg6: memref<1x24xf32, #tpu.memory_space<vmem>>, %arg7: memref<24x4xf32, #tpu.memory_space<vmem>>, %arg8: memref<1x4xf32, #tpu.memory_space<vmem>>, %arg9: memref<1x16x16x4xf32, #tpu.memory_space<vmem>>) attributes {dimension_semantics = [#tpu.dimension_semantics<parallel>, #tpu.dimension_semantics<parallel>], iteration_bounds = array<i64: 2, 1>, scalar_prefetch = 0 : i64, scratch_operands = 0 : i64, tpu.core_type = #tpu.core_type<tc>, window_params = [{transform_indices = @transform_0, window_bounds = array<i64: 1, 18, 24, 4>}, {pipeline_mode = #tpu.pipeline_mode<synchronous>, transform_indices = @transform_1, window_bounds = array<i64: 4, 24>}, {pipeline_mode = #tpu.pipeline_mode<synchronous>, transform_indices = @transform_2, window_bounds = array<i64: 1, 24>}, {pipeline_mode = #tpu.pipeline_mode<synchronous>, transform_indices = @transform_3, window_bounds = array<i64: 3, 3, 24>}, {pipeline_mode = #tpu.pipeline_mode<synchronous>, transform_indices = @transform_4, window_bounds = array<i64: 1, 24>}, {pipeline_mode = #tpu.pipeline_mode<synchronous>, transform_indices = @transform_5, window_bounds = array<i64: 24, 4>}, {pipeline_mode = #tpu.pipeline_mode<synchronous>, transform_indices = @transform_6, window_bounds = array<i64: 1, 4>}, {transform_indices = @transform_7, window_bounds = array<i64: 1, 16, 16, 4>}]} {
    %c16_i32 = arith.constant 16 : i32
    %0 = arith.muli %arg1, %c16_i32 : i32
    %1 = tpu.assume_multiple %0, 16 : i32
    %c0 = arith.constant 0 : index
    %2 = arith.index_cast %1 : i32 to index
    %c0_0 = arith.constant 0 : index
    %c0_1 = arith.constant 0 : index
    %3 = vector.load %arg2[%c0, %2, %c0_0, %c0_1] : memref<1x18x24x4xf32, #tpu.memory_space<vmem>>, vector<1x18x24x4xf32>
    %4 = vector.shape_cast %3 : vector<1x18x24x4xf32> to vector<18x24x4xf32>
    %5 = vector.shape_cast %4 : vector<18x24x4xf32> to vector<432x4xf32>
    %c0_2 = arith.constant 0 : index
    %c0_3 = arith.constant 0 : index
    %6 = vector.load %arg3[%c0_2, %c0_3] : memref<4x24xf32, #tpu.memory_space<vmem>>, vector<4x24xf32>
    %cst = arith.constant dense<0.000000e+00> : vector<432x24xf32>
    %7 = tpu.matmul %5, %6, %cst {dimension_numbers = #tpu.dot_dimension_numbers<[1], [0], [0], [1], [0, 0, 1, 1], [], []>} : vector<432x4xf32>, vector<4x24xf32>, vector<432x24xf32> -> vector<432x24xf32>
    %c0_4 = arith.constant 0 : index
    %c0_5 = arith.constant 0 : index
    %8 = vector.load %arg4[%c0_4, %c0_5] : memref<1x24xf32, #tpu.memory_space<vmem>>, vector<1x24xf32>
    %9 = vector.broadcast %8 : vector<1x24xf32> to vector<432x24xf32>
    %10 = arith.addf %7, %9 : vector<432x24xf32>
    %cst_6 = arith.constant 0.000000e+00 : f32
    %cst_7 = arith.constant 6.000000e+00 : f32
    %11 = vector.broadcast %cst_6 : f32 to vector<432x24xf32>
    %12 = arith.maximumf %11, %10 : vector<432x24xf32>
    %13 = vector.broadcast %cst_7 : f32 to vector<432x24xf32>
    %14 = arith.minimumf %13, %12 : vector<432x24xf32>
    %15 = vector.shape_cast %14 : vector<432x24xf32> to vector<18x24x24xf32>
    %16 = tpu.iota {dimensions = array<i32: 0>} : vector<18x24x1xi32>
    %17 = vector.broadcast %1 : i32 to vector<18x24x1xi32>
    %18 = arith.addi %17, %16 : vector<18x24x1xi32>
    %19 = tpu.iota {dimensions = array<i32: 1>} : vector<18x24x1xi32>
    %c1_i32 = arith.constant 1 : i32
    %20 = vector.broadcast %c1_i32 : i32 to vector<18x24x1xi32>
    %21 = arith.cmpi sge, %18, %20 : vector<18x24x1xi32>
    %c16_i32_8 = arith.constant 16 : i32
    %22 = vector.broadcast %c16_i32_8 : i32 to vector<18x24x1xi32>
    %23 = arith.cmpi sle, %18, %22 : vector<18x24x1xi32>
    %24 = arith.andi %21, %23 : vector<18x24x1xi1>
    %c1_i32_9 = arith.constant 1 : i32
    %25 = vector.broadcast %c1_i32_9 : i32 to vector<18x24x1xi32>
    %26 = arith.cmpi sge, %19, %25 : vector<18x24x1xi32>
    %27 = arith.andi %24, %26 : vector<18x24x1xi1>
    %c16_i32_10 = arith.constant 16 : i32
    %28 = vector.broadcast %c16_i32_10 : i32 to vector<18x24x1xi32>
    %29 = arith.cmpi sle, %19, %28 : vector<18x24x1xi32>
    %30 = arith.andi %27, %29 : vector<18x24x1xi1>
    %cst_11 = arith.constant 0.000000e+00 : f32
    %31 = vector.shape_cast %30 : vector<18x24x1xi1> to vector<18x24x1xi1>
    %32 = vector.broadcast %31 : vector<18x24x1xi1> to vector<18x24x24xi1>
    %33 = vector.broadcast %cst_11 : f32 to vector<18x24x24xf32>
    %34 = arith.select %32, %15, %33 : vector<18x24x24xi1>, vector<18x24x24xf32>
    %c0_12 = arith.constant 0 : index
    %c0_13 = arith.constant 0 : index
    %c0_14 = arith.constant 0 : index
    %35 = vector.load %arg5[%c0_12, %c0_13, %c0_14] : memref<3x3x24xf32, #tpu.memory_space<vmem>>, vector<3x3x24xf32>
    %36 = vector.extract_strided_slice %34 {offsets = [0, 0, 0], sizes = [18, 16, 24], strides = [1, 1, 1]} : vector<18x24x24xf32> to vector<18x16x24xf32>
    %37 = vector.extract_strided_slice %34 {offsets = [0, 1, 0], sizes = [18, 16, 24], strides = [1, 1, 1]} : vector<18x24x24xf32> to vector<18x16x24xf32>
    %38 = vector.extract_strided_slice %34 {offsets = [0, 2, 0], sizes = [18, 16, 24], strides = [1, 1, 1]} : vector<18x24x24xf32> to vector<18x16x24xf32>
    %cst_15 = arith.constant 0.000000e+00 : f32
    %39 = vector.broadcast %cst_15 : f32 to vector<16x16x24xf32>
    %40 = vector.extract_strided_slice %36 {offsets = [0, 0, 0], sizes = [16, 16, 24], strides = [1, 1, 1]} : vector<18x16x24xf32> to vector<16x16x24xf32>
    %41 = vector.extract_strided_slice %35 {offsets = [0, 0, 0], sizes = [1, 1, 24], strides = [1, 1, 1]} : vector<3x3x24xf32> to vector<1x1x24xf32>
    %42 = vector.shape_cast %41 : vector<1x1x24xf32> to vector<24xf32>
    %43 = vector.shape_cast %42 : vector<24xf32> to vector<1x1x24xf32>
    %44 = vector.broadcast %43 : vector<1x1x24xf32> to vector<16x16x24xf32>
    %45 = arith.mulf %40, %44 : vector<16x16x24xf32>
    %46 = arith.addf %39, %45 : vector<16x16x24xf32>
    %47 = vector.extract_strided_slice %37 {offsets = [0, 0, 0], sizes = [16, 16, 24], strides = [1, 1, 1]} : vector<18x16x24xf32> to vector<16x16x24xf32>
    %48 = vector.extract_strided_slice %35 {offsets = [0, 1, 0], sizes = [1, 1, 24], strides = [1, 1, 1]} : vector<3x3x24xf32> to vector<1x1x24xf32>
    %49 = vector.shape_cast %48 : vector<1x1x24xf32> to vector<24xf32>
    %50 = vector.shape_cast %49 : vector<24xf32> to vector<1x1x24xf32>
    %51 = vector.broadcast %50 : vector<1x1x24xf32> to vector<16x16x24xf32>
    %52 = arith.mulf %47, %51 : vector<16x16x24xf32>
    %53 = arith.addf %46, %52 : vector<16x16x24xf32>
    %54 = vector.extract_strided_slice %38 {offsets = [0, 0, 0], sizes = [16, 16, 24], strides = [1, 1, 1]} : vector<18x16x24xf32> to vector<16x16x24xf32>
    %55 = vector.extract_strided_slice %35 {offsets = [0, 2, 0], sizes = [1, 1, 24], strides = [1, 1, 1]} : vector<3x3x24xf32> to vector<1x1x24xf32>
    %56 = vector.shape_cast %55 : vector<1x1x24xf32> to vector<24xf32>
    %57 = vector.shape_cast %56 : vector<24xf32> to vector<1x1x24xf32>
    %58 = vector.broadcast %57 : vector<1x1x24xf32> to vector<16x16x24xf32>
    %59 = arith.mulf %54, %58 : vector<16x16x24xf32>
    %60 = arith.addf %53, %59 : vector<16x16x24xf32>
    %61 = vector.extract_strided_slice %36 {offsets = [1, 0, 0], sizes = [16, 16, 24], strides = [1, 1, 1]} : vector<18x16x24xf32> to vector<16x16x24xf32>
    %62 = vector.extract_strided_slice %35 {offsets = [1, 0, 0], sizes = [1, 1, 24], strides = [1, 1, 1]} : vector<3x3x24xf32> to vector<1x1x24xf32>
    %63 = vector.shape_cast %62 : vector<1x1x24xf32> to vector<24xf32>
    %64 = vector.shape_cast %63 : vector<24xf32> to vector<1x1x24xf32>
    %65 = vector.broadcast %64 : vector<1x1x24xf32> to vector<16x16x24xf32>
    %66 = arith.mulf %61, %65 : vector<16x16x24xf32>
    %67 = arith.addf %60, %66 : vector<16x16x24xf32>
    %68 = vector.extract_strided_slice %37 {offsets = [1, 0, 0], sizes = [16, 16, 24], strides = [1, 1, 1]} : vector<18x16x24xf32> to vector<16x16x24xf32>
    %69 = vector.extract_strided_slice %35 {offsets = [1, 1, 0], sizes = [1, 1, 24], strides = [1, 1, 1]} : vector<3x3x24xf32> to vector<1x1x24xf32>
    %70 = vector.shape_cast %69 : vector<1x1x24xf32> to vector<24xf32>
    %71 = vector.shape_cast %70 : vector<24xf32> to vector<1x1x24xf32>
    %72 = vector.broadcast %71 : vector<1x1x24xf32> to vector<16x16x24xf32>
    %73 = arith.mulf %68, %72 : vector<16x16x24xf32>
    %74 = arith.addf %67, %73 : vector<16x16x24xf32>
    %75 = vector.extract_strided_slice %38 {offsets = [1, 0, 0], sizes = [16, 16, 24], strides = [1, 1, 1]} : vector<18x16x24xf32> to vector<16x16x24xf32>
    %76 = vector.extract_strided_slice %35 {offsets = [1, 2, 0], sizes = [1, 1, 24], strides = [1, 1, 1]} : vector<3x3x24xf32> to vector<1x1x24xf32>
    %77 = vector.shape_cast %76 : vector<1x1x24xf32> to vector<24xf32>
    %78 = vector.shape_cast %77 : vector<24xf32> to vector<1x1x24xf32>
    %79 = vector.broadcast %78 : vector<1x1x24xf32> to vector<16x16x24xf32>
    %80 = arith.mulf %75, %79 : vector<16x16x24xf32>
    %81 = arith.addf %74, %80 : vector<16x16x24xf32>
    %82 = vector.extract_strided_slice %36 {offsets = [2, 0, 0], sizes = [16, 16, 24], strides = [1, 1, 1]} : vector<18x16x24xf32> to vector<16x16x24xf32>
    %83 = vector.extract_strided_slice %35 {offsets = [2, 0, 0], sizes = [1, 1, 24], strides = [1, 1, 1]} : vector<3x3x24xf32> to vector<1x1x24xf32>
    %84 = vector.shape_cast %83 : vector<1x1x24xf32> to vector<24xf32>
    %85 = vector.shape_cast %84 : vector<24xf32> to vector<1x1x24xf32>
    %86 = vector.broadcast %85 : vector<1x1x24xf32> to vector<16x16x24xf32>
    %87 = arith.mulf %82, %86 : vector<16x16x24xf32>
    %88 = arith.addf %81, %87 : vector<16x16x24xf32>
    %89 = vector.extract_strided_slice %37 {offsets = [2, 0, 0], sizes = [16, 16, 24], strides = [1, 1, 1]} : vector<18x16x24xf32> to vector<16x16x24xf32>
    %90 = vector.extract_strided_slice %35 {offsets = [2, 1, 0], sizes = [1, 1, 24], strides = [1, 1, 1]} : vector<3x3x24xf32> to vector<1x1x24xf32>
    %91 = vector.shape_cast %90 : vector<1x1x24xf32> to vector<24xf32>
    %92 = vector.shape_cast %91 : vector<24xf32> to vector<1x1x24xf32>
    %93 = vector.broadcast %92 : vector<1x1x24xf32> to vector<16x16x24xf32>
    %94 = arith.mulf %89, %93 : vector<16x16x24xf32>
    %95 = arith.addf %88, %94 : vector<16x16x24xf32>
    %96 = vector.extract_strided_slice %38 {offsets = [2, 0, 0], sizes = [16, 16, 24], strides = [1, 1, 1]} : vector<18x16x24xf32> to vector<16x16x24xf32>
    %97 = vector.extract_strided_slice %35 {offsets = [2, 2, 0], sizes = [1, 1, 24], strides = [1, 1, 1]} : vector<3x3x24xf32> to vector<1x1x24xf32>
    %98 = vector.shape_cast %97 : vector<1x1x24xf32> to vector<24xf32>
    %99 = vector.shape_cast %98 : vector<24xf32> to vector<1x1x24xf32>
    %100 = vector.broadcast %99 : vector<1x1x24xf32> to vector<16x16x24xf32>
    %101 = arith.mulf %96, %100 : vector<16x16x24xf32>
    %102 = arith.addf %95, %101 : vector<16x16x24xf32>
    %c0_16 = arith.constant 0 : index
    %c0_17 = arith.constant 0 : index
    %103 = vector.load %arg6[%c0_16, %c0_17] : memref<1x24xf32, #tpu.memory_space<vmem>>, vector<1x24xf32>
    %104 = vector.shape_cast %103 : vector<1x24xf32> to vector<1x1x24xf32>
    %105 = vector.broadcast %104 : vector<1x1x24xf32> to vector<16x16x24xf32>
    %106 = arith.addf %102, %105 : vector<16x16x24xf32>
    %cst_18 = arith.constant 0.000000e+00 : f32
    %cst_19 = arith.constant 6.000000e+00 : f32
    %107 = vector.broadcast %cst_18 : f32 to vector<16x16x24xf32>
    %108 = arith.maximumf %107, %106 : vector<16x16x24xf32>
    %109 = vector.broadcast %cst_19 : f32 to vector<16x16x24xf32>
    %110 = arith.minimumf %109, %108 : vector<16x16x24xf32>
    %111 = vector.shape_cast %110 : vector<16x16x24xf32> to vector<256x24xf32>
    %c0_20 = arith.constant 0 : index
    %c0_21 = arith.constant 0 : index
    %112 = vector.load %arg7[%c0_20, %c0_21] : memref<24x4xf32, #tpu.memory_space<vmem>>, vector<24x4xf32>
    %cst_22 = arith.constant dense<0.000000e+00> : vector<256x4xf32>
    %113 = tpu.matmul %111, %112, %cst_22 {dimension_numbers = #tpu.dot_dimension_numbers<[1], [0], [0], [1], [0, 0, 1, 1], [], []>} : vector<256x24xf32>, vector<24x4xf32>, vector<256x4xf32> -> vector<256x4xf32>
    %c0_23 = arith.constant 0 : index
    %c0_24 = arith.constant 0 : index
    %114 = vector.load %arg8[%c0_23, %c0_24] : memref<1x4xf32, #tpu.memory_space<vmem>>, vector<1x4xf32>
    %115 = vector.broadcast %114 : vector<1x4xf32> to vector<256x4xf32>
    %116 = arith.addf %113, %115 : vector<256x4xf32>
    %117 = vector.shape_cast %116 : vector<256x4xf32> to vector<16x16x4xf32>
    %118 = vector.extract_strided_slice %4 {offsets = [1, 1, 0], sizes = [16, 16, 4], strides = [1, 1, 1]} : vector<18x24x4xf32> to vector<16x16x4xf32>
    %119 = arith.addf %117, %118 : vector<16x16x4xf32>
    %c0_25 = arith.constant 0 : index
    %c0_26 = arith.constant 0 : index
    %c0_27 = arith.constant 0 : index
    %c0_28 = arith.constant 0 : index
    %120 = vector.load %arg9[%c0_25, %c0_26, %c0_27, %c0_28] : memref<1x16x16x4xf32, #tpu.memory_space<vmem>>, vector<1x16x16x4xf32>
    %121 = vector.shape_cast %120 : vector<1x16x16x4xf32> to vector<16x16x4xf32>
    %122 = vector.shape_cast %119 : vector<16x16x4xf32> to vector<1x16x16x4xf32>
    tpu.vector_store %arg9[%c0_25, %c0_26, %c0_27, %c0_28], %122 {strides = array<i32>} : memref<1x16x16x4xf32, #tpu.memory_space<vmem>>, vector<1x16x16x4xf32>,
    return
  }
  func.func @transform_0(%arg0: i32, %arg1: i32) -> (i32, i32, i32, i32) {
    %c0_i32 = arith.constant 0 : i32
    %c0_i32_0 = arith.constant 0 : i32
    %c0_i32_1 = arith.constant 0 : i32
    %c0_i32_2 = arith.constant 0 : i32
    return %arg0, %c0_i32, %c0_i32_0, %c0_i32_1 : i32, i32, i32, i32
  }
  func.func @transform_1(%arg0: i32, %arg1: i32) -> (i32, i32) {
    %c0_i32 = arith.constant 0 : i32
    %c0_i32_0 = arith.constant 0 : i32
    %c0_i32_1 = arith.constant 0 : i32
    return %c0_i32, %c0_i32_0 : i32, i32
  }
  func.func @transform_2(%arg0: i32, %arg1: i32) -> (i32, i32) {
    %c0_i32 = arith.constant 0 : i32
    %c0_i32_0 = arith.constant 0 : i32
    %c0_i32_1 = arith.constant 0 : i32
    return %c0_i32, %c0_i32_0 : i32, i32
  }
  func.func @transform_3(%arg0: i32, %arg1: i32) -> (i32, i32, i32) {
    %c0_i32 = arith.constant 0 : i32
    %c0_i32_0 = arith.constant 0 : i32
    %c0_i32_1 = arith.constant 0 : i32
    %c0_i32_2 = arith.constant 0 : i32
    return %c0_i32, %c0_i32_0, %c0_i32_1 : i32, i32, i32
  }
  func.func @transform_4(%arg0: i32, %arg1: i32) -> (i32, i32) {
    %c0_i32 = arith.constant 0 : i32
    %c0_i32_0 = arith.constant 0 : i32
    %c0_i32_1 = arith.constant 0 : i32
    return %c0_i32, %c0_i32_0 : i32, i32
  }
  func.func @transform_5(%arg0: i32, %arg1: i32) -> (i32, i32) {
    %c0_i32 = arith.constant 0 : i32
    %c0_i32_0 = arith.constant 0 : i32
    %c0_i32_1 = arith.constant 0 : i32
    return %c0_i32, %c0_i32_0 : i32, i32
  }
  func.func @transform_6(%arg0: i32, %arg1: i32) -> (i32, i32) {
    %c0_i32 = arith.constant 0 : i32
    %c0_i32_0 = arith.constant 0 : i32
    %c0_i32_1 = arith.constant 0 : i32
    return %c0_i32, %c0_i32_0 : i32, i32
  }
  func.func @transform_7(%arg0: i32, %arg1: i32) -> (i32, i32, i32, i32) {
    %c0_i32 = arith.constant 0 : i32
    %c0_i32_0 = arith.constant 0 : i32
    %c0_i32_1 = arith.constant 0 : i32
    return %arg0, %arg1, %c0_i32, %c0_i32_0 : i32, i32, i32, i32
  }
}

</mosaic_0001>

<llo_original>
// kernel: tpu_custom_call.1
$region0: #{tpu_custom_call.1}
  #allocation0 [shape = 'u32[]', space=smem, size = 0x4, offset = 0x4, fixed_abs, tag = 'smem constant byte address 0x4 - core index']
  #allocation1 [shape = 'u32[144,128]{1,0:T(1,128)}', space=vmem, size = 0x12000, scoped, tag = 'internal scratch']
  %s0 = inlined_call_operand.vmem [shape: f32[2,18,24,4], index: 0, kind: input, shape index: {}]
  %s1 = inlined_call_operand.vmem [shape: f32[4,24], index: 1, kind: input, shape index: {}]
  %s2 = inlined_call_operand.vmem [shape: f32[1,24], index: 2, kind: input, shape index: {}]
  %s3 = inlined_call_operand.vmem [shape: f32[3,3,24], index: 3, kind: input, shape index: {}]
  %s4 = inlined_call_operand.vmem [shape: f32[1,24], index: 4, kind: input, shape index: {}]
  %s5 = inlined_call_operand.vmem [shape: f32[24,4], index: 5, kind: input, shape index: {}]
  %s6 = inlined_call_operand.vmem [shape: f32[1,4], index: 6, kind: input, shape index: {}]
  %s7 = inlined_call_operand.hbm [shape: f32[2,16,64], index: 7, kind: output, shape index: {}]
  %s8 = sld [smem:[#allocation0]]
  $region61: #{tpu_custom_call.1} parent=0
    _
  %s10 = ssub.s32 1, %s8
  %s11 = scalar_select 0, %s10, %s8
  $region1: #{tpu_custom_call.1} parent=0
    #allocation2 [shape = 'u8[16384]{0}', space=vmem, size = 0x4000, scoped, tag = 'output window, operand 0']
    #allocation3 [shape = 's32[2]{0}', space=sflag, size = 0x8, scoped, tag = 'scoped memory for tpu_custom_call.1']
    %12 = vsyncpa [#allocation3], 0
    %s13 = scalar_lea.sflag [#allocation3], 1
    %14 = vsyncpa %s13, 0
    loop: start=0, step=1, limit=4
    $region2: #{tpu_custom_call.1} parent=1 // loop_pre_header
      _
    $region3: #{tpu_custom_call.1} parent=1 // loop_header
      %s16 = sphi 0, %s20
      %p17 = scmp.ge.s32.totalorder %s16, 4
      %s23 = sphi 0, %s35
      %s24 = sphi 0, %s31
      %s25 = sphi 0, %s23
      %s26 = sphi 0, %s24
      %s27 = sphi 0, %s25
      %s28 = sphi 0, %s26
      %s38 = sphi 0, %s40
      %s41 = sphi 0, %s38
      %s42 = sphi 0, %s41
      %s58 = sphi 0, %s42
      %s62 = sphi 0, %s62
      %s64 = sphi 0, %s62
      %s65 = sphi 0, %s64
      %s79 = sphi 0, %s65
      %s83 = sphi 0, %s83
      %s85 = sphi 0, %s83
      %s86 = sphi 0, %s85
      %s100 = sphi 0, %s86
      %s104 = sphi 0, %s104
      %s106 = sphi 0, %s104
      %s107 = sphi 0, %s106
      %s121 = sphi 0, %s107
      %s125 = sphi 0, %s125
      %s127 = sphi 0, %s125
      %s128 = sphi 0, %s127
      %s142 = sphi 0, %s128
      %s146 = sphi 0, %s146
      %s148 = sphi 0, %s146
      %s149 = sphi 0, %s148
      %s163 = sphi 0, %s149
      %s167 = sphi 0, %s167
      %s169 = sphi 0, %s167
      %s170 = sphi 0, %s169
      %s184 = sphi 0, %s170
      %s192 = sphi 0, %s194
      %s195 = sphi 0, %s192
      %s196 = sphi 0, %s195
      %s212 = sphi 0, %s196
    $region4: #{tpu_custom_call.1} parent=1 // loop_header_branch
      %19 = sbr.rel (%p17) target = $region8
    $region5: #{tpu_custom_call.1} parent=1 // loop_body
      %s21 = ssub.s32 %s16, 1
      %s22 = ssub.s32 %s16, 2
      %s29 = sadd.s32 1, %s24
      %p30 = scmp.ge.s32.totalorder %s29, 1
      %s31 = scalar_select %p30, 0, %s29
      %s32 = sadd.s32 1, %s23
      %s33 = scalar_select %p30, %s32, %s23
      %p34 = scmp.ge.s32.totalorder %s33, 2
      %s35 = scalar_select %p34, 0, %s33
      %s36 = ssub.s32 %s23, %s35
      %p37 = scmp.eq.s32.totalorder %s36, 0
      %s39 = sadd.s32 %s38, 1
      %s40 = scalar_select %p37, %s38, %s39
      %p43 = pneg %p37
      %p44 = scmp.eq.s32.totalorder %s16, 1
      %p45 = por %p43, %p44
      %p46 = scmp.ne.s32.totalorder %s38, %s41
      %p47 = scmp.eq.s32.totalorder %s16, 0
      %p48 = por %p46, %p47
      %p49 = scmp.ne.s32.totalorder %s38, %s41
      %p50 = scmp.eq.s32.totalorder %s21, 1
      %p51 = por %p49, %p50
      %p52 = scmp.ne.s32.totalorder %s41, %s42
      %p53 = scmp.eq.s32.totalorder %s21, 0
      %p54 = por %p52, %p53
      %p55 = scmp.ne.s32.totalorder %s41, %s42
      %p56 = scmp.eq.s32.totalorder %s22, 1
      %p57 = por %p55, %p56
      %p59 = scmp.ne.s32.totalorder %s42, %s58
      %p60 = scmp.eq.s32.totalorder %s22, 0
      %p61 = por %p59, %p60
      %s63 = sadd.s32 %s62, 1
      %p66 = scmp.eq.s32.totalorder %s16, 1
      %p67 = scmp.ne.s32.totalorder %s62, %s64
      %p68 = scmp.eq.s32.totalorder %s16, 0
      %p69 = por %p67, %p68
      %p70 = scmp.ne.s32.totalorder %s62, %s64
      %p71 = scmp.eq.s32.totalorder %s21, 1
      %p72 = por %p70, %p71
      %p73 = scmp.ne.s32.totalorder %s64, %s65
      %p74 = scmp.eq.s32.totalorder %s21, 0
      %p75 = por %p73, %p74
      %p76 = scmp.ne.s32.totalorder %s64, %s65
      %p77 = scmp.eq.s32.totalorder %s22, 1
      %p78 = por %p76, %p77
      %p80 = scmp.ne.s32.totalorder %s65, %s79
      %p81 = scmp.eq.s32.totalorder %s22, 0
      %p82 = por %p80, %p81
      %s84 = sadd.s32 %s83, 1
      %p87 = scmp.eq.s32.totalorder %s16, 1
      %p88 = scmp.ne.s32.totalorder %s83, %s85
      %p89 = scmp.eq.s32.totalorder %s16, 0
      %p90 = por %p88, %p89
      %p91 = scmp.ne.s32.totalorder %s83, %s85
      %p92 = scmp.eq.s32.totalorder %s21, 1
      %p93 = por %p91, %p92
      %p94 = scmp.ne.s32.totalorder %s85, %s86
      %p95 = scmp.eq.s32.totalorder %s21, 0
      %p96 = por %p94, %p95
      %p97 = scmp.ne.s32.totalorder %s85, %s86
      %p98 = scmp.eq.s32.totalorder %s22, 1
      %p99 = por %p97, %p98
      %p101 = scmp.ne.s32.totalorder %s86, %s100
      %p102 = scmp.eq.s32.totalorder %s22, 0
      %p103 = por %p101, %p102
      %s105 = sadd.s32 %s104, 1
      %p108 = scmp.eq.s32.totalorder %s16, 1
      %p109 = scmp.ne.s32.totalorder %s104, %s106
      %p110 = scmp.eq.s32.totalorder %s16, 0
      %p111 = por %p109, %p110
      %p112 = scmp.ne.s32.totalorder %s104, %s106
      %p113 = scmp.eq.s32.totalorder %s21, 1
      %p114 = por %p112, %p113
      %p115 = scmp.ne.s32.totalorder %s106, %s107
      %p116 = scmp.eq.s32.totalorder %s21, 0
      %p117 = por %p115, %p116
      %p118 = scmp.ne.s32.totalorder %s106, %s107
      %p119 = scmp.eq.s32.totalorder %s22, 1
      %p120 = por %p118, %p119
      %p122 = scmp.ne.s32.totalorder %s107, %s121
      %p123 = scmp.eq.s32.totalorder %s22, 0
      %p124 = por %p122, %p123
      %s126 = sadd.s32 %s125, 1
      %p129 = scmp.eq.s32.totalorder %s16, 1
      %p130 = scmp.ne.s32.totalorder %s125, %s127
      %p131 = scmp.eq.s32.totalorder %s16, 0
      %p132 = por %p130, %p131
      %p133 = scmp.ne.s32.totalorder %s125, %s127
      %p134 = scmp.eq.s32.totalorder %s21, 1
      %p135 = por %p133, %p134
      %p136 = scmp.ne.s32.totalorder %s127, %s128
      %p137 = scmp.eq.s32.totalorder %s21, 0
      %p138 = por %p136, %p137
      %p139 = scmp.ne.s32.totalorder %s127, %s128
      %p140 = scmp.eq.s32.totalorder %s22, 1
      %p141 = por %p139, %p140
      %p143 = scmp.ne.s32.totalorder %s128, %s142
      %p144 = scmp.eq.s32.totalorder %s22, 0
      %p145 = por %p143, %p144
      %s147 = sadd.s32 %s146, 1
      %p150 = scmp.eq.s32.totalorder %s16, 1
      %p151 = scmp.ne.s32.totalorder %s146, %s148
      %p152 = scmp.eq.s32.totalorder %s16, 0
      %p153 = por %p151, %p152
      %p154 = scmp.ne.s32.totalorder %s146, %s148
      %p155 = scmp.eq.s32.totalorder %s21, 1
      %p156 = por %p154, %p155
      %p157 = scmp.ne.s32.totalorder %s148, %s149
      %p158 = scmp.eq.s32.totalorder %s21, 0
      %p159 = por %p157, %p158
      %p160 = scmp.ne.s32.totalorder %s148, %s149
      %p161 = scmp.eq.s32.totalorder %s22, 1
      %p162 = por %p160, %p161
      %p164 = scmp.ne.s32.totalorder %s149, %s163
      %p165 = scmp.eq.s32.totalorder %s22, 0
      %p166 = por %p164, %p165
      %s168 = sadd.s32 %s167, 1
      %p171 = scmp.eq.s32.totalorder %s16, 1
      %p172 = scmp.ne.s32.totalorder %s167, %s169
      %p173 = scmp.eq.s32.totalorder %s16, 0
      %p174 = por %p172, %p173
      %p175 = scmp.ne.s32.totalorder %s167, %s169
      %p176 = scmp.eq.s32.totalorder %s21, 1
      %p177 = por %p175, %p176
      %p178 = scmp.ne.s32.totalorder %s169, %s170
      %p179 = scmp.eq.s32.totalorder %s21, 0
      %p180 = por %p178, %p179
      %p181 = scmp.ne.s32.totalorder %s169, %s170
      %p182 = scmp.eq.s32.totalorder %s22, 1
      %p183 = por %p181, %p182
      %p185 = scmp.ne.s32.totalorder %s170, %s184
      %p186 = scmp.eq.s32.totalorder %s22, 0
      %p187 = por %p185, %p186
      %s188 = ssub.s32 %s23, %s35
      %s189 = ssub.s32 %s24, %s31
      %s190 = sor.u32 %s188, %s189
      %p191 = scmp.eq.s32.totalorder %s190, 0
      %s193 = sadd.s32 %s192, 1
      %s194 = scalar_select %p191, %s192, %s193
      %p197 = pneg %p191
      %p198 = scmp.eq.s32.totalorder %s16, 1
      %p199 = por %p197, %p198
      %p200 = scmp.ne.s32.totalorder %s192, %s195
      %p201 = scmp.eq.s32.totalorder %s16, 0
      %p202 = por %p200, %p201
      %p203 = scmp.ne.s32.totalorder %s192, %s195
      %p204 = scmp.eq.s32.totalorder %s21, 1
      %p205 = por %p203, %p204
      %p206 = scmp.ne.s32.totalorder %s195, %s196
      %p207 = scmp.eq.s32.totalorder %s21, 0
      %p208 = por %p206, %p207
      %p209 = scmp.ne.s32.totalorder %s195, %s196
      %p210 = scmp.eq.s32.totalorder %s22, 1
      %p211 = por %p209, %p210
      %p213 = scmp.ne.s32.totalorder %s196, %s212
      %p214 = scmp.eq.s32.totalorder %s22, 0
      %p215 = por %p213, %p214
      %p216 = scmp.le.s32.totalorder 1, %s16
      %p217 = scmp.lt.s32.totalorder %s16, 3
      %p218 = pnand %p216, %p217
      %p219 = pneg %p218
      // Predicated region
      $region9: #{tpu_custom_call.1} parent=5 // pred_check
        _
      $region10: #{tpu_custom_call.1} parent=5 // pred_check_branch
        %221 = sbr.rel (%p218) target = $region12
      $region11: #{tpu_custom_call.1} parent=5 // pred_region
        %s222 = ssub.s32 %s16, 1
        // Predicated region
        $region13: #{tpu_custom_call.1} parent=11 // pred_check
          %p223 = pneg %p75
        $region14: #{tpu_custom_call.1} parent=11 // pred_check_branch
          %225 = sbr.rel (%p223) target = $region16
        $region15: #{tpu_custom_call.1} parent=11 // pred_region
          _
        $region16: #{tpu_custom_call.1} parent=11 // pred_fallthru
          _
        // Predicated region
        $region17: #{tpu_custom_call.1} parent=11 // pred_check
          %p226 = pneg %p96
        $region18: #{tpu_custom_call.1} parent=11 // pred_check_branch
          %228 = sbr.rel (%p226) target = $region20
        $region19: #{tpu_custom_call.1} parent=11 // pred_region
          _
        $region20: #{tpu_custom_call.1} parent=11 // pred_fallthru
          _
        // Predicated region
        $region21: #{tpu_custom_call.1} parent=11 // pred_check
          %p229 = pneg %p117
        $region22: #{tpu_custom_call.1} parent=11 // pred_check_branch
          %231 = sbr.rel (%p229) target = $region24
        $region23: #{tpu_custom_call.1} parent=11 // pred_region
          _
        $region24: #{tpu_custom_call.1} parent=11 // pred_fallthru
          _
        // Predicated region
        $region25: #{tpu_custom_call.1} parent=11 // pred_check
          %p232 = pneg %p138
        $region26: #{tpu_custom_call.1} parent=11 // pred_check_branch
          %234 = sbr.rel (%p232) target = $region28
        $region27: #{tpu_custom_call.1} parent=11 // pred_region
          _
        $region28: #{tpu_custom_call.1} parent=11 // pred_fallthru
          _
        // Predicated region
        $region29: #{tpu_custom_call.1} parent=11 // pred_check
          %p235 = pneg %p159
        $region30: #{tpu_custom_call.1} parent=11 // pred_check_branch
          %237 = sbr.rel (%p235) target = $region32
        $region31: #{tpu_custom_call.1} parent=11 // pred_region
          _
        $region32: #{tpu_custom_call.1} parent=11 // pred_fallthru
          _
        // Predicated region
        $region33: #{tpu_custom_call.1} parent=11 // pred_check
          %p238 = pneg %p180
        $region34: #{tpu_custom_call.1} parent=11 // pred_check_branch
          %240 = sbr.rel (%p238) target = $region36
        $region35: #{tpu_custom_call.1} parent=11 // pred_region
          _
        $region36: #{tpu_custom_call.1} parent=11 // pred_fallthru
          _
      $region12: #{tpu_custom_call.1} parent=5 // pred_fallthru
        _
      %p241 = scmp.lt.s32.totalorder %s16, 2
      // Predicated region
      $region37: #{tpu_custom_call.1} parent=5 // pred_check
        %p242 = pneg %p241
      $region38: #{tpu_custom_call.1} parent=5 // pred_check_branch
        %244 = sbr.rel (%p242) target = $region40
      $region39: #{tpu_custom_call.1} parent=5 // pred_region
        // Predicated region
        $region41: #{tpu_custom_call.1} parent=39 // pred_check
          %p245 = pneg %p48
        $region42: #{tpu_custom_call.1} parent=39 // pred_check_branch
          %247 = sbr.rel (%p245) target = $region44
        $region43: #{tpu_custom_call.1} parent=39 // pred_region
          %p248 = scmp.lt.s32.totalorder %s23, 1
          %s249 = scalar_select %p248, %s23, 1
          %s250 = smul.addr %s249, 54
          %s251 = smul.addr %s250, 8
          %s252 = scalar_lea.vmem %s0, %s251
        $region44: #{tpu_custom_call.1} parent=39 // pred_fallthru
          _
      $region40: #{tpu_custom_call.1} parent=5 // pred_fallthru
        _
      %p253 = scmp.le.s32.totalorder 1, %s16
      %p254 = scmp.lt.s32.totalorder %s16, 3
      %p255 = pnand %p253, %p254
      %p256 = pneg %p255
      // Predicated region
      $region45: #{tpu_custom_call.1} parent=5 // pred_check
        _
      $region46: #{tpu_custom_call.1} parent=5 // pred_check_branch
        %258 = sbr.rel (%p255) target = $region48
      $region47: #{tpu_custom_call.1} parent=5 // pred_region
        %s259 = ssub.s32 %s16, 1
        %p260 = scmp.lt.s32.totalorder %s25, 1
        %s261 = scalar_select %p260, %s25, 1
        %s262 = smul.addr %s261, 54
        %s263 = smul.addr %s262, 8
        %s264 = scalar_lea.vmem %s0, %s263
        %p265 = pneg %p54
        %p266 = pneg %p51
        %p267 = pneg %p75
        %p268 = pneg %p72
        %p269 = pneg %p96
        %p270 = pneg %p93
        %p271 = pneg %p117
        %p272 = pneg %p114
        %p273 = pneg %p138
        %p274 = pneg %p135
        %p275 = pneg %p159
        %p276 = pneg %p156
        %p277 = pneg %p180
        %p278 = pneg %p177
        %p279 = pneg %p208
        %p280 = pneg %p205
        %s281 = sand.u32 %s195, 1
        %s282 = scalar_lea.sflag [#allocation3], %s281
        %s283 = sand.u32 %s195, 1
        %s284 = smul.addr %s283, 16
        %s285 = scalar_lea.vmem [#allocation2], %s284
        %p286 = scmp.lt.s32.totalorder %s25, 1
        %s287 = scalar_select %p286, %s25, 1
        %s288 = smul.addr %s287, 54
        %s289 = smul.addr %s288, 8
        %s290 = scalar_lea.vmem %s0, %s289
        %s291 = smul.u32 2, %s26
        %s292 = smul.u32 %s26, 16
        %s293 = smul.u32 %s292, 24
        %s294 = scalar_lea.vmem %s290, %s293
        %v295 = vld [vmem:[%s294] sm:$0xff]
        %v296 = vld [vmem:[%s294 + $0x8] sm:$0xff]
        %v297 = vld [vmem:[%s294 + $0x10] sm:$0xff]
        %v298 = vld [vmem:[%s294 + $0x18] sm:$0xff]
        %v299 = vld [vmem:[%s294 + $0x20] sm:$0xff]
        %v300 = vld [vmem:[%s294 + $0x28] sm:$0xff]
        %v301 = vld [vmem:[%s294 + $0x30] sm:$0xff]
        %v302 = vld [vmem:[%s294 + $0x38] sm:$0xff]
        %v303 = vld [vmem:[%s294 + $0x40] sm:$0xff]
        %v304 = vld [vmem:[%s294 + $0x48] sm:$0xff]
        %v305 = vld [vmem:[%s294 + $0x50] sm:$0xff]
        %v306 = vld [vmem:[%s294 + $0x58] sm:$0xff]
        %v307 = vld [vmem:[%s294 + $0x60] sm:$0xff]
        %v308 = vld [vmem:[%s294 + $0x68] sm:$0xff]
        %v309 = vld [vmem:[%s294 + $0x70] sm:$0xff]
        %v310 = vld [vmem:[%s294 + $0x78] sm:$0xff]
        %v311 = vld [vmem:[%s294 + $0x80] sm:$0xff]
        %v312 = vld [vmem:[%s294 + $0x88] sm:$0xff]
        %v313 = vld [vmem:[%s294 + $0x90] sm:$0xff]
        %v314 = vld [vmem:[%s294 + $0x98] sm:$0xff]
        %v315 = vld [vmem:[%s294 + $0xa0] sm:$0xff]
        %v316 = vld [vmem:[%s294 + $0xa8] sm:$0xff]
        %v317 = vld [vmem:[%s294 + $0xb0] sm:$0xff]
        %v318 = vld [vmem:[%s294 + $0xb8] sm:$0xff]
        %v319 = vld [vmem:[%s294 + $0xc0] sm:$0xff]
        %v320 = vld [vmem:[%s294 + $0xc8] sm:$0xff]
        %v321 = vld [vmem:[%s294 + $0xd0] sm:$0xff]
        %v322 = vld [vmem:[%s294 + $0xd8] sm:$0xff]
        %v323 = vld [vmem:[%s294 + $0xe0] sm:$0xff]
        %v324 = vld [vmem:[%s294 + $0xe8] sm:$0xff]
        %v325 = vld [vmem:[%s294 + $0xf0] sm:$0xff]
        %v326 = vld [vmem:[%s294 + $0xf8] sm:$0xff]
        %v327 = vld [vmem:[%s294 + $0x100] sm:$0xff]
        %v328 = vld [vmem:[%s294 + $0x108] sm:$0xff]
        %v329 = vld [vmem:[%s294 + $0x110] sm:$0xff]
        %v330 = vld [vmem:[%s294 + $0x118] sm:$0xff]
        %v331 = vld [vmem:[%s294 + $0x120] sm:$0xff]
        %v332 = vld [vmem:[%s294 + $0x128] sm:$0xff]
        %v333 = vld [vmem:[%s294 + $0x130] sm:$0xff]
        %v334 = vld [vmem:[%s294 + $0x138] sm:$0xff]
        %v335 = vld [vmem:[%s294 + $0x140] sm:$0xff]
        %v336 = vld [vmem:[%s294 + $0x148] sm:$0xff]
        %v337 = vld [vmem:[%s294 + $0x150] sm:$0xff]
        %v338 = vld [vmem:[%s294 + $0x158] sm:$0xff]
        %v339 = vld [vmem:[%s294 + $0x160] sm:$0xff]
        %v340 = vld [vmem:[%s294 + $0x168] sm:$0xff]
        %v341 = vld [vmem:[%s294 + $0x170] sm:$0xff]
        %v342 = vld [vmem:[%s294 + $0x178] sm:$0xff]
        %v343 = vld [vmem:[%s294 + $0x180] sm:$0xff]
        %v344 = vld [vmem:[%s294 + $0x188] sm:$0xff]
        %v345 = vld [vmem:[%s294 + $0x190] sm:$0xff]
        %v346 = vld [vmem:[%s294 + $0x198] sm:$0xff]
        %v347 = vld [vmem:[%s294 + $0x1a0] sm:$0xff]
        %v348 = vld [vmem:[%s294 + $0x1a8] sm:$0xff]
        %v349 = vld [vmem:[%s1] sm:$0xf]
        %v350 = vld [vmem:[%s2] sm:$0x1]
        %v352 = vlaneseq
        %v353 = vshrl.u32 %v352, 7
        %v354 = vsub.s32 0, %v353
        %v355 = vrot.slane %v350, %v354
        %vm357 = vcmask 31744
        %v359 = vsel %vm357, %v295, 0
        %v362 = vsel %vm357, %v296, 0
        %v365 = vsel %vm357, %v297, 0
        %v368 = vsel %vm357, %v298, 0
        %v371 = vsel %vm357, %v299, 0
        %v374 = vsel %vm357, %v300, 0
        %v377 = vsel %vm357, %v301, 0
        %v380 = vsel %vm357, %v302, 0
        %v383 = vsel %vm357, %v303, 0
        %v386 = vsel %vm357, %v304, 0
        %v389 = vsel %vm357, %v305, 0
        %v392 = vsel %vm357, %v306, 0
        %v395 = vsel %vm357, %v307, 0
        %v398 = vsel %vm357, %v308, 0
        %v401 = vsel %vm357, %v309, 0
        %v404 = vsel %vm357, %v310, 0
        %v407 = vsel %vm357, %v311, 0
        %v410 = vsel %vm357, %v312, 0
        %v413 = vsel %vm357, %v313, 0
        %v416 = vsel %vm357, %v314, 0
        %v419 = vsel %vm357, %v315, 0
        %v422 = vsel %vm357, %v316, 0
        %v425 = vsel %vm357, %v317, 0
        %v428 = vsel %vm357, %v318, 0
        %v431 = vsel %vm357, %v319, 0
        %v434 = vsel %vm357, %v320, 0
        %v437 = vsel %vm357, %v321, 0
        %v440 = vsel %vm357, %v322, 0
        %v443 = vsel %vm357, %v323, 0
        %v446 = vsel %vm357, %v324, 0
        %v449 = vsel %vm357, %v325, 0
        %v452 = vsel %vm357, %v326, 0
        %v455 = vsel %vm357, %v327, 0
        %v458 = vsel %vm357, %v328, 0
        %v461 = vsel %vm357, %v329, 0
        %v464 = vsel %vm357, %v330, 0
        %v467 = vsel %vm357, %v331, 0
        %v470 = vsel %vm357, %v332, 0
        %v473 = vsel %vm357, %v333, 0
        %v476 = vsel %vm357, %v334, 0
        %v479 = vsel %vm357, %v335, 0
        %v482 = vsel %vm357, %v336, 0
        %v485 = vsel %vm357, %v337, 0
        %v488 = vsel %vm357, %v338, 0
        %v491 = vsel %vm357, %v339, 0
        %v494 = vsel %vm357, %v340, 0
        %v497 = vsel %vm357, %v341, 0
        %v500 = vsel %vm357, %v342, 0
        %v503 = vsel %vm357, %v343, 0
        %v506 = vsel %vm357, %v344, 0
        %v509 = vsel %vm357, %v345, 0
        %v512 = vsel %vm357, %v346, 0
        %v515 = vsel %vm357, %v347, 0
        %v518 = vsel %vm357, %v348, 0
        %vm520 = vcmask 1043456
        %v522 = vsel %vm520, %v349, 0
        %524 = vmatprep.subr.mxu0 0.0
        %525 = vmatpush1.msra.mxu0 %v522
        %526 = vmatprep.subr.mxu0 0.0
        %527 = vmatpush1.msra.mxu0 0.0
        %528 = vmatprep.subr.mxu0 0.0
        %529 = vmatpush1.msra.mxu0 0.0
        %530 = vmatprep.subr.mxu0 0.0
        %531 = vmatpush1.msra.mxu0 0.0
        %532 = vmatprep.subr.mxu0 0.0
        %533 = vmatpush1.msra.mxu0 0.0
        %534 = vmatprep.subr.mxu0 0.0
        %535 = vmatpush1.msra.mxu0 0.0
        %536 = vmatprep.subr.mxu0 0.0
        %537 = vmatpush1.msra.mxu0 0.0
        %538 = vmatprep.subr.mxu0 0.0
        %539 = vmatpush1.msra.mxu0 0.0
        %540 = vmatprep.subr.mxu0 0.0
        %541 = vmatpush1.msra.mxu0 0.0
        %542 = vmatprep.subr.mxu0 0.0
        %543 = vmatpush1.msra.mxu0 0.0
        %544 = vmatprep.subr.mxu0 0.0
        %545 = vmatpush1.msra.mxu0 0.0
        %546 = vmatprep.subr.mxu0 0.0
        %547 = vmatpush1.msra.mxu0 0.0
        %548 = vmatprep.subr.mxu0 0.0
        %549 = vmatpush1.msra.mxu0 0.0
        %550 = vmatprep.subr.mxu0 0.0
        %551 = vmatpush1.msra.mxu0 0.0
        %552 = vmatprep.subr.mxu0 0.0
        %553 = vmatpush1.msra.mxu0 0.0
        %554 = vmatprep.subr.mxu0 0.0
        %555 = vmatpush1.msra.mxu0 0.0
        %556 = vmatprep.subr.mxu0 0.0
        %557 = vmatpush1.msra.mxu0 0.0
        %558 = vmatprep.subr.mxu0 0.0
        %559 = vmatpush1.msra.mxu0 0.0
        %560 = vmatprep.subr.mxu0 0.0
        %561 = vmatpush1.msra.mxu0 0.0
        %562 = vmatprep.subr.mxu0 0.0
        %563 = vmatpush1.msra.mxu0 0.0
        %564 = vmatprep.subr.mxu0 0.0
        %565 = vmatpush1.msra.mxu0 0.0
        %566 = vmatprep.subr.mxu0 0.0
        %567 = vmatpush1.msra.mxu0 0.0
        %568 = vmatprep.subr.mxu0 0.0
        %569 = vmatpush1.msra.mxu0 0.0
        %570 = vmatprep.subr.mxu0 0.0
        %571 = vmatpush1.msra.mxu0 0.0
        %572 = vmatprep.subr.mxu0 0.0
        %573 = vmatpush1.msra.mxu0 0.0
        %574 = vmatprep.subr.mxu0 0.0
        %575 = vmatpush1.msra.mxu0 0.0
        %576 = vmatprep.subr.mxu0 0.0
        %577 = vmatpush1.msra.mxu0 0.0
        %578 = vmatprep.subr.mxu0 0.0
        %579 = vmatpush1.msra.mxu0 0.0
        %580 = vmatprep.subr.mxu0 0.0
        %581 = vmatpush1.msra.mxu0 0.0
        %582 = vmatprep.subr.mxu0 0.0
        %583 = vmatpush1.msra.mxu0 0.0
        %584 = vmatprep.subr.mxu0 0.0
        %585 = vmatpush1.msra.mxu0 0.0
        %586 = vmatprep.subr.mxu0 0.0
        %587 = vmatpush1.msra.mxu0 0.0
        %588 = vmatprep.mubr.f32.mxu0 0.0
        %589 = vmatmul.mubr.f32.gmra.mrb[0].mxu0 %v359
        %v590 = vpop.f32.mrb[0].mxu0
        %v591 = vadd.f32 %v355, %v590
        %v592 = vpop.f32.mrb[0].mxu0
        %593 = vmatprep.mubr.f32.mxu0 0.0
        %594 = vmatmul.mubr.f32.gmra.mrb[0].mxu0 %v362
        %v595 = vpop.f32.mrb[0].mxu0
        %v596 = vadd.f32 %v355, %v595
        %v597 = vpop.f32.mrb[0].mxu0
        %598 = vmatprep.mubr.f32.mxu0 0.0
        %599 = vmatmul.mubr.f32.gmra.mrb[0].mxu0 %v365
        %v600 = vpop.f32.mrb[0].mxu0
        %v601 = vadd.f32 %v355, %v600
        %v602 = vpop.f32.mrb[0].mxu0
        %603 = vmatprep.mubr.f32.mxu0 0.0
        %604 = vmatmul.mubr.f32.gmra.mrb[0].mxu0 %v368
        %v605 = vpop.f32.mrb[0].mxu0
        %v606 = vadd.f32 %v355, %v605
        %v607 = vpop.f32.mrb[0].mxu0
        %608 = vmatprep.mubr.f32.mxu0 0.0
        %609 = vmatmul.mubr.f32.gmra.mrb[0].mxu0 %v371
        %v610 = vpop.f32.mrb[0].mxu0
        %v611 = vadd.f32 %v355, %v610
        %v612 = vpop.f32.mrb[0].mxu0
        %613 = vmatprep.mubr.f32.mxu0 0.0
        %614 = vmatmul.mubr.f32.gmra.mrb[0].mxu0 %v374
        %v615 = vpop.f32.mrb[0].mxu0
        %v616 = vadd.f32 %v355, %v615
        %v617 = vpop.f32.mrb[0].mxu0
        %618 = vmatprep.mubr.f32.mxu0 0.0
        %619 = vmatmul.mubr.f32.gmra.mrb[0].mxu0 %v377
        %v620 = vpop.f32.mrb[0].mxu0
        %v621 = vadd.f32 %v355, %v620
        %v622 = vpop.f32.mrb[0].mxu0
        %623 = vmatprep.mubr.f32.mxu0 0.0
        %624 = vmatmul.mubr.f32.gmra.mrb[0].mxu0 %v380
        %v625 = vpop.f32.mrb[0].mxu0
        %v626 = vadd.f32 %v355, %v625
        %v627 = vpop.f32.mrb[0].mxu0
        %628 = vmatprep.mubr.f32.mxu0 0.0
        %629 = vmatmul.mubr.f32.gmra.mrb[0].mxu0 %v383
        %v630 = vpop.f32.mrb[0].mxu0
        %v631 = vadd.f32 %v355, %v630
        %v632 = vpop.f32.mrb[0].mxu0
        %633 = vmatprep.mubr.f32.mxu0 0.0
        %634 = vmatmul.mubr.f32.gmra.mrb[0].mxu0 %v386
        %v635 = vpop.f32.mrb[0].mxu0
        %v636 = vadd.f32 %v355, %v635
        %v637 = vpop.f32.mrb[0].mxu0
        %638 = vmatprep.mubr.f32.mxu0 0.0
        %639 = vmatmul.mubr.f32.gmra.mrb[0].mxu0 %v389
        %v640 = vpop.f32.mrb[0].mxu0
        %v641 = vadd.f32 %v355, %v640
        %v642 = vpop.f32.mrb[0].mxu0
        %643 = vmatprep.mubr.f32.mxu0 0.0
        %644 = vmatmul.mubr.f32.gmra.mrb[0].mxu0 %v392
        %v645 = vpop.f32.mrb[0].mxu0
        %v646 = vadd.f32 %v355, %v645
        %v647 = vpop.f32.mrb[0].mxu0
        %648 = vmatprep.mubr.f32.mxu0 0.0
        %649 = vmatmul.mubr.f32.gmra.mrb[0].mxu0 %v395
        %v650 = vpop.f32.mrb[0].mxu0
        %v651 = vadd.f32 %v355, %v650
        %v652 = vpop.f32.mrb[0].mxu0
        %653 = vmatprep.mubr.f32.mxu0 0.0
        %654 = vmatmul.mubr.f32.gmra.mrb[0].mxu0 %v398
        %v655 = vpop.f32.mrb[0].mxu0
        %v656 = vadd.f32 %v355, %v655
        %v657 = vpop.f32.mrb[0].mxu0
        %658 = vmatprep.mubr.f32.mxu0 0.0
        %659 = vmatmul.mubr.f32.gmra.mrb[0].mxu0 %v401
        %v660 = vpop.f32.mrb[0].mxu0
        %v661 = vadd.f32 %v355, %v660
        %v662 = vpop.f32.mrb[0].mxu0
        %663 = vmatprep.mubr.f32.mxu0 0.0
        %664 = vmatmul.mubr.f32.gmra.mrb[0].mxu0 %v404
        %v665 = vpop.f32.mrb[0].mxu0
        %v666 = vadd.f32 %v355, %v665
        %v667 = vpop.f32.mrb[0].mxu0
        %668 = vmatprep.mubr.f32.mxu0 0.0
        %669 = vmatmul.mubr.f32.gmra.mrb[0].mxu0 %v407
        %v670 = vpop.f32.mrb[0].mxu0
        %v671 = vadd.f32 %v355, %v670
        %v672 = vpop.f32.mrb[0].mxu0
        %673 = vmatprep.mubr.f32.mxu0 0.0
        %674 = vmatmul.mubr.f32.gmra.mrb[0].mxu0 %v410
        %v675 = vpop.f32.mrb[0].mxu0
        %v676 = vadd.f32 %v355, %v675
        %v677 = vpop.f32.mrb[0].mxu0
        %678 = vmatprep.mubr.f32.mxu0 0.0
        %679 = vmatmul.mubr.f32.gmra.mrb[0].mxu0 %v413
        %v680 = vpop.f32.mrb[0].mxu0
        %v681 = vadd.f32 %v355, %v680
        %v682 = vpop.f32.mrb[0].mxu0
        %683 = vmatprep.mubr.f32.mxu0 0.0
        %684 = vmatmul.mubr.f32.gmra.mrb[0].mxu0 %v416
        %v685 = vpop.f32.mrb[0].mxu0
        %v686 = vadd.f32 %v355, %v685
        %v687 = vpop.f32.mrb[0].mxu0
        %688 = vmatprep.mubr.f32.mxu0 0.0
        %689 = vmatmul.mubr.f32.gmra.mrb[0].mxu0 %v419
        %v690 = vpop.f32.mrb[0].mxu0
        %v691 = vadd.f32 %v355, %v690
        %v692 = vpop.f32.mrb[0].mxu0
        %693 = vmatprep.mubr.f32.mxu0 0.0
        %694 = vmatmul.mubr.f32.gmra.mrb[0].mxu0 %v422
        %v695 = vpop.f32.mrb[0].mxu0
        %v696 = vadd.f32 %v355, %v695
        %v697 = vpop.f32.mrb[0].mxu0
        %698 = vmatprep.mubr.f32.mxu0 0.0
        %699 = vmatmul.mubr.f32.gmra.mrb[0].mxu0 %v425
        %v700 = vpop.f32.mrb[0].mxu0
        %v701 = vadd.f32 %v355, %v700
        %v702 = vpop.f32.mrb[0].mxu0
        %703 = vmatprep.mubr.f32.mxu0 0.0
        %704 = vmatmul.mubr.f32.gmra.mrb[0].mxu0 %v428
        %v705 = vpop.f32.mrb[0].mxu0
        %v706 = vadd.f32 %v355, %v705
        %v707 = vpop.f32.mrb[0].mxu0
        %708 = vmatprep.mubr.f32.mxu0 0.0
        %709 = vmatmul.mubr.f32.gmra.mrb[0].mxu0 %v431
        %v710 = vpop.f32.mrb[0].mxu0
        %v711 = vadd.f32 %v355, %v710
        %v712 = vpop.f32.mrb[0].mxu0
        %713 = vmatprep.mubr.f32.mxu0 0.0
        %714 = vmatmul.mubr.f32.gmra.mrb[0].mxu0 %v434
        %v715 = vpop.f32.mrb[0].mxu0
        %v716 = vadd.f32 %v355, %v715
        %v717 = vpop.f32.mrb[0].mxu0
        %718 = vmatprep.mubr.f32.mxu0 0.0
        %719 = vmatmul.mubr.f32.gmra.mrb[0].mxu0 %v437
        %v720 = vpop.f32.mrb[0].mxu0
        %v721 = vadd.f32 %v355, %v720
        %v722 = vpop.f32.mrb[0].mxu0
        %723 = vmatprep.mubr.f32.mxu0 0.0
        %724 = vmatmul.mubr.f32.gmra.mrb[0].mxu0 %v440
        %v725 = vpop.f32.mrb[0].mxu0
        %v726 = vadd.f32 %v355, %v725
        %v727 = vpop.f32.mrb[0].mxu0
        %728 = vmatprep.mubr.f32.mxu0 0.0
        %729 = vmatmul.mubr.f32.gmra.mrb[0].mxu0 %v443
        %v730 = vpop.f32.mrb[0].mxu0
        %v731 = vadd.f32 %v355, %v730
        %v732 = vpop.f32.mrb[0].mxu0
        %733 = vmatprep.mubr.f32.mxu0 0.0
        %734 = vmatmul.mubr.f32.gmra.mrb[0].mxu0 %v446
        %v735 = vpop.f32.mrb[0].mxu0
        %v736 = vadd.f32 %v355, %v735
        %v737 = vpop.f32.mrb[0].mxu0
        %738 = vmatprep.mubr.f32.mxu0 0.0
        %739 = vmatmul.mubr.f32.gmra.mrb[0].mxu0 %v449
        %v740 = vpop.f32.mrb[0].mxu0
        %v741 = vadd.f32 %v355, %v740
        %v742 = vpop.f32.mrb[0].mxu0
        %743 = vmatprep.mubr.f32.mxu0 0.0
        %744 = vmatmul.mubr.f32.gmra.mrb[0].mxu0 %v452
        %v745 = vpop.f32.mrb[0].mxu0
        %v746 = vadd.f32 %v355, %v745
        %v747 = vpop.f32.mrb[0].mxu0
        %748 = vmatprep.mubr.f32.mxu0 0.0
        %749 = vmatmul.mubr.f32.gmra.mrb[0].mxu0 %v455
        %v750 = vpop.f32.mrb[0].mxu0
        %v751 = vadd.f32 %v355, %v750
        %v752 = vpop.f32.mrb[0].mxu0
        %753 = vmatprep.mubr.f32.mxu0 0.0
        %754 = vmatmul.mubr.f32.gmra.mrb[0].mxu0 %v458
        %v755 = vpop.f32.mrb[0].mxu0
        %v756 = vadd.f32 %v355, %v755
        %v757 = vpop.f32.mrb[0].mxu0
        %758 = vmatprep.mubr.f32.mxu0 0.0
        %759 = vmatmul.mubr.f32.gmra.mrb[0].mxu0 %v461
        %v760 = vpop.f32.mrb[0].mxu0
        %v761 = vadd.f32 %v355, %v760
        %v762 = vpop.f32.mrb[0].mxu0
        %763 = vmatprep.mubr.f32.mxu0 0.0
        %764 = vmatmul.mubr.f32.gmra.mrb[0].mxu0 %v464
        %v765 = vpop.f32.mrb[0].mxu0
        %v766 = vadd.f32 %v355, %v765
        %v767 = vpop.f32.mrb[0].mxu0
        %768 = vmatprep.mubr.f32.mxu0 0.0
        %769 = vmatmul.mubr.f32.gmra.mrb[0].mxu0 %v467
        %v770 = vpop.f32.mrb[0].mxu0
        %v771 = vadd.f32 %v355, %v770
        %v772 = vpop.f32.mrb[0].mxu0
        %773 = vmatprep.mubr.f32.mxu0 0.0
        %774 = vmatmul.mubr.f32.gmra.mrb[0].mxu0 %v470
        %v775 = vpop.f32.mrb[0].mxu0
        %v776 = vadd.f32 %v355, %v775
        %v777 = vpop.f32.mrb[0].mxu0
        %778 = vmatprep.mubr.f32.mxu0 0.0
        %779 = vmatmul.mubr.f32.gmra.mrb[0].mxu0 %v473
        %v780 = vpop.f32.mrb[0].mxu0
        %v781 = vadd.f32 %v355, %v780
        %v782 = vpop.f32.mrb[0].mxu0
        %783 = vmatprep.mubr.f32.mxu0 0.0
        %784 = vmatmul.mubr.f32.gmra.mrb[0].mxu0 %v476
        %v785 = vpop.f32.mrb[0].mxu0
        %v786 = vadd.f32 %v355, %v785
        %v787 = vpop.f32.mrb[0].mxu0
        %788 = vmatprep.mubr.f32.mxu0 0.0
        %789 = vmatmul.mubr.f32.gmra.mrb[0].mxu0 %v479
        %v790 = vpop.f32.mrb[0].mxu0
        %v791 = vadd.f32 %v355, %v790
        %v792 = vpop.f32.mrb[0].mxu0
        %793 = vmatprep.mubr.f32.mxu0 0.0
        %794 = vmatmul.mubr.f32.gmra.mrb[0].mxu0 %v482
        %v795 = vpop.f32.mrb[0].mxu0
        %v796 = vadd.f32 %v355, %v795
        %v797 = vpop.f32.mrb[0].mxu0
        %798 = vmatprep.mubr.f32.mxu0 0.0
        %799 = vmatmul.mubr.f32.gmra.mrb[0].mxu0 %v485
        %v800 = vpop.f32.mrb[0].mxu0
        %v801 = vadd.f32 %v355, %v800
        %v802 = vpop.f32.mrb[0].mxu0
        %803 = vmatprep.mubr.f32.mxu0 0.0
        %804 = vmatmul.mubr.f32.gmra.mrb[0].mxu0 %v488
        %v805 = vpop.f32.mrb[0].mxu0
        %v806 = vadd.f32 %v355, %v805
        %v807 = vpop.f32.mrb[0].mxu0
        %808 = vmatprep.mubr.f32.mxu0 0.0
        %809 = vmatmul.mubr.f32.gmra.mrb[0].mxu0 %v491
        %v810 = vpop.f32.mrb[0].mxu0
        %v811 = vadd.f32 %v355, %v810
        %v812 = vpop.f32.mrb[0].mxu0
        %813 = vmatprep.mubr.f32.mxu0 0.0
        %814 = vmatmul.mubr.f32.gmra.mrb[0].mxu0 %v494
        %v815 = vpop.f32.mrb[0].mxu0
        %v816 = vadd.f32 %v355, %v815
        %v817 = vpop.f32.mrb[0].mxu0
        %818 = vmatprep.mubr.f32.mxu0 0.0
        %819 = vmatmul.mubr.f32.gmra.mrb[0].mxu0 %v497
        %v820 = vpop.f32.mrb[0].mxu0
        %v821 = vadd.f32 %v355, %v820
        %v822 = vpop.f32.mrb[0].mxu0
        %823 = vmatprep.mubr.f32.mxu0 0.0
        %824 = vmatmul.mubr.f32.gmra.mrb[0].mxu0 %v500
        %v825 = vpop.f32.mrb[0].mxu0
        %v826 = vadd.f32 %v355, %v825
        %v827 = vpop.f32.mrb[0].mxu0
        %828 = vmatprep.mubr.f32.mxu0 0.0
        %829 = vmatmul.mubr.f32.gmra.mrb[0].mxu0 %v503
        %v830 = vpop.f32.mrb[0].mxu0
        %v831 = vadd.f32 %v355, %v830
        %v832 = vpop.f32.mrb[0].mxu0
        %833 = vmatprep.mubr.f32.mxu0 0.0
        %834 = vmatmul.mubr.f32.gmra.mrb[0].mxu0 %v506
        %v835 = vpop.f32.mrb[0].mxu0
        %v836 = vadd.f32 %v355, %v835
        %v837 = vpop.f32.mrb[0].mxu0
        %838 = vmatprep.mubr.f32.mxu0 0.0
        %839 = vmatmul.mubr.f32.gmra.mrb[0].mxu0 %v509
        %v840 = vpop.f32.mrb[0].mxu0
        %v841 = vadd.f32 %v355, %v840
        %v842 = vpop.f32.mrb[0].mxu0
        %843 = vmatprep.mubr.f32.mxu0 0.0
        %844 = vmatmul.mubr.f32.gmra.mrb[0].mxu0 %v512
        %v845 = vpop.f32.mrb[0].mxu0
        %v846 = vadd.f32 %v355, %v845
        %v847 = vpop.f32.mrb[0].mxu0
        %848 = vmatprep.mubr.f32.mxu0 0.0
        %849 = vmatmul.mubr.f32.gmra.mrb[0].mxu0 %v515
        %v850 = vpop.f32.mrb[0].mxu0
        %v851 = vadd.f32 %v355, %v850
        %v852 = vpop.f32.mrb[0].mxu0
        %853 = vmatprep.mubr.f32.mxu0 0.0
        %854 = vmatmul.mubr.f32.gmra.mrb[0].mxu0 %v518
        %v855 = vpop.f32.mrb[0].mxu0
        %v856 = vadd.f32 %v355, %v855
        %v857 = vpop.f32.mrb[0].mxu0
        %858 = vdwg.mxu0
        %v859 = vmax.f32 %v591, 0.0
        %v860 = vmax.f32 %v596, 0.0
        %v861 = vmax.f32 %v601, 0.0
        %v862 = vmax.f32 %v606, 0.0
        %v863 = vmax.f32 %v611, 0.0
        %v864 = vmax.f32 %v616, 0.0
        %v865 = vmax.f32 %v621, 0.0
        %v866 = vmax.f32 %v626, 0.0
        %v867 = vmax.f32 %v631, 0.0
        %v868 = vmax.f32 %v636, 0.0
        %v869 = vmax.f32 %v641, 0.0
        %v870 = vmax.f32 %v646, 0.0
        %v871 = vmax.f32 %v651, 0.0
        %v872 = vmax.f32 %v656, 0.0
        %v873 = vmax.f32 %v661, 0.0
        %v874 = vmax.f32 %v666, 0.0
        %v875 = vmax.f32 %v671, 0.0
        %v876 = vmax.f32 %v676, 0.0
        %v877 = vmax.f32 %v681, 0.0
        %v878 = vmax.f32 %v686, 0.0
        %v879 = vmax.f32 %v691, 0.0
        %v880 = vmax.f32 %v696, 0.0
        %v881 = vmax.f32 %v701, 0.0
        %v882 = vmax.f32 %v706, 0.0
        %v883 = vmax.f32 %v711, 0.0
        %v884 = vmax.f32 %v716, 0.0
        %v885 = vmax.f32 %v721, 0.0
        %v886 = vmax.f32 %v726, 0.0
        %v887 = vmax.f32 %v731, 0.0
        %v888 = vmax.f32 %v736, 0.0
        %v889 = vmax.f32 %v741, 0.0
        %v890 = vmax.f32 %v746, 0.0
        %v891 = vmax.f32 %v751, 0.0
        %v892 = vmax.f32 %v756, 0.0
        %v893 = vmax.f32 %v761, 0.0
        %v894 = vmax.f32 %v766, 0.0
        %v895 = vmax.f32 %v771, 0.0
        %v896 = vmax.f32 %v776, 0.0
        %v897 = vmax.f32 %v781, 0.0
        %v898 = vmax.f32 %v786, 0.0
        %v899 = vmax.f32 %v791, 0.0
        %v900 = vmax.f32 %v796, 0.0
        %v901 = vmax.f32 %v801, 0.0
        %v902 = vmax.f32 %v806, 0.0
        %v903 = vmax.f32 %v811, 0.0
        %v904 = vmax.f32 %v816, 0.0
        %v905 = vmax.f32 %v821, 0.0
        %v906 = vmax.f32 %v826, 0.0
        %v907 = vmax.f32 %v831, 0.0
        %v908 = vmax.f32 %v836, 0.0
        %v909 = vmax.f32 %v841, 0.0
        %v910 = vmax.f32 %v846, 0.0
        %v911 = vmax.f32 %v851, 0.0
        %v912 = vmax.f32 %v856, 0.0
        %v913 = vmin.f32 %v859, 6.0
        %v914 = vmin.f32 %v860, 6.0
        %v915 = vmin.f32 %v861, 6.0
        %v916 = vmin.f32 %v862, 6.0
        %v917 = vmin.f32 %v863, 6.0
        %v918 = vmin.f32 %v864, 6.0
        %v919 = vmin.f32 %v865, 6.0
        %v920 = vmin.f32 %v866, 6.0
        %v921 = vmin.f32 %v867, 6.0
        %v922 = vmin.f32 %v868, 6.0
        %v923 = vmin.f32 %v869, 6.0
        %v924 = vmin.f32 %v870, 6.0
        %v925 = vmin.f32 %v871, 6.0
        %v926 = vmin.f32 %v872, 6.0
        %v927 = vmin.f32 %v873, 6.0
        %v928 = vmin.f32 %v874, 6.0
        %v929 = vmin.f32 %v875, 6.0
        %v930 = vmin.f32 %v876, 6.0
        %v931 = vmin.f32 %v877, 6.0
        %v932 = vmin.f32 %v878, 6.0
        %v933 = vmin.f32 %v879, 6.0
        %v934 = vmin.f32 %v880, 6.0
        %v935 = vmin.f32 %v881, 6.0
        %v936 = vmin.f32 %v882, 6.0
        %v937 = vmin.f32 %v883, 6.0
        %v938 = vmin.f32 %v884, 6.0
        %v939 = vmin.f32 %v885, 6.0
        %v940 = vmin.f32 %v886, 6.0
        %v941 = vmin.f32 %v887, 6.0
        %v942 = vmin.f32 %v888, 6.0
        %v943 = vmin.f32 %v889, 6.0
        %v944 = vmin.f32 %v890, 6.0
        %v945 = vmin.f32 %v891, 6.0
        %v946 = vmin.f32 %v892, 6.0
        %v947 = vmin.f32 %v893, 6.0
        %v948 = vmin.f32 %v894, 6.0
        %v949 = vmin.f32 %v895, 6.0
        %v950 = vmin.f32 %v896, 6.0
        %v951 = vmin.f32 %v897, 6.0
        %v952 = vmin.f32 %v898, 6.0
        %v953 = vmin.f32 %v899, 6.0
        %v954 = vmin.f32 %v900, 6.0
        %v955 = vmin.f32 %v901, 6.0
        %v956 = vmin.f32 %v902, 6.0
        %v957 = vmin.f32 %v903, 6.0
        %v958 = vmin.f32 %v904, 6.0
        %v959 = vmin.f32 %v905, 6.0
        %v960 = vmin.f32 %v906, 6.0
        %v961 = vmin.f32 %v907, 6.0
        %v962 = vmin.f32 %v908, 6.0
        %v963 = vmin.f32 %v909, 6.0
        %v964 = vmin.f32 %v910, 6.0
        %v965 = vmin.f32 %v911, 6.0
        %v966 = vmin.f32 %v912, 6.0
        %v967 = vstv %s292
        %v968 = vadd.s32 %v967, 1
        %v969 = vadd.s32 %v967, 2
        %v970 = vadd.s32 %v967, 3
        %v971 = vadd.s32 %v967, 4
        %v972 = vadd.s32 %v967, 5
        %v973 = vadd.s32 %v967, 6
        %v974 = vadd.s32 %v967, 7
        %v975 = vadd.s32 %v967, 8
        %v976 = vadd.s32 %v967, 9
        %v977 = vadd.s32 %v967, 10
        %v978 = vadd.s32 %v967, 11
        %v979 = vadd.s32 %v967, 12
        %v980 = vadd.s32 %v967, 13
        %v981 = vadd.s32 %v967, 14
        %v982 = vadd.s32 %v967, 15
        %v983 = vadd.s32 %v967, 16
        %v984 = vadd.s32 %v967, 17
        %v985 = vlaneseq
        %v986 = vshrl.u32 %v985, 7
        %v987 = vadd.s32 %v986, 8
        %v988 = vadd.s32 %v986, 16
        %vm989 = vcmp.ge.s32.totalorder %v967, 1
        %vm990 = vcmp.ge.s32.totalorder %v968, 1
        %vm991 = vcmp.ge.s32.totalorder %v969, 1
        %vm992 = vcmp.ge.s32.totalorder %v970, 1
        %vm993 = vcmp.ge.s32.totalorder %v971, 1
        %vm994 = vcmp.ge.s32.totalorder %v972, 1
        %vm995 = vcmp.ge.s32.totalorder %v973, 1
        %vm996 = vcmp.ge.s32.totalorder %v974, 1
        %vm997 = vcmp.ge.s32.totalorder %v975, 1
        %vm998 = vcmp.ge.s32.totalorder %v976, 1
        %vm999 = vcmp.ge.s32.totalorder %v977, 1
        %vm1000 = vcmp.ge.s32.totalorder %v978, 1
        %vm1001 = vcmp.ge.s32.totalorder %v979, 1
        %vm1002 = vcmp.ge.s32.totalorder %v980, 1
        %vm1003 = vcmp.ge.s32.totalorder %v981, 1
        %vm1004 = vcmp.ge.s32.totalorder %v982, 1
        %vm1005 = vcmp.ge.s32.totalorder %v983, 1
        %vm1006 = vcmp.ge.s32.totalorder %v984, 1
        %vm1007 = vcmp.le.s32.totalorder %v967, 16
        %vm1008 = vcmp.le.s32.totalorder %v968, 16
        %vm1009 = vcmp.le.s32.totalorder %v969, 16
        %vm1010 = vcmp.le.s32.totalorder %v970, 16
        %vm1011 = vcmp.le.s32.totalorder %v971, 16
        %vm1012 = vcmp.le.s32.totalorder %v972, 16
        %vm1013 = vcmp.le.s32.totalorder %v973, 16
        %vm1014 = vcmp.le.s32.totalorder %v974, 16
        %vm1015 = vcmp.le.s32.totalorder %v975, 16
        %vm1016 = vcmp.le.s32.totalorder %v976, 16
        %vm1017 = vcmp.le.s32.totalorder %v977, 16
        %vm1018 = vcmp.le.s32.totalorder %v978, 16
        %vm1019 = vcmp.le.s32.totalorder %v979, 16
        %vm1020 = vcmp.le.s32.totalorder %v980, 16
        %vm1021 = vcmp.le.s32.totalorder %v981, 16
        %vm1022 = vcmp.le.s32.totalorder %v982, 16
        %vm1023 = vcmp.le.s32.totalorder %v983, 16
        %vm1024 = vcmp.le.s32.totalorder %v984, 16
        %vm1025 = vmand %vm989, %vm1007
        %vm1026 = vmand %vm990, %vm1008
        %vm1027 = vmand %vm991, %vm1009
        %vm1028 = vmand %vm992, %vm1010
        %vm1029 = vmand %vm993, %vm1011
        %vm1030 = vmand %vm994, %vm1012
        %vm1031 = vmand %vm995, %vm1013
        %vm1032 = vmand %vm996, %vm1014
        %vm1033 = vmand %vm997, %vm1015
        %vm1034 = vmand %vm998, %vm1016
        %vm1035 = vmand %vm999, %vm1017
        %vm1036 = vmand %vm1000, %vm1018
        %vm1037 = vmand %vm1001, %vm1019
        %vm1038 = vmand %vm1002, %vm1020
        %vm1039 = vmand %vm1003, %vm1021
        %vm1040 = vmand %vm1004, %vm1022
        %vm1041 = vmand %vm1005, %vm1023
        %vm1042 = vmand %vm1006, %vm1024
        %vm1043 = vcmp.ge.s32.totalorder %v986, 1
        %vm1044 = vcmp.ge.s32.totalorder %v987, 1
        %vm1045 = vcmp.ge.s32.totalorder %v988, 1
        %vm1046 = vmand %vm1025, %vm1043
        %vm1047 = vmand %vm1025, %vm1044
        %vm1048 = vmand %vm1025, %vm1045
        %vm1049 = vmand %vm1026, %vm1043
        %vm1050 = vmand %vm1026, %vm1044
        %vm1051 = vmand %vm1026, %vm1045
        %vm1052 = vmand %vm1027, %vm1043
        %vm1053 = vmand %vm1027, %vm1044
        %vm1054 = vmand %vm1027, %vm1045
        %vm1055 = vmand %vm1028, %vm1043
        %vm1056 = vmand %vm1028, %vm1044
        %vm1057 = vmand %vm1028, %vm1045
        %vm1058 = vmand %vm1029, %vm1043
        %vm1059 = vmand %vm1029, %vm1044
        %vm1060 = vmand %vm1029, %vm1045
        %vm1061 = vmand %vm1030, %vm1043
        %vm1062 = vmand %vm1030, %vm1044
        %vm1063 = vmand %vm1030, %vm1045
        %vm1064 = vmand %vm1031, %vm1043
        %vm1065 = vmand %vm1031, %vm1044
        %vm1066 = vmand %vm1031, %vm1045
        %vm1067 = vmand %vm1032, %vm1043
        %vm1068 = vmand %vm1032, %vm1044
        %vm1069 = vmand %vm1032, %vm1045
        %vm1070 = vmand %vm1033, %vm1043
        %vm1071 = vmand %vm1033, %vm1044
        %vm1072 = vmand %vm1033, %vm1045
        %vm1073 = vmand %vm1034, %vm1043
        %vm1074 = vmand %vm1034, %vm1044
        %vm1075 = vmand %vm1034, %vm1045
        %vm1076 = vmand %vm1035, %vm1043
        %vm1077 = vmand %vm1035, %vm1044
        %vm1078 = vmand %vm1035, %vm1045
        %vm1079 = vmand %vm1036, %vm1043
        %vm1080 = vmand %vm1036, %vm1044
        %vm1081 = vmand %vm1036, %vm1045
        %vm1082 = vmand %vm1037, %vm1043
        %vm1083 = vmand %vm1037, %vm1044
        %vm1084 = vmand %vm1037, %vm1045
        %vm1085 = vmand %vm1038, %vm1043
        %vm1086 = vmand %vm1038, %vm1044
        %vm1087 = vmand %vm1038, %vm1045
        %vm1088 = vmand %vm1039, %vm1043
        %vm1089 = vmand %vm1039, %vm1044
        %vm1090 = vmand %vm1039, %vm1045
        %vm1091 = vmand %vm1040, %vm1043
        %vm1092 = vmand %vm1040, %vm1044
        %vm1093 = vmand %vm1040, %vm1045
        %vm1094 = vmand %vm1041, %vm1043
        %vm1095 = vmand %vm1041, %vm1044
        %vm1096 = vmand %vm1041, %vm1045
        %vm1097 = vmand %vm1042, %vm1043
        %vm1098 = vmand %vm1042, %vm1044
        %vm1099 = vmand %vm1042, %vm1045
        %vm1100 = vcmp.le.s32.totalorder %v986, 16
        %vm1101 = vcmp.le.s32.totalorder %v987, 16
        %vm1102 = vcmp.le.s32.totalorder %v988, 16
        %vm1103 = vmand %vm1046, %vm1100
        %vm1104 = vmand %vm1047, %vm1101
        %vm1105 = vmand %vm1048, %vm1102
        %vm1106 = vmand %vm1049, %vm1100
        %vm1107 = vmand %vm1050, %vm1101
        %vm1108 = vmand %vm1051, %vm1102
        %vm1109 = vmand %vm1052, %vm1100
        %vm1110 = vmand %vm1053, %vm1101
        %vm1111 = vmand %vm1054, %vm1102
        %vm1112 = vmand %vm1055, %vm1100
        %vm1113 = vmand %vm1056, %vm1101
        %vm1114 = vmand %vm1057, %vm1102
        %vm1115 = vmand %vm1058, %vm1100
        %vm1116 = vmand %vm1059, %vm1101
        %vm1117 = vmand %vm1060, %vm1102
        %vm1118 = vmand %vm1061, %vm1100
        %vm1119 = vmand %vm1062, %vm1101
        %vm1120 = vmand %vm1063, %vm1102
        %vm1121 = vmand %vm1064, %vm1100
        %vm1122 = vmand %vm1065, %vm1101
        %vm1123 = vmand %vm1066, %vm1102
        %vm1124 = vmand %vm1067, %vm1100
        %vm1125 = vmand %vm1068, %vm1101
        %vm1126 = vmand %vm1069, %vm1102
        %vm1127 = vmand %vm1070, %vm1100
        %vm1128 = vmand %vm1071, %vm1101
        %vm1129 = vmand %vm1072, %vm1102
        %vm1130 = vmand %vm1073, %vm1100
        %vm1131 = vmand %vm1074, %vm1101
        %vm1132 = vmand %vm1075, %vm1102
        %vm1133 = vmand %vm1076, %vm1100
        %vm1134 = vmand %vm1077, %vm1101
        %vm1135 = vmand %vm1078, %vm1102
        %vm1136 = vmand %vm1079, %vm1100
        %vm1137 = vmand %vm1080, %vm1101
        %vm1138 = vmand %vm1081, %vm1102
        %vm1139 = vmand %vm1082, %vm1100
        %vm1140 = vmand %vm1083, %vm1101
        %vm1141 = vmand %vm1084, %vm1102
        %vm1142 = vmand %vm1085, %vm1100
        %vm1143 = vmand %vm1086, %vm1101
        %vm1144 = vmand %vm1087, %vm1102
        %vm1145 = vmand %vm1088, %vm1100
        %vm1146 = vmand %vm1089, %vm1101
        %vm1147 = vmand %vm1090, %vm1102
        %vm1148 = vmand %vm1091, %vm1100
        %vm1149 = vmand %vm1092, %vm1101
        %vm1150 = vmand %vm1093, %vm1102
        %vm1151 = vmand %vm1094, %vm1100
        %vm1152 = vmand %vm1095, %vm1101
        %vm1153 = vmand %vm1096, %vm1102
        %vm1154 = vmand %vm1097, %vm1100
        %vm1155 = vmand %vm1098, %vm1101
        %vm1156 = vmand %vm1099, %vm1102
        %v1157 = vsel %vm1103, 1, 0
        %v1158 = vsel %vm1104, 1, 0
        %v1159 = vsel %vm1105, 1, 0
        %v1160 = vsel %vm1106, 1, 0
        %v1161 = vsel %vm1107, 1, 0
        %v1162 = vsel %vm1108, 1, 0
        %v1163 = vsel %vm1109, 1, 0
        %v1164 = vsel %vm1110, 1, 0
        %v1165 = vsel %vm1111, 1, 0
        %v1166 = vsel %vm1112, 1, 0
        %v1167 = vsel %vm1113, 1, 0
        %v1168 = vsel %vm1114, 1, 0
        %v1169 = vsel %vm1115, 1, 0
        %v1170 = vsel %vm1116, 1, 0
        %v1171 = vsel %vm1117, 1, 0
        %v1172 = vsel %vm1118, 1, 0
        %v1173 = vsel %vm1119, 1, 0
        %v1174 = vsel %vm1120, 1, 0
        %v1175 = vsel %vm1121, 1, 0
        %v1176 = vsel %vm1122, 1, 0
        %v1177 = vsel %vm1123, 1, 0
        %v1178 = vsel %vm1124, 1, 0
        %v1179 = vsel %vm1125, 1, 0
        %v1180 = vsel %vm1126, 1, 0
        %v1181 = vsel %vm1127, 1, 0
        %v1182 = vsel %vm1128, 1, 0
        %v1183 = vsel %vm1129, 1, 0
        %v1184 = vsel %vm1130, 1, 0
        %v1185 = vsel %vm1131, 1, 0
        %v1186 = vsel %vm1132, 1, 0
        %v1187 = vsel %vm1133, 1, 0
        %v1188 = vsel %vm1134, 1, 0
        %v1189 = vsel %vm1135, 1, 0
        %v1190 = vsel %vm1136, 1, 0
        %v1191 = vsel %vm1137, 1, 0
        %v1192 = vsel %vm1138, 1, 0
        %v1193 = vsel %vm1139, 1, 0
        %v1194 = vsel %vm1140, 1, 0
        %v1195 = vsel %vm1141, 1, 0
        %v1196 = vsel %vm1142, 1, 0
        %v1197 = vsel %vm1143, 1, 0
        %v1198 = vsel %vm1144, 1, 0
        %v1199 = vsel %vm1145, 1, 0
        %v1200 = vsel %vm1146, 1, 0
        %v1201 = vsel %vm1147, 1, 0
        %v1202 = vsel %vm1148, 1, 0
        %v1203 = vsel %vm1149, 1, 0
        %v1204 = vsel %vm1150, 1, 0
        %v1205 = vsel %vm1151, 1, 0
        %v1206 = vsel %vm1152, 1, 0
        %v1207 = vsel %vm1153, 1, 0
        %v1208 = vsel %vm1154, 1, 0
        %v1209 = vsel %vm1155, 1, 0
        %v1210 = vsel %vm1156, 1, 0
        %vm1211 = vcmp.eq.s32.totalorder %v1157, 1
        %vm1212 = vcmp.eq.s32.totalorder %v1158, 1
        %vm1213 = vcmp.eq.s32.totalorder %v1159, 1
        %vm1214 = vcmp.eq.s32.totalorder %v1160, 1
        %vm1215 = vcmp.eq.s32.totalorder %v1161, 1
        %vm1216 = vcmp.eq.s32.totalorder %v1162, 1
        %vm1217 = vcmp.eq.s32.totalorder %v1163, 1
        %vm1218 = vcmp.eq.s32.totalorder %v1164, 1
        %vm1219 = vcmp.eq.s32.totalorder %v1165, 1
        %vm1220 = vcmp.eq.s32.totalorder %v1166, 1
        %vm1221 = vcmp.eq.s32.totalorder %v1167, 1
        %vm1222 = vcmp.eq.s32.totalorder %v1168, 1
        %vm1223 = vcmp.eq.s32.totalorder %v1169, 1
        %vm1224 = vcmp.eq.s32.totalorder %v1170, 1
        %vm1225 = vcmp.eq.s32.totalorder %v1171, 1
        %vm1226 = vcmp.eq.s32.totalorder %v1172, 1
        %vm1227 = vcmp.eq.s32.totalorder %v1173, 1
        %vm1228 = vcmp.eq.s32.totalorder %v1174, 1
        %vm1229 = vcmp.eq.s32.totalorder %v1175, 1
        %vm1230 = vcmp.eq.s32.totalorder %v1176, 1
        %vm1231 = vcmp.eq.s32.totalorder %v1177, 1
        %vm1232 = vcmp.eq.s32.totalorder %v1178, 1
        %vm1233 = vcmp.eq.s32.totalorder %v1179, 1
        %vm1234 = vcmp.eq.s32.totalorder %v1180, 1
        %vm1235 = vcmp.eq.s32.totalorder %v1181, 1
        %vm1236 = vcmp.eq.s32.totalorder %v1182, 1
        %vm1237 = vcmp.eq.s32.totalorder %v1183, 1
        %vm1238 = vcmp.eq.s32.totalorder %v1184, 1
        %vm1239 = vcmp.eq.s32.totalorder %v1185, 1
        %vm1240 = vcmp.eq.s32.totalorder %v1186, 1
        %vm1241 = vcmp.eq.s32.totalorder %v1187, 1
        %vm1242 = vcmp.eq.s32.totalorder %v1188, 1
        %vm1243 = vcmp.eq.s32.totalorder %v1189, 1
        %vm1244 = vcmp.eq.s32.totalorder %v1190, 1
        %vm1245 = vcmp.eq.s32.totalorder %v1191, 1
        %vm1246 = vcmp.eq.s32.totalorder %v1192, 1
        %vm1247 = vcmp.eq.s32.totalorder %v1193, 1
        %vm1248 = vcmp.eq.s32.totalorder %v1194, 1
        %vm1249 = vcmp.eq.s32.totalorder %v1195, 1
        %vm1250 = vcmp.eq.s32.totalorder %v1196, 1
        %vm1251 = vcmp.eq.s32.totalorder %v1197, 1
        %vm1252 = vcmp.eq.s32.totalorder %v1198, 1
        %vm1253 = vcmp.eq.s32.totalorder %v1199, 1
        %vm1254 = vcmp.eq.s32.totalorder %v1200, 1
        %vm1255 = vcmp.eq.s32.totalorder %v1201, 1
        %vm1256 = vcmp.eq.s32.totalorder %v1202, 1
        %vm1257 = vcmp.eq.s32.totalorder %v1203, 1
        %vm1258 = vcmp.eq.s32.totalorder %v1204, 1
        %vm1259 = vcmp.eq.s32.totalorder %v1205, 1
        %vm1260 = vcmp.eq.s32.totalorder %v1206, 1
        %vm1261 = vcmp.eq.s32.totalorder %v1207, 1
        %vm1262 = vcmp.eq.s32.totalorder %v1208, 1
        %vm1263 = vcmp.eq.s32.totalorder %v1209, 1
        %vm1264 = vcmp.eq.s32.totalorder %v1210, 1
        %v1265 = vsel %vm1211, %v913, 0.0
        %v1266 = vsel %vm1212, %v914, 0.0
        %v1267 = vsel %vm1213, %v915, 0.0
        %v1268 = vsel %vm1214, %v916, 0.0
        %v1269 = vsel %vm1215, %v917, 0.0
        %v1270 = vsel %vm1216, %v918, 0.0
        %v1271 = vsel %vm1217, %v919, 0.0
        %v1272 = vsel %vm1218, %v920, 0.0
        %v1273 = vsel %vm1219, %v921, 0.0
        %v1274 = vsel %vm1220, %v922, 0.0
        %v1275 = vsel %vm1221, %v923, 0.0
        %v1276 = vsel %vm1222, %v924, 0.0
        %v1277 = vsel %vm1223, %v925, 0.0
        %v1278 = vsel %vm1224, %v926, 0.0
        %v1279 = vsel %vm1225, %v927, 0.0
        %v1280 = vsel %vm1226, %v928, 0.0
        %v1281 = vsel %vm1227, %v929, 0.0
        %v1282 = vsel %vm1228, %v930, 0.0
        %v1283 = vsel %vm1229, %v931, 0.0
        %v1284 = vsel %vm1230, %v932, 0.0
        %v1285 = vsel %vm1231, %v933, 0.0
        %v1286 = vsel %vm1232, %v934, 0.0
        %v1287 = vsel %vm1233, %v935, 0.0
        %v1288 = vsel %vm1234, %v936, 0.0
        %v1289 = vsel %vm1235, %v937, 0.0
        %v1290 = vsel %vm1236, %v938, 0.0
        %v1291 = vsel %vm1237, %v939, 0.0
        %v1292 = vsel %vm1238, %v940, 0.0
        %v1293 = vsel %vm1239, %v941, 0.0
        %v1294 = vsel %vm1240, %v942, 0.0
        %v1295 = vsel %vm1241, %v943, 0.0
        %v1296 = vsel %vm1242, %v944, 0.0
        %v1297 = vsel %vm1243, %v945, 0.0
        %v1298 = vsel %vm1244, %v946, 0.0
        %v1299 = vsel %vm1245, %v947, 0.0
        %v1300 = vsel %vm1246, %v948, 0.0
        %v1301 = vsel %vm1247, %v949, 0.0
        %v1302 = vsel %vm1248, %v950, 0.0
        %v1303 = vsel %vm1249, %v951, 0.0
        %v1304 = vsel %vm1250, %v952, 0.0
        %v1305 = vsel %vm1251, %v953, 0.0
        %v1306 = vsel %vm1252, %v954, 0.0
        %v1307 = vsel %vm1253, %v955, 0.0
        %v1308 = vsel %vm1254, %v956, 0.0
        %v1309 = vsel %vm1255, %v957, 0.0
        %v1310 = vsel %vm1256, %v958, 0.0
        %v1311 = vsel %vm1257, %v959, 0.0
        %v1312 = vsel %vm1258, %v960, 0.0
        %v1313 = vsel %vm1259, %v961, 0.0
        %v1314 = vsel %vm1260, %v962, 0.0
        %v1315 = vsel %vm1261, %v963, 0.0
        %v1316 = vsel %vm1262, %v964, 0.0
        %v1317 = vsel %vm1263, %v965, 0.0
        %v1318 = vsel %vm1264, %v966, 0.0
        %v1319 = vld [vmem:[%s3] sm:$0x7]
        %v1320 = vld [vmem:[%s3 + $0x4] sm:$0x7]
        %v1321 = vld [vmem:[%s3 + $0x8] sm:$0x7]
        %v1322 = vlaneseq
        %v1323 = vshrl.u32 %v1322, 7
        %v1324 = vsub.s32 0, %v1323
        %v1325 = vrot.slane %v1319, %v1324
        %v1326 = vmul.f32 %v1265, %v1325
        %v1327 = vmul.f32 %v1266, %v1325
        %v1328 = vmul.f32 %v1268, %v1325
        %v1329 = vmul.f32 %v1269, %v1325
        %v1330 = vmul.f32 %v1271, %v1325
        %v1331 = vmul.f32 %v1272, %v1325
        %v1332 = vmul.f32 %v1274, %v1325
        %v1333 = vmul.f32 %v1275, %v1325
        %v1334 = vmul.f32 %v1277, %v1325
        %v1335 = vmul.f32 %v1278, %v1325
        %v1336 = vmul.f32 %v1280, %v1325
        %v1337 = vmul.f32 %v1281, %v1325
        %v1338 = vmul.f32 %v1283, %v1325
        %v1339 = vmul.f32 %v1284, %v1325
        %v1340 = vmul.f32 %v1286, %v1325
        %v1341 = vmul.f32 %v1287, %v1325
        %v1342 = vmul.f32 %v1289, %v1325
        %v1343 = vmul.f32 %v1290, %v1325
        %v1344 = vmul.f32 %v1292, %v1325
        %v1345 = vmul.f32 %v1293, %v1325
        %v1346 = vmul.f32 %v1295, %v1325
        %v1347 = vmul.f32 %v1296, %v1325
        %v1348 = vmul.f32 %v1298, %v1325
        %v1349 = vmul.f32 %v1299, %v1325
        %v1350 = vmul.f32 %v1301, %v1325
        %v1351 = vmul.f32 %v1302, %v1325
        %v1352 = vmul.f32 %v1304, %v1325
        %v1353 = vmul.f32 %v1305, %v1325
        %v1354 = vmul.f32 %v1307, %v1325
        %v1355 = vmul.f32 %v1308, %v1325
        %v1356 = vmul.f32 %v1310, %v1325
        %v1357 = vmul.f32 %v1311, %v1325
        %v1358 = vadd.f32 %v1326, 0.0
        %v1359 = vadd.f32 %v1327, 0.0
        %v1360 = vadd.f32 %v1328, 0.0
        %v1361 = vadd.f32 %v1329, 0.0
        %v1362 = vadd.f32 %v1330, 0.0
        %v1363 = vadd.f32 %v1331, 0.0
        %v1364 = vadd.f32 %v1332, 0.0
        %v1365 = vadd.f32 %v1333, 0.0
        %v1366 = vadd.f32 %v1334, 0.0
        %v1367 = vadd.f32 %v1335, 0.0
        %v1368 = vadd.f32 %v1336, 0.0
        %v1369 = vadd.f32 %v1337, 0.0
        %v1370 = vadd.f32 %v1338, 0.0
        %v1371 = vadd.f32 %v1339, 0.0
        %v1372 = vadd.f32 %v1340, 0.0
        %v1373 = vadd.f32 %v1341, 0.0
        %v1374 = vadd.f32 %v1342, 0.0
        %v1375 = vadd.f32 %v1343, 0.0
        %v1376 = vadd.f32 %v1344, 0.0
        %v1377 = vadd.f32 %v1345, 0.0
        %v1378 = vadd.f32 %v1346, 0.0
        %v1379 = vadd.f32 %v1347, 0.0
        %v1380 = vadd.f32 %v1348, 0.0
        %v1381 = vadd.f32 %v1349, 0.0
        %v1382 = vadd.f32 %v1350, 0.0
        %v1383 = vadd.f32 %v1351, 0.0
        %v1384 = vadd.f32 %v1352, 0.0
        %v1385 = vadd.f32 %v1353, 0.0
        %v1386 = vadd.f32 %v1354, 0.0
        %v1387 = vadd.f32 %v1355, 0.0
        %v1388 = vadd.f32 %v1356, 0.0
        %v1389 = vadd.f32 %v1357, 0.0
        %v1390 = vlaneseq
        %v1391 = vshrl.u32 %v1390, 7
        %v1392 = vsub.s32 1, %v1391
        %v1393 = vrot.slane %v1319, %v1392
        %v1394 = vmul.f32 %v1265, %v1393
        %v1395 = vmul.f32 %v1266, %v1393
        %v1396 = vmul.f32 %v1267, %v1393
        %v1397 = vmul.f32 %v1268, %v1393
        %v1398 = vmul.f32 %v1269, %v1393
        %v1399 = vmul.f32 %v1270, %v1393
        %v1400 = vmul.f32 %v1271, %v1393
        %v1401 = vmul.f32 %v1272, %v1393
        %v1402 = vmul.f32 %v1273, %v1393
        %v1403 = vmul.f32 %v1274, %v1393
        %v1404 = vmul.f32 %v1275, %v1393
        %v1405 = vmul.f32 %v1276, %v1393
        %v1406 = vmul.f32 %v1277, %v1393
        %v1407 = vmul.f32 %v1278, %v1393
        %v1408 = vmul.f32 %v1279, %v1393
        %v1409 = vmul.f32 %v1280, %v1393
        %v1410 = vmul.f32 %v1281, %v1393
        %v1411 = vmul.f32 %v1282, %v1393
        %v1412 = vmul.f32 %v1283, %v1393
        %v1413 = vmul.f32 %v1284, %v1393
        %v1414 = vmul.f32 %v1285, %v1393
        %v1415 = vmul.f32 %v1286, %v1393
        %v1416 = vmul.f32 %v1287, %v1393
        %v1417 = vmul.f32 %v1288, %v1393
        %v1418 = vmul.f32 %v1289, %v1393
        %v1419 = vmul.f32 %v1290, %v1393
        %v1420 = vmul.f32 %v1291, %v1393
        %v1421 = vmul.f32 %v1292, %v1393
        %v1422 = vmul.f32 %v1293, %v1393
        %v1423 = vmul.f32 %v1294, %v1393
        %v1424 = vmul.f32 %v1295, %v1393
        %v1425 = vmul.f32 %v1296, %v1393
        %v1426 = vmul.f32 %v1297, %v1393
        %v1427 = vmul.f32 %v1298, %v1393
        %v1428 = vmul.f32 %v1299, %v1393
        %v1429 = vmul.f32 %v1300, %v1393
        %v1430 = vmul.f32 %v1301, %v1393
        %v1431 = vmul.f32 %v1302, %v1393
        %v1432 = vmul.f32 %v1303, %v1393
        %v1433 = vmul.f32 %v1304, %v1393
        %v1434 = vmul.f32 %v1305, %v1393
        %v1435 = vmul.f32 %v1306, %v1393
        %v1436 = vmul.f32 %v1307, %v1393
        %v1437 = vmul.f32 %v1308, %v1393
        %v1438 = vmul.f32 %v1309, %v1393
        %v1439 = vmul.f32 %v1310, %v1393
        %v1440 = vmul.f32 %v1311, %v1393
        %v1441 = vmul.f32 %v1312, %v1393
        %vm1490 = vcmask 1046528
        %v1491 = vrot.slane %v1394, 1
        %v1492 = vrot.slane %v1395, 1
        %v1493 = vsel %vm1490, %v1491, %v1492
        %v1494 = vrot.slane %v1396, 1
        %v1495 = vsel %vm1490, %v1492, %v1494
        %v1496 = vrot.slane %v1397, 1
        %v1497 = vrot.slane %v1398, 1
        %v1498 = vsel %vm1490, %v1496, %v1497
        %v1499 = vrot.slane %v1399, 1
        %v1500 = vsel %vm1490, %v1497, %v1499
        %v1501 = vrot.slane %v1400, 1
        %v1502 = vrot.slane %v1401, 1
        %v1503 = vsel %vm1490, %v1501, %v1502
        %v1504 = vrot.slane %v1402, 1
        %v1505 = vsel %vm1490, %v1502, %v1504
        %v1506 = vrot.slane %v1403, 1
        %v1507 = vrot.slane %v1404, 1
        %v1508 = vsel %vm1490, %v1506, %v1507
        %v1509 = vrot.slane %v1405, 1
        %v1510 = vsel %vm1490, %v1507, %v1509
        %v1511 = vrot.slane %v1406, 1
        %v1512 = vrot.slane %v1407, 1
        %v1513 = vsel %vm1490, %v1511, %v1512
        %v1514 = vrot.slane %v1408, 1
        %v1515 = vsel %vm1490, %v1512, %v1514
        %v1516 = vrot.slane %v1409, 1
        %v1517 = vrot.slane %v1410, 1
        %v1518 = vsel %vm1490, %v1516, %v1517
        %v1519 = vrot.slane %v1411, 1
        %v1520 = vsel %vm1490, %v1517, %v1519
        %v1521 = vrot.slane %v1412, 1
        %v1522 = vrot.slane %v1413, 1
        %v1523 = vsel %vm1490, %v1521, %v1522
        %v1524 = vrot.slane %v1414, 1
        %v1525 = vsel %vm1490, %v1522, %v1524
        %v1526 = vrot.slane %v1415, 1
        %v1527 = vrot.slane %v1416, 1
        %v1528 = vsel %vm1490, %v1526, %v1527
        %v1529 = vrot.slane %v1417, 1
        %v1530 = vsel %vm1490, %v1527, %v1529
        %v1531 = vrot.slane %v1418, 1
        %v1532 = vrot.slane %v1419, 1
        %v1533 = vsel %vm1490, %v1531, %v1532
        %v1534 = vrot.slane %v1420, 1
        %v1535 = vsel %vm1490, %v1532, %v1534
        %v1536 = vrot.slane %v1421, 1
        %v1537 = vrot.slane %v1422, 1
        %v1538 = vsel %vm1490, %v1536, %v1537
        %v1539 = vrot.slane %v1423, 1
        %v1540 = vsel %vm1490, %v1537, %v1539
        %v1541 = vrot.slane %v1424, 1
        %v1542 = vrot.slane %v1425, 1
        %v1543 = vsel %vm1490, %v1541, %v1542
        %v1544 = vrot.slane %v1426, 1
        %v1545 = vsel %vm1490, %v1542, %v1544
        %v1546 = vrot.slane %v1427, 1
        %v1547 = vrot.slane %v1428, 1
        %v1548 = vsel %vm1490, %v1546, %v1547
        %v1549 = vrot.slane %v1429, 1
        %v1550 = vsel %vm1490, %v1547, %v1549
        %v1551 = vrot.slane %v1430, 1
        %v1552 = vrot.slane %v1431, 1
        %v1553 = vsel %vm1490, %v1551, %v1552
        %v1554 = vrot.slane %v1432, 1
        %v1555 = vsel %vm1490, %v1552, %v1554
        %v1556 = vrot.slane %v1433, 1
        %v1557 = vrot.slane %v1434, 1
        %v1558 = vsel %vm1490, %v1556, %v1557
        %v1559 = vrot.slane %v1435, 1
        %v1560 = vsel %vm1490, %v1557, %v1559
        %v1561 = vrot.slane %v1436, 1
        %v1562 = vrot.slane %v1437, 1
        %v1563 = vsel %vm1490, %v1561, %v1562
        %v1564 = vrot.slane %v1438, 1
        %v1565 = vsel %vm1490, %v1562, %v1564
        %v1566 = vrot.slane %v1439, 1
        %v1567 = vrot.slane %v1440, 1
        %v1568 = vsel %vm1490, %v1566, %v1567
        %v1569 = vrot.slane %v1441, 1
        %v1570 = vsel %vm1490, %v1567, %v1569
        %v1603 = vadd.f32 %v1358, %v1493
        %v1604 = vadd.f32 %v1359, %v1495
        %v1605 = vadd.f32 %v1360, %v1498
        %v1606 = vadd.f32 %v1361, %v1500
        %v1607 = vadd.f32 %v1362, %v1503
        %v1608 = vadd.f32 %v1363, %v1505
        %v1609 = vadd.f32 %v1364, %v1508
        %v1610 = vadd.f32 %v1365, %v1510
        %v1611 = vadd.f32 %v1366, %v1513
        %v1612 = vadd.f32 %v1367, %v1515
        %v1613 = vadd.f32 %v1368, %v1518
        %v1614 = vadd.f32 %v1369, %v1520
        %v1615 = vadd.f32 %v1370, %v1523
        %v1616 = vadd.f32 %v1371, %v1525
        %v1617 = vadd.f32 %v1372, %v1528
        %v1618 = vadd.f32 %v1373, %v1530
        %v1619 = vadd.f32 %v1374, %v1533
        %v1620 = vadd.f32 %v1375, %v1535
        %v1621 = vadd.f32 %v1376, %v1538
        %v1622 = vadd.f32 %v1377, %v1540
        %v1623 = vadd.f32 %v1378, %v1543
        %v1624 = vadd.f32 %v1379, %v1545
        %v1625 = vadd.f32 %v1380, %v1548
        %v1626 = vadd.f32 %v1381, %v1550
        %v1627 = vadd.f32 %v1382, %v1553
        %v1628 = vadd.f32 %v1383, %v1555
        %v1629 = vadd.f32 %v1384, %v1558
        %v1630 = vadd.f32 %v1385, %v1560
        %v1631 = vadd.f32 %v1386, %v1563
        %v1632 = vadd.f32 %v1387, %v1565
        %v1633 = vadd.f32 %v1388, %v1568
        %v1634 = vadd.f32 %v1389, %v1570
        %v1635 = vlaneseq
        %v1636 = vshrl.u32 %v1635, 7
        %v1637 = vsub.s32 2, %v1636
        %v1638 = vrot.slane %v1319, %v1637
        %v1639 = vmul.f32 %v1265, %v1638
        %v1640 = vmul.f32 %v1266, %v1638
        %v1641 = vmul.f32 %v1267, %v1638
        %v1642 = vmul.f32 %v1268, %v1638
        %v1643 = vmul.f32 %v1269, %v1638
        %v1644 = vmul.f32 %v1270, %v1638
        %v1645 = vmul.f32 %v1271, %v1638
        %v1646 = vmul.f32 %v1272, %v1638
        %v1647 = vmul.f32 %v1273, %v1638
        %v1648 = vmul.f32 %v1274, %v1638
        %v1649 = vmul.f32 %v1275, %v1638
        %v1650 = vmul.f32 %v1276, %v1638
        %v1651 = vmul.f32 %v1277, %v1638
        %v1652 = vmul.f32 %v1278, %v1638
        %v1653 = vmul.f32 %v1279, %v1638
        %v1654 = vmul.f32 %v1280, %v1638
        %v1655 = vmul.f32 %v1281, %v1638
        %v1656 = vmul.f32 %v1282, %v1638
        %v1657 = vmul.f32 %v1283, %v1638
        %v1658 = vmul.f32 %v1284, %v1638
        %v1659 = vmul.f32 %v1285, %v1638
        %v1660 = vmul.f32 %v1286, %v1638
        %v1661 = vmul.f32 %v1287, %v1638
        %v1662 = vmul.f32 %v1288, %v1638
        %v1663 = vmul.f32 %v1289, %v1638
        %v1664 = vmul.f32 %v1290, %v1638
        %v1665 = vmul.f32 %v1291, %v1638
        %v1666 = vmul.f32 %v1292, %v1638
        %v1667 = vmul.f32 %v1293, %v1638
        %v1668 = vmul.f32 %v1294, %v1638
        %v1669 = vmul.f32 %v1295, %v1638
        %v1670 = vmul.f32 %v1296, %v1638
        %v1671 = vmul.f32 %v1297, %v1638
        %v1672 = vmul.f32 %v1298, %v1638
        %v1673 = vmul.f32 %v1299, %v1638
        %v1674 = vmul.f32 %v1300, %v1638
        %v1675 = vmul.f32 %v1301, %v1638
        %v1676 = vmul.f32 %v1302, %v1638
        %v1677 = vmul.f32 %v1303, %v1638
        %v1678 = vmul.f32 %v1304, %v1638
        %v1679 = vmul.f32 %v1305, %v1638
        %v1680 = vmul.f32 %v1306, %v1638
        %v1681 = vmul.f32 %v1307, %v1638
        %v1682 = vmul.f32 %v1308, %v1638
        %v1683 = vmul.f32 %v1309, %v1638
        %v1684 = vmul.f32 %v1310, %v1638
        %v1685 = vmul.f32 %v1311, %v1638
        %v1686 = vmul.f32 %v1312, %v1638
        %vm1735 = vcmask 1045504
        %v1736 = vrot.slane %v1639, 2
        %v1737 = vrot.slane %v1640, 2
        %v1738 = vsel %vm1735, %v1736, %v1737
        %v1739 = vrot.slane %v1641, 2
        %v1740 = vsel %vm1735, %v1737, %v1739
        %v1741 = vrot.slane %v1642, 2
        %v1742 = vrot.slane %v1643, 2
        %v1743 = vsel %vm1735, %v1741, %v1742
        %v1744 = vrot.slane %v1644, 2
        %v1745 = vsel %vm1735, %v1742, %v1744
        %v1746 = vrot.slane %v1645, 2
        %v1747 = vrot.slane %v1646, 2
        %v1748 = vsel %vm1735, %v1746, %v1747
        %v1749 = vrot.slane %v1647, 2
        %v1750 = vsel %vm1735, %v1747, %v1749
        %v1751 = vrot.slane %v1648, 2
        %v1752 = vrot.slane %v1649, 2
        %v1753 = vsel %vm1735, %v1751, %v1752
        %v1754 = vrot.slane %v1650, 2
        %v1755 = vsel %vm1735, %v1752, %v1754
        %v1756 = vrot.slane %v1651, 2
        %v1757 = vrot.slane %v1652, 2
        %v1758 = vsel %vm1735, %v1756, %v1757
        %v1759 = vrot.slane %v1653, 2
        %v1760 = vsel %vm1735, %v1757, %v1759
        %v1761 = vrot.slane %v1654, 2
        %v1762 = vrot.slane %v1655, 2
        %v1763 = vsel %vm1735, %v1761, %v1762
        %v1764 = vrot.slane %v1656, 2
        %v1765 = vsel %vm1735, %v1762, %v1764
        %v1766 = vrot.slane %v1657, 2
        %v1767 = vrot.slane %v1658, 2
        %v1768 = vsel %vm1735, %v1766, %v1767
        %v1769 = vrot.slane %v1659, 2
        %v1770 = vsel %vm1735, %v1767, %v1769
        %v1771 = vrot.slane %v1660, 2
        %v1772 = vrot.slane %v1661, 2
        %v1773 = vsel %vm1735, %v1771, %v1772
        %v1774 = vrot.slane %v1662, 2
        %v1775 = vsel %vm1735, %v1772, %v1774
        %v1776 = vrot.slane %v1663, 2
        %v1777 = vrot.slane %v1664, 2
        %v1778 = vsel %vm1735, %v1776, %v1777
        %v1779 = vrot.slane %v1665, 2
        %v1780 = vsel %vm1735, %v1777, %v1779
        %v1781 = vrot.slane %v1666, 2
        %v1782 = vrot.slane %v1667, 2
        %v1783 = vsel %vm1735, %v1781, %v1782
        %v1784 = vrot.slane %v1668, 2
        %v1785 = vsel %vm1735, %v1782, %v1784
        %v1786 = vrot.slane %v1669, 2
        %v1787 = vrot.slane %v1670, 2
        %v1788 = vsel %vm1735, %v1786, %v1787
        %v1789 = vrot.slane %v1671, 2
        %v1790 = vsel %vm1735, %v1787, %v1789
        %v1791 = vrot.slane %v1672, 2
        %v1792 = vrot.slane %v1673, 2
        %v1793 = vsel %vm1735, %v1791, %v1792
        %v1794 = vrot.slane %v1674, 2
        %v1795 = vsel %vm1735, %v1792, %v1794
        %v1796 = vrot.slane %v1675, 2
        %v1797 = vrot.slane %v1676, 2
        %v1798 = vsel %vm1735, %v1796, %v1797
        %v1799 = vrot.slane %v1677, 2
        %v1800 = vsel %vm1735, %v1797, %v1799
        %v1801 = vrot.slane %v1678, 2
        %v1802 = vrot.slane %v1679, 2
        %v1803 = vsel %vm1735, %v1801, %v1802
        %v1804 = vrot.slane %v1680, 2
        %v1805 = vsel %vm1735, %v1802, %v1804
        %v1806 = vrot.slane %v1681, 2
        %v1807 = vrot.slane %v1682, 2
        %v1808 = vsel %vm1735, %v1806, %v1807
        %v1809 = vrot.slane %v1683, 2
        %v1810 = vsel %vm1735, %v1807, %v1809
        %v1811 = vrot.slane %v1684, 2
        %v1812 = vrot.slane %v1685, 2
        %v1813 = vsel %vm1735, %v1811, %v1812
        %v1814 = vrot.slane %v1686, 2
        %v1815 = vsel %vm1735, %v1812, %v1814
        %v1848 = vadd.f32 %v1603, %v1738
        %v1849 = vadd.f32 %v1604, %v1740
        %v1850 = vadd.f32 %v1605, %v1743
        %v1851 = vadd.f32 %v1606, %v1745
        %v1852 = vadd.f32 %v1607, %v1748
        %v1853 = vadd.f32 %v1608, %v1750
        %v1854 = vadd.f32 %v1609, %v1753
        %v1855 = vadd.f32 %v1610, %v1755
        %v1856 = vadd.f32 %v1611, %v1758
        %v1857 = vadd.f32 %v1612, %v1760
        %v1858 = vadd.f32 %v1613, %v1763
        %v1859 = vadd.f32 %v1614, %v1765
        %v1860 = vadd.f32 %v1615, %v1768
        %v1861 = vadd.f32 %v1616, %v1770
        %v1862 = vadd.f32 %v1617, %v1773
        %v1863 = vadd.f32 %v1618, %v1775
        %v1864 = vadd.f32 %v1619, %v1778
        %v1865 = vadd.f32 %v1620, %v1780
        %v1866 = vadd.f32 %v1621, %v1783
        %v1867 = vadd.f32 %v1622, %v1785
        %v1868 = vadd.f32 %v1623, %v1788
        %v1869 = vadd.f32 %v1624, %v1790
        %v1870 = vadd.f32 %v1625, %v1793
        %v1871 = vadd.f32 %v1626, %v1795
        %v1872 = vadd.f32 %v1627, %v1798
        %v1873 = vadd.f32 %v1628, %v1800
        %v1874 = vadd.f32 %v1629, %v1803
        %v1875 = vadd.f32 %v1630, %v1805
        %v1876 = vadd.f32 %v1631, %v1808
        %v1877 = vadd.f32 %v1632, %v1810
        %v1878 = vadd.f32 %v1633, %v1813
        %v1879 = vadd.f32 %v1634, %v1815
        %v1880 = vlaneseq
        %v1881 = vshrl.u32 %v1880, 7
        %v1882 = vsub.s32 0, %v1881
        %v1883 = vrot.slane %v1320, %v1882
        %v1884 = vmul.f32 %v1268, %v1883
        %v1885 = vmul.f32 %v1269, %v1883
        %v1886 = vmul.f32 %v1271, %v1883
        %v1887 = vmul.f32 %v1272, %v1883
        %v1888 = vmul.f32 %v1274, %v1883
        %v1889 = vmul.f32 %v1275, %v1883
        %v1890 = vmul.f32 %v1277, %v1883
        %v1891 = vmul.f32 %v1278, %v1883
        %v1892 = vmul.f32 %v1280, %v1883
        %v1893 = vmul.f32 %v1281, %v1883
        %v1894 = vmul.f32 %v1283, %v1883
        %v1895 = vmul.f32 %v1284, %v1883
        %v1896 = vmul.f32 %v1286, %v1883
        %v1897 = vmul.f32 %v1287, %v1883
        %v1898 = vmul.f32 %v1289, %v1883
        %v1899 = vmul.f32 %v1290, %v1883
        %v1900 = vmul.f32 %v1292, %v1883
        %v1901 = vmul.f32 %v1293, %v1883
        %v1902 = vmul.f32 %v1295, %v1883
        %v1903 = vmul.f32 %v1296, %v1883
        %v1904 = vmul.f32 %v1298, %v1883
        %v1905 = vmul.f32 %v1299, %v1883
        %v1906 = vmul.f32 %v1301, %v1883
        %v1907 = vmul.f32 %v1302, %v1883
        %v1908 = vmul.f32 %v1304, %v1883
        %v1909 = vmul.f32 %v1305, %v1883
        %v1910 = vmul.f32 %v1307, %v1883
        %v1911 = vmul.f32 %v1308, %v1883
        %v1912 = vmul.f32 %v1310, %v1883
        %v1913 = vmul.f32 %v1311, %v1883
        %v1914 = vmul.f32 %v1313, %v1883
        %v1915 = vmul.f32 %v1314, %v1883
        %v1916 = vadd.f32 %v1848, %v1884
        %v1917 = vadd.f32 %v1849, %v1885
        %v1918 = vadd.f32 %v1850, %v1886
        %v1919 = vadd.f32 %v1851, %v1887
        %v1920 = vadd.f32 %v1852, %v1888
        %v1921 = vadd.f32 %v1853, %v1889
        %v1922 = vadd.f32 %v1854, %v1890
        %v1923 = vadd.f32 %v1855, %v1891
        %v1924 = vadd.f32 %v1856, %v1892
        %v1925 = vadd.f32 %v1857, %v1893
        %v1926 = vadd.f32 %v1858, %v1894
        %v1927 = vadd.f32 %v1859, %v1895
        %v1928 = vadd.f32 %v1860, %v1896
        %v1929 = vadd.f32 %v1861, %v1897
        %v1930 = vadd.f32 %v1862, %v1898
        %v1931 = vadd.f32 %v1863, %v1899
        %v1932 = vadd.f32 %v1864, %v1900
        %v1933 = vadd.f32 %v1865, %v1901
        %v1934 = vadd.f32 %v1866, %v1902
        %v1935 = vadd.f32 %v1867, %v1903
        %v1936 = vadd.f32 %v1868, %v1904
        %v1937 = vadd.f32 %v1869, %v1905
        %v1938 = vadd.f32 %v1870, %v1906
        %v1939 = vadd.f32 %v1871, %v1907
        %v1940 = vadd.f32 %v1872, %v1908
        %v1941 = vadd.f32 %v1873, %v1909
        %v1942 = vadd.f32 %v1874, %v1910
        %v1943 = vadd.f32 %v1875, %v1911
        %v1944 = vadd.f32 %v1876, %v1912
        %v1945 = vadd.f32 %v1877, %v1913
        %v1946 = vadd.f32 %v1878, %v1914
        %v1947 = vadd.f32 %v1879, %v1915
        %v1948 = vlaneseq
        %v1949 = vshrl.u32 %v1948, 7
        %v1950 = vsub.s32 1, %v1949
        %v1951 = vrot.slane %v1320, %v1950
        %v1952 = vmul.f32 %v1268, %v1951
        %v1953 = vmul.f32 %v1269, %v1951
        %v1954 = vmul.f32 %v1270, %v1951
        %v1955 = vmul.f32 %v1271, %v1951
        %v1956 = vmul.f32 %v1272, %v1951
        %v1957 = vmul.f32 %v1273, %v1951
        %v1958 = vmul.f32 %v1274, %v1951
        %v1959 = vmul.f32 %v1275, %v1951
        %v1960 = vmul.f32 %v1276, %v1951
        %v1961 = vmul.f32 %v1277, %v1951
        %v1962 = vmul.f32 %v1278, %v1951
        %v1963 = vmul.f32 %v1279, %v1951
        %v1964 = vmul.f32 %v1280, %v1951
        %v1965 = vmul.f32 %v1281, %v1951
        %v1966 = vmul.f32 %v1282, %v1951
        %v1967 = vmul.f32 %v1283, %v1951
        %v1968 = vmul.f32 %v1284, %v1951
        %v1969 = vmul.f32 %v1285, %v1951
        %v1970 = vmul.f32 %v1286, %v1951
        %v1971 = vmul.f32 %v1287, %v1951
        %v1972 = vmul.f32 %v1288, %v1951
        %v1973 = vmul.f32 %v1289, %v1951
        %v1974 = vmul.f32 %v1290, %v1951
        %v1975 = vmul.f32 %v1291, %v1951
        %v1976 = vmul.f32 %v1292, %v1951
        %v1977 = vmul.f32 %v1293, %v1951
        %v1978 = vmul.f32 %v1294, %v1951
        %v1979 = vmul.f32 %v1295, %v1951
        %v1980 = vmul.f32 %v1296, %v1951
        %v1981 = vmul.f32 %v1297, %v1951
        %v1982 = vmul.f32 %v1298, %v1951
        %v1983 = vmul.f32 %v1299, %v1951
        %v1984 = vmul.f32 %v1300, %v1951
        %v1985 = vmul.f32 %v1301, %v1951
        %v1986 = vmul.f32 %v1302, %v1951
        %v1987 = vmul.f32 %v1303, %v1951
        %v1988 = vmul.f32 %v1304, %v1951
        %v1989 = vmul.f32 %v1305, %v1951
        %v1990 = vmul.f32 %v1306, %v1951
        %v1991 = vmul.f32 %v1307, %v1951
        %v1992 = vmul.f32 %v1308, %v1951
        %v1993 = vmul.f32 %v1309, %v1951
        %v1994 = vmul.f32 %v1310, %v1951
        %v1995 = vmul.f32 %v1311, %v1951
        %v1996 = vmul.f32 %v1312, %v1951
        %v1997 = vmul.f32 %v1313, %v1951
        %v1998 = vmul.f32 %v1314, %v1951
        %v1999 = vmul.f32 %v1315, %v1951
        %v2048 = vrot.slane %v1952, 1
        %v2049 = vrot.slane %v1953, 1
        %v2050 = vsel %vm1490, %v2048, %v2049
        %v2051 = vrot.slane %v1954, 1
        %v2052 = vsel %vm1490, %v2049, %v2051
        %v2053 = vrot.slane %v1955, 1
        %v2054 = vrot.slane %v1956, 1
        %v2055 = vsel %vm1490, %v2053, %v2054
        %v2056 = vrot.slane %v1957, 1
        %v2057 = vsel %vm1490, %v2054, %v2056
        %v2058 = vrot.slane %v1958, 1
        %v2059 = vrot.slane %v1959, 1
        %v2060 = vsel %vm1490, %v2058, %v2059
        %v2061 = vrot.slane %v1960, 1
        %v2062 = vsel %vm1490, %v2059, %v2061
        %v2063 = vrot.slane %v1961, 1
        %v2064 = vrot.slane %v1962, 1
        %v2065 = vsel %vm1490, %v2063, %v2064
        %v2066 = vrot.slane %v1963, 1
        %v2067 = vsel %vm1490, %v2064, %v2066
        %v2068 = vrot.slane %v1964, 1
        %v2069 = vrot.slane %v1965, 1
        %v2070 = vsel %vm1490, %v2068, %v2069
        %v2071 = vrot.slane %v1966, 1
        %v2072 = vsel %vm1490, %v2069, %v2071
        %v2073 = vrot.slane %v1967, 1
        %v2074 = vrot.slane %v1968, 1
        %v2075 = vsel %vm1490, %v2073, %v2074
        %v2076 = vrot.slane %v1969, 1
        %v2077 = vsel %vm1490, %v2074, %v2076
        %v2078 = vrot.slane %v1970, 1
        %v2079 = vrot.slane %v1971, 1
        %v2080 = vsel %vm1490, %v2078, %v2079
        %v2081 = vrot.slane %v1972, 1
        %v2082 = vsel %vm1490, %v2079, %v2081
        %v2083 = vrot.slane %v1973, 1
        %v2084 = vrot.slane %v1974, 1
        %v2085 = vsel %vm1490, %v2083, %v2084
        %v2086 = vrot.slane %v1975, 1
        %v2087 = vsel %vm1490, %v2084, %v2086
        %v2088 = vrot.slane %v1976, 1
        %v2089 = vrot.slane %v1977, 1
        %v2090 = vsel %vm1490, %v2088, %v2089
        %v2091 = vrot.slane %v1978, 1
        %v2092 = vsel %vm1490, %v2089, %v2091
        %v2093 = vrot.slane %v1979, 1
        %v2094 = vrot.slane %v1980, 1
        %v2095 = vsel %vm1490, %v2093, %v2094
        %v2096 = vrot.slane %v1981, 1
        %v2097 = vsel %vm1490, %v2094, %v2096
        %v2098 = vrot.slane %v1982, 1
        %v2099 = vrot.slane %v1983, 1
        %v2100 = vsel %vm1490, %v2098, %v2099
        %v2101 = vrot.slane %v1984, 1
        %v2102 = vsel %vm1490, %v2099, %v2101
        %v2103 = vrot.slane %v1985, 1
        %v2104 = vrot.slane %v1986, 1
        %v2105 = vsel %vm1490, %v2103, %v2104
        %v2106 = vrot.slane %v1987, 1
        %v2107 = vsel %vm1490, %v2104, %v2106
        %v2108 = vrot.slane %v1988, 1
        %v2109 = vrot.slane %v1989, 1
        %v2110 = vsel %vm1490, %v2108, %v2109
        %v2111 = vrot.slane %v1990, 1
        %v2112 = vsel %vm1490, %v2109, %v2111
        %v2113 = vrot.slane %v1991, 1
        %v2114 = vrot.slane %v1992, 1
        %v2115 = vsel %vm1490, %v2113, %v2114
        %v2116 = vrot.slane %v1993, 1
        %v2117 = vsel %vm1490, %v2114, %v2116
        %v2118 = vrot.slane %v1994, 1
        %v2119 = vrot.slane %v1995, 1
        %v2120 = vsel %vm1490, %v2118, %v2119
        %v2121 = vrot.slane %v1996, 1
        %v2122 = vsel %vm1490, %v2119, %v2121
        %v2123 = vrot.slane %v1997, 1
        %v2124 = vrot.slane %v1998, 1
        %v2125 = vsel %vm1490, %v2123, %v2124
        %v2126 = vrot.slane %v1999, 1
        %v2127 = vsel %vm1490, %v2124, %v2126
        %v2160 = vadd.f32 %v1916, %v2050
        %v2161 = vadd.f32 %v1917, %v2052
        %v2162 = vadd.f32 %v1918, %v2055
        %v2163 = vadd.f32 %v1919, %v2057
        %v2164 = vadd.f32 %v1920, %v2060
        %v2165 = vadd.f32 %v1921, %v2062
        %v2166 = vadd.f32 %v1922, %v2065
        %v2167 = vadd.f32 %v1923, %v2067
        %v2168 = vadd.f32 %v1924, %v2070
        %v2169 = vadd.f32 %v1925, %v2072
        %v2170 = vadd.f32 %v1926, %v2075
        %v2171 = vadd.f32 %v1927, %v2077
        %v2172 = vadd.f32 %v1928, %v2080
        %v2173 = vadd.f32 %v1929, %v2082
        %v2174 = vadd.f32 %v1930, %v2085
        %v2175 = vadd.f32 %v1931, %v2087
        %v2176 = vadd.f32 %v1932, %v2090
        %v2177 = vadd.f32 %v1933, %v2092
        %v2178 = vadd.f32 %v1934, %v2095
        %v2179 = vadd.f32 %v1935, %v2097
        %v2180 = vadd.f32 %v1936, %v2100
        %v2181 = vadd.f32 %v1937, %v2102
        %v2182 = vadd.f32 %v1938, %v2105
        %v2183 = vadd.f32 %v1939, %v2107
        %v2184 = vadd.f32 %v1940, %v2110
        %v2185 = vadd.f32 %v1941, %v2112
        %v2186 = vadd.f32 %v1942, %v2115
        %v2187 = vadd.f32 %v1943, %v2117
        %v2188 = vadd.f32 %v1944, %v2120
        %v2189 = vadd.f32 %v1945, %v2122
        %v2190 = vadd.f32 %v1946, %v2125
        %v2191 = vadd.f32 %v1947, %v2127
        %v2192 = vlaneseq
        %v2193 = vshrl.u32 %v2192, 7
        %v2194 = vsub.s32 2, %v2193
        %v2195 = vrot.slane %v1320, %v2194
        %v2196 = vmul.f32 %v1268, %v2195
        %v2197 = vmul.f32 %v1269, %v2195
        %v2198 = vmul.f32 %v1270, %v2195
        %v2199 = vmul.f32 %v1271, %v2195
        %v2200 = vmul.f32 %v1272, %v2195
        %v2201 = vmul.f32 %v1273, %v2195
        %v2202 = vmul.f32 %v1274, %v2195
        %v2203 = vmul.f32 %v1275, %v2195
        %v2204 = vmul.f32 %v1276, %v2195
        %v2205 = vmul.f32 %v1277, %v2195
        %v2206 = vmul.f32 %v1278, %v2195
        %v2207 = vmul.f32 %v1279, %v2195
        %v2208 = vmul.f32 %v1280, %v2195
        %v2209 = vmul.f32 %v1281, %v2195
        %v2210 = vmul.f32 %v1282, %v2195
        %v2211 = vmul.f32 %v1283, %v2195
        %v2212 = vmul.f32 %v1284, %v2195
        %v2213 = vmul.f32 %v1285, %v2195
        %v2214 = vmul.f32 %v1286, %v2195
        %v2215 = vmul.f32 %v1287, %v2195
        %v2216 = vmul.f32 %v1288, %v2195
        %v2217 = vmul.f32 %v1289, %v2195
        %v2218 = vmul.f32 %v1290, %v2195
        %v2219 = vmul.f32 %v1291, %v2195
        %v2220 = vmul.f32 %v1292, %v2195
        %v2221 = vmul.f32 %v1293, %v2195
        %v2222 = vmul.f32 %v1294, %v2195
        %v2223 = vmul.f32 %v1295, %v2195
        %v2224 = vmul.f32 %v1296, %v2195
        %v2225 = vmul.f32 %v1297, %v2195
        %v2226 = vmul.f32 %v1298, %v2195
        %v2227 = vmul.f32 %v1299, %v2195
        %v2228 = vmul.f32 %v1300, %v2195
        %v2229 = vmul.f32 %v1301, %v2195
        %v2230 = vmul.f32 %v1302, %v2195
        %v2231 = vmul.f32 %v1303, %v2195
        %v2232 = vmul.f32 %v1304, %v2195
        %v2233 = vmul.f32 %v1305, %v2195
        %v2234 = vmul.f32 %v1306, %v2195
        %v2235 = vmul.f32 %v1307, %v2195
        %v2236 = vmul.f32 %v1308, %v2195
        %v2237 = vmul.f32 %v1309, %v2195
        %v2238 = vmul.f32 %v1310, %v2195
        %v2239 = vmul.f32 %v1311, %v2195
        %v2240 = vmul.f32 %v1312, %v2195
        %v2241 = vmul.f32 %v1313, %v2195
        %v2242 = vmul.f32 %v1314, %v2195
        %v2243 = vmul.f32 %v1315, %v2195
        %v2292 = vrot.slane %v2196, 2
        %v2293 = vrot.slane %v2197, 2
        %v2294 = vsel %vm1735, %v2292, %v2293
        %v2295 = vrot.slane %v2198, 2
        %v2296 = vsel %vm1735, %v2293, %v2295
        %v2297 = vrot.slane %v2199, 2
        %v2298 = vrot.slane %v2200, 2
        %v2299 = vsel %vm1735, %v2297, %v2298
        %v2300 = vrot.slane %v2201, 2
        %v2301 = vsel %vm1735, %v2298, %v2300
        %v2302 = vrot.slane %v2202, 2
        %v2303 = vrot.slane %v2203, 2
        %v2304 = vsel %vm1735, %v2302, %v2303
        %v2305 = vrot.slane %v2204, 2
        %v2306 = vsel %vm1735, %v2303, %v2305
        %v2307 = vrot.slane %v2205, 2
        %v2308 = vrot.slane %v2206, 2
        %v2309 = vsel %vm1735, %v2307, %v2308
        %v2310 = vrot.slane %v2207, 2
        %v2311 = vsel %vm1735, %v2308, %v2310
        %v2312 = vrot.slane %v2208, 2
        %v2313 = vrot.slane %v2209, 2
        %v2314 = vsel %vm1735, %v2312, %v2313
        %v2315 = vrot.slane %v2210, 2
        %v2316 = vsel %vm1735, %v2313, %v2315
        %v2317 = vrot.slane %v2211, 2
        %v2318 = vrot.slane %v2212, 2
        %v2319 = vsel %vm1735, %v2317, %v2318
        %v2320 = vrot.slane %v2213, 2
        %v2321 = vsel %vm1735, %v2318, %v2320
        %v2322 = vrot.slane %v2214, 2
        %v2323 = vrot.slane %v2215, 2
        %v2324 = vsel %vm1735, %v2322, %v2323
        %v2325 = vrot.slane %v2216, 2
        %v2326 = vsel %vm1735, %v2323, %v2325
        %v2327 = vrot.slane %v2217, 2
        %v2328 = vrot.slane %v2218, 2
        %v2329 = vsel %vm1735, %v2327, %v2328
        %v2330 = vrot.slane %v2219, 2
        %v2331 = vsel %vm1735, %v2328, %v2330
        %v2332 = vrot.slane %v2220, 2
        %v2333 = vrot.slane %v2221, 2
        %v2334 = vsel %vm1735, %v2332, %v2333
        %v2335 = vrot.slane %v2222, 2
        %v2336 = vsel %vm1735, %v2333, %v2335
        %v2337 = vrot.slane %v2223, 2
        %v2338 = vrot.slane %v2224, 2
        %v2339 = vsel %vm1735, %v2337, %v2338
        %v2340 = vrot.slane %v2225, 2
        %v2341 = vsel %vm1735, %v2338, %v2340
        %v2342 = vrot.slane %v2226, 2
        %v2343 = vrot.slane %v2227, 2
        %v2344 = vsel %vm1735, %v2342, %v2343
        %v2345 = vrot.slane %v2228, 2
        %v2346 = vsel %vm1735, %v2343, %v2345
        %v2347 = vrot.slane %v2229, 2
        %v2348 = vrot.slane %v2230, 2
        %v2349 = vsel %vm1735, %v2347, %v2348
        %v2350 = vrot.slane %v2231, 2
        %v2351 = vsel %vm1735, %v2348, %v2350
        %v2352 = vrot.slane %v2232, 2
        %v2353 = vrot.slane %v2233, 2
        %v2354 = vsel %vm1735, %v2352, %v2353
        %v2355 = vrot.slane %v2234, 2
        %v2356 = vsel %vm1735, %v2353, %v2355
        %v2357 = vrot.slane %v2235, 2
        %v2358 = vrot.slane %v2236, 2
        %v2359 = vsel %vm1735, %v2357, %v2358
        %v2360 = vrot.slane %v2237, 2
        %v2361 = vsel %vm1735, %v2358, %v2360
        %v2362 = vrot.slane %v2238, 2
        %v2363 = vrot.slane %v2239, 2
        %v2364 = vsel %vm1735, %v2362, %v2363
        %v2365 = vrot.slane %v2240, 2
        %v2366 = vsel %vm1735, %v2363, %v2365
        %v2367 = vrot.slane %v2241, 2
        %v2368 = vrot.slane %v2242, 2
        %v2369 = vsel %vm1735, %v2367, %v2368
        %v2370 = vrot.slane %v2243, 2
        %v2371 = vsel %vm1735, %v2368, %v2370
        %v2404 = vadd.f32 %v2160, %v2294
        %v2405 = vadd.f32 %v2161, %v2296
        %v2406 = vadd.f32 %v2162, %v2299
        %v2407 = vadd.f32 %v2163, %v2301
        %v2408 = vadd.f32 %v2164, %v2304
        %v2409 = vadd.f32 %v2165, %v2306
        %v2410 = vadd.f32 %v2166, %v2309
        %v2411 = vadd.f32 %v2167, %v2311
        %v2412 = vadd.f32 %v2168, %v2314
        %v2413 = vadd.f32 %v2169, %v2316
        %v2414 = vadd.f32 %v2170, %v2319
        %v2415 = vadd.f32 %v2171, %v2321
        %v2416 = vadd.f32 %v2172, %v2324
        %v2417 = vadd.f32 %v2173, %v2326
        %v2418 = vadd.f32 %v2174, %v2329
        %v2419 = vadd.f32 %v2175, %v2331
        %v2420 = vadd.f32 %v2176, %v2334
        %v2421 = vadd.f32 %v2177, %v2336
        %v2422 = vadd.f32 %v2178, %v2339
        %v2423 = vadd.f32 %v2179, %v2341
        %v2424 = vadd.f32 %v2180, %v2344
        %v2425 = vadd.f32 %v2181, %v2346
        %v2426 = vadd.f32 %v2182, %v2349
        %v2427 = vadd.f32 %v2183, %v2351
        %v2428 = vadd.f32 %v2184, %v2354
        %v2429 = vadd.f32 %v2185, %v2356
        %v2430 = vadd.f32 %v2186, %v2359
        %v2431 = vadd.f32 %v2187, %v2361
        %v2432 = vadd.f32 %v2188, %v2364
        %v2433 = vadd.f32 %v2189, %v2366
        %v2434 = vadd.f32 %v2190, %v2369
        %v2435 = vadd.f32 %v2191, %v2371
        %v2436 = vlaneseq
        %v2437 = vshrl.u32 %v2436, 7
        %v2438 = vsub.s32 0, %v2437
        %v2439 = vrot.slane %v1321, %v2438
        %v2440 = vmul.f32 %v1271, %v2439
        %v2441 = vmul.f32 %v1272, %v2439
        %v2442 = vmul.f32 %v1274, %v2439
        %v2443 = vmul.f32 %v1275, %v2439
        %v2444 = vmul.f32 %v1277, %v2439
        %v2445 = vmul.f32 %v1278, %v2439
        %v2446 = vmul.f32 %v1280, %v2439
        %v2447 = vmul.f32 %v1281, %v2439
        %v2448 = vmul.f32 %v1283, %v2439
        %v2449 = vmul.f32 %v1284, %v2439
        %v2450 = vmul.f32 %v1286, %v2439
        %v2451 = vmul.f32 %v1287, %v2439
        %v2452 = vmul.f32 %v1289, %v2439
        %v2453 = vmul.f32 %v1290, %v2439
        %v2454 = vmul.f32 %v1292, %v2439
        %v2455 = vmul.f32 %v1293, %v2439
        %v2456 = vmul.f32 %v1295, %v2439
        %v2457 = vmul.f32 %v1296, %v2439
        %v2458 = vmul.f32 %v1298, %v2439
        %v2459 = vmul.f32 %v1299, %v2439
        %v2460 = vmul.f32 %v1301, %v2439
        %v2461 = vmul.f32 %v1302, %v2439
        %v2462 = vmul.f32 %v1304, %v2439
        %v2463 = vmul.f32 %v1305, %v2439
        %v2464 = vmul.f32 %v1307, %v2439
        %v2465 = vmul.f32 %v1308, %v2439
        %v2466 = vmul.f32 %v1310, %v2439
        %v2467 = vmul.f32 %v1311, %v2439
        %v2468 = vmul.f32 %v1313, %v2439
        %v2469 = vmul.f32 %v1314, %v2439
        %v2470 = vmul.f32 %v1316, %v2439
        %v2471 = vmul.f32 %v1317, %v2439
        %v2472 = vadd.f32 %v2404, %v2440
        %v2473 = vadd.f32 %v2405, %v2441
        %v2474 = vadd.f32 %v2406, %v2442
        %v2475 = vadd.f32 %v2407, %v2443
        %v2476 = vadd.f32 %v2408, %v2444
        %v2477 = vadd.f32 %v2409, %v2445
        %v2478 = vadd.f32 %v2410, %v2446
        %v2479 = vadd.f32 %v2411, %v2447
        %v2480 = vadd.f32 %v2412, %v2448
        %v2481 = vadd.f32 %v2413, %v2449
        %v2482 = vadd.f32 %v2414, %v2450
        %v2483 = vadd.f32 %v2415, %v2451
        %v2484 = vadd.f32 %v2416, %v2452
        %v2485 = vadd.f32 %v2417, %v2453
        %v2486 = vadd.f32 %v2418, %v2454
        %v2487 = vadd.f32 %v2419, %v2455
        %v2488 = vadd.f32 %v2420, %v2456
        %v2489 = vadd.f32 %v2421, %v2457
        %v2490 = vadd.f32 %v2422, %v2458
        %v2491 = vadd.f32 %v2423, %v2459
        %v2492 = vadd.f32 %v2424, %v2460
        %v2493 = vadd.f32 %v2425, %v2461
        %v2494 = vadd.f32 %v2426, %v2462
        %v2495 = vadd.f32 %v2427, %v2463
        %v2496 = vadd.f32 %v2428, %v2464
        %v2497 = vadd.f32 %v2429, %v2465
        %v2498 = vadd.f32 %v2430, %v2466
        %v2499 = vadd.f32 %v2431, %v2467
        %v2500 = vadd.f32 %v2432, %v2468
        %v2501 = vadd.f32 %v2433, %v2469
        %v2502 = vadd.f32 %v2434, %v2470
        %v2503 = vadd.f32 %v2435, %v2471
        %v2504 = vlaneseq
        %v2505 = vshrl.u32 %v2504, 7
        %v2506 = vsub.s32 1, %v2505
        %v2507 = vrot.slane %v1321, %v2506
        %v2508 = vmul.f32 %v1271, %v2507
        %v2509 = vmul.f32 %v1272, %v2507
        %v2510 = vmul.f32 %v1273, %v2507
        %v2511 = vmul.f32 %v1274, %v2507
        %v2512 = vmul.f32 %v1275, %v2507
        %v2513 = vmul.f32 %v1276, %v2507
        %v2514 = vmul.f32 %v1277, %v2507
        %v2515 = vmul.f32 %v1278, %v2507
        %v2516 = vmul.f32 %v1279, %v2507
        %v2517 = vmul.f32 %v1280, %v2507
        %v2518 = vmul.f32 %v1281, %v2507
        %v2519 = vmul.f32 %v1282, %v2507
        %v2520 = vmul.f32 %v1283, %v2507
        %v2521 = vmul.f32 %v1284, %v2507
        %v2522 = vmul.f32 %v1285, %v2507
        %v2523 = vmul.f32 %v1286, %v2507
        %v2524 = vmul.f32 %v1287, %v2507
        %v2525 = vmul.f32 %v1288, %v2507
        %v2526 = vmul.f32 %v1289, %v2507
        %v2527 = vmul.f32 %v1290, %v2507
        %v2528 = vmul.f32 %v1291, %v2507
        %v2529 = vmul.f32 %v1292, %v2507
        %v2530 = vmul.f32 %v1293, %v2507
        %v2531 = vmul.f32 %v1294, %v2507
        %v2532 = vmul.f32 %v1295, %v2507
        %v2533 = vmul.f32 %v1296, %v2507
        %v2534 = vmul.f32 %v1297, %v2507
        %v2535 = vmul.f32 %v1298, %v2507
        %v2536 = vmul.f32 %v1299, %v2507
        %v2537 = vmul.f32 %v1300, %v2507
        %v2538 = vmul.f32 %v1301, %v2507
        %v2539 = vmul.f32 %v1302, %v2507
        %v2540 = vmul.f32 %v1303, %v2507
        %v2541 = vmul.f32 %v1304, %v2507
        %v2542 = vmul.f32 %v1305, %v2507
        %v2543 = vmul.f32 %v1306, %v2507
        %v2544 = vmul.f32 %v1307, %v2507
        %v2545 = vmul.f32 %v1308, %v2507
        %v2546 = vmul.f32 %v1309, %v2507
        %v2547 = vmul.f32 %v1310, %v2507
        %v2548 = vmul.f32 %v1311, %v2507
        %v2549 = vmul.f32 %v1312, %v2507
        %v2550 = vmul.f32 %v1313, %v2507
        %v2551 = vmul.f32 %v1314, %v2507
        %v2552 = vmul.f32 %v1315, %v2507
        %v2553 = vmul.f32 %v1316, %v2507
        %v2554 = vmul.f32 %v1317, %v2507
        %v2555 = vmul.f32 %v1318, %v2507
        %v2604 = vrot.slane %v2508, 1
        %v2605 = vrot.slane %v2509, 1
        %v2606 = vsel %vm1490, %v2604, %v2605
        %v2607 = vrot.slane %v2510, 1
        %v2608 = vsel %vm1490, %v2605, %v2607
        %v2609 = vrot.slane %v2511, 1
        %v2610 = vrot.slane %v2512, 1
        %v2611 = vsel %vm1490, %v2609, %v2610
        %v2612 = vrot.slane %v2513, 1
        %v2613 = vsel %vm1490, %v2610, %v2612
        %v2614 = vrot.slane %v2514, 1
        %v2615 = vrot.slane %v2515, 1
        %v2616 = vsel %vm1490, %v2614, %v2615
        %v2617 = vrot.slane %v2516, 1
        %v2618 = vsel %vm1490, %v2615, %v2617
        %v2619 = vrot.slane %v2517, 1
        %v2620 = vrot.slane %v2518, 1
        %v2621 = vsel %vm1490, %v2619, %v2620
        %v2622 = vrot.slane %v2519, 1
        %v2623 = vsel %vm1490, %v2620, %v2622
        %v2624 = vrot.slane %v2520, 1
        %v2625 = vrot.slane %v2521, 1
        %v2626 = vsel %vm1490, %v2624, %v2625
        %v2627 = vrot.slane %v2522, 1
        %v2628 = vsel %vm1490, %v2625, %v2627
        %v2629 = vrot.slane %v2523, 1
        %v2630 = vrot.slane %v2524, 1
        %v2631 = vsel %vm1490, %v2629, %v2630
        %v2632 = vrot.slane %v2525, 1
        %v2633 = vsel %vm1490, %v2630, %v2632
        %v2634 = vrot.slane %v2526, 1
        %v2635 = vrot.slane %v2527, 1
        %v2636 = vsel %vm1490, %v2634, %v2635
        %v2637 = vrot.slane %v2528, 1
        %v2638 = vsel %vm1490, %v2635, %v2637
        %v2639 = vrot.slane %v2529, 1
        %v2640 = vrot.slane %v2530, 1
        %v2641 = vsel %vm1490, %v2639, %v2640
        %v2642 = vrot.slane %v2531, 1
        %v2643 = vsel %vm1490, %v2640, %v2642
        %v2644 = vrot.slane %v2532, 1
        %v2645 = vrot.slane %v2533, 1
        %v2646 = vsel %vm1490, %v2644, %v2645
        %v2647 = vrot.slane %v2534, 1
        %v2648 = vsel %vm1490, %v2645, %v2647
        %v2649 = vrot.slane %v2535, 1
        %v2650 = vrot.slane %v2536, 1
        %v2651 = vsel %vm1490, %v2649, %v2650
        %v2652 = vrot.slane %v2537, 1
        %v2653 = vsel %vm1490, %v2650, %v2652
        %v2654 = vrot.slane %v2538, 1
        %v2655 = vrot.slane %v2539, 1
        %v2656 = vsel %vm1490, %v2654, %v2655
        %v2657 = vrot.slane %v2540, 1
        %v2658 = vsel %vm1490, %v2655, %v2657
        %v2659 = vrot.slane %v2541, 1
        %v2660 = vrot.slane %v2542, 1
        %v2661 = vsel %vm1490, %v2659, %v2660
        %v2662 = vrot.slane %v2543, 1
        %v2663 = vsel %vm1490, %v2660, %v2662
        %v2664 = vrot.slane %v2544, 1
        %v2665 = vrot.slane %v2545, 1
        %v2666 = vsel %vm1490, %v2664, %v2665
        %v2667 = vrot.slane %v2546, 1
        %v2668 = vsel %vm1490, %v2665, %v2667
        %v2669 = vrot.slane %v2547, 1
        %v2670 = vrot.slane %v2548, 1
        %v2671 = vsel %vm1490, %v2669, %v2670
        %v2672 = vrot.slane %v2549, 1
        %v2673 = vsel %vm1490, %v2670, %v2672
        %v2674 = vrot.slane %v2550, 1
        %v2675 = vrot.slane %v2551, 1
        %v2676 = vsel %vm1490, %v2674, %v2675
        %v2677 = vrot.slane %v2552, 1
        %v2678 = vsel %vm1490, %v2675, %v2677
        %v2679 = vrot.slane %v2553, 1
        %v2680 = vrot.slane %v2554, 1
        %v2681 = vsel %vm1490, %v2679, %v2680
        %v2682 = vrot.slane %v2555, 1
        %v2683 = vsel %vm1490, %v2680, %v2682
        %v2716 = vadd.f32 %v2472, %v2606
        %v2717 = vadd.f32 %v2473, %v2608
        %v2718 = vadd.f32 %v2474, %v2611
        %v2719 = vadd.f32 %v2475, %v2613
        %v2720 = vadd.f32 %v2476, %v2616
        %v2721 = vadd.f32 %v2477, %v2618
        %v2722 = vadd.f32 %v2478, %v2621
        %v2723 = vadd.f32 %v2479, %v2623
        %v2724 = vadd.f32 %v2480, %v2626
        %v2725 = vadd.f32 %v2481, %v2628
        %v2726 = vadd.f32 %v2482, %v2631
        %v2727 = vadd.f32 %v2483, %v2633
        %v2728 = vadd.f32 %v2484, %v2636
        %v2729 = vadd.f32 %v2485, %v2638
        %v2730 = vadd.f32 %v2486, %v2641
        %v2731 = vadd.f32 %v2487, %v2643
        %v2732 = vadd.f32 %v2488, %v2646
        %v2733 = vadd.f32 %v2489, %v2648
        %v2734 = vadd.f32 %v2490, %v2651
        %v2735 = vadd.f32 %v2491, %v2653
        %v2736 = vadd.f32 %v2492, %v2656
        %v2737 = vadd.f32 %v2493, %v2658
        %v2738 = vadd.f32 %v2494, %v2661
        %v2739 = vadd.f32 %v2495, %v2663
        %v2740 = vadd.f32 %v2496, %v2666
        %v2741 = vadd.f32 %v2497, %v2668
        %v2742 = vadd.f32 %v2498, %v2671
        %v2743 = vadd.f32 %v2499, %v2673
        %v2744 = vadd.f32 %v2500, %v2676
        %v2745 = vadd.f32 %v2501, %v2678
        %v2746 = vadd.f32 %v2502, %v2681
        %v2747 = vadd.f32 %v2503, %v2683
        %v2748 = vlaneseq
        %v2749 = vshrl.u32 %v2748, 7
        %v2750 = vsub.s32 2, %v2749
        %v2751 = vrot.slane %v1321, %v2750
        %v2752 = vmul.f32 %v1271, %v2751
        %v2753 = vmul.f32 %v1272, %v2751
        %v2754 = vmul.f32 %v1273, %v2751
        %v2755 = vmul.f32 %v1274, %v2751
        %v2756 = vmul.f32 %v1275, %v2751
        %v2757 = vmul.f32 %v1276, %v2751
        %v2758 = vmul.f32 %v1277, %v2751
        %v2759 = vmul.f32 %v1278, %v2751
        %v2760 = vmul.f32 %v1279, %v2751
        %v2761 = vmul.f32 %v1280, %v2751
        %v2762 = vmul.f32 %v1281, %v2751
        %v2763 = vmul.f32 %v1282, %v2751
        %v2764 = vmul.f32 %v1283, %v2751
        %v2765 = vmul.f32 %v1284, %v2751
        %v2766 = vmul.f32 %v1285, %v2751
        %v2767 = vmul.f32 %v1286, %v2751
        %v2768 = vmul.f32 %v1287, %v2751
        %v2769 = vmul.f32 %v1288, %v2751
        %v2770 = vmul.f32 %v1289, %v2751
        %v2771 = vmul.f32 %v1290, %v2751
        %v2772 = vmul.f32 %v1291, %v2751
        %v2773 = vmul.f32 %v1292, %v2751
        %v2774 = vmul.f32 %v1293, %v2751
        %v2775 = vmul.f32 %v1294, %v2751
        %v2776 = vmul.f32 %v1295, %v2751
        %v2777 = vmul.f32 %v1296, %v2751
        %v2778 = vmul.f32 %v1297, %v2751
        %v2779 = vmul.f32 %v1298, %v2751
        %v2780 = vmul.f32 %v1299, %v2751
        %v2781 = vmul.f32 %v1300, %v2751
        %v2782 = vmul.f32 %v1301, %v2751
        %v2783 = vmul.f32 %v1302, %v2751
        %v2784 = vmul.f32 %v1303, %v2751
        %v2785 = vmul.f32 %v1304, %v2751
        %v2786 = vmul.f32 %v1305, %v2751
        %v2787 = vmul.f32 %v1306, %v2751
        %v2788 = vmul.f32 %v1307, %v2751
        %v2789 = vmul.f32 %v1308, %v2751
        %v2790 = vmul.f32 %v1309, %v2751
        %v2791 = vmul.f32 %v1310, %v2751
        %v2792 = vmul.f32 %v1311, %v2751
        %v2793 = vmul.f32 %v1312, %v2751
        %v2794 = vmul.f32 %v1313, %v2751
        %v2795 = vmul.f32 %v1314, %v2751
        %v2796 = vmul.f32 %v1315, %v2751
        %v2797 = vmul.f32 %v1316, %v2751
        %v2798 = vmul.f32 %v1317, %v2751
        %v2799 = vmul.f32 %v1318, %v2751
        %v2848 = vrot.slane %v2752, 2
        %v2849 = vrot.slane %v2753, 2
        %v2850 = vsel %vm1735, %v2848, %v2849
        %v2851 = vrot.slane %v2754, 2
        %v2852 = vsel %vm1735, %v2849, %v2851
        %v2853 = vrot.slane %v2755, 2
        %v2854 = vrot.slane %v2756, 2
        %v2855 = vsel %vm1735, %v2853, %v2854
        %v2856 = vrot.slane %v2757, 2
        %v2857 = vsel %vm1735, %v2854, %v2856
        %v2858 = vrot.slane %v2758, 2
        %v2859 = vrot.slane %v2759, 2
        %v2860 = vsel %vm1735, %v2858, %v2859
        %v2861 = vrot.slane %v2760, 2
        %v2862 = vsel %vm1735, %v2859, %v2861
        %v2863 = vrot.slane %v2761, 2
        %v2864 = vrot.slane %v2762, 2
        %v2865 = vsel %vm1735, %v2863, %v2864
        %v2866 = vrot.slane %v2763, 2
        %v2867 = vsel %vm1735, %v2864, %v2866
        %v2868 = vrot.slane %v2764, 2
        %v2869 = vrot.slane %v2765, 2
        %v2870 = vsel %vm1735, %v2868, %v2869
        %v2871 = vrot.slane %v2766, 2
        %v2872 = vsel %vm1735, %v2869, %v2871
        %v2873 = vrot.slane %v2767, 2
        %v2874 = vrot.slane %v2768, 2
        %v2875 = vsel %vm1735, %v2873, %v2874
        %v2876 = vrot.slane %v2769, 2
        %v2877 = vsel %vm1735, %v2874, %v2876
        %v2878 = vrot.slane %v2770, 2
        %v2879 = vrot.slane %v2771, 2
        %v2880 = vsel %vm1735, %v2878, %v2879
        %v2881 = vrot.slane %v2772, 2
        %v2882 = vsel %vm1735, %v2879, %v2881
        %v2883 = vrot.slane %v2773, 2
        %v2884 = vrot.slane %v2774, 2
        %v2885 = vsel %vm1735, %v2883, %v2884
        %v2886 = vrot.slane %v2775, 2
        %v2887 = vsel %vm1735, %v2884, %v2886
        %v2888 = vrot.slane %v2776, 2
        %v2889 = vrot.slane %v2777, 2
        %v2890 = vsel %vm1735, %v2888, %v2889
        %v2891 = vrot.slane %v2778, 2
        %v2892 = vsel %vm1735, %v2889, %v2891
        %v2893 = vrot.slane %v2779, 2
        %v2894 = vrot.slane %v2780, 2
        %v2895 = vsel %vm1735, %v2893, %v2894
        %v2896 = vrot.slane %v2781, 2
        %v2897 = vsel %vm1735, %v2894, %v2896
        %v2898 = vrot.slane %v2782, 2
        %v2899 = vrot.slane %v2783, 2
        %v2900 = vsel %vm1735, %v2898, %v2899
        %v2901 = vrot.slane %v2784, 2
        %v2902 = vsel %vm1735, %v2899, %v2901
        %v2903 = vrot.slane %v2785, 2
        %v2904 = vrot.slane %v2786, 2
        %v2905 = vsel %vm1735, %v2903, %v2904
        %v2906 = vrot.slane %v2787, 2
        %v2907 = vsel %vm1735, %v2904, %v2906
        %v2908 = vrot.slane %v2788, 2
        %v2909 = vrot.slane %v2789, 2
        %v2910 = vsel %vm1735, %v2908, %v2909
        %v2911 = vrot.slane %v2790, 2
        %v2912 = vsel %vm1735, %v2909, %v2911
        %v2913 = vrot.slane %v2791, 2
        %v2914 = vrot.slane %v2792, 2
        %v2915 = vsel %vm1735, %v2913, %v2914
        %v2916 = vrot.slane %v2793, 2
        %v2917 = vsel %vm1735, %v2914, %v2916
        %v2918 = vrot.slane %v2794, 2
        %v2919 = vrot.slane %v2795, 2
        %v2920 = vsel %vm1735, %v2918, %v2919
        %v2921 = vrot.slane %v2796, 2
        %v2922 = vsel %vm1735, %v2919, %v2921
        %v2923 = vrot.slane %v2797, 2
        %v2924 = vrot.slane %v2798, 2
        %v2925 = vsel %vm1735, %v2923, %v2924
        %v2926 = vrot.slane %v2799, 2
        %v2927 = vsel %vm1735, %v2924, %v2926
        %v2960 = vadd.f32 %v2716, %v2850
        %v2961 = vadd.f32 %v2717, %v2852
        %v2962 = vadd.f32 %v2718, %v2855
        %v2963 = vadd.f32 %v2719, %v2857
        %v2964 = vadd.f32 %v2720, %v2860
        %v2965 = vadd.f32 %v2721, %v2862
        %v2966 = vadd.f32 %v2722, %v2865
        %v2967 = vadd.f32 %v2723, %v2867
        %v2968 = vadd.f32 %v2724, %v2870
        %v2969 = vadd.f32 %v2725, %v2872
        %v2970 = vadd.f32 %v2726, %v2875
        %v2971 = vadd.f32 %v2727, %v2877
        %v2972 = vadd.f32 %v2728, %v2880
        %v2973 = vadd.f32 %v2729, %v2882
        %v2974 = vadd.f32 %v2730, %v2885
        %v2975 = vadd.f32 %v2731, %v2887
        %v2976 = vadd.f32 %v2732, %v2890
        %v2977 = vadd.f32 %v2733, %v2892
        %v2978 = vadd.f32 %v2734, %v2895
        %v2979 = vadd.f32 %v2735, %v2897
        %v2980 = vadd.f32 %v2736, %v2900
        %v2981 = vadd.f32 %v2737, %v2902
        %v2982 = vadd.f32 %v2738, %v2905
        %v2983 = vadd.f32 %v2739, %v2907
        %v2984 = vadd.f32 %v2740, %v2910
        %v2985 = vadd.f32 %v2741, %v2912
        %v2986 = vadd.f32 %v2742, %v2915
        %v2987 = vadd.f32 %v2743, %v2917
        %v2988 = vadd.f32 %v2744, %v2920
        %v2989 = vadd.f32 %v2745, %v2922
        %v2990 = vadd.f32 %v2746, %v2925
        %v2991 = vadd.f32 %v2747, %v2927
        %v2992 = vld [vmem:[%s4] sm:$0x1]
        %v2994 = vlaneseq
        %v2995 = vshrl.u32 %v2994, 7
        %v2996 = vsub.s32 0, %v2995
        %v2997 = vrot.slane %v2992, %v2996
        %v2999 = vadd.f32 %v2960, %v2997
        %v3000 = vadd.f32 %v2961, %v2997
        %v3001 = vadd.f32 %v2962, %v2997
        %v3002 = vadd.f32 %v2963, %v2997
        %v3003 = vadd.f32 %v2964, %v2997
        %v3004 = vadd.f32 %v2965, %v2997
        %v3005 = vadd.f32 %v2966, %v2997
        %v3006 = vadd.f32 %v2967, %v2997
        %v3007 = vadd.f32 %v2968, %v2997
        %v3008 = vadd.f32 %v2969, %v2997
        %v3009 = vadd.f32 %v2970, %v2997
        %v3010 = vadd.f32 %v2971, %v2997
        %v3011 = vadd.f32 %v2972, %v2997
        %v3012 = vadd.f32 %v2973, %v2997
        %v3013 = vadd.f32 %v2974, %v2997
        %v3014 = vadd.f32 %v2975, %v2997
        %v3015 = vadd.f32 %v2976, %v2997
        %v3016 = vadd.f32 %v2977, %v2997
        %v3017 = vadd.f32 %v2978, %v2997
        %v3018 = vadd.f32 %v2979, %v2997
        %v3019 = vadd.f32 %v2980, %v2997
        %v3020 = vadd.f32 %v2981, %v2997
        %v3021 = vadd.f32 %v2982, %v2997
        %v3022 = vadd.f32 %v2983, %v2997
        %v3023 = vadd.f32 %v2984, %v2997
        %v3024 = vadd.f32 %v2985, %v2997
        %v3025 = vadd.f32 %v2986, %v2997
        %v3026 = vadd.f32 %v2987, %v2997
        %v3027 = vadd.f32 %v2988, %v2997
        %v3028 = vadd.f32 %v2989, %v2997
        %v3029 = vadd.f32 %v2990, %v2997
        %v3030 = vadd.f32 %v2991, %v2997
        %v3031 = vmax.f32 %v2999, 0.0
        %v3032 = vmax.f32 %v3000, 0.0
        %v3033 = vmax.f32 %v3001, 0.0
        %v3034 = vmax.f32 %v3002, 0.0
        %v3035 = vmax.f32 %v3003, 0.0
        %v3036 = vmax.f32 %v3004, 0.0
        %v3037 = vmax.f32 %v3005, 0.0
        %v3038 = vmax.f32 %v3006, 0.0
        %v3039 = vmax.f32 %v3007, 0.0
        %v3040 = vmax.f32 %v3008, 0.0
        %v3041 = vmax.f32 %v3009, 0.0
        %v3042 = vmax.f32 %v3010, 0.0
        %v3043 = vmax.f32 %v3011, 0.0
        %v3044 = vmax.f32 %v3012, 0.0
        %v3045 = vmax.f32 %v3013, 0.0
        %v3046 = vmax.f32 %v3014, 0.0
        %v3047 = vmax.f32 %v3015, 0.0
        %v3048 = vmax.f32 %v3016, 0.0
        %v3049 = vmax.f32 %v3017, 0.0
        %v3050 = vmax.f32 %v3018, 0.0
        %v3051 = vmax.f32 %v3019, 0.0
        %v3052 = vmax.f32 %v3020, 0.0
        %v3053 = vmax.f32 %v3021, 0.0
        %v3054 = vmax.f32 %v3022, 0.0
        %v3055 = vmax.f32 %v3023, 0.0
        %v3056 = vmax.f32 %v3024, 0.0
        %v3057 = vmax.f32 %v3025, 0.0
        %v3058 = vmax.f32 %v3026, 0.0
        %v3059 = vmax.f32 %v3027, 0.0
        %v3060 = vmax.f32 %v3028, 0.0
        %v3061 = vmax.f32 %v3029, 0.0
        %v3062 = vmax.f32 %v3030, 0.0
        %v3063 = vmin.f32 %v3031, 6.0
        %v3064 = vmin.f32 %v3032, 6.0
        %v3065 = vmin.f32 %v3033, 6.0
        %v3066 = vmin.f32 %v3034, 6.0
        %v3067 = vmin.f32 %v3035, 6.0
        %v3068 = vmin.f32 %v3036, 6.0
        %v3069 = vmin.f32 %v3037, 6.0
        %v3070 = vmin.f32 %v3038, 6.0
        %v3071 = vmin.f32 %v3039, 6.0
        %v3072 = vmin.f32 %v3040, 6.0
        %v3073 = vmin.f32 %v3041, 6.0
        %v3074 = vmin.f32 %v3042, 6.0
        %v3075 = vmin.f32 %v3043, 6.0
        %v3076 = vmin.f32 %v3044, 6.0
        %v3077 = vmin.f32 %v3045, 6.0
        %v3078 = vmin.f32 %v3046, 6.0
        %v3079 = vmin.f32 %v3047, 6.0
        %v3080 = vmin.f32 %v3048, 6.0
        %v3081 = vmin.f32 %v3049, 6.0
        %v3082 = vmin.f32 %v3050, 6.0
        %v3083 = vmin.f32 %v3051, 6.0
        %v3084 = vmin.f32 %v3052, 6.0
        %v3085 = vmin.f32 %v3053, 6.0
        %v3086 = vmin.f32 %v3054, 6.0
        %v3087 = vmin.f32 %v3055, 6.0
        %v3088 = vmin.f32 %v3056, 6.0
        %v3089 = vmin.f32 %v3057, 6.0
        %v3090 = vmin.f32 %v3058, 6.0
        %v3091 = vmin.f32 %v3059, 6.0
        %v3092 = vmin.f32 %v3060, 6.0
        %v3093 = vmin.f32 %v3061, 6.0
        %v3094 = vmin.f32 %v3062, 6.0
        %v3095 = vld [vmem:[%s5] sm:$0xff]
        %v3096 = vld [vmem:[%s5 + $0x8] sm:$0xff]
        %v3097 = vld [vmem:[%s5 + $0x10] sm:$0xff]
        %v3098 = vld [vmem:[%s6] sm:$0x1]
        %v3100 = vlaneseq
        %v3101 = vshrl.u32 %v3100, 7
        %v3102 = vsub.s32 0, %v3101
        %v3103 = vrot.slane %v3098, %v3102
        %vm3105 = vcmask 195584
        %v3107 = vsel %vm3105, %v3063, 0
        %v3110 = vsel %vm3105, %v3064, 0
        %v3113 = vsel %vm3105, %v3065, 0
        %v3116 = vsel %vm3105, %v3066, 0
        %v3119 = vsel %vm3105, %v3067, 0
        %v3122 = vsel %vm3105, %v3068, 0
        %v3125 = vsel %vm3105, %v3069, 0
        %v3128 = vsel %vm3105, %v3070, 0
        %v3131 = vsel %vm3105, %v3071, 0
        %v3134 = vsel %vm3105, %v3072, 0
        %v3137 = vsel %vm3105, %v3073, 0
        %v3140 = vsel %vm3105, %v3074, 0
        %v3143 = vsel %vm3105, %v3075, 0
        %v3146 = vsel %vm3105, %v3076, 0
        %v3149 = vsel %vm3105, %v3077, 0
        %v3152 = vsel %vm3105, %v3078, 0
        %v3155 = vsel %vm3105, %v3079, 0
        %v3158 = vsel %vm3105, %v3080, 0
        %v3161 = vsel %vm3105, %v3081, 0
        %v3164 = vsel %vm3105, %v3082, 0
        %v3167 = vsel %vm3105, %v3083, 0
        %v3170 = vsel %vm3105, %v3084, 0
        %v3173 = vsel %vm3105, %v3085, 0
        %v3176 = vsel %vm3105, %v3086, 0
        %v3179 = vsel %vm3105, %v3087, 0
        %v3182 = vsel %vm3105, %v3088, 0
        %v3185 = vsel %vm3105, %v3089, 0
        %v3188 = vsel %vm3105, %v3090, 0
        %v3191 = vsel %vm3105, %v3091, 0
        %v3194 = vsel %vm3105, %v3092, 0
        %v3197 = vsel %vm3105, %v3093, 0
        %v3200 = vsel %vm3105, %v3094, 0
        %3202 = vmatprep.subr.mxu0 0.0
        %3203 = vmatpush1.msra.mxu0 %v3095
        %3204 = vmatprep.subr.mxu0 0.0
        %3205 = vmatpush1.msra.mxu0 %v3096
        %3206 = vmatprep.subr.mxu0 0.0
        %3207 = vmatpush1.msra.mxu0 %v3097
        %3208 = vmatprep.subr.mxu0 0.0
        %3209 = vmatpush1.msra.mxu0 0.0
        %3210 = vmatprep.subr.mxu0 0.0
        %3211 = vmatpush1.msra.mxu0 0.0
        %3212 = vmatprep.subr.mxu0 0.0
        %3213 = vmatpush1.msra.mxu0 0.0
        %3214 = vmatprep.subr.mxu0 0.0
        %3215 = vmatpush1.msra.mxu0 0.0
        %3216 = vmatprep.subr.mxu0 0.0
        %3217 = vmatpush1.msra.mxu0 0.0
        %3218 = vmatprep.subr.mxu0 0.0
        %3219 = vmatpush1.msra.mxu0 0.0
        %3220 = vmatprep.subr.mxu0 0.0
        %3221 = vmatpush1.msra.mxu0 0.0
        %3222 = vmatprep.subr.mxu0 0.0
        %3223 = vmatpush1.msra.mxu0 0.0
        %3224 = vmatprep.subr.mxu0 0.0
        %3225 = vmatpush1.msra.mxu0 0.0
        %3226 = vmatprep.subr.mxu0 0.0
        %3227 = vmatpush1.msra.mxu0 0.0
        %3228 = vmatprep.subr.mxu0 0.0
        %3229 = vmatpush1.msra.mxu0 0.0
        %3230 = vmatprep.subr.mxu0 0.0
        %3231 = vmatpush1.msra.mxu0 0.0
        %3232 = vmatprep.subr.mxu0 0.0
        %3233 = vmatpush1.msra.mxu0 0.0
        %3234 = vmatprep.subr.mxu0 0.0
        %3235 = vmatpush1.msra.mxu0 0.0
        %3236 = vmatprep.subr.mxu0 0.0
        %3237 = vmatpush1.msra.mxu0 0.0
        %3238 = vmatprep.subr.mxu0 0.0
        %3239 = vmatpush1.msra.mxu0 0.0
        %3240 = vmatprep.subr.mxu0 0.0
        %3241 = vmatpush1.msra.mxu0 0.0
        %3242 = vmatprep.subr.mxu0 0.0
        %3243 = vmatpush1.msra.mxu0 0.0
        %3244 = vmatprep.subr.mxu0 0.0
        %3245 = vmatpush1.msra.mxu0 0.0
        %3246 = vmatprep.subr.mxu0 0.0
        %3247 = vmatpush1.msra.mxu0 0.0
        %3248 = vmatprep.subr.mxu0 0.0
        %3249 = vmatpush1.msra.mxu0 0.0
        %3250 = vmatprep.subr.mxu0 0.0
        %3251 = vmatpush1.msra.mxu0 0.0
        %3252 = vmatprep.subr.mxu0 0.0
        %3253 = vmatpush1.msra.mxu0 0.0
        %3254 = vmatprep.subr.mxu0 0.0
        %3255 = vmatpush1.msra.mxu0 0.0
        %3256 = vmatprep.subr.mxu0 0.0
        %3257 = vmatpush1.msra.mxu0 0.0
        %3258 = vmatprep.subr.mxu0 0.0
        %3259 = vmatpush1.msra.mxu0 0.0
        %3260 = vmatprep.subr.mxu0 0.0
        %3261 = vmatpush1.msra.mxu0 0.0
        %3262 = vmatprep.subr.mxu0 0.0
        %3263 = vmatpush1.msra.mxu0 0.0
        %3264 = vmatprep.subr.mxu0 0.0
        %3265 = vmatpush1.msra.mxu0 0.0
        %3266 = vmatprep.mubr.f32.mxu0 0.0
        %3267 = vmatmul.mubr.f32.gmra.mrb[0].mxu0 %v3107
        %v3268 = vpop.f32.mrb[0].mxu0
        %v3269 = vadd.f32 %v3103, %v3268
        %v3270 = vpop.f32.mrb[0].mxu0
        %3271 = vmatprep.mubr.f32.mxu0 0.0
        %3272 = vmatmul.mubr.f32.gmra.mrb[0].mxu0 %v3110
        %v3273 = vpop.f32.mrb[0].mxu0
        %v3274 = vadd.f32 %v3103, %v3273
        %v3275 = vpop.f32.mrb[0].mxu0
        %3276 = vmatprep.mubr.f32.mxu0 0.0
        %3277 = vmatmul.mubr.f32.gmra.mrb[0].mxu0 %v3113
        %v3278 = vpop.f32.mrb[0].mxu0
        %v3279 = vadd.f32 %v3103, %v3278
        %v3280 = vpop.f32.mrb[0].mxu0
        %3281 = vmatprep.mubr.f32.mxu0 0.0
        %3282 = vmatmul.mubr.f32.gmra.mrb[0].mxu0 %v3116
        %v3283 = vpop.f32.mrb[0].mxu0
        %v3284 = vadd.f32 %v3103, %v3283
        %v3285 = vpop.f32.mrb[0].mxu0
        %3286 = vmatprep.mubr.f32.mxu0 0.0
        %3287 = vmatmul.mubr.f32.gmra.mrb[0].mxu0 %v3119
        %v3288 = vpop.f32.mrb[0].mxu0
        %v3289 = vadd.f32 %v3103, %v3288
        %v3290 = vpop.f32.mrb[0].mxu0
        %3291 = vmatprep.mubr.f32.mxu0 0.0
        %3292 = vmatmul.mubr.f32.gmra.mrb[0].mxu0 %v3122
        %v3293 = vpop.f32.mrb[0].mxu0
        %v3294 = vadd.f32 %v3103, %v3293
        %v3295 = vpop.f32.mrb[0].mxu0
        %3296 = vmatprep.mubr.f32.mxu0 0.0
        %3297 = vmatmul.mubr.f32.gmra.mrb[0].mxu0 %v3125
        %v3298 = vpop.f32.mrb[0].mxu0
        %v3299 = vadd.f32 %v3103, %v3298
        %v3300 = vpop.f32.mrb[0].mxu0
        %3301 = vmatprep.mubr.f32.mxu0 0.0
        %3302 = vmatmul.mubr.f32.gmra.mrb[0].mxu0 %v3128
        %v3303 = vpop.f32.mrb[0].mxu0
        %v3304 = vadd.f32 %v3103, %v3303
        %v3305 = vpop.f32.mrb[0].mxu0
        %3306 = vmatprep.mubr.f32.mxu0 0.0
        %3307 = vmatmul.mubr.f32.gmra.mrb[0].mxu0 %v3131
        %v3308 = vpop.f32.mrb[0].mxu0
        %v3309 = vadd.f32 %v3103, %v3308
        %v3310 = vpop.f32.mrb[0].mxu0
        %3311 = vmatprep.mubr.f32.mxu0 0.0
        %3312 = vmatmul.mubr.f32.gmra.mrb[0].mxu0 %v3134
        %v3313 = vpop.f32.mrb[0].mxu0
        %v3314 = vadd.f32 %v3103, %v3313
        %v3315 = vpop.f32.mrb[0].mxu0
        %3316 = vmatprep.mubr.f32.mxu0 0.0
        %3317 = vmatmul.mubr.f32.gmra.mrb[0].mxu0 %v3137
        %v3318 = vpop.f32.mrb[0].mxu0
        %v3319 = vadd.f32 %v3103, %v3318
        %v3320 = vpop.f32.mrb[0].mxu0
        %3321 = vmatprep.mubr.f32.mxu0 0.0
        %3322 = vmatmul.mubr.f32.gmra.mrb[0].mxu0 %v3140
        %v3323 = vpop.f32.mrb[0].mxu0
        %v3324 = vadd.f32 %v3103, %v3323
        %v3325 = vpop.f32.mrb[0].mxu0
        %3326 = vmatprep.mubr.f32.mxu0 0.0
        %3327 = vmatmul.mubr.f32.gmra.mrb[0].mxu0 %v3143
        %v3328 = vpop.f32.mrb[0].mxu0
        %v3329 = vadd.f32 %v3103, %v3328
        %v3330 = vpop.f32.mrb[0].mxu0
        %3331 = vmatprep.mubr.f32.mxu0 0.0
        %3332 = vmatmul.mubr.f32.gmra.mrb[0].mxu0 %v3146
        %v3333 = vpop.f32.mrb[0].mxu0
        %v3334 = vadd.f32 %v3103, %v3333
        %v3335 = vpop.f32.mrb[0].mxu0
        %3336 = vmatprep.mubr.f32.mxu0 0.0
        %3337 = vmatmul.mubr.f32.gmra.mrb[0].mxu0 %v3149
        %v3338 = vpop.f32.mrb[0].mxu0
        %v3339 = vadd.f32 %v3103, %v3338
        %v3340 = vpop.f32.mrb[0].mxu0
        %3341 = vmatprep.mubr.f32.mxu0 0.0
        %3342 = vmatmul.mubr.f32.gmra.mrb[0].mxu0 %v3152
        %v3343 = vpop.f32.mrb[0].mxu0
        %v3344 = vadd.f32 %v3103, %v3343
        %v3345 = vpop.f32.mrb[0].mxu0
        %3346 = vmatprep.mubr.f32.mxu0 0.0
        %3347 = vmatmul.mubr.f32.gmra.mrb[0].mxu0 %v3155
        %v3348 = vpop.f32.mrb[0].mxu0
        %v3349 = vadd.f32 %v3103, %v3348
        %v3350 = vpop.f32.mrb[0].mxu0
        %3351 = vmatprep.mubr.f32.mxu0 0.0
        %3352 = vmatmul.mubr.f32.gmra.mrb[0].mxu0 %v3158
        %v3353 = vpop.f32.mrb[0].mxu0
        %v3354 = vadd.f32 %v3103, %v3353
        %v3355 = vpop.f32.mrb[0].mxu0
        %3356 = vmatprep.mubr.f32.mxu0 0.0
        %3357 = vmatmul.mubr.f32.gmra.mrb[0].mxu0 %v3161
        %v3358 = vpop.f32.mrb[0].mxu0
        %v3359 = vadd.f32 %v3103, %v3358
        %v3360 = vpop.f32.mrb[0].mxu0
        %3361 = vmatprep.mubr.f32.mxu0 0.0
        %3362 = vmatmul.mubr.f32.gmra.mrb[0].mxu0 %v3164
        %v3363 = vpop.f32.mrb[0].mxu0
        %v3364 = vadd.f32 %v3103, %v3363
        %v3365 = vpop.f32.mrb[0].mxu0
        %3366 = vmatprep.mubr.f32.mxu0 0.0
        %3367 = vmatmul.mubr.f32.gmra.mrb[0].mxu0 %v3167
        %v3368 = vpop.f32.mrb[0].mxu0
        %v3369 = vadd.f32 %v3103, %v3368
        %v3370 = vpop.f32.mrb[0].mxu0
        %3371 = vmatprep.mubr.f32.mxu0 0.0
        %3372 = vmatmul.mubr.f32.gmra.mrb[0].mxu0 %v3170
        %v3373 = vpop.f32.mrb[0].mxu0
        %v3374 = vadd.f32 %v3103, %v3373
        %v3375 = vpop.f32.mrb[0].mxu0
        %3376 = vmatprep.mubr.f32.mxu0 0.0
        %3377 = vmatmul.mubr.f32.gmra.mrb[0].mxu0 %v3173
        %v3378 = vpop.f32.mrb[0].mxu0
        %v3379 = vadd.f32 %v3103, %v3378
        %v3380 = vpop.f32.mrb[0].mxu0
        %3381 = vmatprep.mubr.f32.mxu0 0.0
        %3382 = vmatmul.mubr.f32.gmra.mrb[0].mxu0 %v3176
        %v3383 = vpop.f32.mrb[0].mxu0
        %v3384 = vadd.f32 %v3103, %v3383
        %v3385 = vpop.f32.mrb[0].mxu0
        %3386 = vmatprep.mubr.f32.mxu0 0.0
        %3387 = vmatmul.mubr.f32.gmra.mrb[0].mxu0 %v3179
        %v3388 = vpop.f32.mrb[0].mxu0
        %v3389 = vadd.f32 %v3103, %v3388
        %v3390 = vpop.f32.mrb[0].mxu0
        %3391 = vmatprep.mubr.f32.mxu0 0.0
        %3392 = vmatmul.mubr.f32.gmra.mrb[0].mxu0 %v3182
        %v3393 = vpop.f32.mrb[0].mxu0
        %v3394 = vadd.f32 %v3103, %v3393
        %v3395 = vpop.f32.mrb[0].mxu0
        %3396 = vmatprep.mubr.f32.mxu0 0.0
        %3397 = vmatmul.mubr.f32.gmra.mrb[0].mxu0 %v3185
        %v3398 = vpop.f32.mrb[0].mxu0
        %v3399 = vadd.f32 %v3103, %v3398
        %v3400 = vpop.f32.mrb[0].mxu0
        %3401 = vmatprep.mubr.f32.mxu0 0.0
        %3402 = vmatmul.mubr.f32.gmra.mrb[0].mxu0 %v3188
        %v3403 = vpop.f32.mrb[0].mxu0
        %v3404 = vadd.f32 %v3103, %v3403
        %v3405 = vpop.f32.mrb[0].mxu0
        %3406 = vmatprep.mubr.f32.mxu0 0.0
        %3407 = vmatmul.mubr.f32.gmra.mrb[0].mxu0 %v3191
        %v3408 = vpop.f32.mrb[0].mxu0
        %v3409 = vadd.f32 %v3103, %v3408
        %v3410 = vpop.f32.mrb[0].mxu0
        %3411 = vmatprep.mubr.f32.mxu0 0.0
        %3412 = vmatmul.mubr.f32.gmra.mrb[0].mxu0 %v3194
        %v3413 = vpop.f32.mrb[0].mxu0
        %v3414 = vadd.f32 %v3103, %v3413
        %v3415 = vpop.f32.mrb[0].mxu0
        %3416 = vmatprep.mubr.f32.mxu0 0.0
        %3417 = vmatmul.mubr.f32.gmra.mrb[0].mxu0 %v3197
        %v3418 = vpop.f32.mrb[0].mxu0
        %v3419 = vadd.f32 %v3103, %v3418
        %v3420 = vpop.f32.mrb[0].mxu0
        %3421 = vmatprep.mubr.f32.mxu0 0.0
        %3422 = vmatmul.mubr.f32.gmra.mrb[0].mxu0 %v3200
        %v3423 = vpop.f32.mrb[0].mxu0
        %v3424 = vadd.f32 %v3103, %v3423
        %v3425 = vpop.f32.mrb[0].mxu0
        %3426 = vdwg.mxu0
        %v3427 = vrot.slane %v298, 1
        %v3428 = vrot.slane %v299, 1
        %v3429 = vsel %vm1490, %v3427, %v3428
        %v3430 = vrot.slane %v300, 1
        %v3431 = vsel %vm1490, %v3428, %v3430
        %v3432 = vrot.slane %v301, 1
        %v3433 = vrot.slane %v302, 1
        %v3434 = vsel %vm1490, %v3432, %v3433
        %v3435 = vrot.slane %v303, 1
        %v3436 = vsel %vm1490, %v3433, %v3435
        %v3437 = vrot.slane %v304, 1
        %v3438 = vrot.slane %v305, 1
        %v3439 = vsel %vm1490, %v3437, %v3438
        %v3440 = vrot.slane %v306, 1
        %v3441 = vsel %vm1490, %v3438, %v3440
        %v3442 = vrot.slane %v307, 1
        %v3443 = vrot.slane %v308, 1
        %v3444 = vsel %vm1490, %v3442, %v3443
        %v3445 = vrot.slane %v309, 1
        %v3446 = vsel %vm1490, %v3443, %v3445
        %v3447 = vrot.slane %v310, 1
        %v3448 = vrot.slane %v311, 1
        %v3449 = vsel %vm1490, %v3447, %v3448
        %v3450 = vrot.slane %v312, 1
        %v3451 = vsel %vm1490, %v3448, %v3450
        %v3452 = vrot.slane %v313, 1
        %v3453 = vrot.slane %v314, 1
        %v3454 = vsel %vm1490, %v3452, %v3453
        %v3455 = vrot.slane %v315, 1
        %v3456 = vsel %vm1490, %v3453, %v3455
        %v3457 = vrot.slane %v316, 1
        %v3458 = vrot.slane %v317, 1
        %v3459 = vsel %vm1490, %v3457, %v3458
        %v3460 = vrot.slane %v318, 1
        %v3461 = vsel %vm1490, %v3458, %v3460
        %v3462 = vrot.slane %v319, 1
        %v3463 = vrot.slane %v320, 1
        %v3464 = vsel %vm1490, %v3462, %v3463
        %v3465 = vrot.slane %v321, 1
        %v3466 = vsel %vm1490, %v3463, %v3465
        %v3467 = vrot.slane %v322, 1
        %v3468 = vrot.slane %v323, 1
        %v3469 = vsel %vm1490, %v3467, %v3468
        %v3470 = vrot.slane %v324, 1
        %v3471 = vsel %vm1490, %v3468, %v3470
        %v3472 = vrot.slane %v325, 1
        %v3473 = vrot.slane %v326, 1
        %v3474 = vsel %vm1490, %v3472, %v3473
        %v3475 = vrot.slane %v327, 1
        %v3476 = vsel %vm1490, %v3473, %v3475
        %v3477 = vrot.slane %v328, 1
        %v3478 = vrot.slane %v329, 1
        %v3479 = vsel %vm1490, %v3477, %v3478
        %v3480 = vrot.slane %v330, 1
        %v3481 = vsel %vm1490, %v3478, %v3480
        %v3482 = vrot.slane %v331, 1
        %v3483 = vrot.slane %v332, 1
        %v3484 = vsel %vm1490, %v3482, %v3483
        %v3485 = vrot.slane %v333, 1
        %v3486 = vsel %vm1490, %v3483, %v3485
        %v3487 = vrot.slane %v334, 1
        %v3488 = vrot.slane %v335, 1
        %v3489 = vsel %vm1490, %v3487, %v3488
        %v3490 = vrot.slane %v336, 1
        %v3491 = vsel %vm1490, %v3488, %v3490
        %v3492 = vrot.slane %v337, 1
        %v3493 = vrot.slane %v338, 1
        %v3494 = vsel %vm1490, %v3492, %v3493
        %v3495 = vrot.slane %v339, 1
        %v3496 = vsel %vm1490, %v3493, %v3495
        %v3497 = vrot.slane %v340, 1
        %v3498 = vrot.slane %v341, 1
        %v3499 = vsel %vm1490, %v3497, %v3498
        %v3500 = vrot.slane %v342, 1
        %v3501 = vsel %vm1490, %v3498, %v3500
        %v3502 = vrot.slane %v343, 1
        %v3503 = vrot.slane %v344, 1
        %v3504 = vsel %vm1490, %v3502, %v3503
        %v3505 = vrot.slane %v345, 1
        %v3506 = vsel %vm1490, %v3503, %v3505
        %v3539 = vadd.f32 %v3269, %v3429
        %v3540 = vadd.f32 %v3274, %v3431
        %v3541 = vadd.f32 %v3279, %v3434
        %v3542 = vadd.f32 %v3284, %v3436
        %v3543 = vadd.f32 %v3289, %v3439
        %v3544 = vadd.f32 %v3294, %v3441
        %v3545 = vadd.f32 %v3299, %v3444
        %v3546 = vadd.f32 %v3304, %v3446
        %v3547 = vadd.f32 %v3309, %v3449
        %v3548 = vadd.f32 %v3314, %v3451
        %v3549 = vadd.f32 %v3319, %v3454
        %v3550 = vadd.f32 %v3324, %v3456
        %v3551 = vadd.f32 %v3329, %v3459
        %v3552 = vadd.f32 %v3334, %v3461
        %v3553 = vadd.f32 %v3339, %v3464
        %v3554 = vadd.f32 %v3344, %v3466
        %v3555 = vadd.f32 %v3349, %v3469
        %v3556 = vadd.f32 %v3354, %v3471
        %v3557 = vadd.f32 %v3359, %v3474
        %v3558 = vadd.f32 %v3364, %v3476
        %v3559 = vadd.f32 %v3369, %v3479
        %v3560 = vadd.f32 %v3374, %v3481
        %v3561 = vadd.f32 %v3379, %v3484
        %v3562 = vadd.f32 %v3384, %v3486
        %v3563 = vadd.f32 %v3389, %v3489
        %v3564 = vadd.f32 %v3394, %v3491
        %v3565 = vadd.f32 %v3399, %v3494
        %v3566 = vadd.f32 %v3404, %v3496
        %v3567 = vadd.f32 %v3409, %v3499
        %v3568 = vadd.f32 %v3414, %v3501
        %v3569 = vadd.f32 %v3419, %v3504
        %v3570 = vadd.f32 %v3424, %v3506
        %v3571 = vcombine.low %v3539, %v3543
        %v3572 = vcombine.high %v3539, %v3543
        %v3574 = vunpack.c.l.s4 1983009808
        %v3575 = vunpack.c.0.s8 %v3574
        %v3576 = vlaneseq
        %v3577 = vshrl.u32 %v3576, 7
        %v3578 = vsub.s32 %v3575, %v3577
        %v3579 = vrot.slane %v3571, %v3578
        %v3581 = vunpack.c.l.s4 1983009808
        %v3582 = vunpack.c.0.s8 %v3581
        %v3583 = vlaneseq
        %v3584 = vshrl.u32 %v3583, 7
        %v3585 = vsub.s32 %v3582, %v3584
        %v3586 = vrot.slane %v3572, %v3585
        %v3587 = vcombine.low %v3541, %v3545
        %v3588 = vcombine.high %v3541, %v3545
        %v3590 = vunpack.c.l.s4 1983009808
        %v3591 = vunpack.c.0.s8 %v3590
        %v3592 = vlaneseq
        %v3593 = vshrl.u32 %v3592, 7
        %v3594 = vsub.s32 %v3591, %v3593
        %v3595 = vrot.slane %v3587, %v3594
        %v3597 = vunpack.c.l.s4 1983009808
        %v3598 = vunpack.c.0.s8 %v3597
        %v3599 = vlaneseq
        %v3600 = vshrl.u32 %v3599, 7
        %v3601 = vsub.s32 %v3598, %v3600
        %v3602 = vrot.slane %v3588, %v3601
        %v3603 = vcombine.low %v3547, %v3551
        %v3604 = vcombine.high %v3547, %v3551
        %v3606 = vunpack.c.l.s4 1983009808
        %v3607 = vunpack.c.0.s8 %v3606
        %v3608 = vlaneseq
        %v3609 = vshrl.u32 %v3608, 7
        %v3610 = vsub.s32 %v3607, %v3609
        %v3611 = vrot.slane %v3603, %v3610
        %v3613 = vunpack.c.l.s4 1983009808
        %v3614 = vunpack.c.0.s8 %v3613
        %v3615 = vlaneseq
        %v3616 = vshrl.u32 %v3615, 7
        %v3617 = vsub.s32 %v3614, %v3616
        %v3618 = vrot.slane %v3604, %v3617
        %v3619 = vcombine.low %v3549, %v3553
        %v3620 = vcombine.high %v3549, %v3553
        %v3622 = vunpack.c.l.s4 1983009808
        %v3623 = vunpack.c.0.s8 %v3622
        %v3624 = vlaneseq
        %v3625 = vshrl.u32 %v3624, 7
        %v3626 = vsub.s32 %v3623, %v3625
        %v3627 = vrot.slane %v3619, %v3626
        %v3629 = vunpack.c.l.s4 1983009808
        %v3630 = vunpack.c.0.s8 %v3629
        %v3631 = vlaneseq
        %v3632 = vshrl.u32 %v3631, 7
        %v3633 = vsub.s32 %v3630, %v3632
        %v3634 = vrot.slane %v3620, %v3633
        %v3635 = vcombine.low %v3579, %v3595
        %v3636 = vcombine.high %v3579, %v3595
        %v3638 = vunpack.c.l.s4 1934713408
        %v3639 = vunpack.c.0.s8 %v3638
        %v3640 = vlaneseq
        %v3641 = vshrl.u32 %v3640, 7
        %v3642 = vsub.s32 %v3639, %v3641
        %v3643 = vrot.slane %v3635, %v3642
        %v3645 = vunpack.c.l.s4 1934713408
        %v3646 = vunpack.c.0.s8 %v3645
        %v3647 = vlaneseq
        %v3648 = vshrl.u32 %v3647, 7
        %v3649 = vsub.s32 %v3646, %v3648
        %v3650 = vrot.slane %v3636, %v3649
        %v3651 = vcombine.low %v3586, %v3602
        %v3652 = vcombine.high %v3586, %v3602
        %v3654 = vunpack.c.l.s4 1934713408
        %v3655 = vunpack.c.0.s8 %v3654
        %v3656 = vlaneseq
        %v3657 = vshrl.u32 %v3656, 7
        %v3658 = vsub.s32 %v3655, %v3657
        %v3659 = vrot.slane %v3651, %v3658
        %v3661 = vunpack.c.l.s4 1934713408
        %v3662 = vunpack.c.0.s8 %v3661
        %v3663 = vlaneseq
        %v3664 = vshrl.u32 %v3663, 7
        %v3665 = vsub.s32 %v3662, %v3664
        %v3666 = vrot.slane %v3652, %v3665
        %v3667 = vcombine.low %v3611, %v3627
        %v3668 = vcombine.high %v3611, %v3627
        %v3670 = vunpack.c.l.s4 1934713408
        %v3671 = vunpack.c.0.s8 %v3670
        %v3672 = vlaneseq
        %v3673 = vshrl.u32 %v3672, 7
        %v3674 = vsub.s32 %v3671, %v3673
        %v3675 = vrot.slane %v3667, %v3674
        %v3677 = vunpack.c.l.s4 1934713408
        %v3678 = vunpack.c.0.s8 %v3677
        %v3679 = vlaneseq
        %v3680 = vshrl.u32 %v3679, 7
        %v3681 = vsub.s32 %v3678, %v3680
        %v3682 = vrot.slane %v3668, %v3681
        %v3683 = vcombine.low %v3618, %v3634
        %v3684 = vcombine.high %v3618, %v3634
        %v3686 = vunpack.c.l.s4 1934713408
        %v3687 = vunpack.c.0.s8 %v3686
        %v3688 = vlaneseq
        %v3689 = vshrl.u32 %v3688, 7
        %v3690 = vsub.s32 %v3687, %v3689
        %v3691 = vrot.slane %v3683, %v3690
        %v3693 = vunpack.c.l.s4 1934713408
        %v3694 = vunpack.c.0.s8 %v3693
        %v3695 = vlaneseq
        %v3696 = vshrl.u32 %v3695, 7
        %v3697 = vsub.s32 %v3694, %v3696
        %v3698 = vrot.slane %v3684, %v3697
        %v3699 = vcombine.low %v3643, %v3675
        %v3700 = vcombine.high %v3643, %v3675
        %v3701 = vcombine.low %v3650, %v3682
        %v3702 = vcombine.high %v3650, %v3682
        %v3703 = vcombine.low %v3659, %v3691
        %v3704 = vcombine.high %v3659, %v3691
        %v3705 = vcombine.low %v3666, %v3698
        %v3706 = vcombine.high %v3666, %v3698
        %v3707 = vcombine.low %v3555, %v3559
        %v3708 = vcombine.high %v3555, %v3559
        %v3710 = vunpack.c.l.s4 1983009808
        %v3711 = vunpack.c.0.s8 %v3710
        %v3712 = vlaneseq
        %v3713 = vshrl.u32 %v3712, 7
        %v3714 = vsub.s32 %v3711, %v3713
        %v3715 = vrot.slane %v3707, %v3714
        %v3717 = vunpack.c.l.s4 1983009808
        %v3718 = vunpack.c.0.s8 %v3717
        %v3719 = vlaneseq
        %v3720 = vshrl.u32 %v3719, 7
        %v3721 = vsub.s32 %v3718, %v3720
        %v3722 = vrot.slane %v3708, %v3721
        %v3723 = vcombine.low %v3557, %v3561
        %v3724 = vcombine.high %v3557, %v3561
        %v3726 = vunpack.c.l.s4 1983009808
        %v3727 = vunpack.c.0.s8 %v3726
        %v3728 = vlaneseq
        %v3729 = vshrl.u32 %v3728, 7
        %v3730 = vsub.s32 %v3727, %v3729
        %v3731 = vrot.slane %v3723, %v3730
        %v3733 = vunpack.c.l.s4 1983009808
        %v3734 = vunpack.c.0.s8 %v3733
        %v3735 = vlaneseq
        %v3736 = vshrl.u32 %v3735, 7
        %v3737 = vsub.s32 %v3734, %v3736
        %v3738 = vrot.slane %v3724, %v3737
        %v3739 = vcombine.low %v3563, %v3567
        %v3740 = vcombine.high %v3563, %v3567
        %v3742 = vunpack.c.l.s4 1983009808
        %v3743 = vunpack.c.0.s8 %v3742
        %v3744 = vlaneseq
        %v3745 = vshrl.u32 %v3744, 7
        %v3746 = vsub.s32 %v3743, %v3745
        %v3747 = vrot.slane %v3739, %v3746
        %v3749 = vunpack.c.l.s4 1983009808
        %v3750 = vunpack.c.0.s8 %v3749
        %v3751 = vlaneseq
        %v3752 = vshrl.u32 %v3751, 7
        %v3753 = vsub.s32 %v3750, %v3752
        %v3754 = vrot.slane %v3740, %v3753
        %v3755 = vcombine.low %v3565, %v3569
        %v3756 = vcombine.high %v3565, %v3569
        %v3758 = vunpack.c.l.s4 1983009808
        %v3759 = vunpack.c.0.s8 %v3758
        %v3760 = vlaneseq
        %v3761 = vshrl.u32 %v3760, 7
        %v3762 = vsub.s32 %v3759, %v3761
        %v3763 = vrot.slane %v3755, %v3762
        %v3765 = vunpack.c.l.s4 1983009808
        %v3766 = vunpack.c.0.s8 %v3765
        %v3767 = vlaneseq
        %v3768 = vshrl.u32 %v3767, 7
        %v3769 = vsub.s32 %v3766, %v3768
        %v3770 = vrot.slane %v3756, %v3769
        %v3771 = vcombine.low %v3715, %v3731
        %v3772 = vcombine.high %v3715, %v3731
        %v3774 = vunpack.c.l.s4 1934713408
        %v3775 = vunpack.c.0.s8 %v3774
        %v3776 = vlaneseq
        %v3777 = vshrl.u32 %v3776, 7
        %v3778 = vsub.s32 %v3775, %v3777
        %v3779 = vrot.slane %v3771, %v3778
        %v3781 = vunpack.c.l.s4 1934713408
        %v3782 = vunpack.c.0.s8 %v3781
        %v3783 = vlaneseq
        %v3784 = vshrl.u32 %v3783, 7
        %v3785 = vsub.s32 %v3782, %v3784
        %v3786 = vrot.slane %v3772, %v3785
        %v3787 = vcombine.low %v3722, %v3738
        %v3788 = vcombine.high %v3722, %v3738
        %v3790 = vunpack.c.l.s4 1934713408
        %v3791 = vunpack.c.0.s8 %v3790
        %v3792 = vlaneseq
        %v3793 = vshrl.u32 %v3792, 7
        %v3794 = vsub.s32 %v3791, %v3793
        %v3795 = vrot.slane %v3787, %v3794
        %v3797 = vunpack.c.l.s4 1934713408
        %v3798 = vunpack.c.0.s8 %v3797
        %v3799 = vlaneseq
        %v3800 = vshrl.u32 %v3799, 7
        %v3801 = vsub.s32 %v3798, %v3800
        %v3802 = vrot.slane %v3788, %v3801
        %v3803 = vcombine.low %v3747, %v3763
        %v3804 = vcombine.high %v3747, %v3763
        %v3806 = vunpack.c.l.s4 1934713408
        %v3807 = vunpack.c.0.s8 %v3806
        %v3808 = vlaneseq
        %v3809 = vshrl.u32 %v3808, 7
        %v3810 = vsub.s32 %v3807, %v3809
        %v3811 = vrot.slane %v3803, %v3810
        %v3813 = vunpack.c.l.s4 1934713408
        %v3814 = vunpack.c.0.s8 %v3813
        %v3815 = vlaneseq
        %v3816 = vshrl.u32 %v3815, 7
        %v3817 = vsub.s32 %v3814, %v3816
        %v3818 = vrot.slane %v3804, %v3817
        %v3819 = vcombine.low %v3754, %v3770
        %v3820 = vcombine.high %v3754, %v3770
        %v3822 = vunpack.c.l.s4 1934713408
        %v3823 = vunpack.c.0.s8 %v3822
        %v3824 = vlaneseq
        %v3825 = vshrl.u32 %v3824, 7
        %v3826 = vsub.s32 %v3823, %v3825
        %v3827 = vrot.slane %v3819, %v3826
        %v3829 = vunpack.c.l.s4 1934713408
        %v3830 = vunpack.c.0.s8 %v3829
        %v3831 = vlaneseq
        %v3832 = vshrl.u32 %v3831, 7
        %v3833 = vsub.s32 %v3830, %v3832
        %v3834 = vrot.slane %v3820, %v3833
        %v3835 = vcombine.low %v3779, %v3811
        %v3836 = vcombine.high %v3779, %v3811
        %v3837 = vcombine.low %v3786, %v3818
        %v3838 = vcombine.high %v3786, %v3818
        %v3839 = vcombine.low %v3795, %v3827
        %v3840 = vcombine.high %v3795, %v3827
        %v3841 = vcombine.low %v3802, %v3834
        %v3842 = vcombine.high %v3802, %v3834
        %v3843 = vcombine.low %v3540, %v3544
        %v3844 = vcombine.high %v3540, %v3544
        %v3846 = vunpack.c.l.s4 1983009808
        %v3847 = vunpack.c.0.s8 %v3846
        %v3848 = vlaneseq
        %v3849 = vshrl.u32 %v3848, 7
        %v3850 = vsub.s32 %v3847, %v3849
        %v3851 = vrot.slane %v3843, %v3850
        %v3853 = vunpack.c.l.s4 1983009808
        %v3854 = vunpack.c.0.s8 %v3853
        %v3855 = vlaneseq
        %v3856 = vshrl.u32 %v3855, 7
        %v3857 = vsub.s32 %v3854, %v3856
        %v3858 = vrot.slane %v3844, %v3857
        %v3859 = vcombine.low %v3542, %v3546
        %v3860 = vcombine.high %v3542, %v3546
        %v3862 = vunpack.c.l.s4 1983009808
        %v3863 = vunpack.c.0.s8 %v3862
        %v3864 = vlaneseq
        %v3865 = vshrl.u32 %v3864, 7
        %v3866 = vsub.s32 %v3863, %v3865
        %v3867 = vrot.slane %v3859, %v3866
        %v3869 = vunpack.c.l.s4 1983009808
        %v3870 = vunpack.c.0.s8 %v3869
        %v3871 = vlaneseq
        %v3872 = vshrl.u32 %v3871, 7
        %v3873 = vsub.s32 %v3870, %v3872
        %v3874 = vrot.slane %v3860, %v3873
        %v3875 = vcombine.low %v3548, %v3552
        %v3876 = vcombine.high %v3548, %v3552
        %v3878 = vunpack.c.l.s4 1983009808
        %v3879 = vunpack.c.0.s8 %v3878
        %v3880 = vlaneseq
        %v3881 = vshrl.u32 %v3880, 7
        %v3882 = vsub.s32 %v3879, %v3881
        %v3883 = vrot.slane %v3875, %v3882
        %v3885 = vunpack.c.l.s4 1983009808
        %v3886 = vunpack.c.0.s8 %v3885
        %v3887 = vlaneseq
        %v3888 = vshrl.u32 %v3887, 7
        %v3889 = vsub.s32 %v3886, %v3888
        %v3890 = vrot.slane %v3876, %v3889
        %v3891 = vcombine.low %v3550, %v3554
        %v3892 = vcombine.high %v3550, %v3554
        %v3894 = vunpack.c.l.s4 1983009808
        %v3895 = vunpack.c.0.s8 %v3894
        %v3896 = vlaneseq
        %v3897 = vshrl.u32 %v3896, 7
        %v3898 = vsub.s32 %v3895, %v3897
        %v3899 = vrot.slane %v3891, %v3898
        %v3901 = vunpack.c.l.s4 1983009808
        %v3902 = vunpack.c.0.s8 %v3901
        %v3903 = vlaneseq
        %v3904 = vshrl.u32 %v3903, 7
        %v3905 = vsub.s32 %v3902, %v3904
        %v3906 = vrot.slane %v3892, %v3905
        %v3907 = vcombine.low %v3851, %v3867
        %v3908 = vcombine.high %v3851, %v3867
        %v3910 = vunpack.c.l.s4 1934713408
        %v3911 = vunpack.c.0.s8 %v3910
        %v3912 = vlaneseq
        %v3913 = vshrl.u32 %v3912, 7
        %v3914 = vsub.s32 %v3911, %v3913
        %v3915 = vrot.slane %v3907, %v3914
        %v3917 = vunpack.c.l.s4 1934713408
        %v3918 = vunpack.c.0.s8 %v3917
        %v3919 = vlaneseq
        %v3920 = vshrl.u32 %v3919, 7
        %v3921 = vsub.s32 %v3918, %v3920
        %v3922 = vrot.slane %v3908, %v3921
        %v3923 = vcombine.low %v3858, %v3874
        %v3924 = vcombine.high %v3858, %v3874
        %v3926 = vunpack.c.l.s4 1934713408
        %v3927 = vunpack.c.0.s8 %v3926
        %v3928 = vlaneseq
        %v3929 = vshrl.u32 %v3928, 7
        %v3930 = vsub.s32 %v3927, %v3929
        %v3931 = vrot.slane %v3923, %v3930
        %v3933 = vunpack.c.l.s4 1934713408
        %v3934 = vunpack.c.0.s8 %v3933
        %v3935 = vlaneseq
        %v3936 = vshrl.u32 %v3935, 7
        %v3937 = vsub.s32 %v3934, %v3936
        %v3938 = vrot.slane %v3924, %v3937
        %v3939 = vcombine.low %v3883, %v3899
        %v3940 = vcombine.high %v3883, %v3899
        %v3942 = vunpack.c.l.s4 1934713408
        %v3943 = vunpack.c.0.s8 %v3942
        %v3944 = vlaneseq
        %v3945 = vshrl.u32 %v3944, 7
        %v3946 = vsub.s32 %v3943, %v3945
        %v3947 = vrot.slane %v3939, %v3946
        %v3949 = vunpack.c.l.s4 1934713408
        %v3950 = vunpack.c.0.s8 %v3949
        %v3951 = vlaneseq
        %v3952 = vshrl.u32 %v3951, 7
        %v3953 = vsub.s32 %v3950, %v3952
        %v3954 = vrot.slane %v3940, %v3953
        %v3955 = vcombine.low %v3890, %v3906
        %v3956 = vcombine.high %v3890, %v3906
        %v3958 = vunpack.c.l.s4 1934713408
        %v3959 = vunpack.c.0.s8 %v3958
        %v3960 = vlaneseq
        %v3961 = vshrl.u32 %v3960, 7
        %v3962 = vsub.s32 %v3959, %v3961
        %v3963 = vrot.slane %v3955, %v3962
        %v3965 = vunpack.c.l.s4 1934713408
        %v3966 = vunpack.c.0.s8 %v3965
        %v3967 = vlaneseq
        %v3968 = vshrl.u32 %v3967, 7
        %v3969 = vsub.s32 %v3966, %v3968
        %v3970 = vrot.slane %v3956, %v3969
        %v3971 = vcombine.low %v3915, %v3947
        %v3972 = vcombine.high %v3915, %v3947
        %v3973 = vcombine.low %v3922, %v3954
        %v3974 = vcombine.high %v3922, %v3954
        %v3975 = vcombine.low %v3931, %v3963
        %v3976 = vcombine.high %v3931, %v3963
        %v3977 = vcombine.low %v3938, %v3970
        %v3978 = vcombine.high %v3938, %v3970
        %v3979 = vcombine.low %v3556, %v3560
        %v3980 = vcombine.high %v3556, %v3560
        %v3982 = vunpack.c.l.s4 1983009808
        %v3983 = vunpack.c.0.s8 %v3982
        %v3984 = vlaneseq
        %v3985 = vshrl.u32 %v3984, 7
        %v3986 = vsub.s32 %v3983, %v3985
        %v3987 = vrot.slane %v3979, %v3986
        %v3989 = vunpack.c.l.s4 1983009808
        %v3990 = vunpack.c.0.s8 %v3989
        %v3991 = vlaneseq
        %v3992 = vshrl.u32 %v3991, 7
        %v3993 = vsub.s32 %v3990, %v3992
        %v3994 = vrot.slane %v3980, %v3993
        %v3995 = vcombine.low %v3558, %v3562
        %v3996 = vcombine.high %v3558, %v3562
        %v3998 = vunpack.c.l.s4 1983009808
        %v3999 = vunpack.c.0.s8 %v3998
        %v4000 = vlaneseq
        %v4001 = vshrl.u32 %v4000, 7
        %v4002 = vsub.s32 %v3999, %v4001
        %v4003 = vrot.slane %v3995, %v4002
        %v4005 = vunpack.c.l.s4 1983009808
        %v4006 = vunpack.c.0.s8 %v4005
        %v4007 = vlaneseq
        %v4008 = vshrl.u32 %v4007, 7
        %v4009 = vsub.s32 %v4006, %v4008
        %v4010 = vrot.slane %v3996, %v4009
        %v4011 = vcombine.low %v3564, %v3568
        %v4012 = vcombine.high %v3564, %v3568
        %v4014 = vunpack.c.l.s4 1983009808
        %v4015 = vunpack.c.0.s8 %v4014
        %v4016 = vlaneseq
        %v4017 = vshrl.u32 %v4016, 7
        %v4018 = vsub.s32 %v4015, %v4017
        %v4019 = vrot.slane %v4011, %v4018
        %v4021 = vunpack.c.l.s4 1983009808
        %v4022 = vunpack.c.0.s8 %v4021
        %v4023 = vlaneseq
        %v4024 = vshrl.u32 %v4023, 7
        %v4025 = vsub.s32 %v4022, %v4024
        %v4026 = vrot.slane %v4012, %v4025
        %v4027 = vcombine.low %v3566, %v3570
        %v4028 = vcombine.high %v3566, %v3570
        %v4030 = vunpack.c.l.s4 1983009808
        %v4031 = vunpack.c.0.s8 %v4030
        %v4032 = vlaneseq
        %v4033 = vshrl.u32 %v4032, 7
        %v4034 = vsub.s32 %v4031, %v4033
        %v4035 = vrot.slane %v4027, %v4034
        %v4037 = vunpack.c.l.s4 1983009808
        %v4038 = vunpack.c.0.s8 %v4037
        %v4039 = vlaneseq
        %v4040 = vshrl.u32 %v4039, 7
        %v4041 = vsub.s32 %v4038, %v4040
        %v4042 = vrot.slane %v4028, %v4041
        %v4043 = vcombine.low %v3987, %v4003
        %v4044 = vcombine.high %v3987, %v4003
        %v4046 = vunpack.c.l.s4 1934713408
        %v4047 = vunpack.c.0.s8 %v4046
        %v4048 = vlaneseq
        %v4049 = vshrl.u32 %v4048, 7
        %v4050 = vsub.s32 %v4047, %v4049
        %v4051 = vrot.slane %v4043, %v4050
        %v4053 = vunpack.c.l.s4 1934713408
        %v4054 = vunpack.c.0.s8 %v4053
        %v4055 = vlaneseq
        %v4056 = vshrl.u32 %v4055, 7
        %v4057 = vsub.s32 %v4054, %v4056
        %v4058 = vrot.slane %v4044, %v4057
        %v4059 = vcombine.low %v3994, %v4010
        %v4060 = vcombine.high %v3994, %v4010
        %v4062 = vunpack.c.l.s4 1934713408
        %v4063 = vunpack.c.0.s8 %v4062
        %v4064 = vlaneseq
        %v4065 = vshrl.u32 %v4064, 7
        %v4066 = vsub.s32 %v4063, %v4065
        %v4067 = vrot.slane %v4059, %v4066
        %v4069 = vunpack.c.l.s4 1934713408
        %v4070 = vunpack.c.0.s8 %v4069
        %v4071 = vlaneseq
        %v4072 = vshrl.u32 %v4071, 7
        %v4073 = vsub.s32 %v4070, %v4072
        %v4074 = vrot.slane %v4060, %v4073
        %v4075 = vcombine.low %v4019, %v4035
        %v4076 = vcombine.high %v4019, %v4035
        %v4078 = vunpack.c.l.s4 1934713408
        %v4079 = vunpack.c.0.s8 %v4078
        %v4080 = vlaneseq
        %v4081 = vshrl.u32 %v4080, 7
        %v4082 = vsub.s32 %v4079, %v4081
        %v4083 = vrot.slane %v4075, %v4082
        %v4085 = vunpack.c.l.s4 1934713408
        %v4086 = vunpack.c.0.s8 %v4085
        %v4087 = vlaneseq
        %v4088 = vshrl.u32 %v4087, 7
        %v4089 = vsub.s32 %v4086, %v4088
        %v4090 = vrot.slane %v4076, %v4089
        %v4091 = vcombine.low %v4026, %v4042
        %v4092 = vcombine.high %v4026, %v4042
        %v4094 = vunpack.c.l.s4 1934713408
        %v4095 = vunpack.c.0.s8 %v4094
        %v4096 = vlaneseq
        %v4097 = vshrl.u32 %v4096, 7
        %v4098 = vsub.s32 %v4095, %v4097
        %v4099 = vrot.slane %v4091, %v4098
        %v4101 = vunpack.c.l.s4 1934713408
        %v4102 = vunpack.c.0.s8 %v4101
        %v4103 = vlaneseq
        %v4104 = vshrl.u32 %v4103, 7
        %v4105 = vsub.s32 %v4102, %v4104
        %v4106 = vrot.slane %v4092, %v4105
        %v4107 = vcombine.low %v4051, %v4083
        %v4108 = vcombine.high %v4051, %v4083
        %v4109 = vcombine.low %v4058, %v4090
        %v4110 = vcombine.high %v4058, %v4090
        %v4111 = vcombine.low %v4067, %v4099
        %v4112 = vcombine.high %v4067, %v4099
        %v4113 = vcombine.low %v4074, %v4106
        %v4114 = vcombine.high %v4074, %v4106
        %4117 = vrot.lane.b32.xlu0 %v3700, 4
        %v4118 = vpop.permute.xlu0 %4117
        %4119 = vrot.lane.b32.xlu0 %v3836, 4
        %v4120 = vpop.permute.xlu0 %4119
        %4125 = vrot.lane.b32.xlu0 %v3701, 8
        %v4126 = vpop.permute.xlu0 %4125
        %4127 = vrot.lane.b32.xlu0 %v3837, 8
        %v4128 = vpop.permute.xlu0 %4127
        %4133 = vrot.lane.b32.xlu0 %v3702, 12
        %v4134 = vpop.permute.xlu0 %4133
        %4135 = vrot.lane.b32.xlu0 %v3838, 12
        %v4136 = vpop.permute.xlu0 %4135
        %4141 = vrot.lane.b32.xlu0 %v3703, 16
        %v4142 = vpop.permute.xlu0 %4141
        %4143 = vrot.lane.b32.xlu0 %v3839, 16
        %v4144 = vpop.permute.xlu0 %4143
        %4149 = vrot.lane.b32.xlu0 %v3704, 20
        %v4150 = vpop.permute.xlu0 %4149
        %4151 = vrot.lane.b32.xlu0 %v3840, 20
        %v4152 = vpop.permute.xlu0 %4151
        %4157 = vrot.lane.b32.xlu0 %v3705, 24
        %v4158 = vpop.permute.xlu0 %4157
        %4159 = vrot.lane.b32.xlu0 %v3841, 24
        %v4160 = vpop.permute.xlu0 %4159
        %4165 = vrot.lane.b32.xlu0 %v3706, 28
        %v4166 = vpop.permute.xlu0 %4165
        %4167 = vrot.lane.b32.xlu0 %v3842, 28
        %v4168 = vpop.permute.xlu0 %4167
        %4173 = vrot.lane.b32.xlu0 %v3971, 32
        %v4174 = vpop.permute.xlu0 %4173
        %4175 = vrot.lane.b32.xlu0 %v4107, 32
        %v4176 = vpop.permute.xlu0 %4175
        %4181 = vrot.lane.b32.xlu0 %v3972, 36
        %v4182 = vpop.permute.xlu0 %4181
        %4183 = vrot.lane.b32.xlu0 %v4108, 36
        %v4184 = vpop.permute.xlu0 %4183
        %4189 = vrot.lane.b32.xlu0 %v3973, 40
        %v4190 = vpop.permute.xlu0 %4189
        %4191 = vrot.lane.b32.xlu0 %v4109, 40
        %v4192 = vpop.permute.xlu0 %4191
        %4197 = vrot.lane.b32.xlu0 %v3974, 44
        %v4198 = vpop.permute.xlu0 %4197
        %4199 = vrot.lane.b32.xlu0 %v4110, 44
        %v4200 = vpop.permute.xlu0 %4199
        %4205 = vrot.lane.b32.xlu0 %v3975, 48
        %v4206 = vpop.permute.xlu0 %4205
        %4207 = vrot.lane.b32.xlu0 %v4111, 48
        %v4208 = vpop.permute.xlu0 %4207
        %4213 = vrot.lane.b32.xlu0 %v3976, 52
        %v4214 = vpop.permute.xlu0 %4213
        %4215 = vrot.lane.b32.xlu0 %v4112, 52
        %v4216 = vpop.permute.xlu0 %4215
        %4221 = vrot.lane.b32.xlu0 %v3977, 56
        %v4222 = vpop.permute.xlu0 %4221
        %4223 = vrot.lane.b32.xlu0 %v4113, 56
        %v4224 = vpop.permute.xlu0 %4223
        %4229 = vrot.lane.b32.xlu0 %v3978, 60
        %v4230 = vpop.permute.xlu0 %4229
        %4231 = vrot.lane.b32.xlu0 %v4114, 60
        %v4232 = vpop.permute.xlu0 %4231
        %v4235 = vsel %vm357, %v3699, %v4118
        %v4236 = vsel %vm357, %v3835, %v4120
        %vm4237 = vcmask 64512
        %v4238 = vsel %vm4237, %v4235, %v4126
        %v4239 = vsel %vm4237, %v4236, %v4128
        %vm4240 = vcmask 97280
        %v4241 = vsel %vm4240, %v4238, %v4134
        %v4242 = vsel %vm4240, %v4239, %v4136
        %vm4243 = vcmask 130048
        %v4244 = vsel %vm4243, %v4241, %v4142
        %v4245 = vsel %vm4243, %v4242, %v4144
        %vm4246 = vcmask 162816
        %v4247 = vsel %vm4246, %v4244, %v4150
        %v4248 = vsel %vm4246, %v4245, %v4152
        %v4249 = vsel %vm3105, %v4247, %v4158
        %v4250 = vsel %vm3105, %v4248, %v4160
        %vm4251 = vcmask 228352
        %v4252 = vsel %vm4251, %v4249, %v4166
        %v4253 = vsel %vm4251, %v4250, %v4168
        %vm4254 = vcmask 261120
        %v4255 = vsel %vm4254, %v4252, %v4174
        %v4256 = vsel %vm4254, %v4253, %v4176
        %vm4257 = vcmask 293888
        %v4258 = vsel %vm4257, %v4255, %v4182
        %v4259 = vsel %vm4257, %v4256, %v4184
        %vm4260 = vcmask 326656
        %v4261 = vsel %vm4260, %v4258, %v4190
        %v4262 = vsel %vm4260, %v4259, %v4192
        %vm4263 = vcmask 359424
        %v4264 = vsel %vm4263, %v4261, %v4198
        %v4265 = vsel %vm4263, %v4262, %v4200
        %vm4266 = vcmask 392192
        %v4267 = vsel %vm4266, %v4264, %v4206
        %v4268 = vsel %vm4266, %v4265, %v4208
        %vm4269 = vcmask 424960
        %v4270 = vsel %vm4269, %v4267, %v4214
        %v4271 = vsel %vm4269, %v4268, %v4216
        %vm4272 = vcmask 457728
        %v4273 = vsel %vm4272, %v4270, %v4222
        %v4274 = vsel %vm4272, %v4271, %v4224
        %vm4275 = vcmask 490496
        %v4276 = vsel %vm4275, %v4273, %v4230
        %v4277 = vsel %vm4275, %v4274, %v4232
        %vm4278 = vcmask 523264
        %4279 = vst.msk [vmem:[%s285] sm:$0xff] %vm4278, %v4276
        %4280 = vst.msk [vmem:[%s285 + $0x8] sm:$0xff] %vm4278, %v4277
        %s4281 = sand.u32 %s195, 1
        %s4282 = scalar_lea.sflag [#allocation3], %s4281
        %s4283 = sand.u32 %s195, 1
        %s4284 = smul.addr %s4283, 16
        %s4285 = scalar_lea.vmem [#allocation2], %s4284
        // Predicated region
        $region49: #{tpu_custom_call.1} parent=47 // pred_check
          %p4286 = pneg %p205
        $region50: #{tpu_custom_call.1} parent=47 // pred_check_branch
          %4288 = sbr.rel (%p4286) target = $region52
        $region51: #{tpu_custom_call.1} parent=47 // pred_region
          %s4289 = smul.u32 2, %s26
          %s4291 = ssub.s32 256, 256
          %4292 = vsyncadd %s4282, %s4291
          %s4293 = smul.addr %s25, 2
          %s4294 = sadd.s32 %s4289, %s4293
          %s4295 = smul.addr %s4294, 128
          %s4296 = scalar_lea.hbm %s7, %s4295
          %s4297 = sshll.u32 %s4285, 4
          %s4298 = int_to_ptr.vmem [resolvable:$true] %s4297
          %4303 = dma.vmem_to_hbm [thread:$0]  %s4298, 256, %s4296, %s4282, 128, 128, 8
        $region52: #{tpu_custom_call.1} parent=47 // pred_fallthru
          _
      $region48: #{tpu_custom_call.1} parent=5 // pred_fallthru
        _
      %p4304 = scmp.le.s32.totalorder 2, %s16
      // Predicated region
      $region53: #{tpu_custom_call.1} parent=5 // pred_check
        %p4305 = pneg %p4304
      $region54: #{tpu_custom_call.1} parent=5 // pred_check_branch
        %4307 = sbr.rel (%p4305) target = $region56
      $region55: #{tpu_custom_call.1} parent=5 // pred_region
        %s4308 = ssub.s32 %s16, 2
        // Predicated region
        $region57: #{tpu_custom_call.1} parent=55 // pred_check
          %p4309 = pneg %p211
        $region58: #{tpu_custom_call.1} parent=55 // pred_check_branch
          %4311 = sbr.rel (%p4309) target = $region60
        $region59: #{tpu_custom_call.1} parent=55 // pred_region
          %s4312 = sand.u32 %s196, 1
          %s4313 = scalar_lea.sflag [#allocation3], %s4312
          %s4314 = sand.u32 %s196, 1
          %s4315 = smul.addr %s4314, 16
          %s4316 = scalar_lea.vmem [#allocation2], %s4315
          %4317 = dma.done %s4313, 256
        $region60: #{tpu_custom_call.1} parent=55 // pred_fallthru
          _
      $region56: #{tpu_custom_call.1} parent=5 // pred_fallthru
        _
    $region6: #{tpu_custom_call.1} parent=1 // loop_footer
      %s20 = sadd.s32 1, %s16
    $region7: #{tpu_custom_call.1} parent=1 // loop_footer_branch
      %15 = sbr.rel target = $region3
    $region8: #{tpu_custom_call.1} parent=1 // loop_exit
      _
    %4318 = vsyncpa [#allocation3], 1
    %s4319 = scalar_lea.sflag [#allocation3], 1
    %4320 = vsyncpa %s4319, 1

// kernel: tpu_custom_call.1
$region0: #{tpu_custom_call.1}
  #allocation0 [shape = 'u32[]', space=smem, size = 0x4, offset = 0x4, fixed_abs, tag = 'smem constant byte address 0x4 - core index']
  #allocation1 [shape = 'u32[144,128]{1,0:T(1,128)}', space=vmem, size = 0x12000, scoped, tag = 'internal scratch']
  %s0 = inlined_call_operand.vmem [shape: f32[2,18,24,4], index: 0, kind: input, shape index: {}]
  %s1 = inlined_call_operand.vmem [shape: f32[4,24], index: 1, kind: input, shape index: {}]
  %s2 = inlined_call_operand.vmem [shape: f32[1,24], index: 2, kind: input, shape index: {}]
  %s3 = inlined_call_operand.vmem [shape: f32[3,3,24], index: 3, kind: input, shape index: {}]
  %s4 = inlined_call_operand.vmem [shape: f32[1,24], index: 4, kind: input, shape index: {}]
  %s5 = inlined_call_operand.vmem [shape: f32[24,4], index: 5, kind: input, shape index: {}]
  %s6 = inlined_call_operand.vmem [shape: f32[1,4], index: 6, kind: input, shape index: {}]
  %s7 = inlined_call_operand.vmem [shape: f32[2,16,16,4], index: 7, kind: output, shape index: {}]
  %s8 = sld [smem:[#allocation0]]
  $region61: #{tpu_custom_call.1} parent=0
    _
  %s10 = ssub.s32 1, %s8
  %s11 = scalar_select 0, %s10, %s8
  loop: start=0, step=1, limit=4
  $region2: #{tpu_custom_call.1} parent=0 // loop_pre_header
    _
  $region3: #{tpu_custom_call.1} parent=0 // loop_header
    %s13 = sphi 0, %s17
    %p14 = scmp.ge.s32.totalorder %s13, 4
    %s20 = sphi 0, %s32
    %s21 = sphi 0, %s28
    %s22 = sphi 0, %s20
    %s23 = sphi 0, %s21
    %s24 = sphi 0, %s22
    %s25 = sphi 0, %s23
    %s35 = sphi 0, %s37
    %s38 = sphi 0, %s35
    %s39 = sphi 0, %s38
    %s55 = sphi 0, %s39
    %s59 = sphi 0, %s59
    %s61 = sphi 0, %s59
    %s62 = sphi 0, %s61
    %s76 = sphi 0, %s62
    %s80 = sphi 0, %s80
    %s82 = sphi 0, %s80
    %s83 = sphi 0, %s82
    %s97 = sphi 0, %s83
    %s101 = sphi 0, %s101
    %s103 = sphi 0, %s101
    %s104 = sphi 0, %s103
    %s118 = sphi 0, %s104
    %s122 = sphi 0, %s122
    %s124 = sphi 0, %s122
    %s125 = sphi 0, %s124
    %s139 = sphi 0, %s125
    %s143 = sphi 0, %s143
    %s145 = sphi 0, %s143
    %s146 = sphi 0, %s145
    %s160 = sphi 0, %s146
    %s164 = sphi 0, %s164
    %s166 = sphi 0, %s164
    %s167 = sphi 0, %s166
    %s181 = sphi 0, %s167
    %s189 = sphi 0, %s191
    %s192 = sphi 0, %s189
    %s193 = sphi 0, %s192
    %s209 = sphi 0, %s193
  $region4: #{tpu_custom_call.1} parent=0 // loop_header_branch
    %16 = sbr.rel (%p14) target = $region8
  $region5: #{tpu_custom_call.1} parent=0 // loop_body
    %s18 = ssub.s32 %s13, 1
    %s19 = ssub.s32 %s13, 2
    %s26 = sadd.s32 1, %s21
    %p27 = scmp.ge.s32.totalorder %s26, 1
    %s28 = scalar_select %p27, 0, %s26
    %s29 = sadd.s32 1, %s20
    %s30 = scalar_select %p27, %s29, %s20
    %p31 = scmp.ge.s32.totalorder %s30, 2
    %s32 = scalar_select %p31, 0, %s30
    %s33 = ssub.s32 %s20, %s32
    %p34 = scmp.eq.s32.totalorder %s33, 0
    %s36 = sadd.s32 %s35, 1
    %s37 = scalar_select %p34, %s35, %s36
    %p40 = pneg %p34
    %p41 = scmp.eq.s32.totalorder %s13, 1
    %p42 = por %p40, %p41
    %p43 = scmp.ne.s32.totalorder %s35, %s38
    %p44 = scmp.eq.s32.totalorder %s13, 0
    %p45 = por %p43, %p44
    %p46 = scmp.ne.s32.totalorder %s35, %s38
    %p47 = scmp.eq.s32.totalorder %s18, 1
    %p48 = por %p46, %p47
    %p49 = scmp.ne.s32.totalorder %s38, %s39
    %p50 = scmp.eq.s32.totalorder %s18, 0
    %p51 = por %p49, %p50
    %p52 = scmp.ne.s32.totalorder %s38, %s39
    %p53 = scmp.eq.s32.totalorder %s19, 1
    %p54 = por %p52, %p53
    %p56 = scmp.ne.s32.totalorder %s39, %s55
    %p57 = scmp.eq.s32.totalorder %s19, 0
    %p58 = por %p56, %p57
    %s60 = sadd.s32 %s59, 1
    %p63 = scmp.eq.s32.totalorder %s13, 1
    %p64 = scmp.ne.s32.totalorder %s59, %s61
    %p65 = scmp.eq.s32.totalorder %s13, 0
    %p66 = por %p64, %p65
    %p67 = scmp.ne.s32.totalorder %s59, %s61
    %p68 = scmp.eq.s32.totalorder %s18, 1
    %p69 = por %p67, %p68
    %p70 = scmp.ne.s32.totalorder %s61, %s62
    %p71 = scmp.eq.s32.totalorder %s18, 0
    %p72 = por %p70, %p71
    %p73 = scmp.ne.s32.totalorder %s61, %s62
    %p74 = scmp.eq.s32.totalorder %s19, 1
    %p75 = por %p73, %p74
    %p77 = scmp.ne.s32.totalorder %s62, %s76
    %p78 = scmp.eq.s32.totalorder %s19, 0
    %p79 = por %p77, %p78
    %s81 = sadd.s32 %s80, 1
    %p84 = scmp.eq.s32.totalorder %s13, 1
    %p85 = scmp.ne.s32.totalorder %s80, %s82
    %p86 = scmp.eq.s32.totalorder %s13, 0
    %p87 = por %p85, %p86
    %p88 = scmp.ne.s32.totalorder %s80, %s82
    %p89 = scmp.eq.s32.totalorder %s18, 1
    %p90 = por %p88, %p89
    %p91 = scmp.ne.s32.totalorder %s82, %s83
    %p92 = scmp.eq.s32.totalorder %s18, 0
    %p93 = por %p91, %p92
    %p94 = scmp.ne.s32.totalorder %s82, %s83
    %p95 = scmp.eq.s32.totalorder %s19, 1
    %p96 = por %p94, %p95
    %p98 = scmp.ne.s32.totalorder %s83, %s97
    %p99 = scmp.eq.s32.totalorder %s19, 0
    %p100 = por %p98, %p99
    %s102 = sadd.s32 %s101, 1
    %p105 = scmp.eq.s32.totalorder %s13, 1
    %p106 = scmp.ne.s32.totalorder %s101, %s103
    %p107 = scmp.eq.s32.totalorder %s13, 0
    %p108 = por %p106, %p107
    %p109 = scmp.ne.s32.totalorder %s101, %s103
    %p110 = scmp.eq.s32.totalorder %s18, 1
    %p111 = por %p109, %p110
    %p112 = scmp.ne.s32.totalorder %s103, %s104
    %p113 = scmp.eq.s32.totalorder %s18, 0
    %p114 = por %p112, %p113
    %p115 = scmp.ne.s32.totalorder %s103, %s104
    %p116 = scmp.eq.s32.totalorder %s19, 1
    %p117 = por %p115, %p116
    %p119 = scmp.ne.s32.totalorder %s104, %s118
    %p120 = scmp.eq.s32.totalorder %s19, 0
    %p121 = por %p119, %p120
    %s123 = sadd.s32 %s122, 1
    %p126 = scmp.eq.s32.totalorder %s13, 1
    %p127 = scmp.ne.s32.totalorder %s122, %s124
    %p128 = scmp.eq.s32.totalorder %s13, 0
    %p129 = por %p127, %p128
    %p130 = scmp.ne.s32.totalorder %s122, %s124
    %p131 = scmp.eq.s32.totalorder %s18, 1
    %p132 = por %p130, %p131
    %p133 = scmp.ne.s32.totalorder %s124, %s125
    %p134 = scmp.eq.s32.totalorder %s18, 0
    %p135 = por %p133, %p134
    %p136 = scmp.ne.s32.totalorder %s124, %s125
    %p137 = scmp.eq.s32.totalorder %s19, 1
    %p138 = por %p136, %p137
    %p140 = scmp.ne.s32.totalorder %s125, %s139
    %p141 = scmp.eq.s32.totalorder %s19, 0
    %p142 = por %p140, %p141
    %s144 = sadd.s32 %s143, 1
    %p147 = scmp.eq.s32.totalorder %s13, 1
    %p148 = scmp.ne.s32.totalorder %s143, %s145
    %p149 = scmp.eq.s32.totalorder %s13, 0
    %p150 = por %p148, %p149
    %p151 = scmp.ne.s32.totalorder %s143, %s145
    %p152 = scmp.eq.s32.totalorder %s18, 1
    %p153 = por %p151, %p152
    %p154 = scmp.ne.s32.totalorder %s145, %s146
    %p155 = scmp.eq.s32.totalorder %s18, 0
    %p156 = por %p154, %p155
    %p157 = scmp.ne.s32.totalorder %s145, %s146
    %p158 = scmp.eq.s32.totalorder %s19, 1
    %p159 = por %p157, %p158
    %p161 = scmp.ne.s32.totalorder %s146, %s160
    %p162 = scmp.eq.s32.totalorder %s19, 0
    %p163 = por %p161, %p162
    %s165 = sadd.s32 %s164, 1
    %p168 = scmp.eq.s32.totalorder %s13, 1
    %p169 = scmp.ne.s32.totalorder %s164, %s166
    %p170 = scmp.eq.s32.totalorder %s13, 0
    %p171 = por %p169, %p170
    %p172 = scmp.ne.s32.totalorder %s164, %s166
    %p173 = scmp.eq.s32.totalorder %s18, 1
    %p174 = por %p172, %p173
    %p175 = scmp.ne.s32.totalorder %s166, %s167
    %p176 = scmp.eq.s32.totalorder %s18, 0
    %p177 = por %p175, %p176
    %p178 = scmp.ne.s32.totalorder %s166, %s167
    %p179 = scmp.eq.s32.totalorder %s19, 1
    %p180 = por %p178, %p179
    %p182 = scmp.ne.s32.totalorder %s167, %s181
    %p183 = scmp.eq.s32.totalorder %s19, 0
    %p184 = por %p182, %p183
    %s185 = ssub.s32 %s20, %s32
    %s186 = ssub.s32 %s21, %s28
    %s187 = sor.u32 %s185, %s186
    %p188 = scmp.eq.s32.totalorder %s187, 0
    %s190 = sadd.s32 %s189, 1
    %s191 = scalar_select %p188, %s189, %s190
    %p194 = pneg %p188
    %p195 = scmp.eq.s32.totalorder %s13, 1
    %p196 = por %p194, %p195
    %p197 = scmp.ne.s32.totalorder %s189, %s192
    %p198 = scmp.eq.s32.totalorder %s13, 0
    %p199 = por %p197, %p198
    %p200 = scmp.ne.s32.totalorder %s189, %s192
    %p201 = scmp.eq.s32.totalorder %s18, 1
    %p202 = por %p200, %p201
    %p203 = scmp.ne.s32.totalorder %s192, %s193
    %p204 = scmp.eq.s32.totalorder %s18, 0
    %p205 = por %p203, %p204
    %p206 = scmp.ne.s32.totalorder %s192, %s193
    %p207 = scmp.eq.s32.totalorder %s19, 1
    %p208 = por %p206, %p207
    %p210 = scmp.ne.s32.totalorder %s193, %s209
    %p211 = scmp.eq.s32.totalorder %s19, 0
    %p212 = por %p210, %p211
    %p213 = scmp.le.s32.totalorder 1, %s13
    %p214 = scmp.lt.s32.totalorder %s13, 3
    %p215 = pnand %p213, %p214
    %p216 = pneg %p215
    // Predicated region
    $region9: #{tpu_custom_call.1} parent=5 // pred_check
      _
    $region10: #{tpu_custom_call.1} parent=5 // pred_check_branch
      %218 = sbr.rel (%p215) target = $region12
    $region11: #{tpu_custom_call.1} parent=5 // pred_region
      %s219 = ssub.s32 %s13, 1
      // Predicated region
      $region13: #{tpu_custom_call.1} parent=11 // pred_check
        %p220 = pneg %p72
      $region14: #{tpu_custom_call.1} parent=11 // pred_check_branch
        %222 = sbr.rel (%p220) target = $region16
      $region15: #{tpu_custom_call.1} parent=11 // pred_region
        _
      $region16: #{tpu_custom_call.1} parent=11 // pred_fallthru
        _
      // Predicated region
      $region17: #{tpu_custom_call.1} parent=11 // pred_check
        %p223 = pneg %p93
      $region18: #{tpu_custom_call.1} parent=11 // pred_check_branch
        %225 = sbr.rel (%p223) target = $region20
      $region19: #{tpu_custom_call.1} parent=11 // pred_region
        _
      $region20: #{tpu_custom_call.1} parent=11 // pred_fallthru
        _
      // Predicated region
      $region21: #{tpu_custom_call.1} parent=11 // pred_check
        %p226 = pneg %p114
      $region22: #{tpu_custom_call.1} parent=11 // pred_check_branch
        %228 = sbr.rel (%p226) target = $region24
      $region23: #{tpu_custom_call.1} parent=11 // pred_region
        _
      $region24: #{tpu_custom_call.1} parent=11 // pred_fallthru
        _
      // Predicated region
      $region25: #{tpu_custom_call.1} parent=11 // pred_check
        %p229 = pneg %p135
      $region26: #{tpu_custom_call.1} parent=11 // pred_check_branch
        %231 = sbr.rel (%p229) target = $region28
      $region27: #{tpu_custom_call.1} parent=11 // pred_region
        _
      $region28: #{tpu_custom_call.1} parent=11 // pred_fallthru
        _
      // Predicated region
      $region29: #{tpu_custom_call.1} parent=11 // pred_check
        %p232 = pneg %p156
      $region30: #{tpu_custom_call.1} parent=11 // pred_check_branch
        %234 = sbr.rel (%p232) target = $region32
      $region31: #{tpu_custom_call.1} parent=11 // pred_region
        _
      $region32: #{tpu_custom_call.1} parent=11 // pred_fallthru
        _
      // Predicated region
      $region33: #{tpu_custom_call.1} parent=11 // pred_check
        %p235 = pneg %p177
      $region34: #{tpu_custom_call.1} parent=11 // pred_check_branch
        %237 = sbr.rel (%p235) target = $region36
      $region35: #{tpu_custom_call.1} parent=11 // pred_region
        _
      $region36: #{tpu_custom_call.1} parent=11 // pred_fallthru
        _
    $region12: #{tpu_custom_call.1} parent=5 // pred_fallthru
      _
    %p238 = scmp.lt.s32.totalorder %s13, 2
    // Predicated region
    $region37: #{tpu_custom_call.1} parent=5 // pred_check
      %p239 = pneg %p238
    $region38: #{tpu_custom_call.1} parent=5 // pred_check_branch
      %241 = sbr.rel (%p239) target = $region40
    $region39: #{tpu_custom_call.1} parent=5 // pred_region
      // Predicated region
      $region41: #{tpu_custom_call.1} parent=39 // pred_check
        %p242 = pneg %p45
      $region42: #{tpu_custom_call.1} parent=39 // pred_check_branch
        %244 = sbr.rel (%p242) target = $region44
      $region43: #{tpu_custom_call.1} parent=39 // pred_region
        %p245 = scmp.lt.s32.totalorder %s20, 1
        %s246 = scalar_select %p245, %s20, 1
        %s247 = smul.addr %s246, 54
        %s248 = smul.addr %s247, 8
        %s249 = scalar_lea.vmem %s0, %s248
      $region44: #{tpu_custom_call.1} parent=39 // pred_fallthru
        _
    $region40: #{tpu_custom_call.1} parent=5 // pred_fallthru
      _
    %p250 = scmp.le.s32.totalorder 1, %s13
    %p251 = scmp.lt.s32.totalorder %s13, 3
    %p252 = pnand %p250, %p251
    %p253 = pneg %p252
    // Predicated region
    $region45: #{tpu_custom_call.1} parent=5 // pred_check
      _
    $region46: #{tpu_custom_call.1} parent=5 // pred_check_branch
      %255 = sbr.rel (%p252) target = $region48
    $region47: #{tpu_custom_call.1} parent=5 // pred_region
      %s256 = ssub.s32 %s13, 1
      %p257 = scmp.lt.s32.totalorder %s22, 1
      %s258 = scalar_select %p257, %s22, 1
      %s259 = smul.addr %s258, 54
      %s260 = smul.addr %s259, 8
      %s261 = scalar_lea.vmem %s0, %s260
      %p262 = pneg %p51
      %p263 = pneg %p48
      %p264 = pneg %p72
      %p265 = pneg %p69
      %p266 = pneg %p93
      %p267 = pneg %p90
      %p268 = pneg %p114
      %p269 = pneg %p111
      %p270 = pneg %p135
      %p271 = pneg %p132
      %p272 = pneg %p156
      %p273 = pneg %p153
      %p274 = pneg %p177
      %p275 = pneg %p174
      %p276 = pneg %p205
      %p277 = pneg %p202
      %s278 = smul.u32 16, %s23
      %p279 = scmp.lt.s32.totalorder %s22, 1
      %s280 = scalar_select %p279, %s22, 1
      %p281 = scmp.lt.s32.totalorder %s278, 15
      %s282 = scalar_select %p281, %s278, 15
      %s283 = smul.addr %s282, 2
      %s284 = smul.addr %s280, 32
      %s285 = sadd.s32 %s283, %s284
      %s286 = smul.addr %s285, 8
      %s287 = scalar_lea.vmem %s7, %s286
      %p288 = scmp.lt.s32.totalorder %s22, 1
      %s289 = scalar_select %p288, %s22, 1
      %s290 = smul.addr %s289, 54
      %s291 = smul.addr %s290, 8
      %s292 = scalar_lea.vmem %s0, %s291
      %s293 = smul.u32 16, %s23
      %p294 = scmp.lt.s32.totalorder %s22, 1
      %s295 = scalar_select %p294, %s22, 1
      %p296 = scmp.lt.s32.totalorder %s293, 15
      %s297 = scalar_select %p296, %s293, 15
      %s298 = smul.addr %s297, 2
      %s299 = smul.addr %s295, 32
      %s300 = sadd.s32 %s298, %s299
      %s301 = smul.addr %s300, 8
      %s302 = scalar_lea.vmem %s7, %s301
      %s303 = smul.u32 16, %s23
      %s304 = smul.u32 %s23, 16
      %s305 = smul.u32 %s304, 24
      %s306 = scalar_lea.vmem %s292, %s305
      %v307 = vld [vmem:[%s306] sm:$0xff]
      %v308 = vld [vmem:[%s306 + $0x8] sm:$0xff]
      %v309 = vld [vmem:[%s306 + $0x10] sm:$0xff]
      %v310 = vld [vmem:[%s306 + $0x18] sm:$0xff]
      %v311 = vld [vmem:[%s306 + $0x20] sm:$0xff]
      %v312 = vld [vmem:[%s306 + $0x28] sm:$0xff]
      %v313 = vld [vmem:[%s306 + $0x30] sm:$0xff]
      %v314 = vld [vmem:[%s306 + $0x38] sm:$0xff]
      %v315 = vld [vmem:[%s306 + $0x40] sm:$0xff]
      %v316 = vld [vmem:[%s306 + $0x48] sm:$0xff]
      %v317 = vld [vmem:[%s306 + $0x50] sm:$0xff]
      %v318 = vld [vmem:[%s306 + $0x58] sm:$0xff]
      %v319 = vld [vmem:[%s306 + $0x60] sm:$0xff]
      %v320 = vld [vmem:[%s306 + $0x68] sm:$0xff]
      %v321 = vld [vmem:[%s306 + $0x70] sm:$0xff]
      %v322 = vld [vmem:[%s306 + $0x78] sm:$0xff]
      %v323 = vld [vmem:[%s306 + $0x80] sm:$0xff]
      %v324 = vld [vmem:[%s306 + $0x88] sm:$0xff]
      %v325 = vld [vmem:[%s306 + $0x90] sm:$0xff]
      %v326 = vld [vmem:[%s306 + $0x98] sm:$0xff]
      %v327 = vld [vmem:[%s306 + $0xa0] sm:$0xff]
      %v328 = vld [vmem:[%s306 + $0xa8] sm:$0xff]
      %v329 = vld [vmem:[%s306 + $0xb0] sm:$0xff]
      %v330 = vld [vmem:[%s306 + $0xb8] sm:$0xff]
      %v331 = vld [vmem:[%s306 + $0xc0] sm:$0xff]
      %v332 = vld [vmem:[%s306 + $0xc8] sm:$0xff]
      %v333 = vld [vmem:[%s306 + $0xd0] sm:$0xff]
      %v334 = vld [vmem:[%s306 + $0xd8] sm:$0xff]
      %v335 = vld [vmem:[%s306 + $0xe0] sm:$0xff]
      %v336 = vld [vmem:[%s306 + $0xe8] sm:$0xff]
      %v337 = vld [vmem:[%s306 + $0xf0] sm:$0xff]
      %v338 = vld [vmem:[%s306 + $0xf8] sm:$0xff]
      %v339 = vld [vmem:[%s306 + $0x100] sm:$0xff]
      %v340 = vld [vmem:[%s306 + $0x108] sm:$0xff]
      %v341 = vld [vmem:[%s306 + $0x110] sm:$0xff]
      %v342 = vld [vmem:[%s306 + $0x118] sm:$0xff]
      %v343 = vld [vmem:[%s306 + $0x120] sm:$0xff]
      %v344 = vld [vmem:[%s306 + $0x128] sm:$0xff]
      %v345 = vld [vmem:[%s306 + $0x130] sm:$0xff]
      %v346 = vld [vmem:[%s306 + $0x138] sm:$0xff]
      %v347 = vld [vmem:[%s306 + $0x140] sm:$0xff]
      %v348 = vld [vmem:[%s306 + $0x148] sm:$0xff]
      %v349 = vld [vmem:[%s306 + $0x150] sm:$0xff]
      %v350 = vld [vmem:[%s306 + $0x158] sm:$0xff]
      %v351 = vld [vmem:[%s306 + $0x160] sm:$0xff]
      %v352 = vld [vmem:[%s306 + $0x168] sm:$0xff]
      %v353 = vld [vmem:[%s306 + $0x170] sm:$0xff]
      %v354 = vld [vmem:[%s306 + $0x178] sm:$0xff]
      %v355 = vld [vmem:[%s306 + $0x180] sm:$0xff]
      %v356 = vld [vmem:[%s306 + $0x188] sm:$0xff]
      %v357 = vld [vmem:[%s306 + $0x190] sm:$0xff]
      %v358 = vld [vmem:[%s306 + $0x198] sm:$0xff]
      %v359 = vld [vmem:[%s306 + $0x1a0] sm:$0xff]
      %v360 = vld [vmem:[%s306 + $0x1a8] sm:$0xff]
      %v361 = vld [vmem:[%s1] sm:$0xf]
      %v362 = vld [vmem:[%s2] sm:$0x1]
      %v364 = vlaneseq
      %v365 = vshrl.u32 %v364, 7
      %v366 = vsub.s32 0, %v365
      %v367 = vrot.slane %v362, %v366
      %vm369 = vcmask 31744
      %v371 = vsel %vm369, %v307, 0
      %v374 = vsel %vm369, %v308, 0
      %v377 = vsel %vm369, %v309, 0
      %v380 = vsel %vm369, %v310, 0
      %v383 = vsel %vm369, %v311, 0
      %v386 = vsel %vm369, %v312, 0
      %v389 = vsel %vm369, %v313, 0
      %v392 = vsel %vm369, %v314, 0
      %v395 = vsel %vm369, %v315, 0
      %v398 = vsel %vm369, %v316, 0
      %v401 = vsel %vm369, %v317, 0
      %v404 = vsel %vm369, %v318, 0
      %v407 = vsel %vm369, %v319, 0
      %v410 = vsel %vm369, %v320, 0
      %v413 = vsel %vm369, %v321, 0
      %v416 = vsel %vm369, %v322, 0
      %v419 = vsel %vm369, %v323, 0
      %v422 = vsel %vm369, %v324, 0
      %v425 = vsel %vm369, %v325, 0
      %v428 = vsel %vm369, %v326, 0
      %v431 = vsel %vm369, %v327, 0
      %v434 = vsel %vm369, %v328, 0
      %v437 = vsel %vm369, %v329, 0
      %v440 = vsel %vm369, %v330, 0
      %v443 = vsel %vm369, %v331, 0
      %v446 = vsel %vm369, %v332, 0
      %v449 = vsel %vm369, %v333, 0
      %v452 = vsel %vm369, %v334, 0
      %v455 = vsel %vm369, %v335, 0
      %v458 = vsel %vm369, %v336, 0
      %v461 = vsel %vm369, %v337, 0
      %v464 = vsel %vm369, %v338, 0
      %v467 = vsel %vm369, %v339, 0
      %v470 = vsel %vm369, %v340, 0
      %v473 = vsel %vm369, %v341, 0
      %v476 = vsel %vm369, %v342, 0
      %v479 = vsel %vm369, %v343, 0
      %v482 = vsel %vm369, %v344, 0
      %v485 = vsel %vm369, %v345, 0
      %v488 = vsel %vm369, %v346, 0
      %v491 = vsel %vm369, %v347, 0
      %v494 = vsel %vm369, %v348, 0
      %v497 = vsel %vm369, %v349, 0
      %v500 = vsel %vm369, %v350, 0
      %v503 = vsel %vm369, %v351, 0
      %v506 = vsel %vm369, %v352, 0
      %v509 = vsel %vm369, %v353, 0
      %v512 = vsel %vm369, %v354, 0
      %v515 = vsel %vm369, %v355, 0
      %v518 = vsel %vm369, %v356, 0
      %v521 = vsel %vm369, %v357, 0
      %v524 = vsel %vm369, %v358, 0
      %v527 = vsel %vm369, %v359, 0
      %v530 = vsel %vm369, %v360, 0
      %vm532 = vcmask 1043456
      %v534 = vsel %vm532, %v361, 0
      %536 = vmatprep.subr.mxu0 0.0
      %537 = vmatpush1.msra.mxu0 %v534
      %538 = vmatprep.subr.mxu0 0.0
      %539 = vmatpush1.msra.mxu0 0.0
      %540 = vmatprep.subr.mxu0 0.0
      %541 = vmatpush1.msra.mxu0 0.0
      %542 = vmatprep.subr.mxu0 0.0
      %543 = vmatpush1.msra.mxu0 0.0
      %544 = vmatprep.subr.mxu0 0.0
      %545 = vmatpush1.msra.mxu0 0.0
      %546 = vmatprep.subr.mxu0 0.0
      %547 = vmatpush1.msra.mxu0 0.0
      %548 = vmatprep.subr.mxu0 0.0
      %549 = vmatpush1.msra.mxu0 0.0
      %550 = vmatprep.subr.mxu0 0.0
      %551 = vmatpush1.msra.mxu0 0.0
      %552 = vmatprep.subr.mxu0 0.0
      %553 = vmatpush1.msra.mxu0 0.0
      %554 = vmatprep.subr.mxu0 0.0
      %555 = vmatpush1.msra.mxu0 0.0
      %556 = vmatprep.subr.mxu0 0.0
      %557 = vmatpush1.msra.mxu0 0.0
      %558 = vmatprep.subr.mxu0 0.0
      %559 = vmatpush1.msra.mxu0 0.0
      %560 = vmatprep.subr.mxu0 0.0
      %561 = vmatpush1.msra.mxu0 0.0
      %562 = vmatprep.subr.mxu0 0.0
      %563 = vmatpush1.msra.mxu0 0.0
      %564 = vmatprep.subr.mxu0 0.0
      %565 = vmatpush1.msra.mxu0 0.0
      %566 = vmatprep.subr.mxu0 0.0
      %567 = vmatpush1.msra.mxu0 0.0
      %568 = vmatprep.subr.mxu0 0.0
      %569 = vmatpush1.msra.mxu0 0.0
      %570 = vmatprep.subr.mxu0 0.0
      %571 = vmatpush1.msra.mxu0 0.0
      %572 = vmatprep.subr.mxu0 0.0
      %573 = vmatpush1.msra.mxu0 0.0
      %574 = vmatprep.subr.mxu0 0.0
      %575 = vmatpush1.msra.mxu0 0.0
      %576 = vmatprep.subr.mxu0 0.0
      %577 = vmatpush1.msra.mxu0 0.0
      %578 = vmatprep.subr.mxu0 0.0
      %579 = vmatpush1.msra.mxu0 0.0
      %580 = vmatprep.subr.mxu0 0.0
      %581 = vmatpush1.msra.mxu0 0.0
      %582 = vmatprep.subr.mxu0 0.0
      %583 = vmatpush1.msra.mxu0 0.0
      %584 = vmatprep.subr.mxu0 0.0
      %585 = vmatpush1.msra.mxu0 0.0
      %586 = vmatprep.subr.mxu0 0.0
      %587 = vmatpush1.msra.mxu0 0.0
      %588 = vmatprep.subr.mxu0 0.0
      %589 = vmatpush1.msra.mxu0 0.0
      %590 = vmatprep.subr.mxu0 0.0
      %591 = vmatpush1.msra.mxu0 0.0
      %592 = vmatprep.subr.mxu0 0.0
      %593 = vmatpush1.msra.mxu0 0.0
      %594 = vmatprep.subr.mxu0 0.0
      %595 = vmatpush1.msra.mxu0 0.0
      %596 = vmatprep.subr.mxu0 0.0
      %597 = vmatpush1.msra.mxu0 0.0
      %598 = vmatprep.subr.mxu0 0.0
      %599 = vmatpush1.msra.mxu0 0.0
      %600 = vmatprep.mubr.f32.mxu0 0.0
      %601 = vmatmul.mubr.f32.gmra.mrb[0].mxu0 %v371
      %v602 = vpop.f32.mrb[0].mxu0
      %v603 = vadd.f32 %v367, %v602
      %v604 = vpop.f32.mrb[0].mxu0
      %605 = vmatprep.mubr.f32.mxu0 0.0
      %606 = vmatmul.mubr.f32.gmra.mrb[0].mxu0 %v374
      %v607 = vpop.f32.mrb[0].mxu0
      %v608 = vadd.f32 %v367, %v607
      %v609 = vpop.f32.mrb[0].mxu0
      %610 = vmatprep.mubr.f32.mxu0 0.0
      %611 = vmatmul.mubr.f32.gmra.mrb[0].mxu0 %v377
      %v612 = vpop.f32.mrb[0].mxu0
      %v613 = vadd.f32 %v367, %v612
      %v614 = vpop.f32.mrb[0].mxu0
      %615 = vmatprep.mubr.f32.mxu0 0.0
      %616 = vmatmul.mubr.f32.gmra.mrb[0].mxu0 %v380
      %v617 = vpop.f32.mrb[0].mxu0
      %v618 = vadd.f32 %v367, %v617
      %v619 = vpop.f32.mrb[0].mxu0
      %620 = vmatprep.mubr.f32.mxu0 0.0
      %621 = vmatmul.mubr.f32.gmra.mrb[0].mxu0 %v383
      %v622 = vpop.f32.mrb[0].mxu0
      %v623 = vadd.f32 %v367, %v622
      %v624 = vpop.f32.mrb[0].mxu0
      %625 = vmatprep.mubr.f32.mxu0 0.0
      %626 = vmatmul.mubr.f32.gmra.mrb[0].mxu0 %v386
      %v627 = vpop.f32.mrb[0].mxu0
      %v628 = vadd.f32 %v367, %v627
      %v629 = vpop.f32.mrb[0].mxu0
      %630 = vmatprep.mubr.f32.mxu0 0.0
      %631 = vmatmul.mubr.f32.gmra.mrb[0].mxu0 %v389
      %v632 = vpop.f32.mrb[0].mxu0
      %v633 = vadd.f32 %v367, %v632
      %v634 = vpop.f32.mrb[0].mxu0
      %635 = vmatprep.mubr.f32.mxu0 0.0
      %636 = vmatmul.mubr.f32.gmra.mrb[0].mxu0 %v392
      %v637 = vpop.f32.mrb[0].mxu0
      %v638 = vadd.f32 %v367, %v637
      %v639 = vpop.f32.mrb[0].mxu0
      %640 = vmatprep.mubr.f32.mxu0 0.0
      %641 = vmatmul.mubr.f32.gmra.mrb[0].mxu0 %v395
      %v642 = vpop.f32.mrb[0].mxu0
      %v643 = vadd.f32 %v367, %v642
      %v644 = vpop.f32.mrb[0].mxu0
      %645 = vmatprep.mubr.f32.mxu0 0.0
      %646 = vmatmul.mubr.f32.gmra.mrb[0].mxu0 %v398
      %v647 = vpop.f32.mrb[0].mxu0
      %v648 = vadd.f32 %v367, %v647
      %v649 = vpop.f32.mrb[0].mxu0
      %650 = vmatprep.mubr.f32.mxu0 0.0
      %651 = vmatmul.mubr.f32.gmra.mrb[0].mxu0 %v401
      %v652 = vpop.f32.mrb[0].mxu0
      %v653 = vadd.f32 %v367, %v652
      %v654 = vpop.f32.mrb[0].mxu0
      %655 = vmatprep.mubr.f32.mxu0 0.0
      %656 = vmatmul.mubr.f32.gmra.mrb[0].mxu0 %v404
      %v657 = vpop.f32.mrb[0].mxu0
      %v658 = vadd.f32 %v367, %v657
      %v659 = vpop.f32.mrb[0].mxu0
      %660 = vmatprep.mubr.f32.mxu0 0.0
      %661 = vmatmul.mubr.f32.gmra.mrb[0].mxu0 %v407
      %v662 = vpop.f32.mrb[0].mxu0
      %v663 = vadd.f32 %v367, %v662
      %v664 = vpop.f32.mrb[0].mxu0
      %665 = vmatprep.mubr.f32.mxu0 0.0
      %666 = vmatmul.mubr.f32.gmra.mrb[0].mxu0 %v410
      %v667 = vpop.f32.mrb[0].mxu0
      %v668 = vadd.f32 %v367, %v667
      %v669 = vpop.f32.mrb[0].mxu0
      %670 = vmatprep.mubr.f32.mxu0 0.0
      %671 = vmatmul.mubr.f32.gmra.mrb[0].mxu0 %v413
      %v672 = vpop.f32.mrb[0].mxu0
      %v673 = vadd.f32 %v367, %v672
      %v674 = vpop.f32.mrb[0].mxu0
      %675 = vmatprep.mubr.f32.mxu0 0.0
      %676 = vmatmul.mubr.f32.gmra.mrb[0].mxu0 %v416
      %v677 = vpop.f32.mrb[0].mxu0
      %v678 = vadd.f32 %v367, %v677
      %v679 = vpop.f32.mrb[0].mxu0
      %680 = vmatprep.mubr.f32.mxu0 0.0
      %681 = vmatmul.mubr.f32.gmra.mrb[0].mxu0 %v419
      %v682 = vpop.f32.mrb[0].mxu0
      %v683 = vadd.f32 %v367, %v682
      %v684 = vpop.f32.mrb[0].mxu0
      %685 = vmatprep.mubr.f32.mxu0 0.0
      %686 = vmatmul.mubr.f32.gmra.mrb[0].mxu0 %v422
      %v687 = vpop.f32.mrb[0].mxu0
      %v688 = vadd.f32 %v367, %v687
      %v689 = vpop.f32.mrb[0].mxu0
      %690 = vmatprep.mubr.f32.mxu0 0.0
      %691 = vmatmul.mubr.f32.gmra.mrb[0].mxu0 %v425
      %v692 = vpop.f32.mrb[0].mxu0
      %v693 = vadd.f32 %v367, %v692
      %v694 = vpop.f32.mrb[0].mxu0
      %695 = vmatprep.mubr.f32.mxu0 0.0
      %696 = vmatmul.mubr.f32.gmra.mrb[0].mxu0 %v428
      %v697 = vpop.f32.mrb[0].mxu0
      %v698 = vadd.f32 %v367, %v697
      %v699 = vpop.f32.mrb[0].mxu0
      %700 = vmatprep.mubr.f32.mxu0 0.0
      %701 = vmatmul.mubr.f32.gmra.mrb[0].mxu0 %v431
      %v702 = vpop.f32.mrb[0].mxu0
      %v703 = vadd.f32 %v367, %v702
      %v704 = vpop.f32.mrb[0].mxu0
      %705 = vmatprep.mubr.f32.mxu0 0.0
      %706 = vmatmul.mubr.f32.gmra.mrb[0].mxu0 %v434
      %v707 = vpop.f32.mrb[0].mxu0
      %v708 = vadd.f32 %v367, %v707
      %v709 = vpop.f32.mrb[0].mxu0
      %710 = vmatprep.mubr.f32.mxu0 0.0
      %711 = vmatmul.mubr.f32.gmra.mrb[0].mxu0 %v437
      %v712 = vpop.f32.mrb[0].mxu0
      %v713 = vadd.f32 %v367, %v712
      %v714 = vpop.f32.mrb[0].mxu0
      %715 = vmatprep.mubr.f32.mxu0 0.0
      %716 = vmatmul.mubr.f32.gmra.mrb[0].mxu0 %v440
      %v717 = vpop.f32.mrb[0].mxu0
      %v718 = vadd.f32 %v367, %v717
      %v719 = vpop.f32.mrb[0].mxu0
      %720 = vmatprep.mubr.f32.mxu0 0.0
      %721 = vmatmul.mubr.f32.gmra.mrb[0].mxu0 %v443
      %v722 = vpop.f32.mrb[0].mxu0
      %v723 = vadd.f32 %v367, %v722
      %v724 = vpop.f32.mrb[0].mxu0
      %725 = vmatprep.mubr.f32.mxu0 0.0
      %726 = vmatmul.mubr.f32.gmra.mrb[0].mxu0 %v446
      %v727 = vpop.f32.mrb[0].mxu0
      %v728 = vadd.f32 %v367, %v727
      %v729 = vpop.f32.mrb[0].mxu0
      %730 = vmatprep.mubr.f32.mxu0 0.0
      %731 = vmatmul.mubr.f32.gmra.mrb[0].mxu0 %v449
      %v732 = vpop.f32.mrb[0].mxu0
      %v733 = vadd.f32 %v367, %v732
      %v734 = vpop.f32.mrb[0].mxu0
      %735 = vmatprep.mubr.f32.mxu0 0.0
      %736 = vmatmul.mubr.f32.gmra.mrb[0].mxu0 %v452
      %v737 = vpop.f32.mrb[0].mxu0
      %v738 = vadd.f32 %v367, %v737
      %v739 = vpop.f32.mrb[0].mxu0
      %740 = vmatprep.mubr.f32.mxu0 0.0
      %741 = vmatmul.mubr.f32.gmra.mrb[0].mxu0 %v455
      %v742 = vpop.f32.mrb[0].mxu0
      %v743 = vadd.f32 %v367, %v742
      %v744 = vpop.f32.mrb[0].mxu0
      %745 = vmatprep.mubr.f32.mxu0 0.0
      %746 = vmatmul.mubr.f32.gmra.mrb[0].mxu0 %v458
      %v747 = vpop.f32.mrb[0].mxu0
      %v748 = vadd.f32 %v367, %v747
      %v749 = vpop.f32.mrb[0].mxu0
      %750 = vmatprep.mubr.f32.mxu0 0.0
      %751 = vmatmul.mubr.f32.gmra.mrb[0].mxu0 %v461
      %v752 = vpop.f32.mrb[0].mxu0
      %v753 = vadd.f32 %v367, %v752
      %v754 = vpop.f32.mrb[0].mxu0
      %755 = vmatprep.mubr.f32.mxu0 0.0
      %756 = vmatmul.mubr.f32.gmra.mrb[0].mxu0 %v464
      %v757 = vpop.f32.mrb[0].mxu0
      %v758 = vadd.f32 %v367, %v757
      %v759 = vpop.f32.mrb[0].mxu0
      %760 = vmatprep.mubr.f32.mxu0 0.0
      %761 = vmatmul.mubr.f32.gmra.mrb[0].mxu0 %v467
      %v762 = vpop.f32.mrb[0].mxu0
      %v763 = vadd.f32 %v367, %v762
      %v764 = vpop.f32.mrb[0].mxu0
      %765 = vmatprep.mubr.f32.mxu0 0.0
      %766 = vmatmul.mubr.f32.gmra.mrb[0].mxu0 %v470
      %v767 = vpop.f32.mrb[0].mxu0
      %v768 = vadd.f32 %v367, %v767
      %v769 = vpop.f32.mrb[0].mxu0
      %770 = vmatprep.mubr.f32.mxu0 0.0
      %771 = vmatmul.mubr.f32.gmra.mrb[0].mxu0 %v473
      %v772 = vpop.f32.mrb[0].mxu0
      %v773 = vadd.f32 %v367, %v772
      %v774 = vpop.f32.mrb[0].mxu0
      %775 = vmatprep.mubr.f32.mxu0 0.0
      %776 = vmatmul.mubr.f32.gmra.mrb[0].mxu0 %v476
      %v777 = vpop.f32.mrb[0].mxu0
      %v778 = vadd.f32 %v367, %v777
      %v779 = vpop.f32.mrb[0].mxu0
      %780 = vmatprep.mubr.f32.mxu0 0.0
      %781 = vmatmul.mubr.f32.gmra.mrb[0].mxu0 %v479
      %v782 = vpop.f32.mrb[0].mxu0
      %v783 = vadd.f32 %v367, %v782
      %v784 = vpop.f32.mrb[0].mxu0
      %785 = vmatprep.mubr.f32.mxu0 0.0
      %786 = vmatmul.mubr.f32.gmra.mrb[0].mxu0 %v482
      %v787 = vpop.f32.mrb[0].mxu0
      %v788 = vadd.f32 %v367, %v787
      %v789 = vpop.f32.mrb[0].mxu0
      %790 = vmatprep.mubr.f32.mxu0 0.0
      %791 = vmatmul.mubr.f32.gmra.mrb[0].mxu0 %v485
      %v792 = vpop.f32.mrb[0].mxu0
      %v793 = vadd.f32 %v367, %v792
      %v794 = vpop.f32.mrb[0].mxu0
      %795 = vmatprep.mubr.f32.mxu0 0.0
      %796 = vmatmul.mubr.f32.gmra.mrb[0].mxu0 %v488
      %v797 = vpop.f32.mrb[0].mxu0
      %v798 = vadd.f32 %v367, %v797
      %v799 = vpop.f32.mrb[0].mxu0
      %800 = vmatprep.mubr.f32.mxu0 0.0
      %801 = vmatmul.mubr.f32.gmra.mrb[0].mxu0 %v491
      %v802 = vpop.f32.mrb[0].mxu0
      %v803 = vadd.f32 %v367, %v802
      %v804 = vpop.f32.mrb[0].mxu0
      %805 = vmatprep.mubr.f32.mxu0 0.0
      %806 = vmatmul.mubr.f32.gmra.mrb[0].mxu0 %v494
      %v807 = vpop.f32.mrb[0].mxu0
      %v808 = vadd.f32 %v367, %v807
      %v809 = vpop.f32.mrb[0].mxu0
      %810 = vmatprep.mubr.f32.mxu0 0.0
      %811 = vmatmul.mubr.f32.gmra.mrb[0].mxu0 %v497
      %v812 = vpop.f32.mrb[0].mxu0
      %v813 = vadd.f32 %v367, %v812
      %v814 = vpop.f32.mrb[0].mxu0
      %815 = vmatprep.mubr.f32.mxu0 0.0
      %816 = vmatmul.mubr.f32.gmra.mrb[0].mxu0 %v500
      %v817 = vpop.f32.mrb[0].mxu0
      %v818 = vadd.f32 %v367, %v817
      %v819 = vpop.f32.mrb[0].mxu0
      %820 = vmatprep.mubr.f32.mxu0 0.0
      %821 = vmatmul.mubr.f32.gmra.mrb[0].mxu0 %v503
      %v822 = vpop.f32.mrb[0].mxu0
      %v823 = vadd.f32 %v367, %v822
      %v824 = vpop.f32.mrb[0].mxu0
      %825 = vmatprep.mubr.f32.mxu0 0.0
      %826 = vmatmul.mubr.f32.gmra.mrb[0].mxu0 %v506
      %v827 = vpop.f32.mrb[0].mxu0
      %v828 = vadd.f32 %v367, %v827
      %v829 = vpop.f32.mrb[0].mxu0
      %830 = vmatprep.mubr.f32.mxu0 0.0
      %831 = vmatmul.mubr.f32.gmra.mrb[0].mxu0 %v509
      %v832 = vpop.f32.mrb[0].mxu0
      %v833 = vadd.f32 %v367, %v832
      %v834 = vpop.f32.mrb[0].mxu0
      %835 = vmatprep.mubr.f32.mxu0 0.0
      %836 = vmatmul.mubr.f32.gmra.mrb[0].mxu0 %v512
      %v837 = vpop.f32.mrb[0].mxu0
      %v838 = vadd.f32 %v367, %v837
      %v839 = vpop.f32.mrb[0].mxu0
      %840 = vmatprep.mubr.f32.mxu0 0.0
      %841 = vmatmul.mubr.f32.gmra.mrb[0].mxu0 %v515
      %v842 = vpop.f32.mrb[0].mxu0
      %v843 = vadd.f32 %v367, %v842
      %v844 = vpop.f32.mrb[0].mxu0
      %845 = vmatprep.mubr.f32.mxu0 0.0
      %846 = vmatmul.mubr.f32.gmra.mrb[0].mxu0 %v518
      %v847 = vpop.f32.mrb[0].mxu0
      %v848 = vadd.f32 %v367, %v847
      %v849 = vpop.f32.mrb[0].mxu0
      %850 = vmatprep.mubr.f32.mxu0 0.0
      %851 = vmatmul.mubr.f32.gmra.mrb[0].mxu0 %v521
      %v852 = vpop.f32.mrb[0].mxu0
      %v853 = vadd.f32 %v367, %v852
      %v854 = vpop.f32.mrb[0].mxu0
      %855 = vmatprep.mubr.f32.mxu0 0.0
      %856 = vmatmul.mubr.f32.gmra.mrb[0].mxu0 %v524
      %v857 = vpop.f32.mrb[0].mxu0
      %v858 = vadd.f32 %v367, %v857
      %v859 = vpop.f32.mrb[0].mxu0
      %860 = vmatprep.mubr.f32.mxu0 0.0
      %861 = vmatmul.mubr.f32.gmra.mrb[0].mxu0 %v527
      %v862 = vpop.f32.mrb[0].mxu0
      %v863 = vadd.f32 %v367, %v862
      %v864 = vpop.f32.mrb[0].mxu0
      %865 = vmatprep.mubr.f32.mxu0 0.0
      %866 = vmatmul.mubr.f32.gmra.mrb[0].mxu0 %v530
      %v867 = vpop.f32.mrb[0].mxu0
      %v868 = vadd.f32 %v367, %v867
      %v869 = vpop.f32.mrb[0].mxu0
      %870 = vdwg.mxu0
      %v871 = vmax.f32 %v603, 0.0
      %v872 = vmax.f32 %v608, 0.0
      %v873 = vmax.f32 %v613, 0.0
      %v874 = vmax.f32 %v618, 0.0
      %v875 = vmax.f32 %v623, 0.0
      %v876 = vmax.f32 %v628, 0.0
      %v877 = vmax.f32 %v633, 0.0
      %v878 = vmax.f32 %v638, 0.0
      %v879 = vmax.f32 %v643, 0.0
      %v880 = vmax.f32 %v648, 0.0
      %v881 = vmax.f32 %v653, 0.0
      %v882 = vmax.f32 %v658, 0.0
      %v883 = vmax.f32 %v663, 0.0
      %v884 = vmax.f32 %v668, 0.0
      %v885 = vmax.f32 %v673, 0.0
      %v886 = vmax.f32 %v678, 0.0
      %v887 = vmax.f32 %v683, 0.0
      %v888 = vmax.f32 %v688, 0.0
      %v889 = vmax.f32 %v693, 0.0
      %v890 = vmax.f32 %v698, 0.0
      %v891 = vmax.f32 %v703, 0.0
      %v892 = vmax.f32 %v708, 0.0
      %v893 = vmax.f32 %v713, 0.0
      %v894 = vmax.f32 %v718, 0.0
      %v895 = vmax.f32 %v723, 0.0
      %v896 = vmax.f32 %v728, 0.0
      %v897 = vmax.f32 %v733, 0.0
      %v898 = vmax.f32 %v738, 0.0
      %v899 = vmax.f32 %v743, 0.0
      %v900 = vmax.f32 %v748, 0.0
      %v901 = vmax.f32 %v753, 0.0
      %v902 = vmax.f32 %v758, 0.0
      %v903 = vmax.f32 %v763, 0.0
      %v904 = vmax.f32 %v768, 0.0
      %v905 = vmax.f32 %v773, 0.0
      %v906 = vmax.f32 %v778, 0.0
      %v907 = vmax.f32 %v783, 0.0
      %v908 = vmax.f32 %v788, 0.0
      %v909 = vmax.f32 %v793, 0.0
      %v910 = vmax.f32 %v798, 0.0
      %v911 = vmax.f32 %v803, 0.0
      %v912 = vmax.f32 %v808, 0.0
      %v913 = vmax.f32 %v813, 0.0
      %v914 = vmax.f32 %v818, 0.0
      %v915 = vmax.f32 %v823, 0.0
      %v916 = vmax.f32 %v828, 0.0
      %v917 = vmax.f32 %v833, 0.0
      %v918 = vmax.f32 %v838, 0.0
      %v919 = vmax.f32 %v843, 0.0
      %v920 = vmax.f32 %v848, 0.0
      %v921 = vmax.f32 %v853, 0.0
      %v922 = vmax.f32 %v858, 0.0
      %v923 = vmax.f32 %v863, 0.0
      %v924 = vmax.f32 %v868, 0.0
      %v925 = vmin.f32 %v871, 6.0
      %v926 = vmin.f32 %v872, 6.0
      %v927 = vmin.f32 %v873, 6.0
      %v928 = vmin.f32 %v874, 6.0
      %v929 = vmin.f32 %v875, 6.0
      %v930 = vmin.f32 %v876, 6.0
      %v931 = vmin.f32 %v877, 6.0
      %v932 = vmin.f32 %v878, 6.0
      %v933 = vmin.f32 %v879, 6.0
      %v934 = vmin.f32 %v880, 6.0
      %v935 = vmin.f32 %v881, 6.0
      %v936 = vmin.f32 %v882, 6.0
      %v937 = vmin.f32 %v883, 6.0
      %v938 = vmin.f32 %v884, 6.0
      %v939 = vmin.f32 %v885, 6.0
      %v940 = vmin.f32 %v886, 6.0
      %v941 = vmin.f32 %v887, 6.0
      %v942 = vmin.f32 %v888, 6.0
      %v943 = vmin.f32 %v889, 6.0
      %v944 = vmin.f32 %v890, 6.0
      %v945 = vmin.f32 %v891, 6.0
      %v946 = vmin.f32 %v892, 6.0
      %v947 = vmin.f32 %v893, 6.0
      %v948 = vmin.f32 %v894, 6.0
      %v949 = vmin.f32 %v895, 6.0
      %v950 = vmin.f32 %v896, 6.0
      %v951 = vmin.f32 %v897, 6.0
      %v952 = vmin.f32 %v898, 6.0
      %v953 = vmin.f32 %v899, 6.0
      %v954 = vmin.f32 %v900, 6.0
      %v955 = vmin.f32 %v901, 6.0
      %v956 = vmin.f32 %v902, 6.0
      %v957 = vmin.f32 %v903, 6.0
      %v958 = vmin.f32 %v904, 6.0
      %v959 = vmin.f32 %v905, 6.0
      %v960 = vmin.f32 %v906, 6.0
      %v961 = vmin.f32 %v907, 6.0
      %v962 = vmin.f32 %v908, 6.0
      %v963 = vmin.f32 %v909, 6.0
      %v964 = vmin.f32 %v910, 6.0
      %v965 = vmin.f32 %v911, 6.0
      %v966 = vmin.f32 %v912, 6.0
      %v967 = vmin.f32 %v913, 6.0
      %v968 = vmin.f32 %v914, 6.0
      %v969 = vmin.f32 %v915, 6.0
      %v970 = vmin.f32 %v916, 6.0
      %v971 = vmin.f32 %v917, 6.0
      %v972 = vmin.f32 %v918, 6.0
      %v973 = vmin.f32 %v919, 6.0
      %v974 = vmin.f32 %v920, 6.0
      %v975 = vmin.f32 %v921, 6.0
      %v976 = vmin.f32 %v922, 6.0
      %v977 = vmin.f32 %v923, 6.0
      %v978 = vmin.f32 %v924, 6.0
      %v979 = vstv %s304
      %v980 = vadd.s32 %v979, 1
      %v981 = vadd.s32 %v979, 2
      %v982 = vadd.s32 %v979, 3
      %v983 = vadd.s32 %v979, 4
      %v984 = vadd.s32 %v979, 5
      %v985 = vadd.s32 %v979, 6
      %v986 = vadd.s32 %v979, 7
      %v987 = vadd.s32 %v979, 8
      %v988 = vadd.s32 %v979, 9
      %v989 = vadd.s32 %v979, 10
      %v990 = vadd.s32 %v979, 11
      %v991 = vadd.s32 %v979, 12
      %v992 = vadd.s32 %v979, 13
      %v993 = vadd.s32 %v979, 14
      %v994 = vadd.s32 %v979, 15
      %v995 = vadd.s32 %v979, 16
      %v996 = vadd.s32 %v979, 17
      %v997 = vlaneseq
      %v998 = vshrl.u32 %v997, 7
      %v999 = vadd.s32 %v998, 8
      %v1000 = vadd.s32 %v998, 16
      %vm1001 = vcmp.ge.s32.totalorder %v979, 1
      %vm1002 = vcmp.ge.s32.totalorder %v980, 1
      %vm1003 = vcmp.ge.s32.totalorder %v981, 1
      %vm1004 = vcmp.ge.s32.totalorder %v982, 1
      %vm1005 = vcmp.ge.s32.totalorder %v983, 1
      %vm1006 = vcmp.ge.s32.totalorder %v984, 1
      %vm1007 = vcmp.ge.s32.totalorder %v985, 1
      %vm1008 = vcmp.ge.s32.totalorder %v986, 1
      %vm1009 = vcmp.ge.s32.totalorder %v987, 1
      %vm1010 = vcmp.ge.s32.totalorder %v988, 1
      %vm1011 = vcmp.ge.s32.totalorder %v989, 1
      %vm1012 = vcmp.ge.s32.totalorder %v990, 1
      %vm1013 = vcmp.ge.s32.totalorder %v991, 1
      %vm1014 = vcmp.ge.s32.totalorder %v992, 1
      %vm1015 = vcmp.ge.s32.totalorder %v993, 1
      %vm1016 = vcmp.ge.s32.totalorder %v994, 1
      %vm1017 = vcmp.ge.s32.totalorder %v995, 1
      %vm1018 = vcmp.ge.s32.totalorder %v996, 1
      %vm1019 = vcmp.le.s32.totalorder %v979, 16
      %vm1020 = vcmp.le.s32.totalorder %v980, 16
      %vm1021 = vcmp.le.s32.totalorder %v981, 16
      %vm1022 = vcmp.le.s32.totalorder %v982, 16
      %vm1023 = vcmp.le.s32.totalorder %v983, 16
      %vm1024 = vcmp.le.s32.totalorder %v984, 16
      %vm1025 = vcmp.le.s32.totalorder %v985, 16
      %vm1026 = vcmp.le.s32.totalorder %v986, 16
      %vm1027 = vcmp.le.s32.totalorder %v987, 16
      %vm1028 = vcmp.le.s32.totalorder %v988, 16
      %vm1029 = vcmp.le.s32.totalorder %v989, 16
      %vm1030 = vcmp.le.s32.totalorder %v990, 16
      %vm1031 = vcmp.le.s32.totalorder %v991, 16
      %vm1032 = vcmp.le.s32.totalorder %v992, 16
      %vm1033 = vcmp.le.s32.totalorder %v993, 16
      %vm1034 = vcmp.le.s32.totalorder %v994, 16
      %vm1035 = vcmp.le.s32.totalorder %v995, 16
      %vm1036 = vcmp.le.s32.totalorder %v996, 16
      %vm1037 = vmand %vm1001, %vm1019
      %vm1038 = vmand %vm1002, %vm1020
      %vm1039 = vmand %vm1003, %vm1021
      %vm1040 = vmand %vm1004, %vm1022
      %vm1041 = vmand %vm1005, %vm1023
      %vm1042 = vmand %vm1006, %vm1024
      %vm1043 = vmand %vm1007, %vm1025
      %vm1044 = vmand %vm1008, %vm1026
      %vm1045 = vmand %vm1009, %vm1027
      %vm1046 = vmand %vm1010, %vm1028
      %vm1047 = vmand %vm1011, %vm1029
      %vm1048 = vmand %vm1012, %vm1030
      %vm1049 = vmand %vm1013, %vm1031
      %vm1050 = vmand %vm1014, %vm1032
      %vm1051 = vmand %vm1015, %vm1033
      %vm1052 = vmand %vm1016, %vm1034
      %vm1053 = vmand %vm1017, %vm1035
      %vm1054 = vmand %vm1018, %vm1036
      %vm1055 = vcmp.ge.s32.totalorder %v998, 1
      %vm1056 = vcmp.ge.s32.totalorder %v999, 1
      %vm1057 = vcmp.ge.s32.totalorder %v1000, 1
      %vm1058 = vmand %vm1037, %vm1055
      %vm1059 = vmand %vm1037, %vm1056
      %vm1060 = vmand %vm1037, %vm1057
      %vm1061 = vmand %vm1038, %vm1055
      %vm1062 = vmand %vm1038, %vm1056
      %vm1063 = vmand %vm1038, %vm1057
      %vm1064 = vmand %vm1039, %vm1055
      %vm1065 = vmand %vm1039, %vm1056
      %vm1066 = vmand %vm1039, %vm1057
      %vm1067 = vmand %vm1040, %vm1055
      %vm1068 = vmand %vm1040, %vm1056
      %vm1069 = vmand %vm1040, %vm1057
      %vm1070 = vmand %vm1041, %vm1055
      %vm1071 = vmand %vm1041, %vm1056
      %vm1072 = vmand %vm1041, %vm1057
      %vm1073 = vmand %vm1042, %vm1055
      %vm1074 = vmand %vm1042, %vm1056
      %vm1075 = vmand %vm1042, %vm1057
      %vm1076 = vmand %vm1043, %vm1055
      %vm1077 = vmand %vm1043, %vm1056
      %vm1078 = vmand %vm1043, %vm1057
      %vm1079 = vmand %vm1044, %vm1055
      %vm1080 = vmand %vm1044, %vm1056
      %vm1081 = vmand %vm1044, %vm1057
      %vm1082 = vmand %vm1045, %vm1055
      %vm1083 = vmand %vm1045, %vm1056
      %vm1084 = vmand %vm1045, %vm1057
      %vm1085 = vmand %vm1046, %vm1055
      %vm1086 = vmand %vm1046, %vm1056
      %vm1087 = vmand %vm1046, %vm1057
      %vm1088 = vmand %vm1047, %vm1055
      %vm1089 = vmand %vm1047, %vm1056
      %vm1090 = vmand %vm1047, %vm1057
      %vm1091 = vmand %vm1048, %vm1055
      %vm1092 = vmand %vm1048, %vm1056
      %vm1093 = vmand %vm1048, %vm1057
      %vm1094 = vmand %vm1049, %vm1055
      %vm1095 = vmand %vm1049, %vm1056
      %vm1096 = vmand %vm1049, %vm1057
      %vm1097 = vmand %vm1050, %vm1055
      %vm1098 = vmand %vm1050, %vm1056
      %vm1099 = vmand %vm1050, %vm1057
      %vm1100 = vmand %vm1051, %vm1055
      %vm1101 = vmand %vm1051, %vm1056
      %vm1102 = vmand %vm1051, %vm1057
      %vm1103 = vmand %vm1052, %vm1055
      %vm1104 = vmand %vm1052, %vm1056
      %vm1105 = vmand %vm1052, %vm1057
      %vm1106 = vmand %vm1053, %vm1055
      %vm1107 = vmand %vm1053, %vm1056
      %vm1108 = vmand %vm1053, %vm1057
      %vm1109 = vmand %vm1054, %vm1055
      %vm1110 = vmand %vm1054, %vm1056
      %vm1111 = vmand %vm1054, %vm1057
      %vm1112 = vcmp.le.s32.totalorder %v998, 16
      %vm1113 = vcmp.le.s32.totalorder %v999, 16
      %vm1114 = vcmp.le.s32.totalorder %v1000, 16
      %vm1115 = vmand %vm1058, %vm1112
      %vm1116 = vmand %vm1059, %vm1113
      %vm1117 = vmand %vm1060, %vm1114
      %vm1118 = vmand %vm1061, %vm1112
      %vm1119 = vmand %vm1062, %vm1113
      %vm1120 = vmand %vm1063, %vm1114
      %vm1121 = vmand %vm1064, %vm1112
      %vm1122 = vmand %vm1065, %vm1113
      %vm1123 = vmand %vm1066, %vm1114
      %vm1124 = vmand %vm1067, %vm1112
      %vm1125 = vmand %vm1068, %vm1113
      %vm1126 = vmand %vm1069, %vm1114
      %vm1127 = vmand %vm1070, %vm1112
      %vm1128 = vmand %vm1071, %vm1113
      %vm1129 = vmand %vm1072, %vm1114
      %vm1130 = vmand %vm1073, %vm1112
      %vm1131 = vmand %vm1074, %vm1113
      %vm1132 = vmand %vm1075, %vm1114
      %vm1133 = vmand %vm1076, %vm1112
      %vm1134 = vmand %vm1077, %vm1113
      %vm1135 = vmand %vm1078, %vm1114
      %vm1136 = vmand %vm1079, %vm1112
      %vm1137 = vmand %vm1080, %vm1113
      %vm1138 = vmand %vm1081, %vm1114
      %vm1139 = vmand %vm1082, %vm1112
      %vm1140 = vmand %vm1083, %vm1113
      %vm1141 = vmand %vm1084, %vm1114
      %vm1142 = vmand %vm1085, %vm1112
      %vm1143 = vmand %vm1086, %vm1113
      %vm1144 = vmand %vm1087, %vm1114
      %vm1145 = vmand %vm1088, %vm1112
      %vm1146 = vmand %vm1089, %vm1113
      %vm1147 = vmand %vm1090, %vm1114
      %vm1148 = vmand %vm1091, %vm1112
      %vm1149 = vmand %vm1092, %vm1113
      %vm1150 = vmand %vm1093, %vm1114
      %vm1151 = vmand %vm1094, %vm1112
      %vm1152 = vmand %vm1095, %vm1113
      %vm1153 = vmand %vm1096, %vm1114
      %vm1154 = vmand %vm1097, %vm1112
      %vm1155 = vmand %vm1098, %vm1113
      %vm1156 = vmand %vm1099, %vm1114
      %vm1157 = vmand %vm1100, %vm1112
      %vm1158 = vmand %vm1101, %vm1113
      %vm1159 = vmand %vm1102, %vm1114
      %vm1160 = vmand %vm1103, %vm1112
      %vm1161 = vmand %vm1104, %vm1113
      %vm1162 = vmand %vm1105, %vm1114
      %vm1163 = vmand %vm1106, %vm1112
      %vm1164 = vmand %vm1107, %vm1113
      %vm1165 = vmand %vm1108, %vm1114
      %vm1166 = vmand %vm1109, %vm1112
      %vm1167 = vmand %vm1110, %vm1113
      %vm1168 = vmand %vm1111, %vm1114
      %v1169 = vsel %vm1115, 1, 0
      %v1170 = vsel %vm1116, 1, 0
      %v1171 = vsel %vm1117, 1, 0
      %v1172 = vsel %vm1118, 1, 0
      %v1173 = vsel %vm1119, 1, 0
      %v1174 = vsel %vm1120, 1, 0
      %v1175 = vsel %vm1121, 1, 0
      %v1176 = vsel %vm1122, 1, 0
      %v1177 = vsel %vm1123, 1, 0
      %v1178 = vsel %vm1124, 1, 0
      %v1179 = vsel %vm1125, 1, 0
      %v1180 = vsel %vm1126, 1, 0
      %v1181 = vsel %vm1127, 1, 0
      %v1182 = vsel %vm1128, 1, 0
      %v1183 = vsel %vm1129, 1, 0
      %v1184 = vsel %vm1130, 1, 0
      %v1185 = vsel %vm1131, 1, 0
      %v1186 = vsel %vm1132, 1, 0
      %v1187 = vsel %vm1133, 1, 0
      %v1188 = vsel %vm1134, 1, 0
      %v1189 = vsel %vm1135, 1, 0
      %v1190 = vsel %vm1136, 1, 0
      %v1191 = vsel %vm1137, 1, 0
      %v1192 = vsel %vm1138, 1, 0
      %v1193 = vsel %vm1139, 1, 0
      %v1194 = vsel %vm1140, 1, 0
      %v1195 = vsel %vm1141, 1, 0
      %v1196 = vsel %vm1142, 1, 0
      %v1197 = vsel %vm1143, 1, 0
      %v1198 = vsel %vm1144, 1, 0
      %v1199 = vsel %vm1145, 1, 0
      %v1200 = vsel %vm1146, 1, 0
      %v1201 = vsel %vm1147, 1, 0
      %v1202 = vsel %vm1148, 1, 0
      %v1203 = vsel %vm1149, 1, 0
      %v1204 = vsel %vm1150, 1, 0
      %v1205 = vsel %vm1151, 1, 0
      %v1206 = vsel %vm1152, 1, 0
      %v1207 = vsel %vm1153, 1, 0
      %v1208 = vsel %vm1154, 1, 0
      %v1209 = vsel %vm1155, 1, 0
      %v1210 = vsel %vm1156, 1, 0
      %v1211 = vsel %vm1157, 1, 0
      %v1212 = vsel %vm1158, 1, 0
      %v1213 = vsel %vm1159, 1, 0
      %v1214 = vsel %vm1160, 1, 0
      %v1215 = vsel %vm1161, 1, 0
      %v1216 = vsel %vm1162, 1, 0
      %v1217 = vsel %vm1163, 1, 0
      %v1218 = vsel %vm1164, 1, 0
      %v1219 = vsel %vm1165, 1, 0
      %v1220 = vsel %vm1166, 1, 0
      %v1221 = vsel %vm1167, 1, 0
      %v1222 = vsel %vm1168, 1, 0
      %vm1223 = vcmp.eq.s32.totalorder %v1169, 1
      %vm1224 = vcmp.eq.s32.totalorder %v1170, 1
      %vm1225 = vcmp.eq.s32.totalorder %v1171, 1
      %vm1226 = vcmp.eq.s32.totalorder %v1172, 1
      %vm1227 = vcmp.eq.s32.totalorder %v1173, 1
      %vm1228 = vcmp.eq.s32.totalorder %v1174, 1
      %vm1229 = vcmp.eq.s32.totalorder %v1175, 1
      %vm1230 = vcmp.eq.s32.totalorder %v1176, 1
      %vm1231 = vcmp.eq.s32.totalorder %v1177, 1
      %vm1232 = vcmp.eq.s32.totalorder %v1178, 1
      %vm1233 = vcmp.eq.s32.totalorder %v1179, 1
      %vm1234 = vcmp.eq.s32.totalorder %v1180, 1
      %vm1235 = vcmp.eq.s32.totalorder %v1181, 1
      %vm1236 = vcmp.eq.s32.totalorder %v1182, 1
      %vm1237 = vcmp.eq.s32.totalorder %v1183, 1
      %vm1238 = vcmp.eq.s32.totalorder %v1184, 1
      %vm1239 = vcmp.eq.s32.totalorder %v1185, 1
      %vm1240 = vcmp.eq.s32.totalorder %v1186, 1
      %vm1241 = vcmp.eq.s32.totalorder %v1187, 1
      %vm1242 = vcmp.eq.s32.totalorder %v1188, 1
      %vm1243 = vcmp.eq.s32.totalorder %v1189, 1
      %vm1244 = vcmp.eq.s32.totalorder %v1190, 1
      %vm1245 = vcmp.eq.s32.totalorder %v1191, 1
      %vm1246 = vcmp.eq.s32.totalorder %v1192, 1
      %vm1247 = vcmp.eq.s32.totalorder %v1193, 1
      %vm1248 = vcmp.eq.s32.totalorder %v1194, 1
      %vm1249 = vcmp.eq.s32.totalorder %v1195, 1
      %vm1250 = vcmp.eq.s32.totalorder %v1196, 1
      %vm1251 = vcmp.eq.s32.totalorder %v1197, 1
      %vm1252 = vcmp.eq.s32.totalorder %v1198, 1
      %vm1253 = vcmp.eq.s32.totalorder %v1199, 1
      %vm1254 = vcmp.eq.s32.totalorder %v1200, 1
      %vm1255 = vcmp.eq.s32.totalorder %v1201, 1
      %vm1256 = vcmp.eq.s32.totalorder %v1202, 1
      %vm1257 = vcmp.eq.s32.totalorder %v1203, 1
      %vm1258 = vcmp.eq.s32.totalorder %v1204, 1
      %vm1259 = vcmp.eq.s32.totalorder %v1205, 1
      %vm1260 = vcmp.eq.s32.totalorder %v1206, 1
      %vm1261 = vcmp.eq.s32.totalorder %v1207, 1
      %vm1262 = vcmp.eq.s32.totalorder %v1208, 1
      %vm1263 = vcmp.eq.s32.totalorder %v1209, 1
      %vm1264 = vcmp.eq.s32.totalorder %v1210, 1
      %vm1265 = vcmp.eq.s32.totalorder %v1211, 1
      %vm1266 = vcmp.eq.s32.totalorder %v1212, 1
      %vm1267 = vcmp.eq.s32.totalorder %v1213, 1
      %vm1268 = vcmp.eq.s32.totalorder %v1214, 1
      %vm1269 = vcmp.eq.s32.totalorder %v1215, 1
      %vm1270 = vcmp.eq.s32.totalorder %v1216, 1
      %vm1271 = vcmp.eq.s32.totalorder %v1217, 1
      %vm1272 = vcmp.eq.s32.totalorder %v1218, 1
      %vm1273 = vcmp.eq.s32.totalorder %v1219, 1
      %vm1274 = vcmp.eq.s32.totalorder %v1220, 1
      %vm1275 = vcmp.eq.s32.totalorder %v1221, 1
      %vm1276 = vcmp.eq.s32.totalorder %v1222, 1
      %v1277 = vsel %vm1223, %v925, 0.0
      %v1278 = vsel %vm1224, %v926, 0.0
      %v1279 = vsel %vm1225, %v927, 0.0
      %v1280 = vsel %vm1226, %v928, 0.0
      %v1281 = vsel %vm1227, %v929, 0.0
      %v1282 = vsel %vm1228, %v930, 0.0
      %v1283 = vsel %vm1229, %v931, 0.0
      %v1284 = vsel %vm1230, %v932, 0.0
      %v1285 = vsel %vm1231, %v933, 0.0
      %v1286 = vsel %vm1232, %v934, 0.0
      %v1287 = vsel %vm1233, %v935, 0.0
      %v1288 = vsel %vm1234, %v936, 0.0
      %v1289 = vsel %vm1235, %v937, 0.0
      %v1290 = vsel %vm1236, %v938, 0.0
      %v1291 = vsel %vm1237, %v939, 0.0
      %v1292 = vsel %vm1238, %v940, 0.0
      %v1293 = vsel %vm1239, %v941, 0.0
      %v1294 = vsel %vm1240, %v942, 0.0
      %v1295 = vsel %vm1241, %v943, 0.0
      %v1296 = vsel %vm1242, %v944, 0.0
      %v1297 = vsel %vm1243, %v945, 0.0
      %v1298 = vsel %vm1244, %v946, 0.0
      %v1299 = vsel %vm1245, %v947, 0.0
      %v1300 = vsel %vm1246, %v948, 0.0
      %v1301 = vsel %vm1247, %v949, 0.0
      %v1302 = vsel %vm1248, %v950, 0.0
      %v1303 = vsel %vm1249, %v951, 0.0
      %v1304 = vsel %vm1250, %v952, 0.0
      %v1305 = vsel %vm1251, %v953, 0.0
      %v1306 = vsel %vm1252, %v954, 0.0
      %v1307 = vsel %vm1253, %v955, 0.0
      %v1308 = vsel %vm1254, %v956, 0.0
      %v1309 = vsel %vm1255, %v957, 0.0
      %v1310 = vsel %vm1256, %v958, 0.0
      %v1311 = vsel %vm1257, %v959, 0.0
      %v1312 = vsel %vm1258, %v960, 0.0
      %v1313 = vsel %vm1259, %v961, 0.0
      %v1314 = vsel %vm1260, %v962, 0.0
      %v1315 = vsel %vm1261, %v963, 0.0
      %v1316 = vsel %vm1262, %v964, 0.0
      %v1317 = vsel %vm1263, %v965, 0.0
      %v1318 = vsel %vm1264, %v966, 0.0
      %v1319 = vsel %vm1265, %v967, 0.0
      %v1320 = vsel %vm1266, %v968, 0.0
      %v1321 = vsel %vm1267, %v969, 0.0
      %v1322 = vsel %vm1268, %v970, 0.0
      %v1323 = vsel %vm1269, %v971, 0.0
      %v1324 = vsel %vm1270, %v972, 0.0
      %v1325 = vsel %vm1271, %v973, 0.0
      %v1326 = vsel %vm1272, %v974, 0.0
      %v1327 = vsel %vm1273, %v975, 0.0
      %v1328 = vsel %vm1274, %v976, 0.0
      %v1329 = vsel %vm1275, %v977, 0.0
      %v1330 = vsel %vm1276, %v978, 0.0
      %v1331 = vld [vmem:[%s3] sm:$0x7]
      %v1332 = vld [vmem:[%s3 + $0x4] sm:$0x7]
      %v1333 = vld [vmem:[%s3 + $0x8] sm:$0x7]
      %v1334 = vlaneseq
      %v1335 = vshrl.u32 %v1334, 7
      %v1336 = vsub.s32 0, %v1335
      %v1337 = vrot.slane %v1331, %v1336
      %v1338 = vmul.f32 %v1277, %v1337
      %v1339 = vmul.f32 %v1278, %v1337
      %v1340 = vmul.f32 %v1280, %v1337
      %v1341 = vmul.f32 %v1281, %v1337
      %v1342 = vmul.f32 %v1283, %v1337
      %v1343 = vmul.f32 %v1284, %v1337
      %v1344 = vmul.f32 %v1286, %v1337
      %v1345 = vmul.f32 %v1287, %v1337
      %v1346 = vmul.f32 %v1289, %v1337
      %v1347 = vmul.f32 %v1290, %v1337
      %v1348 = vmul.f32 %v1292, %v1337
      %v1349 = vmul.f32 %v1293, %v1337
      %v1350 = vmul.f32 %v1295, %v1337
      %v1351 = vmul.f32 %v1296, %v1337
      %v1352 = vmul.f32 %v1298, %v1337
      %v1353 = vmul.f32 %v1299, %v1337
      %v1354 = vmul.f32 %v1301, %v1337
      %v1355 = vmul.f32 %v1302, %v1337
      %v1356 = vmul.f32 %v1304, %v1337
      %v1357 = vmul.f32 %v1305, %v1337
      %v1358 = vmul.f32 %v1307, %v1337
      %v1359 = vmul.f32 %v1308, %v1337
      %v1360 = vmul.f32 %v1310, %v1337
      %v1361 = vmul.f32 %v1311, %v1337
      %v1362 = vmul.f32 %v1313, %v1337
      %v1363 = vmul.f32 %v1314, %v1337
      %v1364 = vmul.f32 %v1316, %v1337
      %v1365 = vmul.f32 %v1317, %v1337
      %v1366 = vmul.f32 %v1319, %v1337
      %v1367 = vmul.f32 %v1320, %v1337
      %v1368 = vmul.f32 %v1322, %v1337
      %v1369 = vmul.f32 %v1323, %v1337
      %v1370 = vadd.f32 %v1338, 0.0
      %v1371 = vadd.f32 %v1339, 0.0
      %v1372 = vadd.f32 %v1340, 0.0
      %v1373 = vadd.f32 %v1341, 0.0
      %v1374 = vadd.f32 %v1342, 0.0
      %v1375 = vadd.f32 %v1343, 0.0
      %v1376 = vadd.f32 %v1344, 0.0
      %v1377 = vadd.f32 %v1345, 0.0
      %v1378 = vadd.f32 %v1346, 0.0
      %v1379 = vadd.f32 %v1347, 0.0
      %v1380 = vadd.f32 %v1348, 0.0
      %v1381 = vadd.f32 %v1349, 0.0
      %v1382 = vadd.f32 %v1350, 0.0
      %v1383 = vadd.f32 %v1351, 0.0
      %v1384 = vadd.f32 %v1352, 0.0
      %v1385 = vadd.f32 %v1353, 0.0
      %v1386 = vadd.f32 %v1354, 0.0
      %v1387 = vadd.f32 %v1355, 0.0
      %v1388 = vadd.f32 %v1356, 0.0
      %v1389 = vadd.f32 %v1357, 0.0
      %v1390 = vadd.f32 %v1358, 0.0
      %v1391 = vadd.f32 %v1359, 0.0
      %v1392 = vadd.f32 %v1360, 0.0
      %v1393 = vadd.f32 %v1361, 0.0
      %v1394 = vadd.f32 %v1362, 0.0
      %v1395 = vadd.f32 %v1363, 0.0
      %v1396 = vadd.f32 %v1364, 0.0
      %v1397 = vadd.f32 %v1365, 0.0
      %v1398 = vadd.f32 %v1366, 0.0
      %v1399 = vadd.f32 %v1367, 0.0
      %v1400 = vadd.f32 %v1368, 0.0
      %v1401 = vadd.f32 %v1369, 0.0
      %v1402 = vlaneseq
      %v1403 = vshrl.u32 %v1402, 7
      %v1404 = vsub.s32 1, %v1403
      %v1405 = vrot.slane %v1331, %v1404
      %v1406 = vmul.f32 %v1277, %v1405
      %v1407 = vmul.f32 %v1278, %v1405
      %v1408 = vmul.f32 %v1279, %v1405
      %v1409 = vmul.f32 %v1280, %v1405
      %v1410 = vmul.f32 %v1281, %v1405
      %v1411 = vmul.f32 %v1282, %v1405
      %v1412 = vmul.f32 %v1283, %v1405
      %v1413 = vmul.f32 %v1284, %v1405
      %v1414 = vmul.f32 %v1285, %v1405
      %v1415 = vmul.f32 %v1286, %v1405
      %v1416 = vmul.f32 %v1287, %v1405
      %v1417 = vmul.f32 %v1288, %v1405
      %v1418 = vmul.f32 %v1289, %v1405
      %v1419 = vmul.f32 %v1290, %v1405
      %v1420 = vmul.f32 %v1291, %v1405
      %v1421 = vmul.f32 %v1292, %v1405
      %v1422 = vmul.f32 %v1293, %v1405
      %v1423 = vmul.f32 %v1294, %v1405
      %v1424 = vmul.f32 %v1295, %v1405
      %v1425 = vmul.f32 %v1296, %v1405
      %v1426 = vmul.f32 %v1297, %v1405
      %v1427 = vmul.f32 %v1298, %v1405
      %v1428 = vmul.f32 %v1299, %v1405
      %v1429 = vmul.f32 %v1300, %v1405
      %v1430 = vmul.f32 %v1301, %v1405
      %v1431 = vmul.f32 %v1302, %v1405
      %v1432 = vmul.f32 %v1303, %v1405
      %v1433 = vmul.f32 %v1304, %v1405
      %v1434 = vmul.f32 %v1305, %v1405
      %v1435 = vmul.f32 %v1306, %v1405
      %v1436 = vmul.f32 %v1307, %v1405
      %v1437 = vmul.f32 %v1308, %v1405
      %v1438 = vmul.f32 %v1309, %v1405
      %v1439 = vmul.f32 %v1310, %v1405
      %v1440 = vmul.f32 %v1311, %v1405
      %v1441 = vmul.f32 %v1312, %v1405
      %v1442 = vmul.f32 %v1313, %v1405
      %v1443 = vmul.f32 %v1314, %v1405
      %v1444 = vmul.f32 %v1315, %v1405
      %v1445 = vmul.f32 %v1316, %v1405
      %v1446 = vmul.f32 %v1317, %v1405
      %v1447 = vmul.f32 %v1318, %v1405
      %v1448 = vmul.f32 %v1319, %v1405
      %v1449 = vmul.f32 %v1320, %v1405
      %v1450 = vmul.f32 %v1321, %v1405
      %v1451 = vmul.f32 %v1322, %v1405
      %v1452 = vmul.f32 %v1323, %v1405
      %v1453 = vmul.f32 %v1324, %v1405
      %vm1502 = vcmask 1046528
      %v1503 = vrot.slane %v1406, 1
      %v1504 = vrot.slane %v1407, 1
      %v1505 = vsel %vm1502, %v1503, %v1504
      %v1506 = vrot.slane %v1408, 1
      %v1507 = vsel %vm1502, %v1504, %v1506
      %v1508 = vrot.slane %v1409, 1
      %v1509 = vrot.slane %v1410, 1
      %v1510 = vsel %vm1502, %v1508, %v1509
      %v1511 = vrot.slane %v1411, 1
      %v1512 = vsel %vm1502, %v1509, %v1511
      %v1513 = vrot.slane %v1412, 1
      %v1514 = vrot.slane %v1413, 1
      %v1515 = vsel %vm1502, %v1513, %v1514
      %v1516 = vrot.slane %v1414, 1
      %v1517 = vsel %vm1502, %v1514, %v1516
      %v1518 = vrot.slane %v1415, 1
      %v1519 = vrot.slane %v1416, 1
      %v1520 = vsel %vm1502, %v1518, %v1519
      %v1521 = vrot.slane %v1417, 1
      %v1522 = vsel %vm1502, %v1519, %v1521
      %v1523 = vrot.slane %v1418, 1
      %v1524 = vrot.slane %v1419, 1
      %v1525 = vsel %vm1502, %v1523, %v1524
      %v1526 = vrot.slane %v1420, 1
      %v1527 = vsel %vm1502, %v1524, %v1526
      %v1528 = vrot.slane %v1421, 1
      %v1529 = vrot.slane %v1422, 1
      %v1530 = vsel %vm1502, %v1528, %v1529
      %v1531 = vrot.slane %v1423, 1
      %v1532 = vsel %vm1502, %v1529, %v1531
      %v1533 = vrot.slane %v1424, 1
      %v1534 = vrot.slane %v1425, 1
      %v1535 = vsel %vm1502, %v1533, %v1534
      %v1536 = vrot.slane %v1426, 1
      %v1537 = vsel %vm1502, %v1534, %v1536
      %v1538 = vrot.slane %v1427, 1
      %v1539 = vrot.slane %v1428, 1
      %v1540 = vsel %vm1502, %v1538, %v1539
      %v1541 = vrot.slane %v1429, 1
      %v1542 = vsel %vm1502, %v1539, %v1541
      %v1543 = vrot.slane %v1430, 1
      %v1544 = vrot.slane %v1431, 1
      %v1545 = vsel %vm1502, %v1543, %v1544
      %v1546 = vrot.slane %v1432, 1
      %v1547 = vsel %vm1502, %v1544, %v1546
      %v1548 = vrot.slane %v1433, 1
      %v1549 = vrot.slane %v1434, 1
      %v1550 = vsel %vm1502, %v1548, %v1549
      %v1551 = vrot.slane %v1435, 1
      %v1552 = vsel %vm1502, %v1549, %v1551
      %v1553 = vrot.slane %v1436, 1
      %v1554 = vrot.slane %v1437, 1
      %v1555 = vsel %vm1502, %v1553, %v1554
      %v1556 = vrot.slane %v1438, 1
      %v1557 = vsel %vm1502, %v1554, %v1556
      %v1558 = vrot.slane %v1439, 1
      %v1559 = vrot.slane %v1440, 1
      %v1560 = vsel %vm1502, %v1558, %v1559
      %v1561 = vrot.slane %v1441, 1
      %v1562 = vsel %vm1502, %v1559, %v1561
      %v1563 = vrot.slane %v1442, 1
      %v1564 = vrot.slane %v1443, 1
      %v1565 = vsel %vm1502, %v1563, %v1564
      %v1566 = vrot.slane %v1444, 1
      %v1567 = vsel %vm1502, %v1564, %v1566
      %v1568 = vrot.slane %v1445, 1
      %v1569 = vrot.slane %v1446, 1
      %v1570 = vsel %vm1502, %v1568, %v1569
      %v1571 = vrot.slane %v1447, 1
      %v1572 = vsel %vm1502, %v1569, %v1571
      %v1573 = vrot.slane %v1448, 1
      %v1574 = vrot.slane %v1449, 1
      %v1575 = vsel %vm1502, %v1573, %v1574
      %v1576 = vrot.slane %v1450, 1
      %v1577 = vsel %vm1502, %v1574, %v1576
      %v1578 = vrot.slane %v1451, 1
      %v1579 = vrot.slane %v1452, 1
      %v1580 = vsel %vm1502, %v1578, %v1579
      %v1581 = vrot.slane %v1453, 1
      %v1582 = vsel %vm1502, %v1579, %v1581
      %v1615 = vadd.f32 %v1370, %v1505
      %v1616 = vadd.f32 %v1371, %v1507
      %v1617 = vadd.f32 %v1372, %v1510
      %v1618 = vadd.f32 %v1373, %v1512
      %v1619 = vadd.f32 %v1374, %v1515
      %v1620 = vadd.f32 %v1375, %v1517
      %v1621 = vadd.f32 %v1376, %v1520
      %v1622 = vadd.f32 %v1377, %v1522
      %v1623 = vadd.f32 %v1378, %v1525
      %v1624 = vadd.f32 %v1379, %v1527
      %v1625 = vadd.f32 %v1380, %v1530
      %v1626 = vadd.f32 %v1381, %v1532
      %v1627 = vadd.f32 %v1382, %v1535
      %v1628 = vadd.f32 %v1383, %v1537
      %v1629 = vadd.f32 %v1384, %v1540
      %v1630 = vadd.f32 %v1385, %v1542
      %v1631 = vadd.f32 %v1386, %v1545
      %v1632 = vadd.f32 %v1387, %v1547
      %v1633 = vadd.f32 %v1388, %v1550
      %v1634 = vadd.f32 %v1389, %v1552
      %v1635 = vadd.f32 %v1390, %v1555
      %v1636 = vadd.f32 %v1391, %v1557
      %v1637 = vadd.f32 %v1392, %v1560
      %v1638 = vadd.f32 %v1393, %v1562
      %v1639 = vadd.f32 %v1394, %v1565
      %v1640 = vadd.f32 %v1395, %v1567
      %v1641 = vadd.f32 %v1396, %v1570
      %v1642 = vadd.f32 %v1397, %v1572
      %v1643 = vadd.f32 %v1398, %v1575
      %v1644 = vadd.f32 %v1399, %v1577
      %v1645 = vadd.f32 %v1400, %v1580
      %v1646 = vadd.f32 %v1401, %v1582
      %v1647 = vlaneseq
      %v1648 = vshrl.u32 %v1647, 7
      %v1649 = vsub.s32 2, %v1648
      %v1650 = vrot.slane %v1331, %v1649
      %v1651 = vmul.f32 %v1277, %v1650
      %v1652 = vmul.f32 %v1278, %v1650
      %v1653 = vmul.f32 %v1279, %v1650
      %v1654 = vmul.f32 %v1280, %v1650
      %v1655 = vmul.f32 %v1281, %v1650
      %v1656 = vmul.f32 %v1282, %v1650
      %v1657 = vmul.f32 %v1283, %v1650
      %v1658 = vmul.f32 %v1284, %v1650
      %v1659 = vmul.f32 %v1285, %v1650
      %v1660 = vmul.f32 %v1286, %v1650
      %v1661 = vmul.f32 %v1287, %v1650
      %v1662 = vmul.f32 %v1288, %v1650
      %v1663 = vmul.f32 %v1289, %v1650
      %v1664 = vmul.f32 %v1290, %v1650
      %v1665 = vmul.f32 %v1291, %v1650
      %v1666 = vmul.f32 %v1292, %v1650
      %v1667 = vmul.f32 %v1293, %v1650
      %v1668 = vmul.f32 %v1294, %v1650
      %v1669 = vmul.f32 %v1295, %v1650
      %v1670 = vmul.f32 %v1296, %v1650
      %v1671 = vmul.f32 %v1297, %v1650
      %v1672 = vmul.f32 %v1298, %v1650
      %v1673 = vmul.f32 %v1299, %v1650
      %v1674 = vmul.f32 %v1300, %v1650
      %v1675 = vmul.f32 %v1301, %v1650
      %v1676 = vmul.f32 %v1302, %v1650
      %v1677 = vmul.f32 %v1303, %v1650
      %v1678 = vmul.f32 %v1304, %v1650
      %v1679 = vmul.f32 %v1305, %v1650
      %v1680 = vmul.f32 %v1306, %v1650
      %v1681 = vmul.f32 %v1307, %v1650
      %v1682 = vmul.f32 %v1308, %v1650
      %v1683 = vmul.f32 %v1309, %v1650
      %v1684 = vmul.f32 %v1310, %v1650
      %v1685 = vmul.f32 %v1311, %v1650
      %v1686 = vmul.f32 %v1312, %v1650
      %v1687 = vmul.f32 %v1313, %v1650
      %v1688 = vmul.f32 %v1314, %v1650
      %v1689 = vmul.f32 %v1315, %v1650
      %v1690 = vmul.f32 %v1316, %v1650
      %v1691 = vmul.f32 %v1317, %v1650
      %v1692 = vmul.f32 %v1318, %v1650
      %v1693 = vmul.f32 %v1319, %v1650
      %v1694 = vmul.f32 %v1320, %v1650
      %v1695 = vmul.f32 %v1321, %v1650
      %v1696 = vmul.f32 %v1322, %v1650
      %v1697 = vmul.f32 %v1323, %v1650
      %v1698 = vmul.f32 %v1324, %v1650
      %vm1747 = vcmask 1045504
      %v1748 = vrot.slane %v1651, 2
      %v1749 = vrot.slane %v1652, 2
      %v1750 = vsel %vm1747, %v1748, %v1749
      %v1751 = vrot.slane %v1653, 2
      %v1752 = vsel %vm1747, %v1749, %v1751
      %v1753 = vrot.slane %v1654, 2
      %v1754 = vrot.slane %v1655, 2
      %v1755 = vsel %vm1747, %v1753, %v1754
      %v1756 = vrot.slane %v1656, 2
      %v1757 = vsel %vm1747, %v1754, %v1756
      %v1758 = vrot.slane %v1657, 2
      %v1759 = vrot.slane %v1658, 2
      %v1760 = vsel %vm1747, %v1758, %v1759
      %v1761 = vrot.slane %v1659, 2
      %v1762 = vsel %vm1747, %v1759, %v1761
      %v1763 = vrot.slane %v1660, 2
      %v1764 = vrot.slane %v1661, 2
      %v1765 = vsel %vm1747, %v1763, %v1764
      %v1766 = vrot.slane %v1662, 2
      %v1767 = vsel %vm1747, %v1764, %v1766
      %v1768 = vrot.slane %v1663, 2
      %v1769 = vrot.slane %v1664, 2
      %v1770 = vsel %vm1747, %v1768, %v1769
      %v1771 = vrot.slane %v1665, 2
      %v1772 = vsel %vm1747, %v1769, %v1771
      %v1773 = vrot.slane %v1666, 2
      %v1774 = vrot.slane %v1667, 2
      %v1775 = vsel %vm1747, %v1773, %v1774
      %v1776 = vrot.slane %v1668, 2
      %v1777 = vsel %vm1747, %v1774, %v1776
      %v1778 = vrot.slane %v1669, 2
      %v1779 = vrot.slane %v1670, 2
      %v1780 = vsel %vm1747, %v1778, %v1779
      %v1781 = vrot.slane %v1671, 2
      %v1782 = vsel %vm1747, %v1779, %v1781
      %v1783 = vrot.slane %v1672, 2
      %v1784 = vrot.slane %v1673, 2
      %v1785 = vsel %vm1747, %v1783, %v1784
      %v1786 = vrot.slane %v1674, 2
      %v1787 = vsel %vm1747, %v1784, %v1786
      %v1788 = vrot.slane %v1675, 2
      %v1789 = vrot.slane %v1676, 2
      %v1790 = vsel %vm1747, %v1788, %v1789
      %v1791 = vrot.slane %v1677, 2
      %v1792 = vsel %vm1747, %v1789, %v1791
      %v1793 = vrot.slane %v1678, 2
      %v1794 = vrot.slane %v1679, 2
      %v1795 = vsel %vm1747, %v1793, %v1794
      %v1796 = vrot.slane %v1680, 2
      %v1797 = vsel %vm1747, %v1794, %v1796
      %v1798 = vrot.slane %v1681, 2
      %v1799 = vrot.slane %v1682, 2
      %v1800 = vsel %vm1747, %v1798, %v1799
      %v1801 = vrot.slane %v1683, 2
      %v1802 = vsel %vm1747, %v1799, %v1801
      %v1803 = vrot.slane %v1684, 2
      %v1804 = vrot.slane %v1685, 2
      %v1805 = vsel %vm1747, %v1803, %v1804
      %v1806 = vrot.slane %v1686, 2
      %v1807 = vsel %vm1747, %v1804, %v1806
      %v1808 = vrot.slane %v1687, 2
      %v1809 = vrot.slane %v1688, 2
      %v1810 = vsel %vm1747, %v1808, %v1809
      %v1811 = vrot.slane %v1689, 2
      %v1812 = vsel %vm1747, %v1809, %v1811
      %v1813 = vrot.slane %v1690, 2
      %v1814 = vrot.slane %v1691, 2
      %v1815 = vsel %vm1747, %v1813, %v1814
      %v1816 = vrot.slane %v1692, 2
      %v1817 = vsel %vm1747, %v1814, %v1816
      %v1818 = vrot.slane %v1693, 2
      %v1819 = vrot.slane %v1694, 2
      %v1820 = vsel %vm1747, %v1818, %v1819
      %v1821 = vrot.slane %v1695, 2
      %v1822 = vsel %vm1747, %v1819, %v1821
      %v1823 = vrot.slane %v1696, 2
      %v1824 = vrot.slane %v1697, 2
      %v1825 = vsel %vm1747, %v1823, %v1824
      %v1826 = vrot.slane %v1698, 2
      %v1827 = vsel %vm1747, %v1824, %v1826
      %v1860 = vadd.f32 %v1615, %v1750
      %v1861 = vadd.f32 %v1616, %v1752
      %v1862 = vadd.f32 %v1617, %v1755
      %v1863 = vadd.f32 %v1618, %v1757
      %v1864 = vadd.f32 %v1619, %v1760
      %v1865 = vadd.f32 %v1620, %v1762
      %v1866 = vadd.f32 %v1621, %v1765
      %v1867 = vadd.f32 %v1622, %v1767
      %v1868 = vadd.f32 %v1623, %v1770
      %v1869 = vadd.f32 %v1624, %v1772
      %v1870 = vadd.f32 %v1625, %v1775
      %v1871 = vadd.f32 %v1626, %v1777
      %v1872 = vadd.f32 %v1627, %v1780
      %v1873 = vadd.f32 %v1628, %v1782
      %v1874 = vadd.f32 %v1629, %v1785
      %v1875 = vadd.f32 %v1630, %v1787
      %v1876 = vadd.f32 %v1631, %v1790
      %v1877 = vadd.f32 %v1632, %v1792
      %v1878 = vadd.f32 %v1633, %v1795
      %v1879 = vadd.f32 %v1634, %v1797
      %v1880 = vadd.f32 %v1635, %v1800
      %v1881 = vadd.f32 %v1636, %v1802
      %v1882 = vadd.f32 %v1637, %v1805
      %v1883 = vadd.f32 %v1638, %v1807
      %v1884 = vadd.f32 %v1639, %v1810
      %v1885 = vadd.f32 %v1640, %v1812
      %v1886 = vadd.f32 %v1641, %v1815
      %v1887 = vadd.f32 %v1642, %v1817
      %v1888 = vadd.f32 %v1643, %v1820
      %v1889 = vadd.f32 %v1644, %v1822
      %v1890 = vadd.f32 %v1645, %v1825
      %v1891 = vadd.f32 %v1646, %v1827
      %v1892 = vlaneseq
      %v1893 = vshrl.u32 %v1892, 7
      %v1894 = vsub.s32 0, %v1893
      %v1895 = vrot.slane %v1332, %v1894
      %v1896 = vmul.f32 %v1280, %v1895
      %v1897 = vmul.f32 %v1281, %v1895
      %v1898 = vmul.f32 %v1283, %v1895
      %v1899 = vmul.f32 %v1284, %v1895
      %v1900 = vmul.f32 %v1286, %v1895
      %v1901 = vmul.f32 %v1287, %v1895
      %v1902 = vmul.f32 %v1289, %v1895
      %v1903 = vmul.f32 %v1290, %v1895
      %v1904 = vmul.f32 %v1292, %v1895
      %v1905 = vmul.f32 %v1293, %v1895
      %v1906 = vmul.f32 %v1295, %v1895
      %v1907 = vmul.f32 %v1296, %v1895
      %v1908 = vmul.f32 %v1298, %v1895
      %v1909 = vmul.f32 %v1299, %v1895
      %v1910 = vmul.f32 %v1301, %v1895
      %v1911 = vmul.f32 %v1302, %v1895
      %v1912 = vmul.f32 %v1304, %v1895
      %v1913 = vmul.f32 %v1305, %v1895
      %v1914 = vmul.f32 %v1307, %v1895
      %v1915 = vmul.f32 %v1308, %v1895
      %v1916 = vmul.f32 %v1310, %v1895
      %v1917 = vmul.f32 %v1311, %v1895
      %v1918 = vmul.f32 %v1313, %v1895
      %v1919 = vmul.f32 %v1314, %v1895
      %v1920 = vmul.f32 %v1316, %v1895
      %v1921 = vmul.f32 %v1317, %v1895
      %v1922 = vmul.f32 %v1319, %v1895
      %v1923 = vmul.f32 %v1320, %v1895
      %v1924 = vmul.f32 %v1322, %v1895
      %v1925 = vmul.f32 %v1323, %v1895
      %v1926 = vmul.f32 %v1325, %v1895
      %v1927 = vmul.f32 %v1326, %v1895
      %v1928 = vadd.f32 %v1860, %v1896
      %v1929 = vadd.f32 %v1861, %v1897
      %v1930 = vadd.f32 %v1862, %v1898
      %v1931 = vadd.f32 %v1863, %v1899
      %v1932 = vadd.f32 %v1864, %v1900
      %v1933 = vadd.f32 %v1865, %v1901
      %v1934 = vadd.f32 %v1866, %v1902
      %v1935 = vadd.f32 %v1867, %v1903
      %v1936 = vadd.f32 %v1868, %v1904
      %v1937 = vadd.f32 %v1869, %v1905
      %v1938 = vadd.f32 %v1870, %v1906
      %v1939 = vadd.f32 %v1871, %v1907
      %v1940 = vadd.f32 %v1872, %v1908
      %v1941 = vadd.f32 %v1873, %v1909
      %v1942 = vadd.f32 %v1874, %v1910
      %v1943 = vadd.f32 %v1875, %v1911
      %v1944 = vadd.f32 %v1876, %v1912
      %v1945 = vadd.f32 %v1877, %v1913
      %v1946 = vadd.f32 %v1878, %v1914
      %v1947 = vadd.f32 %v1879, %v1915
      %v1948 = vadd.f32 %v1880, %v1916
      %v1949 = vadd.f32 %v1881, %v1917
      %v1950 = vadd.f32 %v1882, %v1918
      %v1951 = vadd.f32 %v1883, %v1919
      %v1952 = vadd.f32 %v1884, %v1920
      %v1953 = vadd.f32 %v1885, %v1921
      %v1954 = vadd.f32 %v1886, %v1922
      %v1955 = vadd.f32 %v1887, %v1923
      %v1956 = vadd.f32 %v1888, %v1924
      %v1957 = vadd.f32 %v1889, %v1925
      %v1958 = vadd.f32 %v1890, %v1926
      %v1959 = vadd.f32 %v1891, %v1927
      %v1960 = vlaneseq
      %v1961 = vshrl.u32 %v1960, 7
      %v1962 = vsub.s32 1, %v1961
      %v1963 = vrot.slane %v1332, %v1962
      %v1964 = vmul.f32 %v1280, %v1963
      %v1965 = vmul.f32 %v1281, %v1963
      %v1966 = vmul.f32 %v1282, %v1963
      %v1967 = vmul.f32 %v1283, %v1963
      %v1968 = vmul.f32 %v1284, %v1963
      %v1969 = vmul.f32 %v1285, %v1963
      %v1970 = vmul.f32 %v1286, %v1963
      %v1971 = vmul.f32 %v1287, %v1963
      %v1972 = vmul.f32 %v1288, %v1963
      %v1973 = vmul.f32 %v1289, %v1963
      %v1974 = vmul.f32 %v1290, %v1963
      %v1975 = vmul.f32 %v1291, %v1963
      %v1976 = vmul.f32 %v1292, %v1963
      %v1977 = vmul.f32 %v1293, %v1963
      %v1978 = vmul.f32 %v1294, %v1963
      %v1979 = vmul.f32 %v1295, %v1963
      %v1980 = vmul.f32 %v1296, %v1963
      %v1981 = vmul.f32 %v1297, %v1963
      %v1982 = vmul.f32 %v1298, %v1963
      %v1983 = vmul.f32 %v1299, %v1963
      %v1984 = vmul.f32 %v1300, %v1963
      %v1985 = vmul.f32 %v1301, %v1963
      %v1986 = vmul.f32 %v1302, %v1963
      %v1987 = vmul.f32 %v1303, %v1963
      %v1988 = vmul.f32 %v1304, %v1963
      %v1989 = vmul.f32 %v1305, %v1963
      %v1990 = vmul.f32 %v1306, %v1963
      %v1991 = vmul.f32 %v1307, %v1963
      %v1992 = vmul.f32 %v1308, %v1963
      %v1993 = vmul.f32 %v1309, %v1963
      %v1994 = vmul.f32 %v1310, %v1963
      %v1995 = vmul.f32 %v1311, %v1963
      %v1996 = vmul.f32 %v1312, %v1963
      %v1997 = vmul.f32 %v1313, %v1963
      %v1998 = vmul.f32 %v1314, %v1963
      %v1999 = vmul.f32 %v1315, %v1963
      %v2000 = vmul.f32 %v1316, %v1963
      %v2001 = vmul.f32 %v1317, %v1963
      %v2002 = vmul.f32 %v1318, %v1963
      %v2003 = vmul.f32 %v1319, %v1963
      %v2004 = vmul.f32 %v1320, %v1963
      %v2005 = vmul.f32 %v1321, %v1963
      %v2006 = vmul.f32 %v1322, %v1963
      %v2007 = vmul.f32 %v1323, %v1963
      %v2008 = vmul.f32 %v1324, %v1963
      %v2009 = vmul.f32 %v1325, %v1963
      %v2010 = vmul.f32 %v1326, %v1963
      %v2011 = vmul.f32 %v1327, %v1963
      %v2060 = vrot.slane %v1964, 1
      %v2061 = vrot.slane %v1965, 1
      %v2062 = vsel %vm1502, %v2060, %v2061
      %v2063 = vrot.slane %v1966, 1
      %v2064 = vsel %vm1502, %v2061, %v2063
      %v2065 = vrot.slane %v1967, 1
      %v2066 = vrot.slane %v1968, 1
      %v2067 = vsel %vm1502, %v2065, %v2066
      %v2068 = vrot.slane %v1969, 1
      %v2069 = vsel %vm1502, %v2066, %v2068
      %v2070 = vrot.slane %v1970, 1
      %v2071 = vrot.slane %v1971, 1
      %v2072 = vsel %vm1502, %v2070, %v2071
      %v2073 = vrot.slane %v1972, 1
      %v2074 = vsel %vm1502, %v2071, %v2073
      %v2075 = vrot.slane %v1973, 1
      %v2076 = vrot.slane %v1974, 1
      %v2077 = vsel %vm1502, %v2075, %v2076
      %v2078 = vrot.slane %v1975, 1
      %v2079 = vsel %vm1502, %v2076, %v2078
      %v2080 = vrot.slane %v1976, 1
      %v2081 = vrot.slane %v1977, 1
      %v2082 = vsel %vm1502, %v2080, %v2081
      %v2083 = vrot.slane %v1978, 1
      %v2084 = vsel %vm1502, %v2081, %v2083
      %v2085 = vrot.slane %v1979, 1
      %v2086 = vrot.slane %v1980, 1
      %v2087 = vsel %vm1502, %v2085, %v2086
      %v2088 = vrot.slane %v1981, 1
      %v2089 = vsel %vm1502, %v2086, %v2088
      %v2090 = vrot.slane %v1982, 1
      %v2091 = vrot.slane %v1983, 1
      %v2092 = vsel %vm1502, %v2090, %v2091
      %v2093 = vrot.slane %v1984, 1
      %v2094 = vsel %vm1502, %v2091, %v2093
      %v2095 = vrot.slane %v1985, 1
      %v2096 = vrot.slane %v1986, 1
      %v2097 = vsel %vm1502, %v2095, %v2096
      %v2098 = vrot.slane %v1987, 1
      %v2099 = vsel %vm1502, %v2096, %v2098
      %v2100 = vrot.slane %v1988, 1
      %v2101 = vrot.slane %v1989, 1
      %v2102 = vsel %vm1502, %v2100, %v2101
      %v2103 = vrot.slane %v1990, 1
      %v2104 = vsel %vm1502, %v2101, %v2103
      %v2105 = vrot.slane %v1991, 1
      %v2106 = vrot.slane %v1992, 1
      %v2107 = vsel %vm1502, %v2105, %v2106
      %v2108 = vrot.slane %v1993, 1
      %v2109 = vsel %vm1502, %v2106, %v2108
      %v2110 = vrot.slane %v1994, 1
      %v2111 = vrot.slane %v1995, 1
      %v2112 = vsel %vm1502, %v2110, %v2111
      %v2113 = vrot.slane %v1996, 1
      %v2114 = vsel %vm1502, %v2111, %v2113
      %v2115 = vrot.slane %v1997, 1
      %v2116 = vrot.slane %v1998, 1
      %v2117 = vsel %vm1502, %v2115, %v2116
      %v2118 = vrot.slane %v1999, 1
      %v2119 = vsel %vm1502, %v2116, %v2118
      %v2120 = vrot.slane %v2000, 1
      %v2121 = vrot.slane %v2001, 1
      %v2122 = vsel %vm1502, %v2120, %v2121
      %v2123 = vrot.slane %v2002, 1
      %v2124 = vsel %vm1502, %v2121, %v2123
      %v2125 = vrot.slane %v2003, 1
      %v2126 = vrot.slane %v2004, 1
      %v2127 = vsel %vm1502, %v2125, %v2126
      %v2128 = vrot.slane %v2005, 1
      %v2129 = vsel %vm1502, %v2126, %v2128
      %v2130 = vrot.slane %v2006, 1
      %v2131 = vrot.slane %v2007, 1
      %v2132 = vsel %vm1502, %v2130, %v2131
      %v2133 = vrot.slane %v2008, 1
      %v2134 = vsel %vm1502, %v2131, %v2133
      %v2135 = vrot.slane %v2009, 1
      %v2136 = vrot.slane %v2010, 1
      %v2137 = vsel %vm1502, %v2135, %v2136
      %v2138 = vrot.slane %v2011, 1
      %v2139 = vsel %vm1502, %v2136, %v2138
      %v2172 = vadd.f32 %v1928, %v2062
      %v2173 = vadd.f32 %v1929, %v2064
      %v2174 = vadd.f32 %v1930, %v2067
      %v2175 = vadd.f32 %v1931, %v2069
      %v2176 = vadd.f32 %v1932, %v2072
      %v2177 = vadd.f32 %v1933, %v2074
      %v2178 = vadd.f32 %v1934, %v2077
      %v2179 = vadd.f32 %v1935, %v2079
      %v2180 = vadd.f32 %v1936, %v2082
      %v2181 = vadd.f32 %v1937, %v2084
      %v2182 = vadd.f32 %v1938, %v2087
      %v2183 = vadd.f32 %v1939, %v2089
      %v2184 = vadd.f32 %v1940, %v2092
      %v2185 = vadd.f32 %v1941, %v2094
      %v2186 = vadd.f32 %v1942, %v2097
      %v2187 = vadd.f32 %v1943, %v2099
      %v2188 = vadd.f32 %v1944, %v2102
      %v2189 = vadd.f32 %v1945, %v2104
      %v2190 = vadd.f32 %v1946, %v2107
      %v2191 = vadd.f32 %v1947, %v2109
      %v2192 = vadd.f32 %v1948, %v2112
      %v2193 = vadd.f32 %v1949, %v2114
      %v2194 = vadd.f32 %v1950, %v2117
      %v2195 = vadd.f32 %v1951, %v2119
      %v2196 = vadd.f32 %v1952, %v2122
      %v2197 = vadd.f32 %v1953, %v2124
      %v2198 = vadd.f32 %v1954, %v2127
      %v2199 = vadd.f32 %v1955, %v2129
      %v2200 = vadd.f32 %v1956, %v2132
      %v2201 = vadd.f32 %v1957, %v2134
      %v2202 = vadd.f32 %v1958, %v2137
      %v2203 = vadd.f32 %v1959, %v2139
      %v2204 = vlaneseq
      %v2205 = vshrl.u32 %v2204, 7
      %v2206 = vsub.s32 2, %v2205
      %v2207 = vrot.slane %v1332, %v2206
      %v2208 = vmul.f32 %v1280, %v2207
      %v2209 = vmul.f32 %v1281, %v2207
      %v2210 = vmul.f32 %v1282, %v2207
      %v2211 = vmul.f32 %v1283, %v2207
      %v2212 = vmul.f32 %v1284, %v2207
      %v2213 = vmul.f32 %v1285, %v2207
      %v2214 = vmul.f32 %v1286, %v2207
      %v2215 = vmul.f32 %v1287, %v2207
      %v2216 = vmul.f32 %v1288, %v2207
      %v2217 = vmul.f32 %v1289, %v2207
      %v2218 = vmul.f32 %v1290, %v2207
      %v2219 = vmul.f32 %v1291, %v2207
      %v2220 = vmul.f32 %v1292, %v2207
      %v2221 = vmul.f32 %v1293, %v2207
      %v2222 = vmul.f32 %v1294, %v2207
      %v2223 = vmul.f32 %v1295, %v2207
      %v2224 = vmul.f32 %v1296, %v2207
      %v2225 = vmul.f32 %v1297, %v2207
      %v2226 = vmul.f32 %v1298, %v2207
      %v2227 = vmul.f32 %v1299, %v2207
      %v2228 = vmul.f32 %v1300, %v2207
      %v2229 = vmul.f32 %v1301, %v2207
      %v2230 = vmul.f32 %v1302, %v2207
      %v2231 = vmul.f32 %v1303, %v2207
      %v2232 = vmul.f32 %v1304, %v2207
      %v2233 = vmul.f32 %v1305, %v2207
      %v2234 = vmul.f32 %v1306, %v2207
      %v2235 = vmul.f32 %v1307, %v2207
      %v2236 = vmul.f32 %v1308, %v2207
      %v2237 = vmul.f32 %v1309, %v2207
      %v2238 = vmul.f32 %v1310, %v2207
      %v2239 = vmul.f32 %v1311, %v2207
      %v2240 = vmul.f32 %v1312, %v2207
      %v2241 = vmul.f32 %v1313, %v2207
      %v2242 = vmul.f32 %v1314, %v2207
      %v2243 = vmul.f32 %v1315, %v2207
      %v2244 = vmul.f32 %v1316, %v2207
      %v2245 = vmul.f32 %v1317, %v2207
      %v2246 = vmul.f32 %v1318, %v2207
      %v2247 = vmul.f32 %v1319, %v2207
      %v2248 = vmul.f32 %v1320, %v2207
      %v2249 = vmul.f32 %v1321, %v2207
      %v2250 = vmul.f32 %v1322, %v2207
      %v2251 = vmul.f32 %v1323, %v2207
      %v2252 = vmul.f32 %v1324, %v2207
      %v2253 = vmul.f32 %v1325, %v2207
      %v2254 = vmul.f32 %v1326, %v2207
      %v2255 = vmul.f32 %v1327, %v2207
      %v2304 = vrot.slane %v2208, 2
      %v2305 = vrot.slane %v2209, 2
      %v2306 = vsel %vm1747, %v2304, %v2305
      %v2307 = vrot.slane %v2210, 2
      %v2308 = vsel %vm1747, %v2305, %v2307
      %v2309 = vrot.slane %v2211, 2
      %v2310 = vrot.slane %v2212, 2
      %v2311 = vsel %vm1747, %v2309, %v2310
      %v2312 = vrot.slane %v2213, 2
      %v2313 = vsel %vm1747, %v2310, %v2312
      %v2314 = vrot.slane %v2214, 2
      %v2315 = vrot.slane %v2215, 2
      %v2316 = vsel %vm1747, %v2314, %v2315
      %v2317 = vrot.slane %v2216, 2
      %v2318 = vsel %vm1747, %v2315, %v2317
      %v2319 = vrot.slane %v2217, 2
      %v2320 = vrot.slane %v2218, 2
      %v2321 = vsel %vm1747, %v2319, %v2320
      %v2322 = vrot.slane %v2219, 2
      %v2323 = vsel %vm1747, %v2320, %v2322
      %v2324 = vrot.slane %v2220, 2
      %v2325 = vrot.slane %v2221, 2
      %v2326 = vsel %vm1747, %v2324, %v2325
      %v2327 = vrot.slane %v2222, 2
      %v2328 = vsel %vm1747, %v2325, %v2327
      %v2329 = vrot.slane %v2223, 2
      %v2330 = vrot.slane %v2224, 2
      %v2331 = vsel %vm1747, %v2329, %v2330
      %v2332 = vrot.slane %v2225, 2
      %v2333 = vsel %vm1747, %v2330, %v2332
      %v2334 = vrot.slane %v2226, 2
      %v2335 = vrot.slane %v2227, 2
      %v2336 = vsel %vm1747, %v2334, %v2335
      %v2337 = vrot.slane %v2228, 2
      %v2338 = vsel %vm1747, %v2335, %v2337
      %v2339 = vrot.slane %v2229, 2
      %v2340 = vrot.slane %v2230, 2
      %v2341 = vsel %vm1747, %v2339, %v2340
      %v2342 = vrot.slane %v2231, 2
      %v2343 = vsel %vm1747, %v2340, %v2342
      %v2344 = vrot.slane %v2232, 2
      %v2345 = vrot.slane %v2233, 2
      %v2346 = vsel %vm1747, %v2344, %v2345
      %v2347 = vrot.slane %v2234, 2
      %v2348 = vsel %vm1747, %v2345, %v2347
      %v2349 = vrot.slane %v2235, 2
      %v2350 = vrot.slane %v2236, 2
      %v2351 = vsel %vm1747, %v2349, %v2350
      %v2352 = vrot.slane %v2237, 2
      %v2353 = vsel %vm1747, %v2350, %v2352
      %v2354 = vrot.slane %v2238, 2
      %v2355 = vrot.slane %v2239, 2
      %v2356 = vsel %vm1747, %v2354, %v2355
      %v2357 = vrot.slane %v2240, 2
      %v2358 = vsel %vm1747, %v2355, %v2357
      %v2359 = vrot.slane %v2241, 2
      %v2360 = vrot.slane %v2242, 2
      %v2361 = vsel %vm1747, %v2359, %v2360
      %v2362 = vrot.slane %v2243, 2
      %v2363 = vsel %vm1747, %v2360, %v2362
      %v2364 = vrot.slane %v2244, 2
      %v2365 = vrot.slane %v2245, 2
      %v2366 = vsel %vm1747, %v2364, %v2365
      %v2367 = vrot.slane %v2246, 2
      %v2368 = vsel %vm1747, %v2365, %v2367
      %v2369 = vrot.slane %v2247, 2
      %v2370 = vrot.slane %v2248, 2
      %v2371 = vsel %vm1747, %v2369, %v2370
      %v2372 = vrot.slane %v2249, 2
      %v2373 = vsel %vm1747, %v2370, %v2372
      %v2374 = vrot.slane %v2250, 2
      %v2375 = vrot.slane %v2251, 2
      %v2376 = vsel %vm1747, %v2374, %v2375
      %v2377 = vrot.slane %v2252, 2
      %v2378 = vsel %vm1747, %v2375, %v2377
      %v2379 = vrot.slane %v2253, 2
      %v2380 = vrot.slane %v2254, 2
      %v2381 = vsel %vm1747, %v2379, %v2380
      %v2382 = vrot.slane %v2255, 2
      %v2383 = vsel %vm1747, %v2380, %v2382
      %v2416 = vadd.f32 %v2172, %v2306
      %v2417 = vadd.f32 %v2173, %v2308
      %v2418 = vadd.f32 %v2174, %v2311
      %v2419 = vadd.f32 %v2175, %v2313
      %v2420 = vadd.f32 %v2176, %v2316
      %v2421 = vadd.f32 %v2177, %v2318
      %v2422 = vadd.f32 %v2178, %v2321
      %v2423 = vadd.f32 %v2179, %v2323
      %v2424 = vadd.f32 %v2180, %v2326
      %v2425 = vadd.f32 %v2181, %v2328
      %v2426 = vadd.f32 %v2182, %v2331
      %v2427 = vadd.f32 %v2183, %v2333
      %v2428 = vadd.f32 %v2184, %v2336
      %v2429 = vadd.f32 %v2185, %v2338
      %v2430 = vadd.f32 %v2186, %v2341
      %v2431 = vadd.f32 %v2187, %v2343
      %v2432 = vadd.f32 %v2188, %v2346
      %v2433 = vadd.f32 %v2189, %v2348
      %v2434 = vadd.f32 %v2190, %v2351
      %v2435 = vadd.f32 %v2191, %v2353
      %v2436 = vadd.f32 %v2192, %v2356
      %v2437 = vadd.f32 %v2193, %v2358
      %v2438 = vadd.f32 %v2194, %v2361
      %v2439 = vadd.f32 %v2195, %v2363
      %v2440 = vadd.f32 %v2196, %v2366
      %v2441 = vadd.f32 %v2197, %v2368
      %v2442 = vadd.f32 %v2198, %v2371
      %v2443 = vadd.f32 %v2199, %v2373
      %v2444 = vadd.f32 %v2200, %v2376
      %v2445 = vadd.f32 %v2201, %v2378
      %v2446 = vadd.f32 %v2202, %v2381
      %v2447 = vadd.f32 %v2203, %v2383
      %v2448 = vlaneseq
      %v2449 = vshrl.u32 %v2448, 7
      %v2450 = vsub.s32 0, %v2449
      %v2451 = vrot.slane %v1333, %v2450
      %v2452 = vmul.f32 %v1283, %v2451
      %v2453 = vmul.f32 %v1284, %v2451
      %v2454 = vmul.f32 %v1286, %v2451
      %v2455 = vmul.f32 %v1287, %v2451
      %v2456 = vmul.f32 %v1289, %v2451
      %v2457 = vmul.f32 %v1290, %v2451
      %v2458 = vmul.f32 %v1292, %v2451
      %v2459 = vmul.f32 %v1293, %v2451
      %v2460 = vmul.f32 %v1295, %v2451
      %v2461 = vmul.f32 %v1296, %v2451
      %v2462 = vmul.f32 %v1298, %v2451
      %v2463 = vmul.f32 %v1299, %v2451
      %v2464 = vmul.f32 %v1301, %v2451
      %v2465 = vmul.f32 %v1302, %v2451
      %v2466 = vmul.f32 %v1304, %v2451
      %v2467 = vmul.f32 %v1305, %v2451
      %v2468 = vmul.f32 %v1307, %v2451
      %v2469 = vmul.f32 %v1308, %v2451
      %v2470 = vmul.f32 %v1310, %v2451
      %v2471 = vmul.f32 %v1311, %v2451
      %v2472 = vmul.f32 %v1313, %v2451
      %v2473 = vmul.f32 %v1314, %v2451
      %v2474 = vmul.f32 %v1316, %v2451
      %v2475 = vmul.f32 %v1317, %v2451
      %v2476 = vmul.f32 %v1319, %v2451
      %v2477 = vmul.f32 %v1320, %v2451
      %v2478 = vmul.f32 %v1322, %v2451
      %v2479 = vmul.f32 %v1323, %v2451
      %v2480 = vmul.f32 %v1325, %v2451
      %v2481 = vmul.f32 %v1326, %v2451
      %v2482 = vmul.f32 %v1328, %v2451
      %v2483 = vmul.f32 %v1329, %v2451
      %v2484 = vadd.f32 %v2416, %v2452
      %v2485 = vadd.f32 %v2417, %v2453
      %v2486 = vadd.f32 %v2418, %v2454
      %v2487 = vadd.f32 %v2419, %v2455
      %v2488 = vadd.f32 %v2420, %v2456
      %v2489 = vadd.f32 %v2421, %v2457
      %v2490 = vadd.f32 %v2422, %v2458
      %v2491 = vadd.f32 %v2423, %v2459
      %v2492 = vadd.f32 %v2424, %v2460
      %v2493 = vadd.f32 %v2425, %v2461
      %v2494 = vadd.f32 %v2426, %v2462
      %v2495 = vadd.f32 %v2427, %v2463
      %v2496 = vadd.f32 %v2428, %v2464
      %v2497 = vadd.f32 %v2429, %v2465
      %v2498 = vadd.f32 %v2430, %v2466
      %v2499 = vadd.f32 %v2431, %v2467
      %v2500 = vadd.f32 %v2432, %v2468
      %v2501 = vadd.f32 %v2433, %v2469
      %v2502 = vadd.f32 %v2434, %v2470
      %v2503 = vadd.f32 %v2435, %v2471
      %v2504 = vadd.f32 %v2436, %v2472
      %v2505 = vadd.f32 %v2437, %v2473
      %v2506 = vadd.f32 %v2438, %v2474
      %v2507 = vadd.f32 %v2439, %v2475
      %v2508 = vadd.f32 %v2440, %v2476
      %v2509 = vadd.f32 %v2441, %v2477
      %v2510 = vadd.f32 %v2442, %v2478
      %v2511 = vadd.f32 %v2443, %v2479
      %v2512 = vadd.f32 %v2444, %v2480
      %v2513 = vadd.f32 %v2445, %v2481
      %v2514 = vadd.f32 %v2446, %v2482
      %v2515 = vadd.f32 %v2447, %v2483
      %v2516 = vlaneseq
      %v2517 = vshrl.u32 %v2516, 7
      %v2518 = vsub.s32 1, %v2517
      %v2519 = vrot.slane %v1333, %v2518
      %v2520 = vmul.f32 %v1283, %v2519
      %v2521 = vmul.f32 %v1284, %v2519
      %v2522 = vmul.f32 %v1285, %v2519
      %v2523 = vmul.f32 %v1286, %v2519
      %v2524 = vmul.f32 %v1287, %v2519
      %v2525 = vmul.f32 %v1288, %v2519
      %v2526 = vmul.f32 %v1289, %v2519
      %v2527 = vmul.f32 %v1290, %v2519
      %v2528 = vmul.f32 %v1291, %v2519
      %v2529 = vmul.f32 %v1292, %v2519
      %v2530 = vmul.f32 %v1293, %v2519
      %v2531 = vmul.f32 %v1294, %v2519
      %v2532 = vmul.f32 %v1295, %v2519
      %v2533 = vmul.f32 %v1296, %v2519
      %v2534 = vmul.f32 %v1297, %v2519
      %v2535 = vmul.f32 %v1298, %v2519
      %v2536 = vmul.f32 %v1299, %v2519
      %v2537 = vmul.f32 %v1300, %v2519
      %v2538 = vmul.f32 %v1301, %v2519
      %v2539 = vmul.f32 %v1302, %v2519
      %v2540 = vmul.f32 %v1303, %v2519
      %v2541 = vmul.f32 %v1304, %v2519
      %v2542 = vmul.f32 %v1305, %v2519
      %v2543 = vmul.f32 %v1306, %v2519
      %v2544 = vmul.f32 %v1307, %v2519
      %v2545 = vmul.f32 %v1308, %v2519
      %v2546 = vmul.f32 %v1309, %v2519
      %v2547 = vmul.f32 %v1310, %v2519
      %v2548 = vmul.f32 %v1311, %v2519
      %v2549 = vmul.f32 %v1312, %v2519
      %v2550 = vmul.f32 %v1313, %v2519
      %v2551 = vmul.f32 %v1314, %v2519
      %v2552 = vmul.f32 %v1315, %v2519
      %v2553 = vmul.f32 %v1316, %v2519
      %v2554 = vmul.f32 %v1317, %v2519
      %v2555 = vmul.f32 %v1318, %v2519
      %v2556 = vmul.f32 %v1319, %v2519
      %v2557 = vmul.f32 %v1320, %v2519
      %v2558 = vmul.f32 %v1321, %v2519
      %v2559 = vmul.f32 %v1322, %v2519
      %v2560 = vmul.f32 %v1323, %v2519
      %v2561 = vmul.f32 %v1324, %v2519
      %v2562 = vmul.f32 %v1325, %v2519
      %v2563 = vmul.f32 %v1326, %v2519
      %v2564 = vmul.f32 %v1327, %v2519
      %v2565 = vmul.f32 %v1328, %v2519
      %v2566 = vmul.f32 %v1329, %v2519
      %v2567 = vmul.f32 %v1330, %v2519
      %v2616 = vrot.slane %v2520, 1
      %v2617 = vrot.slane %v2521, 1
      %v2618 = vsel %vm1502, %v2616, %v2617
      %v2619 = vrot.slane %v2522, 1
      %v2620 = vsel %vm1502, %v2617, %v2619
      %v2621 = vrot.slane %v2523, 1
      %v2622 = vrot.slane %v2524, 1
      %v2623 = vsel %vm1502, %v2621, %v2622
      %v2624 = vrot.slane %v2525, 1
      %v2625 = vsel %vm1502, %v2622, %v2624
      %v2626 = vrot.slane %v2526, 1
      %v2627 = vrot.slane %v2527, 1
      %v2628 = vsel %vm1502, %v2626, %v2627
      %v2629 = vrot.slane %v2528, 1
      %v2630 = vsel %vm1502, %v2627, %v2629
      %v2631 = vrot.slane %v2529, 1
      %v2632 = vrot.slane %v2530, 1
      %v2633 = vsel %vm1502, %v2631, %v2632
      %v2634 = vrot.slane %v2531, 1
      %v2635 = vsel %vm1502, %v2632, %v2634
      %v2636 = vrot.slane %v2532, 1
      %v2637 = vrot.slane %v2533, 1
      %v2638 = vsel %vm1502, %v2636, %v2637
      %v2639 = vrot.slane %v2534, 1
      %v2640 = vsel %vm1502, %v2637, %v2639
      %v2641 = vrot.slane %v2535, 1
      %v2642 = vrot.slane %v2536, 1
      %v2643 = vsel %vm1502, %v2641, %v2642
      %v2644 = vrot.slane %v2537, 1
      %v2645 = vsel %vm1502, %v2642, %v2644
      %v2646 = vrot.slane %v2538, 1
      %v2647 = vrot.slane %v2539, 1
      %v2648 = vsel %vm1502, %v2646, %v2647
      %v2649 = vrot.slane %v2540, 1
      %v2650 = vsel %vm1502, %v2647, %v2649
      %v2651 = vrot.slane %v2541, 1
      %v2652 = vrot.slane %v2542, 1
      %v2653 = vsel %vm1502, %v2651, %v2652
      %v2654 = vrot.slane %v2543, 1
      %v2655 = vsel %vm1502, %v2652, %v2654
      %v2656 = vrot.slane %v2544, 1
      %v2657 = vrot.slane %v2545, 1
      %v2658 = vsel %vm1502, %v2656, %v2657
      %v2659 = vrot.slane %v2546, 1
      %v2660 = vsel %vm1502, %v2657, %v2659
      %v2661 = vrot.slane %v2547, 1
      %v2662 = vrot.slane %v2548, 1
      %v2663 = vsel %vm1502, %v2661, %v2662
      %v2664 = vrot.slane %v2549, 1
      %v2665 = vsel %vm1502, %v2662, %v2664
      %v2666 = vrot.slane %v2550, 1
      %v2667 = vrot.slane %v2551, 1
      %v2668 = vsel %vm1502, %v2666, %v2667
      %v2669 = vrot.slane %v2552, 1
      %v2670 = vsel %vm1502, %v2667, %v2669
      %v2671 = vrot.slane %v2553, 1
      %v2672 = vrot.slane %v2554, 1
      %v2673 = vsel %vm1502, %v2671, %v2672
      %v2674 = vrot.slane %v2555, 1
      %v2675 = vsel %vm1502, %v2672, %v2674
      %v2676 = vrot.slane %v2556, 1
      %v2677 = vrot.slane %v2557, 1
      %v2678 = vsel %vm1502, %v2676, %v2677
      %v2679 = vrot.slane %v2558, 1
      %v2680 = vsel %vm1502, %v2677, %v2679
      %v2681 = vrot.slane %v2559, 1
      %v2682 = vrot.slane %v2560, 1
      %v2683 = vsel %vm1502, %v2681, %v2682
      %v2684 = vrot.slane %v2561, 1
      %v2685 = vsel %vm1502, %v2682, %v2684
      %v2686 = vrot.slane %v2562, 1
      %v2687 = vrot.slane %v2563, 1
      %v2688 = vsel %vm1502, %v2686, %v2687
      %v2689 = vrot.slane %v2564, 1
      %v2690 = vsel %vm1502, %v2687, %v2689
      %v2691 = vrot.slane %v2565, 1
      %v2692 = vrot.slane %v2566, 1
      %v2693 = vsel %vm1502, %v2691, %v2692
      %v2694 = vrot.slane %v2567, 1
      %v2695 = vsel %vm1502, %v2692, %v2694
      %v2728 = vadd.f32 %v2484, %v2618
      %v2729 = vadd.f32 %v2485, %v2620
      %v2730 = vadd.f32 %v2486, %v2623
      %v2731 = vadd.f32 %v2487, %v2625
      %v2732 = vadd.f32 %v2488, %v2628
      %v2733 = vadd.f32 %v2489, %v2630
      %v2734 = vadd.f32 %v2490, %v2633
      %v2735 = vadd.f32 %v2491, %v2635
      %v2736 = vadd.f32 %v2492, %v2638
      %v2737 = vadd.f32 %v2493, %v2640
      %v2738 = vadd.f32 %v2494, %v2643
      %v2739 = vadd.f32 %v2495, %v2645
      %v2740 = vadd.f32 %v2496, %v2648
      %v2741 = vadd.f32 %v2497, %v2650
      %v2742 = vadd.f32 %v2498, %v2653
      %v2743 = vadd.f32 %v2499, %v2655
      %v2744 = vadd.f32 %v2500, %v2658
      %v2745 = vadd.f32 %v2501, %v2660
      %v2746 = vadd.f32 %v2502, %v2663
      %v2747 = vadd.f32 %v2503, %v2665
      %v2748 = vadd.f32 %v2504, %v2668
      %v2749 = vadd.f32 %v2505, %v2670
      %v2750 = vadd.f32 %v2506, %v2673
      %v2751 = vadd.f32 %v2507, %v2675
      %v2752 = vadd.f32 %v2508, %v2678
      %v2753 = vadd.f32 %v2509, %v2680
      %v2754 = vadd.f32 %v2510, %v2683
      %v2755 = vadd.f32 %v2511, %v2685
      %v2756 = vadd.f32 %v2512, %v2688
      %v2757 = vadd.f32 %v2513, %v2690
      %v2758 = vadd.f32 %v2514, %v2693
      %v2759 = vadd.f32 %v2515, %v2695
      %v2760 = vlaneseq
      %v2761 = vshrl.u32 %v2760, 7
      %v2762 = vsub.s32 2, %v2761
      %v2763 = vrot.slane %v1333, %v2762
      %v2764 = vmul.f32 %v1283, %v2763
      %v2765 = vmul.f32 %v1284, %v2763
      %v2766 = vmul.f32 %v1285, %v2763
      %v2767 = vmul.f32 %v1286, %v2763
      %v2768 = vmul.f32 %v1287, %v2763
      %v2769 = vmul.f32 %v1288, %v2763
      %v2770 = vmul.f32 %v1289, %v2763
      %v2771 = vmul.f32 %v1290, %v2763
      %v2772 = vmul.f32 %v1291, %v2763
      %v2773 = vmul.f32 %v1292, %v2763
      %v2774 = vmul.f32 %v1293, %v2763
      %v2775 = vmul.f32 %v1294, %v2763
      %v2776 = vmul.f32 %v1295, %v2763
      %v2777 = vmul.f32 %v1296, %v2763
      %v2778 = vmul.f32 %v1297, %v2763
      %v2779 = vmul.f32 %v1298, %v2763
      %v2780 = vmul.f32 %v1299, %v2763
      %v2781 = vmul.f32 %v1300, %v2763
      %v2782 = vmul.f32 %v1301, %v2763
      %v2783 = vmul.f32 %v1302, %v2763
      %v2784 = vmul.f32 %v1303, %v2763
      %v2785 = vmul.f32 %v1304, %v2763
      %v2786 = vmul.f32 %v1305, %v2763
      %v2787 = vmul.f32 %v1306, %v2763
      %v2788 = vmul.f32 %v1307, %v2763
      %v2789 = vmul.f32 %v1308, %v2763
      %v2790 = vmul.f32 %v1309, %v2763
      %v2791 = vmul.f32 %v1310, %v2763
      %v2792 = vmul.f32 %v1311, %v2763
      %v2793 = vmul.f32 %v1312, %v2763
      %v2794 = vmul.f32 %v1313, %v2763
      %v2795 = vmul.f32 %v1314, %v2763
      %v2796 = vmul.f32 %v1315, %v2763
      %v2797 = vmul.f32 %v1316, %v2763
      %v2798 = vmul.f32 %v1317, %v2763
      %v2799 = vmul.f32 %v1318, %v2763
      %v2800 = vmul.f32 %v1319, %v2763
      %v2801 = vmul.f32 %v1320, %v2763
      %v2802 = vmul.f32 %v1321, %v2763
      %v2803 = vmul.f32 %v1322, %v2763
      %v2804 = vmul.f32 %v1323, %v2763
      %v2805 = vmul.f32 %v1324, %v2763
      %v2806 = vmul.f32 %v1325, %v2763
      %v2807 = vmul.f32 %v1326, %v2763
      %v2808 = vmul.f32 %v1327, %v2763
      %v2809 = vmul.f32 %v1328, %v2763
      %v2810 = vmul.f32 %v1329, %v2763
      %v2811 = vmul.f32 %v1330, %v2763
      %v2860 = vrot.slane %v2764, 2
      %v2861 = vrot.slane %v2765, 2
      %v2862 = vsel %vm1747, %v2860, %v2861
      %v2863 = vrot.slane %v2766, 2
      %v2864 = vsel %vm1747, %v2861, %v2863
      %v2865 = vrot.slane %v2767, 2
      %v2866 = vrot.slane %v2768, 2
      %v2867 = vsel %vm1747, %v2865, %v2866
      %v2868 = vrot.slane %v2769, 2
      %v2869 = vsel %vm1747, %v2866, %v2868
      %v2870 = vrot.slane %v2770, 2
      %v2871 = vrot.slane %v2771, 2
      %v2872 = vsel %vm1747, %v2870, %v2871
      %v2873 = vrot.slane %v2772, 2
      %v2874 = vsel %vm1747, %v2871, %v2873
      %v2875 = vrot.slane %v2773, 2
      %v2876 = vrot.slane %v2774, 2
      %v2877 = vsel %vm1747, %v2875, %v2876
      %v2878 = vrot.slane %v2775, 2
      %v2879 = vsel %vm1747, %v2876, %v2878
      %v2880 = vrot.slane %v2776, 2
      %v2881 = vrot.slane %v2777, 2
      %v2882 = vsel %vm1747, %v2880, %v2881
      %v2883 = vrot.slane %v2778, 2
      %v2884 = vsel %vm1747, %v2881, %v2883
      %v2885 = vrot.slane %v2779, 2
      %v2886 = vrot.slane %v2780, 2
      %v2887 = vsel %vm1747, %v2885, %v2886
      %v2888 = vrot.slane %v2781, 2
      %v2889 = vsel %vm1747, %v2886, %v2888
      %v2890 = vrot.slane %v2782, 2
      %v2891 = vrot.slane %v2783, 2
      %v2892 = vsel %vm1747, %v2890, %v2891
      %v2893 = vrot.slane %v2784, 2
      %v2894 = vsel %vm1747, %v2891, %v2893
      %v2895 = vrot.slane %v2785, 2
      %v2896 = vrot.slane %v2786, 2
      %v2897 = vsel %vm1747, %v2895, %v2896
      %v2898 = vrot.slane %v2787, 2
      %v2899 = vsel %vm1747, %v2896, %v2898
      %v2900 = vrot.slane %v2788, 2
      %v2901 = vrot.slane %v2789, 2
      %v2902 = vsel %vm1747, %v2900, %v2901
      %v2903 = vrot.slane %v2790, 2
      %v2904 = vsel %vm1747, %v2901, %v2903
      %v2905 = vrot.slane %v2791, 2
      %v2906 = vrot.slane %v2792, 2
      %v2907 = vsel %vm1747, %v2905, %v2906
      %v2908 = vrot.slane %v2793, 2
      %v2909 = vsel %vm1747, %v2906, %v2908
      %v2910 = vrot.slane %v2794, 2
      %v2911 = vrot.slane %v2795, 2
      %v2912 = vsel %vm1747, %v2910, %v2911
      %v2913 = vrot.slane %v2796, 2
      %v2914 = vsel %vm1747, %v2911, %v2913
      %v2915 = vrot.slane %v2797, 2
      %v2916 = vrot.slane %v2798, 2
      %v2917 = vsel %vm1747, %v2915, %v2916
      %v2918 = vrot.slane %v2799, 2
      %v2919 = vsel %vm1747, %v2916, %v2918
      %v2920 = vrot.slane %v2800, 2
      %v2921 = vrot.slane %v2801, 2
      %v2922 = vsel %vm1747, %v2920, %v2921
      %v2923 = vrot.slane %v2802, 2
      %v2924 = vsel %vm1747, %v2921, %v2923
      %v2925 = vrot.slane %v2803, 2
      %v2926 = vrot.slane %v2804, 2
      %v2927 = vsel %vm1747, %v2925, %v2926
      %v2928 = vrot.slane %v2805, 2
      %v2929 = vsel %vm1747, %v2926, %v2928
      %v2930 = vrot.slane %v2806, 2
      %v2931 = vrot.slane %v2807, 2
      %v2932 = vsel %vm1747, %v2930, %v2931
      %v2933 = vrot.slane %v2808, 2
      %v2934 = vsel %vm1747, %v2931, %v2933
      %v2935 = vrot.slane %v2809, 2
      %v2936 = vrot.slane %v2810, 2
      %v2937 = vsel %vm1747, %v2935, %v2936
      %v2938 = vrot.slane %v2811, 2
      %v2939 = vsel %vm1747, %v2936, %v2938
      %v2972 = vadd.f32 %v2728, %v2862
      %v2973 = vadd.f32 %v2729, %v2864
      %v2974 = vadd.f32 %v2730, %v2867
      %v2975 = vadd.f32 %v2731, %v2869
      %v2976 = vadd.f32 %v2732, %v2872
      %v2977 = vadd.f32 %v2733, %v2874
      %v2978 = vadd.f32 %v2734, %v2877
      %v2979 = vadd.f32 %v2735, %v2879
      %v2980 = vadd.f32 %v2736, %v2882
      %v2981 = vadd.f32 %v2737, %v2884
      %v2982 = vadd.f32 %v2738, %v2887
      %v2983 = vadd.f32 %v2739, %v2889
      %v2984 = vadd.f32 %v2740, %v2892
      %v2985 = vadd.f32 %v2741, %v2894
      %v2986 = vadd.f32 %v2742, %v2897
      %v2987 = vadd.f32 %v2743, %v2899
      %v2988 = vadd.f32 %v2744, %v2902
      %v2989 = vadd.f32 %v2745, %v2904
      %v2990 = vadd.f32 %v2746, %v2907
      %v2991 = vadd.f32 %v2747, %v2909
      %v2992 = vadd.f32 %v2748, %v2912
      %v2993 = vadd.f32 %v2749, %v2914
      %v2994 = vadd.f32 %v2750, %v2917
      %v2995 = vadd.f32 %v2751, %v2919
      %v2996 = vadd.f32 %v2752, %v2922
      %v2997 = vadd.f32 %v2753, %v2924
      %v2998 = vadd.f32 %v2754, %v2927
      %v2999 = vadd.f32 %v2755, %v2929
      %v3000 = vadd.f32 %v2756, %v2932
      %v3001 = vadd.f32 %v2757, %v2934
      %v3002 = vadd.f32 %v2758, %v2937
      %v3003 = vadd.f32 %v2759, %v2939
      %v3004 = vld [vmem:[%s4] sm:$0x1]
      %v3006 = vlaneseq
      %v3007 = vshrl.u32 %v3006, 7
      %v3008 = vsub.s32 0, %v3007
      %v3009 = vrot.slane %v3004, %v3008
      %v3011 = vadd.f32 %v2972, %v3009
      %v3012 = vadd.f32 %v2973, %v3009
      %v3013 = vadd.f32 %v2974, %v3009
      %v3014 = vadd.f32 %v2975, %v3009
      %v3015 = vadd.f32 %v2976, %v3009
      %v3016 = vadd.f32 %v2977, %v3009
      %v3017 = vadd.f32 %v2978, %v3009
      %v3018 = vadd.f32 %v2979, %v3009
      %v3019 = vadd.f32 %v2980, %v3009
      %v3020 = vadd.f32 %v2981, %v3009
      %v3021 = vadd.f32 %v2982, %v3009
      %v3022 = vadd.f32 %v2983, %v3009
      %v3023 = vadd.f32 %v2984, %v3009
      %v3024 = vadd.f32 %v2985, %v3009
      %v3025 = vadd.f32 %v2986, %v3009
      %v3026 = vadd.f32 %v2987, %v3009
      %v3027 = vadd.f32 %v2988, %v3009
      %v3028 = vadd.f32 %v2989, %v3009
      %v3029 = vadd.f32 %v2990, %v3009
      %v3030 = vadd.f32 %v2991, %v3009
      %v3031 = vadd.f32 %v2992, %v3009
      %v3032 = vadd.f32 %v2993, %v3009
      %v3033 = vadd.f32 %v2994, %v3009
      %v3034 = vadd.f32 %v2995, %v3009
      %v3035 = vadd.f32 %v2996, %v3009
      %v3036 = vadd.f32 %v2997, %v3009
      %v3037 = vadd.f32 %v2998, %v3009
      %v3038 = vadd.f32 %v2999, %v3009
      %v3039 = vadd.f32 %v3000, %v3009
      %v3040 = vadd.f32 %v3001, %v3009
      %v3041 = vadd.f32 %v3002, %v3009
      %v3042 = vadd.f32 %v3003, %v3009
      %v3043 = vmax.f32 %v3011, 0.0
      %v3044 = vmax.f32 %v3012, 0.0
      %v3045 = vmax.f32 %v3013, 0.0
      %v3046 = vmax.f32 %v3014, 0.0
      %v3047 = vmax.f32 %v3015, 0.0
      %v3048 = vmax.f32 %v3016, 0.0
      %v3049 = vmax.f32 %v3017, 0.0
      %v3050 = vmax.f32 %v3018, 0.0
      %v3051 = vmax.f32 %v3019, 0.0
      %v3052 = vmax.f32 %v3020, 0.0
      %v3053 = vmax.f32 %v3021, 0.0
      %v3054 = vmax.f32 %v3022, 0.0
      %v3055 = vmax.f32 %v3023, 0.0
      %v3056 = vmax.f32 %v3024, 0.0
      %v3057 = vmax.f32 %v3025, 0.0
      %v3058 = vmax.f32 %v3026, 0.0
      %v3059 = vmax.f32 %v3027, 0.0
      %v3060 = vmax.f32 %v3028, 0.0
      %v3061 = vmax.f32 %v3029, 0.0
      %v3062 = vmax.f32 %v3030, 0.0
      %v3063 = vmax.f32 %v3031, 0.0
      %v3064 = vmax.f32 %v3032, 0.0
      %v3065 = vmax.f32 %v3033, 0.0
      %v3066 = vmax.f32 %v3034, 0.0
      %v3067 = vmax.f32 %v3035, 0.0
      %v3068 = vmax.f32 %v3036, 0.0
      %v3069 = vmax.f32 %v3037, 0.0
      %v3070 = vmax.f32 %v3038, 0.0
      %v3071 = vmax.f32 %v3039, 0.0
      %v3072 = vmax.f32 %v3040, 0.0
      %v3073 = vmax.f32 %v3041, 0.0
      %v3074 = vmax.f32 %v3042, 0.0
      %v3075 = vmin.f32 %v3043, 6.0
      %v3076 = vmin.f32 %v3044, 6.0
      %v3077 = vmin.f32 %v3045, 6.0
      %v3078 = vmin.f32 %v3046, 6.0
      %v3079 = vmin.f32 %v3047, 6.0
      %v3080 = vmin.f32 %v3048, 6.0
      %v3081 = vmin.f32 %v3049, 6.0
      %v3082 = vmin.f32 %v3050, 6.0
      %v3083 = vmin.f32 %v3051, 6.0
      %v3084 = vmin.f32 %v3052, 6.0
      %v3085 = vmin.f32 %v3053, 6.0
      %v3086 = vmin.f32 %v3054, 6.0
      %v3087 = vmin.f32 %v3055, 6.0
      %v3088 = vmin.f32 %v3056, 6.0
      %v3089 = vmin.f32 %v3057, 6.0
      %v3090 = vmin.f32 %v3058, 6.0
      %v3091 = vmin.f32 %v3059, 6.0
      %v3092 = vmin.f32 %v3060, 6.0
      %v3093 = vmin.f32 %v3061, 6.0
      %v3094 = vmin.f32 %v3062, 6.0
      %v3095 = vmin.f32 %v3063, 6.0
      %v3096 = vmin.f32 %v3064, 6.0
      %v3097 = vmin.f32 %v3065, 6.0
      %v3098 = vmin.f32 %v3066, 6.0
      %v3099 = vmin.f32 %v3067, 6.0
      %v3100 = vmin.f32 %v3068, 6.0
      %v3101 = vmin.f32 %v3069, 6.0
      %v3102 = vmin.f32 %v3070, 6.0
      %v3103 = vmin.f32 %v3071, 6.0
      %v3104 = vmin.f32 %v3072, 6.0
      %v3105 = vmin.f32 %v3073, 6.0
      %v3106 = vmin.f32 %v3074, 6.0
      %v3107 = vld [vmem:[%s5] sm:$0xff]
      %v3108 = vld [vmem:[%s5 + $0x8] sm:$0xff]
      %v3109 = vld [vmem:[%s5 + $0x10] sm:$0xff]
      %v3110 = vld [vmem:[%s6] sm:$0x1]
      %v3112 = vlaneseq
      %v3113 = vshrl.u32 %v3112, 7
      %v3114 = vsub.s32 0, %v3113
      %v3115 = vrot.slane %v3110, %v3114
      %vm3117 = vcmask 195584
      %v3119 = vsel %vm3117, %v3075, 0
      %v3122 = vsel %vm3117, %v3076, 0
      %v3125 = vsel %vm3117, %v3077, 0
      %v3128 = vsel %vm3117, %v3078, 0
      %v3131 = vsel %vm3117, %v3079, 0
      %v3134 = vsel %vm3117, %v3080, 0
      %v3137 = vsel %vm3117, %v3081, 0
      %v3140 = vsel %vm3117, %v3082, 0
      %v3143 = vsel %vm3117, %v3083, 0
      %v3146 = vsel %vm3117, %v3084, 0
      %v3149 = vsel %vm3117, %v3085, 0
      %v3152 = vsel %vm3117, %v3086, 0
      %v3155 = vsel %vm3117, %v3087, 0
      %v3158 = vsel %vm3117, %v3088, 0
      %v3161 = vsel %vm3117, %v3089, 0
      %v3164 = vsel %vm3117, %v3090, 0
      %v3167 = vsel %vm3117, %v3091, 0
      %v3170 = vsel %vm3117, %v3092, 0
      %v3173 = vsel %vm3117, %v3093, 0
      %v3176 = vsel %vm3117, %v3094, 0
      %v3179 = vsel %vm3117, %v3095, 0
      %v3182 = vsel %vm3117, %v3096, 0
      %v3185 = vsel %vm3117, %v3097, 0
      %v3188 = vsel %vm3117, %v3098, 0
      %v3191 = vsel %vm3117, %v3099, 0
      %v3194 = vsel %vm3117, %v3100, 0
      %v3197 = vsel %vm3117, %v3101, 0
      %v3200 = vsel %vm3117, %v3102, 0
      %v3203 = vsel %vm3117, %v3103, 0
      %v3206 = vsel %vm3117, %v3104, 0
      %v3209 = vsel %vm3117, %v3105, 0
      %v3212 = vsel %vm3117, %v3106, 0
      %3214 = vmatprep.subr.mxu0 0.0
      %3215 = vmatpush1.msra.mxu0 %v3107
      %3216 = vmatprep.subr.mxu0 0.0
      %3217 = vmatpush1.msra.mxu0 %v3108
      %3218 = vmatprep.subr.mxu0 0.0
      %3219 = vmatpush1.msra.mxu0 %v3109
      %3220 = vmatprep.subr.mxu0 0.0
      %3221 = vmatpush1.msra.mxu0 0.0
      %3222 = vmatprep.subr.mxu0 0.0
      %3223 = vmatpush1.msra.mxu0 0.0
      %3224 = vmatprep.subr.mxu0 0.0
      %3225 = vmatpush1.msra.mxu0 0.0
      %3226 = vmatprep.subr.mxu0 0.0
      %3227 = vmatpush1.msra.mxu0 0.0
      %3228 = vmatprep.subr.mxu0 0.0
      %3229 = vmatpush1.msra.mxu0 0.0
      %3230 = vmatprep.subr.mxu0 0.0
      %3231 = vmatpush1.msra.mxu0 0.0
      %3232 = vmatprep.subr.mxu0 0.0
      %3233 = vmatpush1.msra.mxu0 0.0
      %3234 = vmatprep.subr.mxu0 0.0
      %3235 = vmatpush1.msra.mxu0 0.0
      %3236 = vmatprep.subr.mxu0 0.0
      %3237 = vmatpush1.msra.mxu0 0.0
      %3238 = vmatprep.subr.mxu0 0.0
      %3239 = vmatpush1.msra.mxu0 0.0
      %3240 = vmatprep.subr.mxu0 0.0
      %3241 = vmatpush1.msra.mxu0 0.0
      %3242 = vmatprep.subr.mxu0 0.0
      %3243 = vmatpush1.msra.mxu0 0.0
      %3244 = vmatprep.subr.mxu0 0.0
      %3245 = vmatpush1.msra.mxu0 0.0
      %3246 = vmatprep.subr.mxu0 0.0
      %3247 = vmatpush1.msra.mxu0 0.0
      %3248 = vmatprep.subr.mxu0 0.0
      %3249 = vmatpush1.msra.mxu0 0.0
      %3250 = vmatprep.subr.mxu0 0.0
      %3251 = vmatpush1.msra.mxu0 0.0
      %3252 = vmatprep.subr.mxu0 0.0
      %3253 = vmatpush1.msra.mxu0 0.0
      %3254 = vmatprep.subr.mxu0 0.0
      %3255 = vmatpush1.msra.mxu0 0.0
      %3256 = vmatprep.subr.mxu0 0.0
      %3257 = vmatpush1.msra.mxu0 0.0
      %3258 = vmatprep.subr.mxu0 0.0
      %3259 = vmatpush1.msra.mxu0 0.0
      %3260 = vmatprep.subr.mxu0 0.0
      %3261 = vmatpush1.msra.mxu0 0.0
      %3262 = vmatprep.subr.mxu0 0.0
      %3263 = vmatpush1.msra.mxu0 0.0
      %3264 = vmatprep.subr.mxu0 0.0
      %3265 = vmatpush1.msra.mxu0 0.0
      %3266 = vmatprep.subr.mxu0 0.0
      %3267 = vmatpush1.msra.mxu0 0.0
      %3268 = vmatprep.subr.mxu0 0.0
      %3269 = vmatpush1.msra.mxu0 0.0
      %3270 = vmatprep.subr.mxu0 0.0
      %3271 = vmatpush1.msra.mxu0 0.0
      %3272 = vmatprep.subr.mxu0 0.0
      %3273 = vmatpush1.msra.mxu0 0.0
      %3274 = vmatprep.subr.mxu0 0.0
      %3275 = vmatpush1.msra.mxu0 0.0
      %3276 = vmatprep.subr.mxu0 0.0
      %3277 = vmatpush1.msra.mxu0 0.0
      %3278 = vmatprep.mubr.f32.mxu0 0.0
      %3279 = vmatmul.mubr.f32.gmra.mrb[0].mxu0 %v3119
      %v3280 = vpop.f32.mrb[0].mxu0
      %v3281 = vadd.f32 %v3115, %v3280
      %v3282 = vpop.f32.mrb[0].mxu0
      %3283 = vmatprep.mubr.f32.mxu0 0.0
      %3284 = vmatmul.mubr.f32.gmra.mrb[0].mxu0 %v3122
      %v3285 = vpop.f32.mrb[0].mxu0
      %v3286 = vadd.f32 %v3115, %v3285
      %v3287 = vpop.f32.mrb[0].mxu0
      %3288 = vmatprep.mubr.f32.mxu0 0.0
      %3289 = vmatmul.mubr.f32.gmra.mrb[0].mxu0 %v3125
      %v3290 = vpop.f32.mrb[0].mxu0
      %v3291 = vadd.f32 %v3115, %v3290
      %v3292 = vpop.f32.mrb[0].mxu0
      %3293 = vmatprep.mubr.f32.mxu0 0.0
      %3294 = vmatmul.mubr.f32.gmra.mrb[0].mxu0 %v3128
      %v3295 = vpop.f32.mrb[0].mxu0
      %v3296 = vadd.f32 %v3115, %v3295
      %v3297 = vpop.f32.mrb[0].mxu0
      %3298 = vmatprep.mubr.f32.mxu0 0.0
      %3299 = vmatmul.mubr.f32.gmra.mrb[0].mxu0 %v3131
      %v3300 = vpop.f32.mrb[0].mxu0
      %v3301 = vadd.f32 %v3115, %v3300
      %v3302 = vpop.f32.mrb[0].mxu0
      %3303 = vmatprep.mubr.f32.mxu0 0.0
      %3304 = vmatmul.mubr.f32.gmra.mrb[0].mxu0 %v3134
      %v3305 = vpop.f32.mrb[0].mxu0
      %v3306 = vadd.f32 %v3115, %v3305
      %v3307 = vpop.f32.mrb[0].mxu0
      %3308 = vmatprep.mubr.f32.mxu0 0.0
      %3309 = vmatmul.mubr.f32.gmra.mrb[0].mxu0 %v3137
      %v3310 = vpop.f32.mrb[0].mxu0
      %v3311 = vadd.f32 %v3115, %v3310
      %v3312 = vpop.f32.mrb[0].mxu0
      %3313 = vmatprep.mubr.f32.mxu0 0.0
      %3314 = vmatmul.mubr.f32.gmra.mrb[0].mxu0 %v3140
      %v3315 = vpop.f32.mrb[0].mxu0
      %v3316 = vadd.f32 %v3115, %v3315
      %v3317 = vpop.f32.mrb[0].mxu0
      %3318 = vmatprep.mubr.f32.mxu0 0.0
      %3319 = vmatmul.mubr.f32.gmra.mrb[0].mxu0 %v3143
      %v3320 = vpop.f32.mrb[0].mxu0
      %v3321 = vadd.f32 %v3115, %v3320
      %v3322 = vpop.f32.mrb[0].mxu0
      %3323 = vmatprep.mubr.f32.mxu0 0.0
      %3324 = vmatmul.mubr.f32.gmra.mrb[0].mxu0 %v3146
      %v3325 = vpop.f32.mrb[0].mxu0
      %v3326 = vadd.f32 %v3115, %v3325
      %v3327 = vpop.f32.mrb[0].mxu0
      %3328 = vmatprep.mubr.f32.mxu0 0.0
      %3329 = vmatmul.mubr.f32.gmra.mrb[0].mxu0 %v3149
      %v3330 = vpop.f32.mrb[0].mxu0
      %v3331 = vadd.f32 %v3115, %v3330
      %v3332 = vpop.f32.mrb[0].mxu0
      %3333 = vmatprep.mubr.f32.mxu0 0.0
      %3334 = vmatmul.mubr.f32.gmra.mrb[0].mxu0 %v3152
      %v3335 = vpop.f32.mrb[0].mxu0
      %v3336 = vadd.f32 %v3115, %v3335
      %v3337 = vpop.f32.mrb[0].mxu0
      %3338 = vmatprep.mubr.f32.mxu0 0.0
      %3339 = vmatmul.mubr.f32.gmra.mrb[0].mxu0 %v3155
      %v3340 = vpop.f32.mrb[0].mxu0
      %v3341 = vadd.f32 %v3115, %v3340
      %v3342 = vpop.f32.mrb[0].mxu0
      %3343 = vmatprep.mubr.f32.mxu0 0.0
      %3344 = vmatmul.mubr.f32.gmra.mrb[0].mxu0 %v3158
      %v3345 = vpop.f32.mrb[0].mxu0
      %v3346 = vadd.f32 %v3115, %v3345
      %v3347 = vpop.f32.mrb[0].mxu0
      %3348 = vmatprep.mubr.f32.mxu0 0.0
      %3349 = vmatmul.mubr.f32.gmra.mrb[0].mxu0 %v3161
      %v3350 = vpop.f32.mrb[0].mxu0
      %v3351 = vadd.f32 %v3115, %v3350
      %v3352 = vpop.f32.mrb[0].mxu0
      %3353 = vmatprep.mubr.f32.mxu0 0.0
      %3354 = vmatmul.mubr.f32.gmra.mrb[0].mxu0 %v3164
      %v3355 = vpop.f32.mrb[0].mxu0
      %v3356 = vadd.f32 %v3115, %v3355
      %v3357 = vpop.f32.mrb[0].mxu0
      %3358 = vmatprep.mubr.f32.mxu0 0.0
      %3359 = vmatmul.mubr.f32.gmra.mrb[0].mxu0 %v3167
      %v3360 = vpop.f32.mrb[0].mxu0
      %v3361 = vadd.f32 %v3115, %v3360
      %v3362 = vpop.f32.mrb[0].mxu0
      %3363 = vmatprep.mubr.f32.mxu0 0.0
      %3364 = vmatmul.mubr.f32.gmra.mrb[0].mxu0 %v3170
      %v3365 = vpop.f32.mrb[0].mxu0
      %v3366 = vadd.f32 %v3115, %v3365
      %v3367 = vpop.f32.mrb[0].mxu0
      %3368 = vmatprep.mubr.f32.mxu0 0.0
      %3369 = vmatmul.mubr.f32.gmra.mrb[0].mxu0 %v3173
      %v3370 = vpop.f32.mrb[0].mxu0
      %v3371 = vadd.f32 %v3115, %v3370
      %v3372 = vpop.f32.mrb[0].mxu0
      %3373 = vmatprep.mubr.f32.mxu0 0.0
      %3374 = vmatmul.mubr.f32.gmra.mrb[0].mxu0 %v3176
      %v3375 = vpop.f32.mrb[0].mxu0
      %v3376 = vadd.f32 %v3115, %v3375
      %v3377 = vpop.f32.mrb[0].mxu0
      %3378 = vmatprep.mubr.f32.mxu0 0.0
      %3379 = vmatmul.mubr.f32.gmra.mrb[0].mxu0 %v3179
      %v3380 = vpop.f32.mrb[0].mxu0
      %v3381 = vadd.f32 %v3115, %v3380
      %v3382 = vpop.f32.mrb[0].mxu0
      %3383 = vmatprep.mubr.f32.mxu0 0.0
      %3384 = vmatmul.mubr.f32.gmra.mrb[0].mxu0 %v3182
      %v3385 = vpop.f32.mrb[0].mxu0
      %v3386 = vadd.f32 %v3115, %v3385
      %v3387 = vpop.f32.mrb[0].mxu0
      %3388 = vmatprep.mubr.f32.mxu0 0.0
      %3389 = vmatmul.mubr.f32.gmra.mrb[0].mxu0 %v3185
      %v3390 = vpop.f32.mrb[0].mxu0
      %v3391 = vadd.f32 %v3115, %v3390
      %v3392 = vpop.f32.mrb[0].mxu0
      %3393 = vmatprep.mubr.f32.mxu0 0.0
      %3394 = vmatmul.mubr.f32.gmra.mrb[0].mxu0 %v3188
      %v3395 = vpop.f32.mrb[0].mxu0
      %v3396 = vadd.f32 %v3115, %v3395
      %v3397 = vpop.f32.mrb[0].mxu0
      %3398 = vmatprep.mubr.f32.mxu0 0.0
      %3399 = vmatmul.mubr.f32.gmra.mrb[0].mxu0 %v3191
      %v3400 = vpop.f32.mrb[0].mxu0
      %v3401 = vadd.f32 %v3115, %v3400
      %v3402 = vpop.f32.mrb[0].mxu0
      %3403 = vmatprep.mubr.f32.mxu0 0.0
      %3404 = vmatmul.mubr.f32.gmra.mrb[0].mxu0 %v3194
      %v3405 = vpop.f32.mrb[0].mxu0
      %v3406 = vadd.f32 %v3115, %v3405
      %v3407 = vpop.f32.mrb[0].mxu0
      %3408 = vmatprep.mubr.f32.mxu0 0.0
      %3409 = vmatmul.mubr.f32.gmra.mrb[0].mxu0 %v3197
      %v3410 = vpop.f32.mrb[0].mxu0
      %v3411 = vadd.f32 %v3115, %v3410
      %v3412 = vpop.f32.mrb[0].mxu0
      %3413 = vmatprep.mubr.f32.mxu0 0.0
      %3414 = vmatmul.mubr.f32.gmra.mrb[0].mxu0 %v3200
      %v3415 = vpop.f32.mrb[0].mxu0
      %v3416 = vadd.f32 %v3115, %v3415
      %v3417 = vpop.f32.mrb[0].mxu0
      %3418 = vmatprep.mubr.f32.mxu0 0.0
      %3419 = vmatmul.mubr.f32.gmra.mrb[0].mxu0 %v3203
      %v3420 = vpop.f32.mrb[0].mxu0
      %v3421 = vadd.f32 %v3115, %v3420
      %v3422 = vpop.f32.mrb[0].mxu0
      %3423 = vmatprep.mubr.f32.mxu0 0.0
      %3424 = vmatmul.mubr.f32.gmra.mrb[0].mxu0 %v3206
      %v3425 = vpop.f32.mrb[0].mxu0
      %v3426 = vadd.f32 %v3115, %v3425
      %v3427 = vpop.f32.mrb[0].mxu0
      %3428 = vmatprep.mubr.f32.mxu0 0.0
      %3429 = vmatmul.mubr.f32.gmra.mrb[0].mxu0 %v3209
      %v3430 = vpop.f32.mrb[0].mxu0
      %v3431 = vadd.f32 %v3115, %v3430
      %v3432 = vpop.f32.mrb[0].mxu0
      %3433 = vmatprep.mubr.f32.mxu0 0.0
      %3434 = vmatmul.mubr.f32.gmra.mrb[0].mxu0 %v3212
      %v3435 = vpop.f32.mrb[0].mxu0
      %v3436 = vadd.f32 %v3115, %v3435
      %v3437 = vpop.f32.mrb[0].mxu0
      %3438 = vdwg.mxu0
      %v3439 = vrot.slane %v310, 1
      %v3440 = vrot.slane %v311, 1
      %v3441 = vsel %vm1502, %v3439, %v3440
      %v3442 = vrot.slane %v312, 1
      %v3443 = vsel %vm1502, %v3440, %v3442
      %v3444 = vrot.slane %v313, 1
      %v3445 = vrot.slane %v314, 1
      %v3446 = vsel %vm1502, %v3444, %v3445
      %v3447 = vrot.slane %v315, 1
      %v3448 = vsel %vm1502, %v3445, %v3447
      %v3449 = vrot.slane %v316, 1
      %v3450 = vrot.slane %v317, 1
      %v3451 = vsel %vm1502, %v3449, %v3450
      %v3452 = vrot.slane %v318, 1
      %v3453 = vsel %vm1502, %v3450, %v3452
      %v3454 = vrot.slane %v319, 1
      %v3455 = vrot.slane %v320, 1
      %v3456 = vsel %vm1502, %v3454, %v3455
      %v3457 = vrot.slane %v321, 1
      %v3458 = vsel %vm1502, %v3455, %v3457
      %v3459 = vrot.slane %v322, 1
      %v3460 = vrot.slane %v323, 1
      %v3461 = vsel %vm1502, %v3459, %v3460
      %v3462 = vrot.slane %v324, 1
      %v3463 = vsel %vm1502, %v3460, %v3462
      %v3464 = vrot.slane %v325, 1
      %v3465 = vrot.slane %v326, 1
      %v3466 = vsel %vm1502, %v3464, %v3465
      %v3467 = vrot.slane %v327, 1
      %v3468 = vsel %vm1502, %v3465, %v3467
      %v3469 = vrot.slane %v328, 1
      %v3470 = vrot.slane %v329, 1
      %v3471 = vsel %vm1502, %v3469, %v3470
      %v3472 = vrot.slane %v330, 1
      %v3473 = vsel %vm1502, %v3470, %v3472
      %v3474 = vrot.slane %v331, 1
      %v3475 = vrot.slane %v332, 1
      %v3476 = vsel %vm1502, %v3474, %v3475
      %v3477 = vrot.slane %v333, 1
      %v3478 = vsel %vm1502, %v3475, %v3477
      %v3479 = vrot.slane %v334, 1
      %v3480 = vrot.slane %v335, 1
      %v3481 = vsel %vm1502, %v3479, %v3480
      %v3482 = vrot.slane %v336, 1
      %v3483 = vsel %vm1502, %v3480, %v3482
      %v3484 = vrot.slane %v337, 1
      %v3485 = vrot.slane %v338, 1
      %v3486 = vsel %vm1502, %v3484, %v3485
      %v3487 = vrot.slane %v339, 1
      %v3488 = vsel %vm1502, %v3485, %v3487
      %v3489 = vrot.slane %v340, 1
      %v3490 = vrot.slane %v341, 1
      %v3491 = vsel %vm1502, %v3489, %v3490
      %v3492 = vrot.slane %v342, 1
      %v3493 = vsel %vm1502, %v3490, %v3492
      %v3494 = vrot.slane %v343, 1
      %v3495 = vrot.slane %v344, 1
      %v3496 = vsel %vm1502, %v3494, %v3495
      %v3497 = vrot.slane %v345, 1
      %v3498 = vsel %vm1502, %v3495, %v3497
      %v3499 = vrot.slane %v346, 1
      %v3500 = vrot.slane %v347, 1
      %v3501 = vsel %vm1502, %v3499, %v3500
      %v3502 = vrot.slane %v348, 1
      %v3503 = vsel %vm1502, %v3500, %v3502
      %v3504 = vrot.slane %v349, 1
      %v3505 = vrot.slane %v350, 1
      %v3506 = vsel %vm1502, %v3504, %v3505
      %v3507 = vrot.slane %v351, 1
      %v3508 = vsel %vm1502, %v3505, %v3507
      %v3509 = vrot.slane %v352, 1
      %v3510 = vrot.slane %v353, 1
      %v3511 = vsel %vm1502, %v3509, %v3510
      %v3512 = vrot.slane %v354, 1
      %v3513 = vsel %vm1502, %v3510, %v3512
      %v3514 = vrot.slane %v355, 1
      %v3515 = vrot.slane %v356, 1
      %v3516 = vsel %vm1502, %v3514, %v3515
      %v3517 = vrot.slane %v357, 1
      %v3518 = vsel %vm1502, %v3515, %v3517
      %v3551 = vadd.f32 %v3281, %v3441
      %v3552 = vadd.f32 %v3286, %v3443
      %v3553 = vadd.f32 %v3291, %v3446
      %v3554 = vadd.f32 %v3296, %v3448
      %v3555 = vadd.f32 %v3301, %v3451
      %v3556 = vadd.f32 %v3306, %v3453
      %v3557 = vadd.f32 %v3311, %v3456
      %v3558 = vadd.f32 %v3316, %v3458
      %v3559 = vadd.f32 %v3321, %v3461
      %v3560 = vadd.f32 %v3326, %v3463
      %v3561 = vadd.f32 %v3331, %v3466
      %v3562 = vadd.f32 %v3336, %v3468
      %v3563 = vadd.f32 %v3341, %v3471
      %v3564 = vadd.f32 %v3346, %v3473
      %v3565 = vadd.f32 %v3351, %v3476
      %v3566 = vadd.f32 %v3356, %v3478
      %v3567 = vadd.f32 %v3361, %v3481
      %v3568 = vadd.f32 %v3366, %v3483
      %v3569 = vadd.f32 %v3371, %v3486
      %v3570 = vadd.f32 %v3376, %v3488
      %v3571 = vadd.f32 %v3381, %v3491
      %v3572 = vadd.f32 %v3386, %v3493
      %v3573 = vadd.f32 %v3391, %v3496
      %v3574 = vadd.f32 %v3396, %v3498
      %v3575 = vadd.f32 %v3401, %v3501
      %v3576 = vadd.f32 %v3406, %v3503
      %v3577 = vadd.f32 %v3411, %v3506
      %v3578 = vadd.f32 %v3416, %v3508
      %v3579 = vadd.f32 %v3421, %v3511
      %v3580 = vadd.f32 %v3426, %v3513
      %v3581 = vadd.f32 %v3431, %v3516
      %v3582 = vadd.f32 %v3436, %v3518
      %3583 = vst.msk [vmem:[%s302] sm:$0xff] %vm369, %v3551
      %3584 = vst.msk [vmem:[%s302 + $0x8] sm:$0xff] %vm369, %v3552
      %3585 = vst.msk [vmem:[%s302 + $0x10] sm:$0xff] %vm369, %v3553
      %3586 = vst.msk [vmem:[%s302 + $0x18] sm:$0xff] %vm369, %v3554
      %3587 = vst.msk [vmem:[%s302 + $0x20] sm:$0xff] %vm369, %v3555
      %3588 = vst.msk [vmem:[%s302 + $0x28] sm:$0xff] %vm369, %v3556
      %3589 = vst.msk [vmem:[%s302 + $0x30] sm:$0xff] %vm369, %v3557
      %3590 = vst.msk [vmem:[%s302 + $0x38] sm:$0xff] %vm369, %v3558
      %3591 = vst.msk [vmem:[%s302 + $0x40] sm:$0xff] %vm369, %v3559
      %3592 = vst.msk [vmem:[%s302 + $0x48] sm:$0xff] %vm369, %v3560
      %3593 = vst.msk [vmem:[%s302 + $0x50] sm:$0xff] %vm369, %v3561
      %3594 = vst.msk [vmem:[%s302 + $0x58] sm:$0xff] %vm369, %v3562
      %3595 = vst.msk [vmem:[%s302 + $0x60] sm:$0xff] %vm369, %v3563
      %3596 = vst.msk [vmem:[%s302 + $0x68] sm:$0xff] %vm369, %v3564
      %3597 = vst.msk [vmem:[%s302 + $0x70] sm:$0xff] %vm369, %v3565
      %3598 = vst.msk [vmem:[%s302 + $0x78] sm:$0xff] %vm369, %v3566
      %3599 = vst.msk [vmem:[%s302 + $0x80] sm:$0xff] %vm369, %v3567
      %3600 = vst.msk [vmem:[%s302 + $0x88] sm:$0xff] %vm369, %v3568
      %3601 = vst.msk [vmem:[%s302 + $0x90] sm:$0xff] %vm369, %v3569
      %3602 = vst.msk [vmem:[%s302 + $0x98] sm:$0xff] %vm369, %v3570
      %3603 = vst.msk [vmem:[%s302 + $0xa0] sm:$0xff] %vm369, %v3571
      %3604 = vst.msk [vmem:[%s302 + $0xa8] sm:$0xff] %vm369, %v3572
      %3605 = vst.msk [vmem:[%s302 + $0xb0] sm:$0xff] %vm369, %v3573
      %3606 = vst.msk [vmem:[%s302 + $0xb8] sm:$0xff] %vm369, %v3574
      %3607 = vst.msk [vmem:[%s302 + $0xc0] sm:$0xff] %vm369, %v3575
      %3608 = vst.msk [vmem:[%s302 + $0xc8] sm:$0xff] %vm369, %v3576
      %3609 = vst.msk [vmem:[%s302 + $0xd0] sm:$0xff] %vm369, %v3577
      %3610 = vst.msk [vmem:[%s302 + $0xd8] sm:$0xff] %vm369, %v3578
      %3611 = vst.msk [vmem:[%s302 + $0xe0] sm:$0xff] %vm369, %v3579
      %3612 = vst.msk [vmem:[%s302 + $0xe8] sm:$0xff] %vm369, %v3580
      %3613 = vst.msk [vmem:[%s302 + $0xf0] sm:$0xff] %vm369, %v3581
      %3614 = vst.msk [vmem:[%s302 + $0xf8] sm:$0xff] %vm369, %v3582
      %s3615 = smul.u32 16, %s23
      %p3616 = scmp.lt.s32.totalorder %s22, 1
      %s3617 = scalar_select %p3616, %s22, 1
      %p3618 = scmp.lt.s32.totalorder %s3615, 15
      %s3619 = scalar_select %p3618, %s3615, 15
      %s3620 = smul.addr %s3619, 2
      %s3621 = smul.addr %s3617, 32
      %s3622 = sadd.s32 %s3620, %s3621
      %s3623 = smul.addr %s3622, 8
      %s3624 = scalar_lea.vmem %s7, %s3623
      // Predicated region
      $region49: #{tpu_custom_call.1} parent=47 // pred_check
        %p3625 = pneg %p202
      $region50: #{tpu_custom_call.1} parent=47 // pred_check_branch
        %3627 = sbr.rel (%p3625) target = $region52
      $region51: #{tpu_custom_call.1} parent=47 // pred_region
        %s3628 = smul.u32 16, %s23
      $region52: #{tpu_custom_call.1} parent=47 // pred_fallthru
        _
    $region48: #{tpu_custom_call.1} parent=5 // pred_fallthru
      _
    %p3629 = scmp.le.s32.totalorder 2, %s13
    // Predicated region
    $region53: #{tpu_custom_call.1} parent=5 // pred_check
      %p3630 = pneg %p3629
    $region54: #{tpu_custom_call.1} parent=5 // pred_check_branch
      %3632 = sbr.rel (%p3630) target = $region56
    $region55: #{tpu_custom_call.1} parent=5 // pred_region
      %s3633 = ssub.s32 %s13, 2
      // Predicated region
      $region57: #{tpu_custom_call.1} parent=55 // pred_check
        %p3634 = pneg %p208
      $region58: #{tpu_custom_call.1} parent=55 // pred_check_branch
        %3636 = sbr.rel (%p3634) target = $region60
      $region59: #{tpu_custom_call.1} parent=55 // pred_region
        %s3637 = smul.u32 16, %s25
        %p3638 = scmp.lt.s32.totalorder %s24, 1
        %s3639 = scalar_select %p3638, %s24, 1
        %p3640 = scmp.lt.s32.totalorder %s3637, 15
        %s3641 = scalar_select %p3640, %s3637, 15
        %s3642 = smul.addr %s3641, 2
        %s3643 = smul.addr %s3639, 32
        %s3644 = sadd.s32 %s3642, %s3643
        %s3645 = smul.addr %s3644, 8
        %s3646 = scalar_lea.vmem %s7, %s3645
      $region60: #{tpu_custom_call.1} parent=55 // pred_fallthru
        _
    $region56: #{tpu_custom_call.1} parent=5 // pred_fallthru
      _
  $region6: #{tpu_custom_call.1} parent=0 // loop_footer
    %s17 = sadd.s32 1, %s13
  $region7: #{tpu_custom_call.1} parent=0 // loop_footer_branch
    %12 = sbr.rel target = $region3
  $region8: #{tpu_custom_call.1} parent=0 // loop_exit
    _

</llo_original>
